<compile_context>
chip_gen: v7x
topology: tpu7x:2x2x1
jax: 0.10.0
libtpu: 0.0.40
codegen_flags: <defaults>
</compile_context>

<pallas_src>
import functools
import math

import numpy as np
import jax
import jax.numpy as jnp
from jax.experimental import pallas as pl
from jax.experimental.pallas import tpu as pltpu


# ----------------------------------------------------------------------------
# Pallas kernel: T_BLK AttnEncoderCell steps per grid iteration
# ----------------------------------------------------------------------------
def _attn_encoder_kernel(
    fs_ref, ms_ref,                               # streamed per-block inputs
    wa_ref, wh_ref, v_ref,                        # attention params
    wih_ref, whh_ref, bg_ref,                     # per-gate shared LSTMCell params
    wlt_ref, blt_ref,                             # output linear (lt)
    out_ref,                                      # packed [T_BLK, B, OUT_LANES]
    h_scratch, c_scratch,                         # [n_layers, B, H] persistent state
    *, n_layers, hidden_size, prior_gamma, t_blk, vocab, n_spatial, out_lanes,
):
    H, V, N = hidden_size, vocab, n_spatial

    @pl.when(pl.program_id(0) == 0)
    def _init():  # init_lstm_hidden -> zeros
        h_scratch[...] = jnp.zeros_like(h_scratch)
        c_scratch[...] = jnp.zeros_like(c_scratch)

    # loop-invariant (resident) parameters: load once per grid step
    wa = wa_ref[...]                       # (A, H) bf16
    wh = wh_ref[...]                       # (H, H) f32
    v_b = v_ref[...].reshape(1, 1, H)      # lane-major broadcast, no relayout
    wlt = wlt_ref[...]                     # (H, V) f32
    blt = blt_ref[...]                     # (1, V) f32

    lane_pad = out_lanes - (2 * V + N)

    for ti in range(t_blk):                # unrolled; recurrent state in scratch
        attn = fs_ref[ti]                  # (B, N, A) bf16
        prior = ms_ref[ti]                 # (B, N)    f32
        B, _, A = attn.shape

        # prev_out = hidden[0][-1]  (last layer's h from previous step)
        prev_out = h_scratch[n_layers - 1]                               # (B, H)

        # attention logits: bf16 MXU matmul with f32 accumulation
        aw = jnp.dot(attn.reshape(B * N, A), wa,
                     preferred_element_type=jnp.float32).reshape(B, N, H)
        aw = aw + jnp.dot(prev_out, wh,
                          preferred_element_type=jnp.float32)[:, None, :]
        scores = jnp.sum(jnp.tanh(aw) * v_b, axis=-1)                    # (B, N)

        # softmax over the spatial axis (dim 0 in the PyTorch [N, B] layout)
        scores = scores - jnp.max(scores, axis=1, keepdims=True)
        e = jnp.exp(scores)
        sm = e / jnp.sum(e, axis=1, keepdims=True)

        # multiply by prior_map ** gamma (these are the returned "betas")
        if prior_gamma == 1.0:
            pw = prior
        else:
            # torch.pow(0, g > 0) == 0; guard the exp/log lowering against NaN
            pw = jnp.where(prior > 0.0,
                           jnp.exp(prior_gamma *
                                   jnp.log(jnp.maximum(prior, 1e-30))),
                           0.0)
        w = sm * pw                                                      # (B, N)

        # context vector on the MXU: s = (w @ attn) / clamp(sum(w), 1e-5)
        denom = jnp.maximum(jnp.sum(w, axis=1, keepdims=True), 1e-5)     # (B, 1)
        s = jnp.einsum("bkn,bna->bka", w[:, None, :],
                       attn.astype(jnp.float32),
                       preferred_element_type=jnp.float32)[:, 0, :] / denom

        # multi-layer LSTM: one shared nn.LSTMCell applied per layer (as in torch)
        output = s
        for layer in range(n_layers):
            h_prev = h_scratch[layer]
            c_prev = c_scratch[layer]
            gate_pre = []
            for g in range(4):             # lane-aligned per-gate matmuls (i,f,g,o)
                gate_pre.append(
                    jnp.dot(output, wih_ref[g], preferred_element_type=jnp.float32)
                    + jnp.dot(h_prev, whh_ref[g], preferred_element_type=jnp.float32)
                    + bg_ref[g])
            i_g = jax.nn.sigmoid(gate_pre[0])
            f_g = jax.nn.sigmoid(gate_pre[1])
            g_g = jnp.tanh(gate_pre[2])
            o_g = jax.nn.sigmoid(gate_pre[3])
            c_new = f_g * c_prev + i_g * g_g
            h_new = o_g * jnp.tanh(c_new)
            h_scratch[layer] = h_new
            c_scratch[layer] = c_new
            output = h_new

        # output linear (lt) + softmax classifier
        logits = jnp.dot(output, wlt, preferred_element_type=jnp.float32) + blt
        lmax = jnp.max(logits, axis=-1, keepdims=True)
        el = jnp.exp(logits - lmax)
        probs = el / jnp.sum(el, axis=-1, keepdims=True)

        # lane-dense packed store: [logits | probs | betas | zero pad]
        parts = [logits, probs, w]
        if lane_pad > 0:
            parts.append(jnp.zeros((B, lane_pad), jnp.float32))
        out_ref[ti] = jnp.concatenate(parts, axis=-1)


def attn_encoder_forward(Fs_enc, Ms_enc, params, n_layers, hidden_size, prior_gamma,
                         t_blk=4):
    """Fs_enc: [L, B, N, A] f32, Ms_enc: [L, B, N] f32
       -> logits [L,B,V], probs [L,B,V], betas [L,B,N]  (f32)."""
    L, B, N, A = Fs_enc.shape
    H = hidden_size
    assert A == H, "shared LSTMCell requires attn_size == hidden_size"
    V = params["W_lt"].shape[0]

    # ---- host-side parameter prep (layout / dtype) ----
    wa_bf16 = params["Wa"].astype(jnp.bfloat16)                          # (A, H)
    wh = params["Wh"].astype(jnp.float32)                                # (H, H)
    v_row = params["v"].reshape(1, H).astype(jnp.float32)                # lane-major
    w_ih_g = jnp.transpose(params["W_ih"].reshape(4, H, A), (0, 2, 1))   # (4, A, H)
    w_hh_g = jnp.transpose(params["W_hh"].reshape(4, H, H), (0, 2, 1))   # (4, H, H)
    b_g = (params["b_ih"] + params["b_hh"]).reshape(4, 1, H)             # pre-summed
    wlt_t = params["W_lt"].T.astype(jnp.float32)                         # (H, V)
    blt = params["b_lt"].reshape(1, V).astype(jnp.float32)

    # ---- pad time to a multiple of the time block ----
    num_blk = (L + t_blk - 1) // t_blk
    L_pad = num_blk * t_blk
    if L_pad != L:
        Fs_enc = jnp.pad(Fs_enc, ((0, L_pad - L), (0, 0), (0, 0), (0, 0)))
        Ms_enc = jnp.pad(Ms_enc, ((0, L_pad - L), (0, 0), (0, 0)))
    fs_bf16 = Fs_enc.astype(jnp.bfloat16)      # stream features in bf16 (HBM-bound)
    ms_f32 = Ms_enc.astype(jnp.float32)

    out_lanes = ((2 * V + N + 127) // 128) * 128    # lane-dense packed output width

    kernel = functools.partial(
        _attn_encoder_kernel, n_layers=n_layers, hidden_size=H,
        prior_gamma=prior_gamma, t_blk=t_blk, vocab=V, n_spatial=N,
        out_lanes=out_lanes)

    def full(shape):
        return pl.BlockSpec(shape, lambda b, _n=len(shape): (0,) * _n)

    grid_spec = pltpu.PrefetchScalarGridSpec(
        num_scalar_prefetch=0,
        grid=(num_blk,),
        in_specs=[
            pl.BlockSpec((t_blk, B, N, A), lambda b: (b, 0, 0, 0)),
            pl.BlockSpec((t_blk, B, N), lambda b: (b, 0, 0)),
            full((A, H)),          # Wa (bf16)
            full((H, H)),          # Wh
            full((1, H)),          # v (lane-major)
            full((4, A, H)),       # per-gate W_ih^T
            full((4, H, H)),       # per-gate W_hh^T
            full((4, 1, H)),       # per-gate (b_ih + b_hh)
            full((H, V)),          # W_lt^T
            full((1, V)),          # b_lt
        ],
        out_specs=pl.BlockSpec((t_blk, B, out_lanes), lambda b: (b, 0, 0)),
        scratch_shapes=[
            pltpu.VMEM((n_layers, B, H), jnp.float32),   # h state
            pltpu.VMEM((n_layers, B, H), jnp.float32),   # c state
        ],
    )
    packed = pl.pallas_call(
        kernel,
        out_shape=jax.ShapeDtypeStruct((L_pad, B, out_lanes), jnp.float32),
        grid_spec=grid_spec,
        compiler_params=pltpu.CompilerParams(
            dimension_semantics=("arbitrary",)),   # time axis carries LSTM state
    )(fs_bf16, ms_f32, wa_bf16, wh, v_row, w_ih_g, w_hh_g, b_g, wlt_t, blt)

    packed = packed[:L]
    logits = packed[..., :V]
    probs = packed[..., V:2 * V]
    betas = packed[..., 2 * V:2 * V + N]
    return logits, probs, betas


# ----------------------------------------------------------------------------
# Pure-JAX reference of the encoder (same dtype policy; correctness check only)
# ----------------------------------------------------------------------------
def attn_encoder_ref(Fs_enc, Ms_enc, params, n_layers, H, gamma):
    L, B, N, A = Fs_enc.shape
    fb = Fs_enc.astype(jnp.bfloat16)
    wa = params["Wa"].astype(jnp.bfloat16)
    v_row = params["v"].reshape(1, 1, H)
    w_ih_t = params["W_ih"].T
    w_hh_t = params["W_hh"].T
    bias = (params["b_ih"] + params["b_hh"]).reshape(1, 4 * H)
    wlt_t = params["W_lt"].T
    blt = params["b_lt"].reshape(1, -1)

    h = jnp.zeros((n_layers, B, H), jnp.float32)
    c = jnp.zeros((n_layers, B, H), jnp.float32)
    logits_all, probs_all, betas_all = [], [], []
    for t in range(L):
        attn_b, prior = fb[t], Ms_enc[t]
        prev = h[n_layers - 1]
        aw = jnp.dot(attn_b.reshape(B * N, A), wa,
                     preferred_element_type=jnp.float32).reshape(B, N, H) \
             + (prev @ params["Wh"])[:, None, :]
        sc = jnp.sum(jnp.tanh(aw) * v_row, axis=-1)
        sm = jax.nn.softmax(sc, axis=1)
        if gamma == 1.0:
            pw = prior
        else:
            pw = jnp.where(prior > 0.0,
                           jnp.exp(gamma * jnp.log(jnp.maximum(prior, 1e-30))), 0.0)
        wgt = sm * pw
        denom = jnp.maximum(wgt.sum(1, keepdims=True), 1e-5)
        s = jnp.einsum("bn,bna->ba", wgt, attn_b.astype(jnp.float32)) / denom
        out = s
        hs, cs = [], []
        for i in range(n_layers):
            gates = out @ w_ih_t + h[i] @ w_hh_t + bias
            ig = jax.nn.sigmoid(gates[:, :H])
            fg = jax.nn.sigmoid(gates[:, H:2 * H])
            gg = jnp.tanh(gates[:, 2 * H:3 * H])
            og = jax.nn.sigmoid(gates[:, 3 * H:])
            cn = fg * c[i] + ig * gg
            hn = og * jnp.tanh(cn)
            hs.append(hn); cs.append(cn); out = hn
        h, c = jnp.stack(hs), jnp.stack(cs)
        lg = out @ wlt_t + blt
        logits_all.append(lg)
        probs_all.append(jax.nn.softmax(lg, -1))
        betas_all.append(wgt)
    return jnp.stack(logits_all), jnp.stack(probs_all), jnp.stack(betas_all)


# ----------------------------------------------------------------------------
# FSR glue (segment extraction, reshapes, decode) — plain python/JAX
# ----------------------------------------------------------------------------
def greedy_ctc_decode(prob_mat, int_to_char, digit=True, blank=0):
    # TODO(synk): original Decoder class not provided; standard CTC greedy collapse.
    ids = np.argmax(np.asarray(prob_mat), axis=-1)
    out, prev = [], -1
    for i in ids:
        if i != prev and i != blank:
            out.append(int(i))
        prev = i
    return out if digit else [int_to_char[i] for i in out]


def fsr_forward(params, cfg, Fs, fs_label, fs_mask, det_label, Ms, digit=True):
    B, L = Fs.shape[0], Fs.shape[1]
    feat_dim, h, w = Fs.shape[2], Fs.shape[3], Fs.shape[4]
    char_to_int, int_to_char = cfg["char_to_int"], cfg["int_to_char"]

    fs_indexes, labels, prob_sizes, label_sizes = [], [], [], []
    det_np, mask_np = np.asarray(det_label), np.asarray(fs_mask)
    for b in range(B):
        if len(fs_label[b]) == 0:
            return (jnp.zeros((1,)), [], [], [], [])
        val_seqs = det_np[b][mask_np[b] == 1]
        assert len(val_seqs) == len(fs_label[b])
        for i in range(len(val_seqs)):
            start, end = max(int(val_seqs[i, 0]), 0), min(int(val_seqs[i, 1]), L)
            fs_indexes.append((b, start, end))
            labels.extend([char_to_int[ch] for ch in fs_label[b][i]])
            prob_sizes.append(end - start)
            label_sizes.append(len(fs_label[b][i]))

    n_seg, Lmax = len(prob_sizes), max(prob_sizes)
    fs_feats = np.zeros((n_seg, Lmax, feat_dim, h, w), np.float32)
    fs_priors = np.zeros((n_seg, Lmax, h, w), np.float32)
    Fs_np, Ms_np = np.asarray(Fs), np.asarray(Ms)
    for i, (bid, start, end) in enumerate(fs_indexes):
        fl = end - start
        fs_feats[i, :fl] = Fs_np[bid, start:end]
        fs_priors[i, :fl] = Ms_np[bid, start:end]

    N = h * w
    Fs_enc = jnp.asarray(fs_feats).reshape(n_seg, Lmax, feat_dim, N).transpose(1, 0, 3, 2)
    Ms_enc = jnp.asarray(fs_priors).reshape(n_seg, Lmax, N).transpose(1, 0, 2)

    logits, probs, betas = attn_encoder_forward(
        Fs_enc, Ms_enc, params, cfg["n_layers"], cfg["hidden_size"], cfg["prior_gamma"])

    betas = jnp.transpose(betas, (1, 0, 2)).reshape(n_seg, Lmax, h, w)  # [n_seg,L,h,w]

    # TODO(synk): CTC loss (DP over ragged label sequences) has no clean Pallas equivalent.
    l = jnp.zeros((1,))

    probs_np = np.asarray(jnp.transpose(probs, (1, 0, 2)))              # [n_seg, L, V]
    betas_unflat = [[] for _ in range(B)]
    probs_unflat = [[] for _ in range(B)]
    preds = []
    for j in range(n_seg):
        bid = fs_indexes[j][0]
        betas_unflat[bid].append(betas[j, :prob_sizes[j]])
        probs_unflat[bid].append(probs_np[j, :prob_sizes[j]])
        preds.append(greedy_ctc_decode(probs_np[j, :prob_sizes[j]], int_to_char, digit=digit))

    labels_flat, start = [], 0
    for j in range(len(label_sizes)):
        lf = list(labels[start:start + label_sizes[j]])
        if not digit:
            lf = "".join(int_to_char[x] for x in lf)
        labels_flat.append(lf)
        start += label_sizes[j]
    return (l, preds, labels_flat, betas_unflat, probs_unflat)


# ----------------------------------------------------------------------------
# Deterministic parameter init (shapes from the module's __init__)
# ----------------------------------------------------------------------------
def init_params(key, hidden_size, attn_size, vocab_size):
    H, A, V = hidden_size, attn_size, vocab_size
    ks = jax.random.split(key, 8)
    bnd_v = math.sqrt(6.0 / (H + 1))
    v = jax.random.uniform(ks[0], (H, 1), jnp.float32, -bnd_v, bnd_v)
    # NOTE: the PyTorch __init__ zero-inits Wa/Wh; use small deterministic random
    # values instead so the attention path is exercised non-degenerately.
    Wa = 0.1 * jax.random.normal(ks[1], (A, H), jnp.float32)
    Wh = 0.1 * jax.random.normal(ks[2], (H, H), jnp.float32)
    k = 1.0 / math.sqrt(H)
    W_ih = jax.random.uniform(ks[3], (4 * H, A), jnp.float32, -k, k)
    W_hh = jax.random.uniform(ks[4], (4 * H, H), jnp.float32, -k, k)
    b_ih = jax.random.uniform(ks[5], (4 * H,), jnp.float32, -k, k)
    b_hh = jax.random.uniform(ks[6], (4 * H,), jnp.float32, -k, k)
    W_lt = jax.random.uniform(ks[7], (V, H), jnp.float32, -k, k)
    b_lt = jnp.zeros((V,), jnp.float32)
    return {"Wa": Wa, "Wh": Wh, "v": v, "W_ih": W_ih, "W_hh": W_hh,
            "b_ih": b_ih, "b_hh": b_hh, "W_lt": W_lt, "b_lt": b_lt}


if __name__ == "__main__":
    key = jax.random.PRNGKey(0)
    hidden_size = attn_size = 32     # attn_size == hidden_size (shared LSTMCell)
    n_layers = 2
    char_list = ["_", "a", "b", "c", "d", "e", "f", "g"]   # index 0 = CTC blank
    B, L, F, hh, ww = 2, 12, attn_size, 4, 4

    k1, k2, kp = jax.random.split(key, 3)
    Fs = jax.random.normal(k1, (B, L, F, hh, ww), jnp.float32)
    Ms = jax.nn.sigmoid(jax.random.normal(k2, (B, L, hh, ww), jnp.float32))
    det_label = np.array([[[0, 6, 1], [7, 11, 1]],
                          [[2, 10, 1], [0, 0, 0]]], np.int32)
    fs_mask = np.array([[1, 1], [1, 0]], np.int32)
    fs_label = [["abc", "de"], ["fgab"]]

    params = init_params(kp, hidden_size, attn_size, len(char_list))
    cfg = dict(
        hidden_size=hidden_size, attn_size=attn_size, n_layers=n_layers, prior_gamma=1.0,
        char_to_int={c: i for i, c in enumerate(char_list)},
        int_to_char={i: c for i, c in enumerate(char_list)},
    )

    # run the FSR forward (kernel inside)
    l, preds, labels_flat, betas_unflat, probs_unflat = fsr_forward(
        params, cfg, Fs, fs_label, fs_mask, det_label, Ms, digit=True)
    jax.block_until_ready(l)

    # sanity-check the Pallas encoder against a pure-JAX reference
    # (Lmax = 10 deliberately NOT a multiple of T_BLK to exercise time padding)
    n_seg, Lmax, N = 3, 10, hh * ww
    kf, km = jax.random.split(jax.random.PRNGKey(1))
    Fs_enc = jax.random.normal(kf, (Lmax, n_seg, N, attn_size), jnp.float32)
    Ms_enc = jax.nn.sigmoid(jax.random.normal(km, (Lmax, n_seg, N), jnp.float32))
    lg_k, pr_k, be_k = attn_encoder_forward(Fs_enc, Ms_enc, params, n_layers, hidden_size, 1.0)
    lg_r, pr_r, be_r = attn_encoder_ref(Fs_enc, Ms_enc, params, n_layers, hidden_size, 1.0)
    np.testing.assert_allclose(np.asarray(lg_k), np.asarray(lg_r), rtol=2e-3, atol=2e-3)
    np.testing.assert_allclose(np.asarray(pr_k), np.asarray(pr_r), rtol=2e-3, atol=2e-3)
    np.testing.assert_allclose(np.asarray(be_k), np.asarray(be_r), rtol=2e-3, atol=2e-3)

    print("KERNEL_OK")
</pallas_src>

<mosaic_0001>
module attributes {stable_mosaic.version = 11 : i64} {
  func.func @_attn_encoder_kernel(%arg0: i32, %arg1: memref<4x3x16x32xbf16, #tpu.memory_space<vmem>>, %arg2: memref<4x3x16xf32, #tpu.memory_space<vmem>>, %arg3: memref<32x32xbf16, #tpu.memory_space<vmem>>, %arg4: memref<32x32xf32, #tpu.memory_space<vmem>>, %arg5: memref<1x32xf32, #tpu.memory_space<vmem>>, %arg6: memref<4x32x32xf32, #tpu.memory_space<vmem>>, %arg7: memref<4x32x32xf32, #tpu.memory_space<vmem>>, %arg8: memref<4x1x32xf32, #tpu.memory_space<vmem>>, %arg9: memref<32x8xf32, #tpu.memory_space<vmem>>, %arg10: memref<1x8xf32, #tpu.memory_space<vmem>>, %arg11: memref<4x3x128xf32, #tpu.memory_space<vmem>>, %arg12: memref<2x3x32xf32, #tpu.memory_space<vmem>>, %arg13: memref<2x3x32xf32, #tpu.memory_space<vmem>>) attributes {dimension_semantics = [#tpu.dimension_semantics<arbitrary>], iteration_bounds = array<i64: 2>, scalar_prefetch = 0 : i64, scratch_operands = 2 : i64, tpu.core_type = #tpu.core_type<tc>, window_params = [{transform_indices = @transform_0, window_bounds = array<i64: 4, 3, 16, 32>}, {transform_indices = @transform_1, window_bounds = array<i64: 4, 3, 16>}, {pipeline_mode = #tpu.pipeline_mode<synchronous>, transform_indices = @transform_2, window_bounds = array<i64: 32, 32>}, {pipeline_mode = #tpu.pipeline_mode<synchronous>, transform_indices = @transform_3, window_bounds = array<i64: 32, 32>}, {pipeline_mode = #tpu.pipeline_mode<synchronous>, transform_indices = @transform_4, window_bounds = array<i64: 1, 32>}, {pipeline_mode = #tpu.pipeline_mode<synchronous>, transform_indices = @transform_5, window_bounds = array<i64: 4, 32, 32>}, {pipeline_mode = #tpu.pipeline_mode<synchronous>, transform_indices = @transform_6, window_bounds = array<i64: 4, 32, 32>}, {pipeline_mode = #tpu.pipeline_mode<synchronous>, transform_indices = @transform_7, window_bounds = array<i64: 4, 1, 32>}, {pipeline_mode = #tpu.pipeline_mode<synchronous>, transform_indices = @transform_8, window_bounds = array<i64: 32, 8>}, {pipeline_mode = #tpu.pipeline_mode<synchronous>, transform_indices = @transform_9, window_bounds = array<i64: 1, 8>}, {transform_indices = @transform_10, window_bounds = array<i64: 4, 3, 128>}]} {
    %c0_i32 = arith.constant 0 : i32
    %0 = arith.cmpi eq, %arg0, %c0_i32 : i32
    %1 = arith.extui %0 : i1 to i32
    %c0_i32_0 = arith.constant 0 : i32
    %2 = arith.cmpi ne, %1, %c0_i32_0 : i32
    scf.if %2 {
      %cst_578 = arith.constant 0.000000e+00 : f32
      %825 = vector.broadcast %cst_578 : f32 to vector<2x3x32xf32>
      %c0_579 = arith.constant 0 : index
      %c0_580 = arith.constant 0 : index
      %c0_581 = arith.constant 0 : index
      %826 = vector.load %arg12[%c0_579, %c0_580, %c0_581] : memref<2x3x32xf32, #tpu.memory_space<vmem>>, vector<2x3x32xf32>
      tpu.vector_store %arg12[%c0_579, %c0_580, %c0_581], %825 {strides = array<i32>} : memref<2x3x32xf32, #tpu.memory_space<vmem>>, vector<2x3x32xf32>,
      %cst_582 = arith.constant 0.000000e+00 : f32
      %827 = vector.broadcast %cst_582 : f32 to vector<2x3x32xf32>
      %c0_583 = arith.constant 0 : index
      %c0_584 = arith.constant 0 : index
      %c0_585 = arith.constant 0 : index
      %828 = vector.load %arg13[%c0_583, %c0_584, %c0_585] : memref<2x3x32xf32, #tpu.memory_space<vmem>>, vector<2x3x32xf32>
      tpu.vector_store %arg13[%c0_583, %c0_584, %c0_585], %827 {strides = array<i32>} : memref<2x3x32xf32, #tpu.memory_space<vmem>>, vector<2x3x32xf32>,
    } else {
    }
    %c0 = arith.constant 0 : index
    %c0_1 = arith.constant 0 : index
    %3 = vector.load %arg3[%c0, %c0_1] : memref<32x32xbf16, #tpu.memory_space<vmem>>, vector<32x32xbf16>
    %c0_2 = arith.constant 0 : index
    %c0_3 = arith.constant 0 : index
    %4 = vector.load %arg4[%c0_2, %c0_3] : memref<32x32xf32, #tpu.memory_space<vmem>>, vector<32x32xf32>
    %c0_4 = arith.constant 0 : index
    %c0_5 = arith.constant 0 : index
    %5 = vector.load %arg5[%c0_4, %c0_5] : memref<1x32xf32, #tpu.memory_space<vmem>>, vector<1x32xf32>
    %6 = vector.shape_cast %5 : vector<1x32xf32> to vector<1x1x32xf32>
    %c0_6 = arith.constant 0 : index
    %c0_7 = arith.constant 0 : index
    %7 = vector.load %arg9[%c0_6, %c0_7] : memref<32x8xf32, #tpu.memory_space<vmem>>, vector<32x8xf32>
    %c0_8 = arith.constant 0 : index
    %c0_9 = arith.constant 0 : index
    %8 = vector.load %arg10[%c0_8, %c0_9] : memref<1x8xf32, #tpu.memory_space<vmem>>, vector<1x8xf32>
    %c0_10 = arith.constant 0 : index
    %c0_11 = arith.constant 0 : index
    %c0_12 = arith.constant 0 : index
    %c0_13 = arith.constant 0 : index
    %9 = vector.load %arg1[%c0_10, %c0_11, %c0_12, %c0_13] : memref<4x3x16x32xbf16, #tpu.memory_space<vmem>>, vector<1x3x16x32xbf16>
    %10 = vector.shape_cast %9 : vector<1x3x16x32xbf16> to vector<3x16x32xbf16>
    %c0_14 = arith.constant 0 : index
    %c0_15 = arith.constant 0 : index
    %c0_16 = arith.constant 0 : index
    %11 = vector.load %arg2[%c0_14, %c0_15, %c0_16] : memref<4x3x16xf32, #tpu.memory_space<vmem>>, vector<1x3x16xf32>
    %12 = vector.shape_cast %11 : vector<1x3x16xf32> to vector<3x16xf32>
    %c1 = arith.constant 1 : index
    %c0_17 = arith.constant 0 : index
    %c0_18 = arith.constant 0 : index
    %13 = vector.load %arg12[%c1, %c0_17, %c0_18] : memref<2x3x32xf32, #tpu.memory_space<vmem>>, vector<1x3x32xf32>
    %14 = vector.shape_cast %13 : vector<1x3x32xf32> to vector<3x32xf32>
    %15 = vector.shape_cast %10 : vector<3x16x32xbf16> to vector<48x32xbf16>
    %cst = arith.constant dense<0.000000e+00> : vector<48x32xf32>
    %16 = tpu.matmul %15, %3, %cst {dimension_numbers = #tpu.dot_dimension_numbers<[1], [0], [0], [1], [0, 0, 1, 1], [], []>} : vector<48x32xbf16>, vector<32x32xbf16>, vector<48x32xf32> -> vector<48x32xf32>
    %17 = vector.shape_cast %16 : vector<48x32xf32> to vector<3x16x32xf32>
    %cst_19 = arith.constant dense<0.000000e+00> : vector<3x32xf32>
    %18 = tpu.matmul %14, %4, %cst_19 {dimension_numbers = #tpu.dot_dimension_numbers<[1], [0], [0], [1], [0, 0, 1, 1], [], []>} : vector<3x32xf32>, vector<32x32xf32>, vector<3x32xf32> -> vector<3x32xf32>
    %19 = vector.shape_cast %18 : vector<3x32xf32> to vector<3x1x32xf32>
    %20 = vector.broadcast %19 : vector<3x1x32xf32> to vector<3x16x32xf32>
    %21 = arith.addf %17, %20 : vector<3x16x32xf32>
    %22 = math.tanh %21 : vector<3x16x32xf32>
    %23 = vector.broadcast %6 : vector<1x1x32xf32> to vector<3x16x32xf32>
    %24 = arith.mulf %22, %23 : vector<3x16x32xf32>
    %cst_20 = arith.constant dense<0.000000e+00> : vector<3x16xf32>
    %25 = vector.multi_reduction <add>, %24, %cst_20 [2] : vector<3x16x32xf32> to vector<3x16xf32>
    %cst_21 = arith.constant dense<0xFF800000> : vector<3xf32>
    %26 = vector.multi_reduction <maximumf>, %25, %cst_21 [1] : vector<3x16xf32> to vector<3xf32>
    %27 = vector.shape_cast %26 : vector<3xf32> to vector<3x1xf32>
    %28 = vector.broadcast %27 : vector<3x1xf32> to vector<3x16xf32>
    %29 = arith.subf %25, %28 : vector<3x16xf32>
    %30 = math.exp %29 : vector<3x16xf32>
    %cst_22 = arith.constant dense<0.000000e+00> : vector<3xf32>
    %31 = vector.multi_reduction <add>, %30, %cst_22 [1] : vector<3x16xf32> to vector<3xf32>
    %32 = vector.shape_cast %31 : vector<3xf32> to vector<3x1xf32>
    %33 = vector.broadcast %32 : vector<3x1xf32> to vector<3x16xf32>
    %34 = arith.divf %30, %33 : vector<3x16xf32>
    %35 = arith.mulf %34, %12 : vector<3x16xf32>
    %cst_23 = arith.constant dense<0.000000e+00> : vector<3xf32>
    %36 = vector.multi_reduction <add>, %35, %cst_23 [1] : vector<3x16xf32> to vector<3xf32>
    %37 = vector.shape_cast %36 : vector<3xf32> to vector<3x1xf32>
    %cst_24 = arith.constant 9.99999974E-6 : f32
    %38 = vector.broadcast %cst_24 : f32 to vector<3x1xf32>
    %39 = arith.maximumf %37, %38 : vector<3x1xf32>
    %40 = vector.shape_cast %35 : vector<3x16xf32> to vector<3x1x16xf32>
    %41 = arith.extf %10 : vector<3x16x32xbf16> to vector<3x16x32xf32>
    "tpu.trace_start"() <{level = 10 : i32, message = "bkn,bna->bka"}> : () -> ()
    %cst_25 = arith.constant dense<0.000000e+00> : vector<3x1x32xf32>
    %42 = tpu.matmul %40, %41, %cst_25 {dimension_numbers = #tpu.dot_dimension_numbers<[2], [1], [1], [2], [0, 0, 0, 1, 1, 2], [0], [0]>} : vector<3x1x16xf32>, vector<3x16x32xf32>, vector<3x1x32xf32> -> vector<3x1x32xf32>
    "tpu.trace_stop"() : () -> ()
    %43 = vector.shape_cast %42 : vector<3x1x32xf32> to vector<3x32xf32>
    %44 = vector.broadcast %39 : vector<3x1xf32> to vector<3x32xf32>
    %45 = arith.divf %43, %44 : vector<3x32xf32>
    %c0_26 = arith.constant 0 : index
    %c0_27 = arith.constant 0 : index
    %c0_28 = arith.constant 0 : index
    %46 = vector.load %arg12[%c0_26, %c0_27, %c0_28] : memref<2x3x32xf32, #tpu.memory_space<vmem>>, vector<1x3x32xf32>
    %47 = vector.shape_cast %46 : vector<1x3x32xf32> to vector<3x32xf32>
    %c0_29 = arith.constant 0 : index
    %c0_30 = arith.constant 0 : index
    %c0_31 = arith.constant 0 : index
    %48 = vector.load %arg13[%c0_29, %c0_30, %c0_31] : memref<2x3x32xf32, #tpu.memory_space<vmem>>, vector<1x3x32xf32>
    %49 = vector.shape_cast %48 : vector<1x3x32xf32> to vector<3x32xf32>
    %c0_32 = arith.constant 0 : index
    %c0_33 = arith.constant 0 : index
    %c0_34 = arith.constant 0 : index
    %50 = vector.load %arg6[%c0_32, %c0_33, %c0_34] : memref<4x32x32xf32, #tpu.memory_space<vmem>>, vector<1x32x32xf32>
    %51 = vector.shape_cast %50 : vector<1x32x32xf32> to vector<32x32xf32>
    %cst_35 = arith.constant dense<0.000000e+00> : vector<3x32xf32>
    %52 = tpu.matmul %45, %51, %cst_35 {dimension_numbers = #tpu.dot_dimension_numbers<[1], [0], [0], [1], [0, 0, 1, 1], [], []>} : vector<3x32xf32>, vector<32x32xf32>, vector<3x32xf32> -> vector<3x32xf32>
    %c0_36 = arith.constant 0 : index
    %c0_37 = arith.constant 0 : index
    %c0_38 = arith.constant 0 : index
    %53 = vector.load %arg7[%c0_36, %c0_37, %c0_38] : memref<4x32x32xf32, #tpu.memory_space<vmem>>, vector<1x32x32xf32>
    %54 = vector.shape_cast %53 : vector<1x32x32xf32> to vector<32x32xf32>
    %cst_39 = arith.constant dense<0.000000e+00> : vector<3x32xf32>
    %55 = tpu.matmul %47, %54, %cst_39 {dimension_numbers = #tpu.dot_dimension_numbers<[1], [0], [0], [1], [0, 0, 1, 1], [], []>} : vector<3x32xf32>, vector<32x32xf32>, vector<3x32xf32> -> vector<3x32xf32>
    %56 = arith.addf %52, %55 : vector<3x32xf32>
    %c0_40 = arith.constant 0 : index
    %c0_41 = arith.constant 0 : index
    %c0_42 = arith.constant 0 : index
    %57 = vector.load %arg8[%c0_40, %c0_41, %c0_42] : memref<4x1x32xf32, #tpu.memory_space<vmem>>, vector<1x1x32xf32>
    %58 = vector.shape_cast %57 : vector<1x1x32xf32> to vector<1x32xf32>
    %59 = vector.broadcast %58 : vector<1x32xf32> to vector<3x32xf32>
    %60 = arith.addf %56, %59 : vector<3x32xf32>
    %c1_43 = arith.constant 1 : index
    %c0_44 = arith.constant 0 : index
    %c0_45 = arith.constant 0 : index
    %61 = vector.load %arg6[%c1_43, %c0_44, %c0_45] : memref<4x32x32xf32, #tpu.memory_space<vmem>>, vector<1x32x32xf32>
    %62 = vector.shape_cast %61 : vector<1x32x32xf32> to vector<32x32xf32>
    %cst_46 = arith.constant dense<0.000000e+00> : vector<3x32xf32>
    %63 = tpu.matmul %45, %62, %cst_46 {dimension_numbers = #tpu.dot_dimension_numbers<[1], [0], [0], [1], [0, 0, 1, 1], [], []>} : vector<3x32xf32>, vector<32x32xf32>, vector<3x32xf32> -> vector<3x32xf32>
    %c1_47 = arith.constant 1 : index
    %c0_48 = arith.constant 0 : index
    %c0_49 = arith.constant 0 : index
    %64 = vector.load %arg7[%c1_47, %c0_48, %c0_49] : memref<4x32x32xf32, #tpu.memory_space<vmem>>, vector<1x32x32xf32>
    %65 = vector.shape_cast %64 : vector<1x32x32xf32> to vector<32x32xf32>
    %cst_50 = arith.constant dense<0.000000e+00> : vector<3x32xf32>
    %66 = tpu.matmul %47, %65, %cst_50 {dimension_numbers = #tpu.dot_dimension_numbers<[1], [0], [0], [1], [0, 0, 1, 1], [], []>} : vector<3x32xf32>, vector<32x32xf32>, vector<3x32xf32> -> vector<3x32xf32>
    %67 = arith.addf %63, %66 : vector<3x32xf32>
    %c1_51 = arith.constant 1 : index
    %c0_52 = arith.constant 0 : index
    %c0_53 = arith.constant 0 : index
    %68 = vector.load %arg8[%c1_51, %c0_52, %c0_53] : memref<4x1x32xf32, #tpu.memory_space<vmem>>, vector<1x1x32xf32>
    %69 = vector.shape_cast %68 : vector<1x1x32xf32> to vector<1x32xf32>
    %70 = vector.broadcast %69 : vector<1x32xf32> to vector<3x32xf32>
    %71 = arith.addf %67, %70 : vector<3x32xf32>
    %c2 = arith.constant 2 : index
    %c0_54 = arith.constant 0 : index
    %c0_55 = arith.constant 0 : index
    %72 = vector.load %arg6[%c2, %c0_54, %c0_55] : memref<4x32x32xf32, #tpu.memory_space<vmem>>, vector<1x32x32xf32>
    %73 = vector.shape_cast %72 : vector<1x32x32xf32> to vector<32x32xf32>
    %cst_56 = arith.constant dense<0.000000e+00> : vector<3x32xf32>
    %74 = tpu.matmul %45, %73, %cst_56 {dimension_numbers = #tpu.dot_dimension_numbers<[1], [0], [0], [1], [0, 0, 1, 1], [], []>} : vector<3x32xf32>, vector<32x32xf32>, vector<3x32xf32> -> vector<3x32xf32>
    %c2_57 = arith.constant 2 : index
    %c0_58 = arith.constant 0 : index
    %c0_59 = arith.constant 0 : index
    %75 = vector.load %arg7[%c2_57, %c0_58, %c0_59] : memref<4x32x32xf32, #tpu.memory_space<vmem>>, vector<1x32x32xf32>
    %76 = vector.shape_cast %75 : vector<1x32x32xf32> to vector<32x32xf32>
    %cst_60 = arith.constant dense<0.000000e+00> : vector<3x32xf32>
    %77 = tpu.matmul %47, %76, %cst_60 {dimension_numbers = #tpu.dot_dimension_numbers<[1], [0], [0], [1], [0, 0, 1, 1], [], []>} : vector<3x32xf32>, vector<32x32xf32>, vector<3x32xf32> -> vector<3x32xf32>
    %78 = arith.addf %74, %77 : vector<3x32xf32>
    %c2_61 = arith.constant 2 : index
    %c0_62 = arith.constant 0 : index
    %c0_63 = arith.constant 0 : index
    %79 = vector.load %arg8[%c2_61, %c0_62, %c0_63] : memref<4x1x32xf32, #tpu.memory_space<vmem>>, vector<1x1x32xf32>
    %80 = vector.shape_cast %79 : vector<1x1x32xf32> to vector<1x32xf32>
    %81 = vector.broadcast %80 : vector<1x32xf32> to vector<3x32xf32>
    %82 = arith.addf %78, %81 : vector<3x32xf32>
    %c3 = arith.constant 3 : index
    %c0_64 = arith.constant 0 : index
    %c0_65 = arith.constant 0 : index
    %83 = vector.load %arg6[%c3, %c0_64, %c0_65] : memref<4x32x32xf32, #tpu.memory_space<vmem>>, vector<1x32x32xf32>
    %84 = vector.shape_cast %83 : vector<1x32x32xf32> to vector<32x32xf32>
    %cst_66 = arith.constant dense<0.000000e+00> : vector<3x32xf32>
    %85 = tpu.matmul %45, %84, %cst_66 {dimension_numbers = #tpu.dot_dimension_numbers<[1], [0], [0], [1], [0, 0, 1, 1], [], []>} : vector<3x32xf32>, vector<32x32xf32>, vector<3x32xf32> -> vector<3x32xf32>
    %c3_67 = arith.constant 3 : index
    %c0_68 = arith.constant 0 : index
    %c0_69 = arith.constant 0 : index
    %86 = vector.load %arg7[%c3_67, %c0_68, %c0_69] : memref<4x32x32xf32, #tpu.memory_space<vmem>>, vector<1x32x32xf32>
    %87 = vector.shape_cast %86 : vector<1x32x32xf32> to vector<32x32xf32>
    %cst_70 = arith.constant dense<0.000000e+00> : vector<3x32xf32>
    %88 = tpu.matmul %47, %87, %cst_70 {dimension_numbers = #tpu.dot_dimension_numbers<[1], [0], [0], [1], [0, 0, 1, 1], [], []>} : vector<3x32xf32>, vector<32x32xf32>, vector<3x32xf32> -> vector<3x32xf32>
    %89 = arith.addf %85, %88 : vector<3x32xf32>
    %c3_71 = arith.constant 3 : index
    %c0_72 = arith.constant 0 : index
    %c0_73 = arith.constant 0 : index
    %90 = vector.load %arg8[%c3_71, %c0_72, %c0_73] : memref<4x1x32xf32, #tpu.memory_space<vmem>>, vector<1x1x32xf32>
    %91 = vector.shape_cast %90 : vector<1x1x32xf32> to vector<1x32xf32>
    %92 = vector.broadcast %91 : vector<1x32xf32> to vector<3x32xf32>
    %93 = arith.addf %89, %92 : vector<3x32xf32>
    %94 = arith.negf %60 : vector<3x32xf32>
    %95 = math.exp %94 : vector<3x32xf32>
    %cst_74 = arith.constant 1.000000e+00 : f32
    %96 = vector.broadcast %cst_74 : f32 to vector<3x32xf32>
    %97 = arith.addf %96, %95 : vector<3x32xf32>
    %98 = arith.divf %96, %97 : vector<3x32xf32>
    %99 = arith.negf %71 : vector<3x32xf32>
    %100 = math.exp %99 : vector<3x32xf32>
    %cst_75 = arith.constant 1.000000e+00 : f32
    %101 = vector.broadcast %cst_75 : f32 to vector<3x32xf32>
    %102 = arith.addf %101, %100 : vector<3x32xf32>
    %103 = arith.divf %101, %102 : vector<3x32xf32>
    %104 = math.tanh %82 : vector<3x32xf32>
    %105 = arith.negf %93 : vector<3x32xf32>
    %106 = math.exp %105 : vector<3x32xf32>
    %cst_76 = arith.constant 1.000000e+00 : f32
    %107 = vector.broadcast %cst_76 : f32 to vector<3x32xf32>
    %108 = arith.addf %107, %106 : vector<3x32xf32>
    %109 = arith.divf %107, %108 : vector<3x32xf32>
    %110 = arith.mulf %103, %49 : vector<3x32xf32>
    %111 = arith.mulf %98, %104 : vector<3x32xf32>
    %112 = arith.addf %110, %111 : vector<3x32xf32>
    %113 = math.tanh %112 : vector<3x32xf32>
    %114 = arith.mulf %109, %113 : vector<3x32xf32>
    %c0_77 = arith.constant 0 : index
    %c0_78 = arith.constant 0 : index
    %c0_79 = arith.constant 0 : index
    %115 = vector.load %arg12[%c0_77, %c0_78, %c0_79] : memref<2x3x32xf32, #tpu.memory_space<vmem>>, vector<1x3x32xf32>
    %116 = vector.shape_cast %115 : vector<1x3x32xf32> to vector<3x32xf32>
    %117 = vector.shape_cast %114 : vector<3x32xf32> to vector<1x3x32xf32>
    tpu.vector_store %arg12[%c0_77, %c0_78, %c0_79], %117 {strides = array<i32>} : memref<2x3x32xf32, #tpu.memory_space<vmem>>, vector<1x3x32xf32>,
    %c0_80 = arith.constant 0 : index
    %c0_81 = arith.constant 0 : index
    %c0_82 = arith.constant 0 : index
    %118 = vector.load %arg13[%c0_80, %c0_81, %c0_82] : memref<2x3x32xf32, #tpu.memory_space<vmem>>, vector<1x3x32xf32>
    %119 = vector.shape_cast %118 : vector<1x3x32xf32> to vector<3x32xf32>
    %120 = vector.shape_cast %112 : vector<3x32xf32> to vector<1x3x32xf32>
    tpu.vector_store %arg13[%c0_80, %c0_81, %c0_82], %120 {strides = array<i32>} : memref<2x3x32xf32, #tpu.memory_space<vmem>>, vector<1x3x32xf32>,
    %c1_83 = arith.constant 1 : index
    %c0_84 = arith.constant 0 : index
    %c0_85 = arith.constant 0 : index
    %121 = vector.load %arg12[%c1_83, %c0_84, %c0_85] : memref<2x3x32xf32, #tpu.memory_space<vmem>>, vector<1x3x32xf32>
    %122 = vector.shape_cast %121 : vector<1x3x32xf32> to vector<3x32xf32>
    %c1_86 = arith.constant 1 : index
    %c0_87 = arith.constant 0 : index
    %c0_88 = arith.constant 0 : index
    %123 = vector.load %arg13[%c1_86, %c0_87, %c0_88] : memref<2x3x32xf32, #tpu.memory_space<vmem>>, vector<1x3x32xf32>
    %124 = vector.shape_cast %123 : vector<1x3x32xf32> to vector<3x32xf32>
    %c0_89 = arith.constant 0 : index
    %c0_90 = arith.constant 0 : index
    %c0_91 = arith.constant 0 : index
    %125 = vector.load %arg6[%c0_89, %c0_90, %c0_91] : memref<4x32x32xf32, #tpu.memory_space<vmem>>, vector<1x32x32xf32>
    %126 = vector.shape_cast %125 : vector<1x32x32xf32> to vector<32x32xf32>
    %cst_92 = arith.constant dense<0.000000e+00> : vector<3x32xf32>
    %127 = tpu.matmul %114, %126, %cst_92 {dimension_numbers = #tpu.dot_dimension_numbers<[1], [0], [0], [1], [0, 0, 1, 1], [], []>} : vector<3x32xf32>, vector<32x32xf32>, vector<3x32xf32> -> vector<3x32xf32>
    %c0_93 = arith.constant 0 : index
    %c0_94 = arith.constant 0 : index
    %c0_95 = arith.constant 0 : index
    %128 = vector.load %arg7[%c0_93, %c0_94, %c0_95] : memref<4x32x32xf32, #tpu.memory_space<vmem>>, vector<1x32x32xf32>
    %129 = vector.shape_cast %128 : vector<1x32x32xf32> to vector<32x32xf32>
    %cst_96 = arith.constant dense<0.000000e+00> : vector<3x32xf32>
    %130 = tpu.matmul %122, %129, %cst_96 {dimension_numbers = #tpu.dot_dimension_numbers<[1], [0], [0], [1], [0, 0, 1, 1], [], []>} : vector<3x32xf32>, vector<32x32xf32>, vector<3x32xf32> -> vector<3x32xf32>
    %131 = arith.addf %127, %130 : vector<3x32xf32>
    %c0_97 = arith.constant 0 : index
    %c0_98 = arith.constant 0 : index
    %c0_99 = arith.constant 0 : index
    %132 = vector.load %arg8[%c0_97, %c0_98, %c0_99] : memref<4x1x32xf32, #tpu.memory_space<vmem>>, vector<1x1x32xf32>
    %133 = vector.shape_cast %132 : vector<1x1x32xf32> to vector<1x32xf32>
    %134 = vector.broadcast %133 : vector<1x32xf32> to vector<3x32xf32>
    %135 = arith.addf %131, %134 : vector<3x32xf32>
    %c1_100 = arith.constant 1 : index
    %c0_101 = arith.constant 0 : index
    %c0_102 = arith.constant 0 : index
    %136 = vector.load %arg6[%c1_100, %c0_101, %c0_102] : memref<4x32x32xf32, #tpu.memory_space<vmem>>, vector<1x32x32xf32>
    %137 = vector.shape_cast %136 : vector<1x32x32xf32> to vector<32x32xf32>
    %cst_103 = arith.constant dense<0.000000e+00> : vector<3x32xf32>
    %138 = tpu.matmul %114, %137, %cst_103 {dimension_numbers = #tpu.dot_dimension_numbers<[1], [0], [0], [1], [0, 0, 1, 1], [], []>} : vector<3x32xf32>, vector<32x32xf32>, vector<3x32xf32> -> vector<3x32xf32>
    %c1_104 = arith.constant 1 : index
    %c0_105 = arith.constant 0 : index
    %c0_106 = arith.constant 0 : index
    %139 = vector.load %arg7[%c1_104, %c0_105, %c0_106] : memref<4x32x32xf32, #tpu.memory_space<vmem>>, vector<1x32x32xf32>
    %140 = vector.shape_cast %139 : vector<1x32x32xf32> to vector<32x32xf32>
    %cst_107 = arith.constant dense<0.000000e+00> : vector<3x32xf32>
    %141 = tpu.matmul %122, %140, %cst_107 {dimension_numbers = #tpu.dot_dimension_numbers<[1], [0], [0], [1], [0, 0, 1, 1], [], []>} : vector<3x32xf32>, vector<32x32xf32>, vector<3x32xf32> -> vector<3x32xf32>
    %142 = arith.addf %138, %141 : vector<3x32xf32>
    %c1_108 = arith.constant 1 : index
    %c0_109 = arith.constant 0 : index
    %c0_110 = arith.constant 0 : index
    %143 = vector.load %arg8[%c1_108, %c0_109, %c0_110] : memref<4x1x32xf32, #tpu.memory_space<vmem>>, vector<1x1x32xf32>
    %144 = vector.shape_cast %143 : vector<1x1x32xf32> to vector<1x32xf32>
    %145 = vector.broadcast %144 : vector<1x32xf32> to vector<3x32xf32>
    %146 = arith.addf %142, %145 : vector<3x32xf32>
    %c2_111 = arith.constant 2 : index
    %c0_112 = arith.constant 0 : index
    %c0_113 = arith.constant 0 : index
    %147 = vector.load %arg6[%c2_111, %c0_112, %c0_113] : memref<4x32x32xf32, #tpu.memory_space<vmem>>, vector<1x32x32xf32>
    %148 = vector.shape_cast %147 : vector<1x32x32xf32> to vector<32x32xf32>
    %cst_114 = arith.constant dense<0.000000e+00> : vector<3x32xf32>
    %149 = tpu.matmul %114, %148, %cst_114 {dimension_numbers = #tpu.dot_dimension_numbers<[1], [0], [0], [1], [0, 0, 1, 1], [], []>} : vector<3x32xf32>, vector<32x32xf32>, vector<3x32xf32> -> vector<3x32xf32>
    %c2_115 = arith.constant 2 : index
    %c0_116 = arith.constant 0 : index
    %c0_117 = arith.constant 0 : index
    %150 = vector.load %arg7[%c2_115, %c0_116, %c0_117] : memref<4x32x32xf32, #tpu.memory_space<vmem>>, vector<1x32x32xf32>
    %151 = vector.shape_cast %150 : vector<1x32x32xf32> to vector<32x32xf32>
    %cst_118 = arith.constant dense<0.000000e+00> : vector<3x32xf32>
    %152 = tpu.matmul %122, %151, %cst_118 {dimension_numbers = #tpu.dot_dimension_numbers<[1], [0], [0], [1], [0, 0, 1, 1], [], []>} : vector<3x32xf32>, vector<32x32xf32>, vector<3x32xf32> -> vector<3x32xf32>
    %153 = arith.addf %149, %152 : vector<3x32xf32>
    %c2_119 = arith.constant 2 : index
    %c0_120 = arith.constant 0 : index
    %c0_121 = arith.constant 0 : index
    %154 = vector.load %arg8[%c2_119, %c0_120, %c0_121] : memref<4x1x32xf32, #tpu.memory_space<vmem>>, vector<1x1x32xf32>
    %155 = vector.shape_cast %154 : vector<1x1x32xf32> to vector<1x32xf32>
    %156 = vector.broadcast %155 : vector<1x32xf32> to vector<3x32xf32>
    %157 = arith.addf %153, %156 : vector<3x32xf32>
    %c3_122 = arith.constant 3 : index
    %c0_123 = arith.constant 0 : index
    %c0_124 = arith.constant 0 : index
    %158 = vector.load %arg6[%c3_122, %c0_123, %c0_124] : memref<4x32x32xf32, #tpu.memory_space<vmem>>, vector<1x32x32xf32>
    %159 = vector.shape_cast %158 : vector<1x32x32xf32> to vector<32x32xf32>
    %cst_125 = arith.constant dense<0.000000e+00> : vector<3x32xf32>
    %160 = tpu.matmul %114, %159, %cst_125 {dimension_numbers = #tpu.dot_dimension_numbers<[1], [0], [0], [1], [0, 0, 1, 1], [], []>} : vector<3x32xf32>, vector<32x32xf32>, vector<3x32xf32> -> vector<3x32xf32>
    %c3_126 = arith.constant 3 : index
    %c0_127 = arith.constant 0 : index
    %c0_128 = arith.constant 0 : index
    %161 = vector.load %arg7[%c3_126, %c0_127, %c0_128] : memref<4x32x32xf32, #tpu.memory_space<vmem>>, vector<1x32x32xf32>
    %162 = vector.shape_cast %161 : vector<1x32x32xf32> to vector<32x32xf32>
    %cst_129 = arith.constant dense<0.000000e+00> : vector<3x32xf32>
    %163 = tpu.matmul %122, %162, %cst_129 {dimension_numbers = #tpu.dot_dimension_numbers<[1], [0], [0], [1], [0, 0, 1, 1], [], []>} : vector<3x32xf32>, vector<32x32xf32>, vector<3x32xf32> -> vector<3x32xf32>
    %164 = arith.addf %160, %163 : vector<3x32xf32>
    %c3_130 = arith.constant 3 : index
    %c0_131 = arith.constant 0 : index
    %c0_132 = arith.constant 0 : index
    %165 = vector.load %arg8[%c3_130, %c0_131, %c0_132] : memref<4x1x32xf32, #tpu.memory_space<vmem>>, vector<1x1x32xf32>
    %166 = vector.shape_cast %165 : vector<1x1x32xf32> to vector<1x32xf32>
    %167 = vector.broadcast %166 : vector<1x32xf32> to vector<3x32xf32>
    %168 = arith.addf %164, %167 : vector<3x32xf32>
    %169 = arith.negf %135 : vector<3x32xf32>
    %170 = math.exp %169 : vector<3x32xf32>
    %cst_133 = arith.constant 1.000000e+00 : f32
    %171 = vector.broadcast %cst_133 : f32 to vector<3x32xf32>
    %172 = arith.addf %171, %170 : vector<3x32xf32>
    %173 = arith.divf %171, %172 : vector<3x32xf32>
    %174 = arith.negf %146 : vector<3x32xf32>
    %175 = math.exp %174 : vector<3x32xf32>
    %cst_134 = arith.constant 1.000000e+00 : f32
    %176 = vector.broadcast %cst_134 : f32 to vector<3x32xf32>
    %177 = arith.addf %176, %175 : vector<3x32xf32>
    %178 = arith.divf %176, %177 : vector<3x32xf32>
    %179 = math.tanh %157 : vector<3x32xf32>
    %180 = arith.negf %168 : vector<3x32xf32>
    %181 = math.exp %180 : vector<3x32xf32>
    %cst_135 = arith.constant 1.000000e+00 : f32
    %182 = vector.broadcast %cst_135 : f32 to vector<3x32xf32>
    %183 = arith.addf %182, %181 : vector<3x32xf32>
    %184 = arith.divf %182, %183 : vector<3x32xf32>
    %185 = arith.mulf %178, %124 : vector<3x32xf32>
    %186 = arith.mulf %173, %179 : vector<3x32xf32>
    %187 = arith.addf %185, %186 : vector<3x32xf32>
    %188 = math.tanh %187 : vector<3x32xf32>
    %189 = arith.mulf %184, %188 : vector<3x32xf32>
    %c1_136 = arith.constant 1 : index
    %c0_137 = arith.constant 0 : index
    %c0_138 = arith.constant 0 : index
    %190 = vector.load %arg12[%c1_136, %c0_137, %c0_138] : memref<2x3x32xf32, #tpu.memory_space<vmem>>, vector<1x3x32xf32>
    %191 = vector.shape_cast %190 : vector<1x3x32xf32> to vector<3x32xf32>
    %192 = vector.shape_cast %189 : vector<3x32xf32> to vector<1x3x32xf32>
    tpu.vector_store %arg12[%c1_136, %c0_137, %c0_138], %192 {strides = array<i32>} : memref<2x3x32xf32, #tpu.memory_space<vmem>>, vector<1x3x32xf32>,
    %c1_139 = arith.constant 1 : index
    %c0_140 = arith.constant 0 : index
    %c0_141 = arith.constant 0 : index
    %193 = vector.load %arg13[%c1_139, %c0_140, %c0_141] : memref<2x3x32xf32, #tpu.memory_space<vmem>>, vector<1x3x32xf32>
    %194 = vector.shape_cast %193 : vector<1x3x32xf32> to vector<3x32xf32>
    %195 = vector.shape_cast %187 : vector<3x32xf32> to vector<1x3x32xf32>
    tpu.vector_store %arg13[%c1_139, %c0_140, %c0_141], %195 {strides = array<i32>} : memref<2x3x32xf32, #tpu.memory_space<vmem>>, vector<1x3x32xf32>,
    %cst_142 = arith.constant dense<0.000000e+00> : vector<3x8xf32>
    %196 = tpu.matmul %189, %7, %cst_142 {dimension_numbers = #tpu.dot_dimension_numbers<[1], [0], [0], [1], [0, 0, 1, 1], [], []>} : vector<3x32xf32>, vector<32x8xf32>, vector<3x8xf32> -> vector<3x8xf32>
    %197 = vector.broadcast %8 : vector<1x8xf32> to vector<3x8xf32>
    %198 = arith.addf %196, %197 : vector<3x8xf32>
    %cst_143 = arith.constant dense<0xFF800000> : vector<3xf32>
    %199 = vector.multi_reduction <maximumf>, %198, %cst_143 [1] : vector<3x8xf32> to vector<3xf32>
    %200 = vector.shape_cast %199 : vector<3xf32> to vector<3x1xf32>
    %201 = vector.broadcast %200 : vector<3x1xf32> to vector<3x8xf32>
    %202 = arith.subf %198, %201 : vector<3x8xf32>
    %203 = math.exp %202 : vector<3x8xf32>
    %cst_144 = arith.constant dense<0.000000e+00> : vector<3xf32>
    %204 = vector.multi_reduction <add>, %203, %cst_144 [1] : vector<3x8xf32> to vector<3xf32>
    %205 = vector.shape_cast %204 : vector<3xf32> to vector<3x1xf32>
    %206 = vector.broadcast %205 : vector<3x1xf32> to vector<3x8xf32>
    %207 = arith.divf %203, %206 : vector<3x8xf32>
    %cst_145 = arith.constant 0.000000e+00 : f32
    %208 = vector.broadcast %cst_145 : f32 to vector<3x96xf32>
    %209 = tpu.concatenate %198, %207, %35, %208 in 1 : vector<3x8xf32>, vector<3x8xf32>, vector<3x16xf32>, vector<3x96xf32> -> vector<3x128xf32>
    %c0_146 = arith.constant 0 : index
    %c0_147 = arith.constant 0 : index
    %c0_148 = arith.constant 0 : index
    %210 = vector.load %arg11[%c0_146, %c0_147, %c0_148] : memref<4x3x128xf32, #tpu.memory_space<vmem>>, vector<1x3x128xf32>
    %211 = vector.shape_cast %210 : vector<1x3x128xf32> to vector<3x128xf32>
    %212 = vector.shape_cast %209 : vector<3x128xf32> to vector<1x3x128xf32>
    tpu.vector_store %arg11[%c0_146, %c0_147, %c0_148], %212 {strides = array<i32>} : memref<4x3x128xf32, #tpu.memory_space<vmem>>, vector<1x3x128xf32>,
    %c1_149 = arith.constant 1 : index
    %c0_150 = arith.constant 0 : index
    %c0_151 = arith.constant 0 : index
    %c0_152 = arith.constant 0 : index
    %213 = vector.load %arg1[%c1_149, %c0_150, %c0_151, %c0_152] : memref<4x3x16x32xbf16, #tpu.memory_space<vmem>>, vector<1x3x16x32xbf16>
    %214 = vector.shape_cast %213 : vector<1x3x16x32xbf16> to vector<3x16x32xbf16>
    %c1_153 = arith.constant 1 : index
    %c0_154 = arith.constant 0 : index
    %c0_155 = arith.constant 0 : index
    %215 = vector.load %arg2[%c1_153, %c0_154, %c0_155] : memref<4x3x16xf32, #tpu.memory_space<vmem>>, vector<1x3x16xf32>
    %216 = vector.shape_cast %215 : vector<1x3x16xf32> to vector<3x16xf32>
    %c1_156 = arith.constant 1 : index
    %c0_157 = arith.constant 0 : index
    %c0_158 = arith.constant 0 : index
    %217 = vector.load %arg12[%c1_156, %c0_157, %c0_158] : memref<2x3x32xf32, #tpu.memory_space<vmem>>, vector<1x3x32xf32>
    %218 = vector.shape_cast %217 : vector<1x3x32xf32> to vector<3x32xf32>
    %219 = vector.shape_cast %214 : vector<3x16x32xbf16> to vector<48x32xbf16>
    %cst_159 = arith.constant dense<0.000000e+00> : vector<48x32xf32>
    %220 = tpu.matmul %219, %3, %cst_159 {dimension_numbers = #tpu.dot_dimension_numbers<[1], [0], [0], [1], [0, 0, 1, 1], [], []>} : vector<48x32xbf16>, vector<32x32xbf16>, vector<48x32xf32> -> vector<48x32xf32>
    %221 = vector.shape_cast %220 : vector<48x32xf32> to vector<3x16x32xf32>
    %cst_160 = arith.constant dense<0.000000e+00> : vector<3x32xf32>
    %222 = tpu.matmul %218, %4, %cst_160 {dimension_numbers = #tpu.dot_dimension_numbers<[1], [0], [0], [1], [0, 0, 1, 1], [], []>} : vector<3x32xf32>, vector<32x32xf32>, vector<3x32xf32> -> vector<3x32xf32>
    %223 = vector.shape_cast %222 : vector<3x32xf32> to vector<3x1x32xf32>
    %224 = vector.broadcast %223 : vector<3x1x32xf32> to vector<3x16x32xf32>
    %225 = arith.addf %221, %224 : vector<3x16x32xf32>
    %226 = math.tanh %225 : vector<3x16x32xf32>
    %227 = vector.broadcast %6 : vector<1x1x32xf32> to vector<3x16x32xf32>
    %228 = arith.mulf %226, %227 : vector<3x16x32xf32>
    %cst_161 = arith.constant dense<0.000000e+00> : vector<3x16xf32>
    %229 = vector.multi_reduction <add>, %228, %cst_161 [2] : vector<3x16x32xf32> to vector<3x16xf32>
    %cst_162 = arith.constant dense<0xFF800000> : vector<3xf32>
    %230 = vector.multi_reduction <maximumf>, %229, %cst_162 [1] : vector<3x16xf32> to vector<3xf32>
    %231 = vector.shape_cast %230 : vector<3xf32> to vector<3x1xf32>
    %232 = vector.broadcast %231 : vector<3x1xf32> to vector<3x16xf32>
    %233 = arith.subf %229, %232 : vector<3x16xf32>
    %234 = math.exp %233 : vector<3x16xf32>
    %cst_163 = arith.constant dense<0.000000e+00> : vector<3xf32>
    %235 = vector.multi_reduction <add>, %234, %cst_163 [1] : vector<3x16xf32> to vector<3xf32>
    %236 = vector.shape_cast %235 : vector<3xf32> to vector<3x1xf32>
    %237 = vector.broadcast %236 : vector<3x1xf32> to vector<3x16xf32>
    %238 = arith.divf %234, %237 : vector<3x16xf32>
    %239 = arith.mulf %238, %216 : vector<3x16xf32>
    %cst_164 = arith.constant dense<0.000000e+00> : vector<3xf32>
    %240 = vector.multi_reduction <add>, %239, %cst_164 [1] : vector<3x16xf32> to vector<3xf32>
    %241 = vector.shape_cast %240 : vector<3xf32> to vector<3x1xf32>
    %cst_165 = arith.constant 9.99999974E-6 : f32
    %242 = vector.broadcast %cst_165 : f32 to vector<3x1xf32>
    %243 = arith.maximumf %241, %242 : vector<3x1xf32>
    %244 = vector.shape_cast %239 : vector<3x16xf32> to vector<3x1x16xf32>
    %245 = arith.extf %214 : vector<3x16x32xbf16> to vector<3x16x32xf32>
    "tpu.trace_start"() <{level = 10 : i32, message = "bkn,bna->bka"}> : () -> ()
    %cst_166 = arith.constant dense<0.000000e+00> : vector<3x1x32xf32>
    %246 = tpu.matmul %244, %245, %cst_166 {dimension_numbers = #tpu.dot_dimension_numbers<[2], [1], [1], [2], [0, 0, 0, 1, 1, 2], [0], [0]>} : vector<3x1x16xf32>, vector<3x16x32xf32>, vector<3x1x32xf32> -> vector<3x1x32xf32>
    "tpu.trace_stop"() : () -> ()
    %247 = vector.shape_cast %246 : vector<3x1x32xf32> to vector<3x32xf32>
    %248 = vector.broadcast %243 : vector<3x1xf32> to vector<3x32xf32>
    %249 = arith.divf %247, %248 : vector<3x32xf32>
    %c0_167 = arith.constant 0 : index
    %c0_168 = arith.constant 0 : index
    %c0_169 = arith.constant 0 : index
    %250 = vector.load %arg12[%c0_167, %c0_168, %c0_169] : memref<2x3x32xf32, #tpu.memory_space<vmem>>, vector<1x3x32xf32>
    %251 = vector.shape_cast %250 : vector<1x3x32xf32> to vector<3x32xf32>
    %c0_170 = arith.constant 0 : index
    %c0_171 = arith.constant 0 : index
    %c0_172 = arith.constant 0 : index
    %252 = vector.load %arg13[%c0_170, %c0_171, %c0_172] : memref<2x3x32xf32, #tpu.memory_space<vmem>>, vector<1x3x32xf32>
    %253 = vector.shape_cast %252 : vector<1x3x32xf32> to vector<3x32xf32>
    %c0_173 = arith.constant 0 : index
    %c0_174 = arith.constant 0 : index
    %c0_175 = arith.constant 0 : index
    %254 = vector.load %arg6[%c0_173, %c0_174, %c0_175] : memref<4x32x32xf32, #tpu.memory_space<vmem>>, vector<1x32x32xf32>
    %255 = vector.shape_cast %254 : vector<1x32x32xf32> to vector<32x32xf32>
    %cst_176 = arith.constant dense<0.000000e+00> : vector<3x32xf32>
    %256 = tpu.matmul %249, %255, %cst_176 {dimension_numbers = #tpu.dot_dimension_numbers<[1], [0], [0], [1], [0, 0, 1, 1], [], []>} : vector<3x32xf32>, vector<32x32xf32>, vector<3x32xf32> -> vector<3x32xf32>
    %c0_177 = arith.constant 0 : index
    %c0_178 = arith.constant 0 : index
    %c0_179 = arith.constant 0 : index
    %257 = vector.load %arg7[%c0_177, %c0_178, %c0_179] : memref<4x32x32xf32, #tpu.memory_space<vmem>>, vector<1x32x32xf32>
    %258 = vector.shape_cast %257 : vector<1x32x32xf32> to vector<32x32xf32>
    %cst_180 = arith.constant dense<0.000000e+00> : vector<3x32xf32>
    %259 = tpu.matmul %251, %258, %cst_180 {dimension_numbers = #tpu.dot_dimension_numbers<[1], [0], [0], [1], [0, 0, 1, 1], [], []>} : vector<3x32xf32>, vector<32x32xf32>, vector<3x32xf32> -> vector<3x32xf32>
    %260 = arith.addf %256, %259 : vector<3x32xf32>
    %c0_181 = arith.constant 0 : index
    %c0_182 = arith.constant 0 : index
    %c0_183 = arith.constant 0 : index
    %261 = vector.load %arg8[%c0_181, %c0_182, %c0_183] : memref<4x1x32xf32, #tpu.memory_space<vmem>>, vector<1x1x32xf32>
    %262 = vector.shape_cast %261 : vector<1x1x32xf32> to vector<1x32xf32>
    %263 = vector.broadcast %262 : vector<1x32xf32> to vector<3x32xf32>
    %264 = arith.addf %260, %263 : vector<3x32xf32>
    %c1_184 = arith.constant 1 : index
    %c0_185 = arith.constant 0 : index
    %c0_186 = arith.constant 0 : index
    %265 = vector.load %arg6[%c1_184, %c0_185, %c0_186] : memref<4x32x32xf32, #tpu.memory_space<vmem>>, vector<1x32x32xf32>
    %266 = vector.shape_cast %265 : vector<1x32x32xf32> to vector<32x32xf32>
    %cst_187 = arith.constant dense<0.000000e+00> : vector<3x32xf32>
    %267 = tpu.matmul %249, %266, %cst_187 {dimension_numbers = #tpu.dot_dimension_numbers<[1], [0], [0], [1], [0, 0, 1, 1], [], []>} : vector<3x32xf32>, vector<32x32xf32>, vector<3x32xf32> -> vector<3x32xf32>
    %c1_188 = arith.constant 1 : index
    %c0_189 = arith.constant 0 : index
    %c0_190 = arith.constant 0 : index
    %268 = vector.load %arg7[%c1_188, %c0_189, %c0_190] : memref<4x32x32xf32, #tpu.memory_space<vmem>>, vector<1x32x32xf32>
    %269 = vector.shape_cast %268 : vector<1x32x32xf32> to vector<32x32xf32>
    %cst_191 = arith.constant dense<0.000000e+00> : vector<3x32xf32>
    %270 = tpu.matmul %251, %269, %cst_191 {dimension_numbers = #tpu.dot_dimension_numbers<[1], [0], [0], [1], [0, 0, 1, 1], [], []>} : vector<3x32xf32>, vector<32x32xf32>, vector<3x32xf32> -> vector<3x32xf32>
    %271 = arith.addf %267, %270 : vector<3x32xf32>
    %c1_192 = arith.constant 1 : index
    %c0_193 = arith.constant 0 : index
    %c0_194 = arith.constant 0 : index
    %272 = vector.load %arg8[%c1_192, %c0_193, %c0_194] : memref<4x1x32xf32, #tpu.memory_space<vmem>>, vector<1x1x32xf32>
    %273 = vector.shape_cast %272 : vector<1x1x32xf32> to vector<1x32xf32>
    %274 = vector.broadcast %273 : vector<1x32xf32> to vector<3x32xf32>
    %275 = arith.addf %271, %274 : vector<3x32xf32>
    %c2_195 = arith.constant 2 : index
    %c0_196 = arith.constant 0 : index
    %c0_197 = arith.constant 0 : index
    %276 = vector.load %arg6[%c2_195, %c0_196, %c0_197] : memref<4x32x32xf32, #tpu.memory_space<vmem>>, vector<1x32x32xf32>
    %277 = vector.shape_cast %276 : vector<1x32x32xf32> to vector<32x32xf32>
    %cst_198 = arith.constant dense<0.000000e+00> : vector<3x32xf32>
    %278 = tpu.matmul %249, %277, %cst_198 {dimension_numbers = #tpu.dot_dimension_numbers<[1], [0], [0], [1], [0, 0, 1, 1], [], []>} : vector<3x32xf32>, vector<32x32xf32>, vector<3x32xf32> -> vector<3x32xf32>
    %c2_199 = arith.constant 2 : index
    %c0_200 = arith.constant 0 : index
    %c0_201 = arith.constant 0 : index
    %279 = vector.load %arg7[%c2_199, %c0_200, %c0_201] : memref<4x32x32xf32, #tpu.memory_space<vmem>>, vector<1x32x32xf32>
    %280 = vector.shape_cast %279 : vector<1x32x32xf32> to vector<32x32xf32>
    %cst_202 = arith.constant dense<0.000000e+00> : vector<3x32xf32>
    %281 = tpu.matmul %251, %280, %cst_202 {dimension_numbers = #tpu.dot_dimension_numbers<[1], [0], [0], [1], [0, 0, 1, 1], [], []>} : vector<3x32xf32>, vector<32x32xf32>, vector<3x32xf32> -> vector<3x32xf32>
    %282 = arith.addf %278, %281 : vector<3x32xf32>
    %c2_203 = arith.constant 2 : index
    %c0_204 = arith.constant 0 : index
    %c0_205 = arith.constant 0 : index
    %283 = vector.load %arg8[%c2_203, %c0_204, %c0_205] : memref<4x1x32xf32, #tpu.memory_space<vmem>>, vector<1x1x32xf32>
    %284 = vector.shape_cast %283 : vector<1x1x32xf32> to vector<1x32xf32>
    %285 = vector.broadcast %284 : vector<1x32xf32> to vector<3x32xf32>
    %286 = arith.addf %282, %285 : vector<3x32xf32>
    %c3_206 = arith.constant 3 : index
    %c0_207 = arith.constant 0 : index
    %c0_208 = arith.constant 0 : index
    %287 = vector.load %arg6[%c3_206, %c0_207, %c0_208] : memref<4x32x32xf32, #tpu.memory_space<vmem>>, vector<1x32x32xf32>
    %288 = vector.shape_cast %287 : vector<1x32x32xf32> to vector<32x32xf32>
    %cst_209 = arith.constant dense<0.000000e+00> : vector<3x32xf32>
    %289 = tpu.matmul %249, %288, %cst_209 {dimension_numbers = #tpu.dot_dimension_numbers<[1], [0], [0], [1], [0, 0, 1, 1], [], []>} : vector<3x32xf32>, vector<32x32xf32>, vector<3x32xf32> -> vector<3x32xf32>
    %c3_210 = arith.constant 3 : index
    %c0_211 = arith.constant 0 : index
    %c0_212 = arith.constant 0 : index
    %290 = vector.load %arg7[%c3_210, %c0_211, %c0_212] : memref<4x32x32xf32, #tpu.memory_space<vmem>>, vector<1x32x32xf32>
    %291 = vector.shape_cast %290 : vector<1x32x32xf32> to vector<32x32xf32>
    %cst_213 = arith.constant dense<0.000000e+00> : vector<3x32xf32>
    %292 = tpu.matmul %251, %291, %cst_213 {dimension_numbers = #tpu.dot_dimension_numbers<[1], [0], [0], [1], [0, 0, 1, 1], [], []>} : vector<3x32xf32>, vector<32x32xf32>, vector<3x32xf32> -> vector<3x32xf32>
    %293 = arith.addf %289, %292 : vector<3x32xf32>
    %c3_214 = arith.constant 3 : index
    %c0_215 = arith.constant 0 : index
    %c0_216 = arith.constant 0 : index
    %294 = vector.load %arg8[%c3_214, %c0_215, %c0_216] : memref<4x1x32xf32, #tpu.memory_space<vmem>>, vector<1x1x32xf32>
    %295 = vector.shape_cast %294 : vector<1x1x32xf32> to vector<1x32xf32>
    %296 = vector.broadcast %295 : vector<1x32xf32> to vector<3x32xf32>
    %297 = arith.addf %293, %296 : vector<3x32xf32>
    %298 = arith.negf %264 : vector<3x32xf32>
    %299 = math.exp %298 : vector<3x32xf32>
    %cst_217 = arith.constant 1.000000e+00 : f32
    %300 = vector.broadcast %cst_217 : f32 to vector<3x32xf32>
    %301 = arith.addf %300, %299 : vector<3x32xf32>
    %302 = arith.divf %300, %301 : vector<3x32xf32>
    %303 = arith.negf %275 : vector<3x32xf32>
    %304 = math.exp %303 : vector<3x32xf32>
    %cst_218 = arith.constant 1.000000e+00 : f32
    %305 = vector.broadcast %cst_218 : f32 to vector<3x32xf32>
    %306 = arith.addf %305, %304 : vector<3x32xf32>
    %307 = arith.divf %305, %306 : vector<3x32xf32>
    %308 = math.tanh %286 : vector<3x32xf32>
    %309 = arith.negf %297 : vector<3x32xf32>
    %310 = math.exp %309 : vector<3x32xf32>
    %cst_219 = arith.constant 1.000000e+00 : f32
    %311 = vector.broadcast %cst_219 : f32 to vector<3x32xf32>
    %312 = arith.addf %311, %310 : vector<3x32xf32>
    %313 = arith.divf %311, %312 : vector<3x32xf32>
    %314 = arith.mulf %307, %253 : vector<3x32xf32>
    %315 = arith.mulf %302, %308 : vector<3x32xf32>
    %316 = arith.addf %314, %315 : vector<3x32xf32>
    %317 = math.tanh %316 : vector<3x32xf32>
    %318 = arith.mulf %313, %317 : vector<3x32xf32>
    %c0_220 = arith.constant 0 : index
    %c0_221 = arith.constant 0 : index
    %c0_222 = arith.constant 0 : index
    %319 = vector.load %arg12[%c0_220, %c0_221, %c0_222] : memref<2x3x32xf32, #tpu.memory_space<vmem>>, vector<1x3x32xf32>
    %320 = vector.shape_cast %319 : vector<1x3x32xf32> to vector<3x32xf32>
    %321 = vector.shape_cast %318 : vector<3x32xf32> to vector<1x3x32xf32>
    tpu.vector_store %arg12[%c0_220, %c0_221, %c0_222], %321 {strides = array<i32>} : memref<2x3x32xf32, #tpu.memory_space<vmem>>, vector<1x3x32xf32>,
    %c0_223 = arith.constant 0 : index
    %c0_224 = arith.constant 0 : index
    %c0_225 = arith.constant 0 : index
    %322 = vector.load %arg13[%c0_223, %c0_224, %c0_225] : memref<2x3x32xf32, #tpu.memory_space<vmem>>, vector<1x3x32xf32>
    %323 = vector.shape_cast %322 : vector<1x3x32xf32> to vector<3x32xf32>
    %324 = vector.shape_cast %316 : vector<3x32xf32> to vector<1x3x32xf32>
    tpu.vector_store %arg13[%c0_223, %c0_224, %c0_225], %324 {strides = array<i32>} : memref<2x3x32xf32, #tpu.memory_space<vmem>>, vector<1x3x32xf32>,
    %c1_226 = arith.constant 1 : index
    %c0_227 = arith.constant 0 : index
    %c0_228 = arith.constant 0 : index
    %325 = vector.load %arg12[%c1_226, %c0_227, %c0_228] : memref<2x3x32xf32, #tpu.memory_space<vmem>>, vector<1x3x32xf32>
    %326 = vector.shape_cast %325 : vector<1x3x32xf32> to vector<3x32xf32>
    %c1_229 = arith.constant 1 : index
    %c0_230 = arith.constant 0 : index
    %c0_231 = arith.constant 0 : index
    %327 = vector.load %arg13[%c1_229, %c0_230, %c0_231] : memref<2x3x32xf32, #tpu.memory_space<vmem>>, vector<1x3x32xf32>
    %328 = vector.shape_cast %327 : vector<1x3x32xf32> to vector<3x32xf32>
    %c0_232 = arith.constant 0 : index
    %c0_233 = arith.constant 0 : index
    %c0_234 = arith.constant 0 : index
    %329 = vector.load %arg6[%c0_232, %c0_233, %c0_234] : memref<4x32x32xf32, #tpu.memory_space<vmem>>, vector<1x32x32xf32>
    %330 = vector.shape_cast %329 : vector<1x32x32xf32> to vector<32x32xf32>
    %cst_235 = arith.constant dense<0.000000e+00> : vector<3x32xf32>
    %331 = tpu.matmul %318, %330, %cst_235 {dimension_numbers = #tpu.dot_dimension_numbers<[1], [0], [0], [1], [0, 0, 1, 1], [], []>} : vector<3x32xf32>, vector<32x32xf32>, vector<3x32xf32> -> vector<3x32xf32>
    %c0_236 = arith.constant 0 : index
    %c0_237 = arith.constant 0 : index
    %c0_238 = arith.constant 0 : index
    %332 = vector.load %arg7[%c0_236, %c0_237, %c0_238] : memref<4x32x32xf32, #tpu.memory_space<vmem>>, vector<1x32x32xf32>
    %333 = vector.shape_cast %332 : vector<1x32x32xf32> to vector<32x32xf32>
    %cst_239 = arith.constant dense<0.000000e+00> : vector<3x32xf32>
    %334 = tpu.matmul %326, %333, %cst_239 {dimension_numbers = #tpu.dot_dimension_numbers<[1], [0], [0], [1], [0, 0, 1, 1], [], []>} : vector<3x32xf32>, vector<32x32xf32>, vector<3x32xf32> -> vector<3x32xf32>
    %335 = arith.addf %331, %334 : vector<3x32xf32>
    %c0_240 = arith.constant 0 : index
    %c0_241 = arith.constant 0 : index
    %c0_242 = arith.constant 0 : index
    %336 = vector.load %arg8[%c0_240, %c0_241, %c0_242] : memref<4x1x32xf32, #tpu.memory_space<vmem>>, vector<1x1x32xf32>
    %337 = vector.shape_cast %336 : vector<1x1x32xf32> to vector<1x32xf32>
    %338 = vector.broadcast %337 : vector<1x32xf32> to vector<3x32xf32>
    %339 = arith.addf %335, %338 : vector<3x32xf32>
    %c1_243 = arith.constant 1 : index
    %c0_244 = arith.constant 0 : index
    %c0_245 = arith.constant 0 : index
    %340 = vector.load %arg6[%c1_243, %c0_244, %c0_245] : memref<4x32x32xf32, #tpu.memory_space<vmem>>, vector<1x32x32xf32>
    %341 = vector.shape_cast %340 : vector<1x32x32xf32> to vector<32x32xf32>
    %cst_246 = arith.constant dense<0.000000e+00> : vector<3x32xf32>
    %342 = tpu.matmul %318, %341, %cst_246 {dimension_numbers = #tpu.dot_dimension_numbers<[1], [0], [0], [1], [0, 0, 1, 1], [], []>} : vector<3x32xf32>, vector<32x32xf32>, vector<3x32xf32> -> vector<3x32xf32>
    %c1_247 = arith.constant 1 : index
    %c0_248 = arith.constant 0 : index
    %c0_249 = arith.constant 0 : index
    %343 = vector.load %arg7[%c1_247, %c0_248, %c0_249] : memref<4x32x32xf32, #tpu.memory_space<vmem>>, vector<1x32x32xf32>
    %344 = vector.shape_cast %343 : vector<1x32x32xf32> to vector<32x32xf32>
    %cst_250 = arith.constant dense<0.000000e+00> : vector<3x32xf32>
    %345 = tpu.matmul %326, %344, %cst_250 {dimension_numbers = #tpu.dot_dimension_numbers<[1], [0], [0], [1], [0, 0, 1, 1], [], []>} : vector<3x32xf32>, vector<32x32xf32>, vector<3x32xf32> -> vector<3x32xf32>
    %346 = arith.addf %342, %345 : vector<3x32xf32>
    %c1_251 = arith.constant 1 : index
    %c0_252 = arith.constant 0 : index
    %c0_253 = arith.constant 0 : index
    %347 = vector.load %arg8[%c1_251, %c0_252, %c0_253] : memref<4x1x32xf32, #tpu.memory_space<vmem>>, vector<1x1x32xf32>
    %348 = vector.shape_cast %347 : vector<1x1x32xf32> to vector<1x32xf32>
    %349 = vector.broadcast %348 : vector<1x32xf32> to vector<3x32xf32>
    %350 = arith.addf %346, %349 : vector<3x32xf32>
    %c2_254 = arith.constant 2 : index
    %c0_255 = arith.constant 0 : index
    %c0_256 = arith.constant 0 : index
    %351 = vector.load %arg6[%c2_254, %c0_255, %c0_256] : memref<4x32x32xf32, #tpu.memory_space<vmem>>, vector<1x32x32xf32>
    %352 = vector.shape_cast %351 : vector<1x32x32xf32> to vector<32x32xf32>
    %cst_257 = arith.constant dense<0.000000e+00> : vector<3x32xf32>
    %353 = tpu.matmul %318, %352, %cst_257 {dimension_numbers = #tpu.dot_dimension_numbers<[1], [0], [0], [1], [0, 0, 1, 1], [], []>} : vector<3x32xf32>, vector<32x32xf32>, vector<3x32xf32> -> vector<3x32xf32>
    %c2_258 = arith.constant 2 : index
    %c0_259 = arith.constant 0 : index
    %c0_260 = arith.constant 0 : index
    %354 = vector.load %arg7[%c2_258, %c0_259, %c0_260] : memref<4x32x32xf32, #tpu.memory_space<vmem>>, vector<1x32x32xf32>
    %355 = vector.shape_cast %354 : vector<1x32x32xf32> to vector<32x32xf32>
    %cst_261 = arith.constant dense<0.000000e+00> : vector<3x32xf32>
    %356 = tpu.matmul %326, %355, %cst_261 {dimension_numbers = #tpu.dot_dimension_numbers<[1], [0], [0], [1], [0, 0, 1, 1], [], []>} : vector<3x32xf32>, vector<32x32xf32>, vector<3x32xf32> -> vector<3x32xf32>
    %357 = arith.addf %353, %356 : vector<3x32xf32>
    %c2_262 = arith.constant 2 : index
    %c0_263 = arith.constant 0 : index
    %c0_264 = arith.constant 0 : index
    %358 = vector.load %arg8[%c2_262, %c0_263, %c0_264] : memref<4x1x32xf32, #tpu.memory_space<vmem>>, vector<1x1x32xf32>
    %359 = vector.shape_cast %358 : vector<1x1x32xf32> to vector<1x32xf32>
    %360 = vector.broadcast %359 : vector<1x32xf32> to vector<3x32xf32>
    %361 = arith.addf %357, %360 : vector<3x32xf32>
    %c3_265 = arith.constant 3 : index
    %c0_266 = arith.constant 0 : index
    %c0_267 = arith.constant 0 : index
    %362 = vector.load %arg6[%c3_265, %c0_266, %c0_267] : memref<4x32x32xf32, #tpu.memory_space<vmem>>, vector<1x32x32xf32>
    %363 = vector.shape_cast %362 : vector<1x32x32xf32> to vector<32x32xf32>
    %cst_268 = arith.constant dense<0.000000e+00> : vector<3x32xf32>
    %364 = tpu.matmul %318, %363, %cst_268 {dimension_numbers = #tpu.dot_dimension_numbers<[1], [0], [0], [1], [0, 0, 1, 1], [], []>} : vector<3x32xf32>, vector<32x32xf32>, vector<3x32xf32> -> vector<3x32xf32>
    %c3_269 = arith.constant 3 : index
    %c0_270 = arith.constant 0 : index
    %c0_271 = arith.constant 0 : index
    %365 = vector.load %arg7[%c3_269, %c0_270, %c0_271] : memref<4x32x32xf32, #tpu.memory_space<vmem>>, vector<1x32x32xf32>
    %366 = vector.shape_cast %365 : vector<1x32x32xf32> to vector<32x32xf32>
    %cst_272 = arith.constant dense<0.000000e+00> : vector<3x32xf32>
    %367 = tpu.matmul %326, %366, %cst_272 {dimension_numbers = #tpu.dot_dimension_numbers<[1], [0], [0], [1], [0, 0, 1, 1], [], []>} : vector<3x32xf32>, vector<32x32xf32>, vector<3x32xf32> -> vector<3x32xf32>
    %368 = arith.addf %364, %367 : vector<3x32xf32>
    %c3_273 = arith.constant 3 : index
    %c0_274 = arith.constant 0 : index
    %c0_275 = arith.constant 0 : index
    %369 = vector.load %arg8[%c3_273, %c0_274, %c0_275] : memref<4x1x32xf32, #tpu.memory_space<vmem>>, vector<1x1x32xf32>
    %370 = vector.shape_cast %369 : vector<1x1x32xf32> to vector<1x32xf32>
    %371 = vector.broadcast %370 : vector<1x32xf32> to vector<3x32xf32>
    %372 = arith.addf %368, %371 : vector<3x32xf32>
    %373 = arith.negf %339 : vector<3x32xf32>
    %374 = math.exp %373 : vector<3x32xf32>
    %cst_276 = arith.constant 1.000000e+00 : f32
    %375 = vector.broadcast %cst_276 : f32 to vector<3x32xf32>
    %376 = arith.addf %375, %374 : vector<3x32xf32>
    %377 = arith.divf %375, %376 : vector<3x32xf32>
    %378 = arith.negf %350 : vector<3x32xf32>
    %379 = math.exp %378 : vector<3x32xf32>
    %cst_277 = arith.constant 1.000000e+00 : f32
    %380 = vector.broadcast %cst_277 : f32 to vector<3x32xf32>
    %381 = arith.addf %380, %379 : vector<3x32xf32>
    %382 = arith.divf %380, %381 : vector<3x32xf32>
    %383 = math.tanh %361 : vector<3x32xf32>
    %384 = arith.negf %372 : vector<3x32xf32>
    %385 = math.exp %384 : vector<3x32xf32>
    %cst_278 = arith.constant 1.000000e+00 : f32
    %386 = vector.broadcast %cst_278 : f32 to vector<3x32xf32>
    %387 = arith.addf %386, %385 : vector<3x32xf32>
    %388 = arith.divf %386, %387 : vector<3x32xf32>
    %389 = arith.mulf %382, %328 : vector<3x32xf32>
    %390 = arith.mulf %377, %383 : vector<3x32xf32>
    %391 = arith.addf %389, %390 : vector<3x32xf32>
    %392 = math.tanh %391 : vector<3x32xf32>
    %393 = arith.mulf %388, %392 : vector<3x32xf32>
    %c1_279 = arith.constant 1 : index
    %c0_280 = arith.constant 0 : index
    %c0_281 = arith.constant 0 : index
    %394 = vector.load %arg12[%c1_279, %c0_280, %c0_281] : memref<2x3x32xf32, #tpu.memory_space<vmem>>, vector<1x3x32xf32>
    %395 = vector.shape_cast %394 : vector<1x3x32xf32> to vector<3x32xf32>
    %396 = vector.shape_cast %393 : vector<3x32xf32> to vector<1x3x32xf32>
    tpu.vector_store %arg12[%c1_279, %c0_280, %c0_281], %396 {strides = array<i32>} : memref<2x3x32xf32, #tpu.memory_space<vmem>>, vector<1x3x32xf32>,
    %c1_282 = arith.constant 1 : index
    %c0_283 = arith.constant 0 : index
    %c0_284 = arith.constant 0 : index
    %397 = vector.load %arg13[%c1_282, %c0_283, %c0_284] : memref<2x3x32xf32, #tpu.memory_space<vmem>>, vector<1x3x32xf32>
    %398 = vector.shape_cast %397 : vector<1x3x32xf32> to vector<3x32xf32>
    %399 = vector.shape_cast %391 : vector<3x32xf32> to vector<1x3x32xf32>
    tpu.vector_store %arg13[%c1_282, %c0_283, %c0_284], %399 {strides = array<i32>} : memref<2x3x32xf32, #tpu.memory_space<vmem>>, vector<1x3x32xf32>,
    %cst_285 = arith.constant dense<0.000000e+00> : vector<3x8xf32>
    %400 = tpu.matmul %393, %7, %cst_285 {dimension_numbers = #tpu.dot_dimension_numbers<[1], [0], [0], [1], [0, 0, 1, 1], [], []>} : vector<3x32xf32>, vector<32x8xf32>, vector<3x8xf32> -> vector<3x8xf32>
    %401 = vector.broadcast %8 : vector<1x8xf32> to vector<3x8xf32>
    %402 = arith.addf %400, %401 : vector<3x8xf32>
    %cst_286 = arith.constant dense<0xFF800000> : vector<3xf32>
    %403 = vector.multi_reduction <maximumf>, %402, %cst_286 [1] : vector<3x8xf32> to vector<3xf32>
    %404 = vector.shape_cast %403 : vector<3xf32> to vector<3x1xf32>
    %405 = vector.broadcast %404 : vector<3x1xf32> to vector<3x8xf32>
    %406 = arith.subf %402, %405 : vector<3x8xf32>
    %407 = math.exp %406 : vector<3x8xf32>
    %cst_287 = arith.constant dense<0.000000e+00> : vector<3xf32>
    %408 = vector.multi_reduction <add>, %407, %cst_287 [1] : vector<3x8xf32> to vector<3xf32>
    %409 = vector.shape_cast %408 : vector<3xf32> to vector<3x1xf32>
    %410 = vector.broadcast %409 : vector<3x1xf32> to vector<3x8xf32>
    %411 = arith.divf %407, %410 : vector<3x8xf32>
    %cst_288 = arith.constant 0.000000e+00 : f32
    %412 = vector.broadcast %cst_288 : f32 to vector<3x96xf32>
    %413 = tpu.concatenate %402, %411, %239, %412 in 1 : vector<3x8xf32>, vector<3x8xf32>, vector<3x16xf32>, vector<3x96xf32> -> vector<3x128xf32>
    %c1_289 = arith.constant 1 : index
    %c0_290 = arith.constant 0 : index
    %c0_291 = arith.constant 0 : index
    %414 = vector.load %arg11[%c1_289, %c0_290, %c0_291] : memref<4x3x128xf32, #tpu.memory_space<vmem>>, vector<1x3x128xf32>
    %415 = vector.shape_cast %414 : vector<1x3x128xf32> to vector<3x128xf32>
    %416 = vector.shape_cast %413 : vector<3x128xf32> to vector<1x3x128xf32>
    tpu.vector_store %arg11[%c1_289, %c0_290, %c0_291], %416 {strides = array<i32>} : memref<4x3x128xf32, #tpu.memory_space<vmem>>, vector<1x3x128xf32>,
    %c2_292 = arith.constant 2 : index
    %c0_293 = arith.constant 0 : index
    %c0_294 = arith.constant 0 : index
    %c0_295 = arith.constant 0 : index
    %417 = vector.load %arg1[%c2_292, %c0_293, %c0_294, %c0_295] : memref<4x3x16x32xbf16, #tpu.memory_space<vmem>>, vector<1x3x16x32xbf16>
    %418 = vector.shape_cast %417 : vector<1x3x16x32xbf16> to vector<3x16x32xbf16>
    %c2_296 = arith.constant 2 : index
    %c0_297 = arith.constant 0 : index
    %c0_298 = arith.constant 0 : index
    %419 = vector.load %arg2[%c2_296, %c0_297, %c0_298] : memref<4x3x16xf32, #tpu.memory_space<vmem>>, vector<1x3x16xf32>
    %420 = vector.shape_cast %419 : vector<1x3x16xf32> to vector<3x16xf32>
    %c1_299 = arith.constant 1 : index
    %c0_300 = arith.constant 0 : index
    %c0_301 = arith.constant 0 : index
    %421 = vector.load %arg12[%c1_299, %c0_300, %c0_301] : memref<2x3x32xf32, #tpu.memory_space<vmem>>, vector<1x3x32xf32>
    %422 = vector.shape_cast %421 : vector<1x3x32xf32> to vector<3x32xf32>
    %423 = vector.shape_cast %418 : vector<3x16x32xbf16> to vector<48x32xbf16>
    %cst_302 = arith.constant dense<0.000000e+00> : vector<48x32xf32>
    %424 = tpu.matmul %423, %3, %cst_302 {dimension_numbers = #tpu.dot_dimension_numbers<[1], [0], [0], [1], [0, 0, 1, 1], [], []>} : vector<48x32xbf16>, vector<32x32xbf16>, vector<48x32xf32> -> vector<48x32xf32>
    %425 = vector.shape_cast %424 : vector<48x32xf32> to vector<3x16x32xf32>
    %cst_303 = arith.constant dense<0.000000e+00> : vector<3x32xf32>
    %426 = tpu.matmul %422, %4, %cst_303 {dimension_numbers = #tpu.dot_dimension_numbers<[1], [0], [0], [1], [0, 0, 1, 1], [], []>} : vector<3x32xf32>, vector<32x32xf32>, vector<3x32xf32> -> vector<3x32xf32>
    %427 = vector.shape_cast %426 : vector<3x32xf32> to vector<3x1x32xf32>
    %428 = vector.broadcast %427 : vector<3x1x32xf32> to vector<3x16x32xf32>
    %429 = arith.addf %425, %428 : vector<3x16x32xf32>
    %430 = math.tanh %429 : vector<3x16x32xf32>
    %431 = vector.broadcast %6 : vector<1x1x32xf32> to vector<3x16x32xf32>
    %432 = arith.mulf %430, %431 : vector<3x16x32xf32>
    %cst_304 = arith.constant dense<0.000000e+00> : vector<3x16xf32>
    %433 = vector.multi_reduction <add>, %432, %cst_304 [2] : vector<3x16x32xf32> to vector<3x16xf32>
    %cst_305 = arith.constant dense<0xFF800000> : vector<3xf32>
    %434 = vector.multi_reduction <maximumf>, %433, %cst_305 [1] : vector<3x16xf32> to vector<3xf32>
    %435 = vector.shape_cast %434 : vector<3xf32> to vector<3x1xf32>
    %436 = vector.broadcast %435 : vector<3x1xf32> to vector<3x16xf32>
    %437 = arith.subf %433, %436 : vector<3x16xf32>
    %438 = math.exp %437 : vector<3x16xf32>
    %cst_306 = arith.constant dense<0.000000e+00> : vector<3xf32>
    %439 = vector.multi_reduction <add>, %438, %cst_306 [1] : vector<3x16xf32> to vector<3xf32>
    %440 = vector.shape_cast %439 : vector<3xf32> to vector<3x1xf32>
    %441 = vector.broadcast %440 : vector<3x1xf32> to vector<3x16xf32>
    %442 = arith.divf %438, %441 : vector<3x16xf32>
    %443 = arith.mulf %442, %420 : vector<3x16xf32>
    %cst_307 = arith.constant dense<0.000000e+00> : vector<3xf32>
    %444 = vector.multi_reduction <add>, %443, %cst_307 [1] : vector<3x16xf32> to vector<3xf32>
    %445 = vector.shape_cast %444 : vector<3xf32> to vector<3x1xf32>
    %cst_308 = arith.constant 9.99999974E-6 : f32
    %446 = vector.broadcast %cst_308 : f32 to vector<3x1xf32>
    %447 = arith.maximumf %445, %446 : vector<3x1xf32>
    %448 = vector.shape_cast %443 : vector<3x16xf32> to vector<3x1x16xf32>
    %449 = arith.extf %418 : vector<3x16x32xbf16> to vector<3x16x32xf32>
    "tpu.trace_start"() <{level = 10 : i32, message = "bkn,bna->bka"}> : () -> ()
    %cst_309 = arith.constant dense<0.000000e+00> : vector<3x1x32xf32>
    %450 = tpu.matmul %448, %449, %cst_309 {dimension_numbers = #tpu.dot_dimension_numbers<[2], [1], [1], [2], [0, 0, 0, 1, 1, 2], [0], [0]>} : vector<3x1x16xf32>, vector<3x16x32xf32>, vector<3x1x32xf32> -> vector<3x1x32xf32>
    "tpu.trace_stop"() : () -> ()
    %451 = vector.shape_cast %450 : vector<3x1x32xf32> to vector<3x32xf32>
    %452 = vector.broadcast %447 : vector<3x1xf32> to vector<3x32xf32>
    %453 = arith.divf %451, %452 : vector<3x32xf32>
    %c0_310 = arith.constant 0 : index
    %c0_311 = arith.constant 0 : index
    %c0_312 = arith.constant 0 : index
    %454 = vector.load %arg12[%c0_310, %c0_311, %c0_312] : memref<2x3x32xf32, #tpu.memory_space<vmem>>, vector<1x3x32xf32>
    %455 = vector.shape_cast %454 : vector<1x3x32xf32> to vector<3x32xf32>
    %c0_313 = arith.constant 0 : index
    %c0_314 = arith.constant 0 : index
    %c0_315 = arith.constant 0 : index
    %456 = vector.load %arg13[%c0_313, %c0_314, %c0_315] : memref<2x3x32xf32, #tpu.memory_space<vmem>>, vector<1x3x32xf32>
    %457 = vector.shape_cast %456 : vector<1x3x32xf32> to vector<3x32xf32>
    %c0_316 = arith.constant 0 : index
    %c0_317 = arith.constant 0 : index
    %c0_318 = arith.constant 0 : index
    %458 = vector.load %arg6[%c0_316, %c0_317, %c0_318] : memref<4x32x32xf32, #tpu.memory_space<vmem>>, vector<1x32x32xf32>
    %459 = vector.shape_cast %458 : vector<1x32x32xf32> to vector<32x32xf32>
    %cst_319 = arith.constant dense<0.000000e+00> : vector<3x32xf32>
    %460 = tpu.matmul %453, %459, %cst_319 {dimension_numbers = #tpu.dot_dimension_numbers<[1], [0], [0], [1], [0, 0, 1, 1], [], []>} : vector<3x32xf32>, vector<32x32xf32>, vector<3x32xf32> -> vector<3x32xf32>
    %c0_320 = arith.constant 0 : index
    %c0_321 = arith.constant 0 : index
    %c0_322 = arith.constant 0 : index
    %461 = vector.load %arg7[%c0_320, %c0_321, %c0_322] : memref<4x32x32xf32, #tpu.memory_space<vmem>>, vector<1x32x32xf32>
    %462 = vector.shape_cast %461 : vector<1x32x32xf32> to vector<32x32xf32>
    %cst_323 = arith.constant dense<0.000000e+00> : vector<3x32xf32>
    %463 = tpu.matmul %455, %462, %cst_323 {dimension_numbers = #tpu.dot_dimension_numbers<[1], [0], [0], [1], [0, 0, 1, 1], [], []>} : vector<3x32xf32>, vector<32x32xf32>, vector<3x32xf32> -> vector<3x32xf32>
    %464 = arith.addf %460, %463 : vector<3x32xf32>
    %c0_324 = arith.constant 0 : index
    %c0_325 = arith.constant 0 : index
    %c0_326 = arith.constant 0 : index
    %465 = vector.load %arg8[%c0_324, %c0_325, %c0_326] : memref<4x1x32xf32, #tpu.memory_space<vmem>>, vector<1x1x32xf32>
    %466 = vector.shape_cast %465 : vector<1x1x32xf32> to vector<1x32xf32>
    %467 = vector.broadcast %466 : vector<1x32xf32> to vector<3x32xf32>
    %468 = arith.addf %464, %467 : vector<3x32xf32>
    %c1_327 = arith.constant 1 : index
    %c0_328 = arith.constant 0 : index
    %c0_329 = arith.constant 0 : index
    %469 = vector.load %arg6[%c1_327, %c0_328, %c0_329] : memref<4x32x32xf32, #tpu.memory_space<vmem>>, vector<1x32x32xf32>
    %470 = vector.shape_cast %469 : vector<1x32x32xf32> to vector<32x32xf32>
    %cst_330 = arith.constant dense<0.000000e+00> : vector<3x32xf32>
    %471 = tpu.matmul %453, %470, %cst_330 {dimension_numbers = #tpu.dot_dimension_numbers<[1], [0], [0], [1], [0, 0, 1, 1], [], []>} : vector<3x32xf32>, vector<32x32xf32>, vector<3x32xf32> -> vector<3x32xf32>
    %c1_331 = arith.constant 1 : index
    %c0_332 = arith.constant 0 : index
    %c0_333 = arith.constant 0 : index
    %472 = vector.load %arg7[%c1_331, %c0_332, %c0_333] : memref<4x32x32xf32, #tpu.memory_space<vmem>>, vector<1x32x32xf32>
    %473 = vector.shape_cast %472 : vector<1x32x32xf32> to vector<32x32xf32>
    %cst_334 = arith.constant dense<0.000000e+00> : vector<3x32xf32>
    %474 = tpu.matmul %455, %473, %cst_334 {dimension_numbers = #tpu.dot_dimension_numbers<[1], [0], [0], [1], [0, 0, 1, 1], [], []>} : vector<3x32xf32>, vector<32x32xf32>, vector<3x32xf32> -> vector<3x32xf32>
    %475 = arith.addf %471, %474 : vector<3x32xf32>
    %c1_335 = arith.constant 1 : index
    %c0_336 = arith.constant 0 : index
    %c0_337 = arith.constant 0 : index
    %476 = vector.load %arg8[%c1_335, %c0_336, %c0_337] : memref<4x1x32xf32, #tpu.memory_space<vmem>>, vector<1x1x32xf32>
    %477 = vector.shape_cast %476 : vector<1x1x32xf32> to vector<1x32xf32>
    %478 = vector.broadcast %477 : vector<1x32xf32> to vector<3x32xf32>
    %479 = arith.addf %475, %478 : vector<3x32xf32>
    %c2_338 = arith.constant 2 : index
    %c0_339 = arith.constant 0 : index
    %c0_340 = arith.constant 0 : index
    %480 = vector.load %arg6[%c2_338, %c0_339, %c0_340] : memref<4x32x32xf32, #tpu.memory_space<vmem>>, vector<1x32x32xf32>
    %481 = vector.shape_cast %480 : vector<1x32x32xf32> to vector<32x32xf32>
    %cst_341 = arith.constant dense<0.000000e+00> : vector<3x32xf32>
    %482 = tpu.matmul %453, %481, %cst_341 {dimension_numbers = #tpu.dot_dimension_numbers<[1], [0], [0], [1], [0, 0, 1, 1], [], []>} : vector<3x32xf32>, vector<32x32xf32>, vector<3x32xf32> -> vector<3x32xf32>
    %c2_342 = arith.constant 2 : index
    %c0_343 = arith.constant 0 : index
    %c0_344 = arith.constant 0 : index
    %483 = vector.load %arg7[%c2_342, %c0_343, %c0_344] : memref<4x32x32xf32, #tpu.memory_space<vmem>>, vector<1x32x32xf32>
    %484 = vector.shape_cast %483 : vector<1x32x32xf32> to vector<32x32xf32>
    %cst_345 = arith.constant dense<0.000000e+00> : vector<3x32xf32>
    %485 = tpu.matmul %455, %484, %cst_345 {dimension_numbers = #tpu.dot_dimension_numbers<[1], [0], [0], [1], [0, 0, 1, 1], [], []>} : vector<3x32xf32>, vector<32x32xf32>, vector<3x32xf32> -> vector<3x32xf32>
    %486 = arith.addf %482, %485 : vector<3x32xf32>
    %c2_346 = arith.constant 2 : index
    %c0_347 = arith.constant 0 : index
    %c0_348 = arith.constant 0 : index
    %487 = vector.load %arg8[%c2_346, %c0_347, %c0_348] : memref<4x1x32xf32, #tpu.memory_space<vmem>>, vector<1x1x32xf32>
    %488 = vector.shape_cast %487 : vector<1x1x32xf32> to vector<1x32xf32>
    %489 = vector.broadcast %488 : vector<1x32xf32> to vector<3x32xf32>
    %490 = arith.addf %486, %489 : vector<3x32xf32>
    %c3_349 = arith.constant 3 : index
    %c0_350 = arith.constant 0 : index
    %c0_351 = arith.constant 0 : index
    %491 = vector.load %arg6[%c3_349, %c0_350, %c0_351] : memref<4x32x32xf32, #tpu.memory_space<vmem>>, vector<1x32x32xf32>
    %492 = vector.shape_cast %491 : vector<1x32x32xf32> to vector<32x32xf32>
    %cst_352 = arith.constant dense<0.000000e+00> : vector<3x32xf32>
    %493 = tpu.matmul %453, %492, %cst_352 {dimension_numbers = #tpu.dot_dimension_numbers<[1], [0], [0], [1], [0, 0, 1, 1], [], []>} : vector<3x32xf32>, vector<32x32xf32>, vector<3x32xf32> -> vector<3x32xf32>
    %c3_353 = arith.constant 3 : index
    %c0_354 = arith.constant 0 : index
    %c0_355 = arith.constant 0 : index
    %494 = vector.load %arg7[%c3_353, %c0_354, %c0_355] : memref<4x32x32xf32, #tpu.memory_space<vmem>>, vector<1x32x32xf32>
    %495 = vector.shape_cast %494 : vector<1x32x32xf32> to vector<32x32xf32>
    %cst_356 = arith.constant dense<0.000000e+00> : vector<3x32xf32>
    %496 = tpu.matmul %455, %495, %cst_356 {dimension_numbers = #tpu.dot_dimension_numbers<[1], [0], [0], [1], [0, 0, 1, 1], [], []>} : vector<3x32xf32>, vector<32x32xf32>, vector<3x32xf32> -> vector<3x32xf32>
    %497 = arith.addf %493, %496 : vector<3x32xf32>
    %c3_357 = arith.constant 3 : index
    %c0_358 = arith.constant 0 : index
    %c0_359 = arith.constant 0 : index
    %498 = vector.load %arg8[%c3_357, %c0_358, %c0_359] : memref<4x1x32xf32, #tpu.memory_space<vmem>>, vector<1x1x32xf32>
    %499 = vector.shape_cast %498 : vector<1x1x32xf32> to vector<1x32xf32>
    %500 = vector.broadcast %499 : vector<1x32xf32> to vector<3x32xf32>
    %501 = arith.addf %497, %500 : vector<3x32xf32>
    %502 = arith.negf %468 : vector<3x32xf32>
    %503 = math.exp %502 : vector<3x32xf32>
    %cst_360 = arith.constant 1.000000e+00 : f32
    %504 = vector.broadcast %cst_360 : f32 to vector<3x32xf32>
    %505 = arith.addf %504, %503 : vector<3x32xf32>
    %506 = arith.divf %504, %505 : vector<3x32xf32>
    %507 = arith.negf %479 : vector<3x32xf32>
    %508 = math.exp %507 : vector<3x32xf32>
    %cst_361 = arith.constant 1.000000e+00 : f32
    %509 = vector.broadcast %cst_361 : f32 to vector<3x32xf32>
    %510 = arith.addf %509, %508 : vector<3x32xf32>
    %511 = arith.divf %509, %510 : vector<3x32xf32>
    %512 = math.tanh %490 : vector<3x32xf32>
    %513 = arith.negf %501 : vector<3x32xf32>
    %514 = math.exp %513 : vector<3x32xf32>
    %cst_362 = arith.constant 1.000000e+00 : f32
    %515 = vector.broadcast %cst_362 : f32 to vector<3x32xf32>
    %516 = arith.addf %515, %514 : vector<3x32xf32>
    %517 = arith.divf %515, %516 : vector<3x32xf32>
    %518 = arith.mulf %511, %457 : vector<3x32xf32>
    %519 = arith.mulf %506, %512 : vector<3x32xf32>
    %520 = arith.addf %518, %519 : vector<3x32xf32>
    %521 = math.tanh %520 : vector<3x32xf32>
    %522 = arith.mulf %517, %521 : vector<3x32xf32>
    %c0_363 = arith.constant 0 : index
    %c0_364 = arith.constant 0 : index
    %c0_365 = arith.constant 0 : index
    %523 = vector.load %arg12[%c0_363, %c0_364, %c0_365] : memref<2x3x32xf32, #tpu.memory_space<vmem>>, vector<1x3x32xf32>
    %524 = vector.shape_cast %523 : vector<1x3x32xf32> to vector<3x32xf32>
    %525 = vector.shape_cast %522 : vector<3x32xf32> to vector<1x3x32xf32>
    tpu.vector_store %arg12[%c0_363, %c0_364, %c0_365], %525 {strides = array<i32>} : memref<2x3x32xf32, #tpu.memory_space<vmem>>, vector<1x3x32xf32>,
    %c0_366 = arith.constant 0 : index
    %c0_367 = arith.constant 0 : index
    %c0_368 = arith.constant 0 : index
    %526 = vector.load %arg13[%c0_366, %c0_367, %c0_368] : memref<2x3x32xf32, #tpu.memory_space<vmem>>, vector<1x3x32xf32>
    %527 = vector.shape_cast %526 : vector<1x3x32xf32> to vector<3x32xf32>
    %528 = vector.shape_cast %520 : vector<3x32xf32> to vector<1x3x32xf32>
    tpu.vector_store %arg13[%c0_366, %c0_367, %c0_368], %528 {strides = array<i32>} : memref<2x3x32xf32, #tpu.memory_space<vmem>>, vector<1x3x32xf32>,
    %c1_369 = arith.constant 1 : index
    %c0_370 = arith.constant 0 : index
    %c0_371 = arith.constant 0 : index
    %529 = vector.load %arg12[%c1_369, %c0_370, %c0_371] : memref<2x3x32xf32, #tpu.memory_space<vmem>>, vector<1x3x32xf32>
    %530 = vector.shape_cast %529 : vector<1x3x32xf32> to vector<3x32xf32>
    %c1_372 = arith.constant 1 : index
    %c0_373 = arith.constant 0 : index
    %c0_374 = arith.constant 0 : index
    %531 = vector.load %arg13[%c1_372, %c0_373, %c0_374] : memref<2x3x32xf32, #tpu.memory_space<vmem>>, vector<1x3x32xf32>
    %532 = vector.shape_cast %531 : vector<1x3x32xf32> to vector<3x32xf32>
    %c0_375 = arith.constant 0 : index
    %c0_376 = arith.constant 0 : index
    %c0_377 = arith.constant 0 : index
    %533 = vector.load %arg6[%c0_375, %c0_376, %c0_377] : memref<4x32x32xf32, #tpu.memory_space<vmem>>, vector<1x32x32xf32>
    %534 = vector.shape_cast %533 : vector<1x32x32xf32> to vector<32x32xf32>
    %cst_378 = arith.constant dense<0.000000e+00> : vector<3x32xf32>
    %535 = tpu.matmul %522, %534, %cst_378 {dimension_numbers = #tpu.dot_dimension_numbers<[1], [0], [0], [1], [0, 0, 1, 1], [], []>} : vector<3x32xf32>, vector<32x32xf32>, vector<3x32xf32> -> vector<3x32xf32>
    %c0_379 = arith.constant 0 : index
    %c0_380 = arith.constant 0 : index
    %c0_381 = arith.constant 0 : index
    %536 = vector.load %arg7[%c0_379, %c0_380, %c0_381] : memref<4x32x32xf32, #tpu.memory_space<vmem>>, vector<1x32x32xf32>
    %537 = vector.shape_cast %536 : vector<1x32x32xf32> to vector<32x32xf32>
    %cst_382 = arith.constant dense<0.000000e+00> : vector<3x32xf32>
    %538 = tpu.matmul %530, %537, %cst_382 {dimension_numbers = #tpu.dot_dimension_numbers<[1], [0], [0], [1], [0, 0, 1, 1], [], []>} : vector<3x32xf32>, vector<32x32xf32>, vector<3x32xf32> -> vector<3x32xf32>
    %539 = arith.addf %535, %538 : vector<3x32xf32>
    %c0_383 = arith.constant 0 : index
    %c0_384 = arith.constant 0 : index
    %c0_385 = arith.constant 0 : index
    %540 = vector.load %arg8[%c0_383, %c0_384, %c0_385] : memref<4x1x32xf32, #tpu.memory_space<vmem>>, vector<1x1x32xf32>
    %541 = vector.shape_cast %540 : vector<1x1x32xf32> to vector<1x32xf32>
    %542 = vector.broadcast %541 : vector<1x32xf32> to vector<3x32xf32>
    %543 = arith.addf %539, %542 : vector<3x32xf32>
    %c1_386 = arith.constant 1 : index
    %c0_387 = arith.constant 0 : index
    %c0_388 = arith.constant 0 : index
    %544 = vector.load %arg6[%c1_386, %c0_387, %c0_388] : memref<4x32x32xf32, #tpu.memory_space<vmem>>, vector<1x32x32xf32>
    %545 = vector.shape_cast %544 : vector<1x32x32xf32> to vector<32x32xf32>
    %cst_389 = arith.constant dense<0.000000e+00> : vector<3x32xf32>
    %546 = tpu.matmul %522, %545, %cst_389 {dimension_numbers = #tpu.dot_dimension_numbers<[1], [0], [0], [1], [0, 0, 1, 1], [], []>} : vector<3x32xf32>, vector<32x32xf32>, vector<3x32xf32> -> vector<3x32xf32>
    %c1_390 = arith.constant 1 : index
    %c0_391 = arith.constant 0 : index
    %c0_392 = arith.constant 0 : index
    %547 = vector.load %arg7[%c1_390, %c0_391, %c0_392] : memref<4x32x32xf32, #tpu.memory_space<vmem>>, vector<1x32x32xf32>
    %548 = vector.shape_cast %547 : vector<1x32x32xf32> to vector<32x32xf32>
    %cst_393 = arith.constant dense<0.000000e+00> : vector<3x32xf32>
    %549 = tpu.matmul %530, %548, %cst_393 {dimension_numbers = #tpu.dot_dimension_numbers<[1], [0], [0], [1], [0, 0, 1, 1], [], []>} : vector<3x32xf32>, vector<32x32xf32>, vector<3x32xf32> -> vector<3x32xf32>
    %550 = arith.addf %546, %549 : vector<3x32xf32>
    %c1_394 = arith.constant 1 : index
    %c0_395 = arith.constant 0 : index
    %c0_396 = arith.constant 0 : index
    %551 = vector.load %arg8[%c1_394, %c0_395, %c0_396] : memref<4x1x32xf32, #tpu.memory_space<vmem>>, vector<1x1x32xf32>
    %552 = vector.shape_cast %551 : vector<1x1x32xf32> to vector<1x32xf32>
    %553 = vector.broadcast %552 : vector<1x32xf32> to vector<3x32xf32>
    %554 = arith.addf %550, %553 : vector<3x32xf32>
    %c2_397 = arith.constant 2 : index
    %c0_398 = arith.constant 0 : index
    %c0_399 = arith.constant 0 : index
    %555 = vector.load %arg6[%c2_397, %c0_398, %c0_399] : memref<4x32x32xf32, #tpu.memory_space<vmem>>, vector<1x32x32xf32>
    %556 = vector.shape_cast %555 : vector<1x32x32xf32> to vector<32x32xf32>
    %cst_400 = arith.constant dense<0.000000e+00> : vector<3x32xf32>
    %557 = tpu.matmul %522, %556, %cst_400 {dimension_numbers = #tpu.dot_dimension_numbers<[1], [0], [0], [1], [0, 0, 1, 1], [], []>} : vector<3x32xf32>, vector<32x32xf32>, vector<3x32xf32> -> vector<3x32xf32>
    %c2_401 = arith.constant 2 : index
    %c0_402 = arith.constant 0 : index
    %c0_403 = arith.constant 0 : index
    %558 = vector.load %arg7[%c2_401, %c0_402, %c0_403] : memref<4x32x32xf32, #tpu.memory_space<vmem>>, vector<1x32x32xf32>
    %559 = vector.shape_cast %558 : vector<1x32x32xf32> to vector<32x32xf32>
    %cst_404 = arith.constant dense<0.000000e+00> : vector<3x32xf32>
    %560 = tpu.matmul %530, %559, %cst_404 {dimension_numbers = #tpu.dot_dimension_numbers<[1], [0], [0], [1], [0, 0, 1, 1], [], []>} : vector<3x32xf32>, vector<32x32xf32>, vector<3x32xf32> -> vector<3x32xf32>
    %561 = arith.addf %557, %560 : vector<3x32xf32>
    %c2_405 = arith.constant 2 : index
    %c0_406 = arith.constant 0 : index
    %c0_407 = arith.constant 0 : index
    %562 = vector.load %arg8[%c2_405, %c0_406, %c0_407] : memref<4x1x32xf32, #tpu.memory_space<vmem>>, vector<1x1x32xf32>
    %563 = vector.shape_cast %562 : vector<1x1x32xf32> to vector<1x32xf32>
    %564 = vector.broadcast %563 : vector<1x32xf32> to vector<3x32xf32>
    %565 = arith.addf %561, %564 : vector<3x32xf32>
    %c3_408 = arith.constant 3 : index
    %c0_409 = arith.constant 0 : index
    %c0_410 = arith.constant 0 : index
    %566 = vector.load %arg6[%c3_408, %c0_409, %c0_410] : memref<4x32x32xf32, #tpu.memory_space<vmem>>, vector<1x32x32xf32>
    %567 = vector.shape_cast %566 : vector<1x32x32xf32> to vector<32x32xf32>
    %cst_411 = arith.constant dense<0.000000e+00> : vector<3x32xf32>
    %568 = tpu.matmul %522, %567, %cst_411 {dimension_numbers = #tpu.dot_dimension_numbers<[1], [0], [0], [1], [0, 0, 1, 1], [], []>} : vector<3x32xf32>, vector<32x32xf32>, vector<3x32xf32> -> vector<3x32xf32>
    %c3_412 = arith.constant 3 : index
    %c0_413 = arith.constant 0 : index
    %c0_414 = arith.constant 0 : index
    %569 = vector.load %arg7[%c3_412, %c0_413, %c0_414] : memref<4x32x32xf32, #tpu.memory_space<vmem>>, vector<1x32x32xf32>
    %570 = vector.shape_cast %569 : vector<1x32x32xf32> to vector<32x32xf32>
    %cst_415 = arith.constant dense<0.000000e+00> : vector<3x32xf32>
    %571 = tpu.matmul %530, %570, %cst_415 {dimension_numbers = #tpu.dot_dimension_numbers<[1], [0], [0], [1], [0, 0, 1, 1], [], []>} : vector<3x32xf32>, vector<32x32xf32>, vector<3x32xf32> -> vector<3x32xf32>
    %572 = arith.addf %568, %571 : vector<3x32xf32>
    %c3_416 = arith.constant 3 : index
    %c0_417 = arith.constant 0 : index
    %c0_418 = arith.constant 0 : index
    %573 = vector.load %arg8[%c3_416, %c0_417, %c0_418] : memref<4x1x32xf32, #tpu.memory_space<vmem>>, vector<1x1x32xf32>
    %574 = vector.shape_cast %573 : vector<1x1x32xf32> to vector<1x32xf32>
    %575 = vector.broadcast %574 : vector<1x32xf32> to vector<3x32xf32>
    %576 = arith.addf %572, %575 : vector<3x32xf32>
    %577 = arith.negf %543 : vector<3x32xf32>
    %578 = math.exp %577 : vector<3x32xf32>
    %cst_419 = arith.constant 1.000000e+00 : f32
    %579 = vector.broadcast %cst_419 : f32 to vector<3x32xf32>
    %580 = arith.addf %579, %578 : vector<3x32xf32>
    %581 = arith.divf %579, %580 : vector<3x32xf32>
    %582 = arith.negf %554 : vector<3x32xf32>
    %583 = math.exp %582 : vector<3x32xf32>
    %cst_420 = arith.constant 1.000000e+00 : f32
    %584 = vector.broadcast %cst_420 : f32 to vector<3x32xf32>
    %585 = arith.addf %584, %583 : vector<3x32xf32>
    %586 = arith.divf %584, %585 : vector<3x32xf32>
    %587 = math.tanh %565 : vector<3x32xf32>
    %588 = arith.negf %576 : vector<3x32xf32>
    %589 = math.exp %588 : vector<3x32xf32>
    %cst_421 = arith.constant 1.000000e+00 : f32
    %590 = vector.broadcast %cst_421 : f32 to vector<3x32xf32>
    %591 = arith.addf %590, %589 : vector<3x32xf32>
    %592 = arith.divf %590, %591 : vector<3x32xf32>
    %593 = arith.mulf %586, %532 : vector<3x32xf32>
    %594 = arith.mulf %581, %587 : vector<3x32xf32>
    %595 = arith.addf %593, %594 : vector<3x32xf32>
    %596 = math.tanh %595 : vector<3x32xf32>
    %597 = arith.mulf %592, %596 : vector<3x32xf32>
    %c1_422 = arith.constant 1 : index
    %c0_423 = arith.constant 0 : index
    %c0_424 = arith.constant 0 : index
    %598 = vector.load %arg12[%c1_422, %c0_423, %c0_424] : memref<2x3x32xf32, #tpu.memory_space<vmem>>, vector<1x3x32xf32>
    %599 = vector.shape_cast %598 : vector<1x3x32xf32> to vector<3x32xf32>
    %600 = vector.shape_cast %597 : vector<3x32xf32> to vector<1x3x32xf32>
    tpu.vector_store %arg12[%c1_422, %c0_423, %c0_424], %600 {strides = array<i32>} : memref<2x3x32xf32, #tpu.memory_space<vmem>>, vector<1x3x32xf32>,
    %c1_425 = arith.constant 1 : index
    %c0_426 = arith.constant 0 : index
    %c0_427 = arith.constant 0 : index
    %601 = vector.load %arg13[%c1_425, %c0_426, %c0_427] : memref<2x3x32xf32, #tpu.memory_space<vmem>>, vector<1x3x32xf32>
    %602 = vector.shape_cast %601 : vector<1x3x32xf32> to vector<3x32xf32>
    %603 = vector.shape_cast %595 : vector<3x32xf32> to vector<1x3x32xf32>
    tpu.vector_store %arg13[%c1_425, %c0_426, %c0_427], %603 {strides = array<i32>} : memref<2x3x32xf32, #tpu.memory_space<vmem>>, vector<1x3x32xf32>,
    %cst_428 = arith.constant dense<0.000000e+00> : vector<3x8xf32>
    %604 = tpu.matmul %597, %7, %cst_428 {dimension_numbers = #tpu.dot_dimension_numbers<[1], [0], [0], [1], [0, 0, 1, 1], [], []>} : vector<3x32xf32>, vector<32x8xf32>, vector<3x8xf32> -> vector<3x8xf32>
    %605 = vector.broadcast %8 : vector<1x8xf32> to vector<3x8xf32>
    %606 = arith.addf %604, %605 : vector<3x8xf32>
    %cst_429 = arith.constant dense<0xFF800000> : vector<3xf32>
    %607 = vector.multi_reduction <maximumf>, %606, %cst_429 [1] : vector<3x8xf32> to vector<3xf32>
    %608 = vector.shape_cast %607 : vector<3xf32> to vector<3x1xf32>
    %609 = vector.broadcast %608 : vector<3x1xf32> to vector<3x8xf32>
    %610 = arith.subf %606, %609 : vector<3x8xf32>
    %611 = math.exp %610 : vector<3x8xf32>
    %cst_430 = arith.constant dense<0.000000e+00> : vector<3xf32>
    %612 = vector.multi_reduction <add>, %611, %cst_430 [1] : vector<3x8xf32> to vector<3xf32>
    %613 = vector.shape_cast %612 : vector<3xf32> to vector<3x1xf32>
    %614 = vector.broadcast %613 : vector<3x1xf32> to vector<3x8xf32>
    %615 = arith.divf %611, %614 : vector<3x8xf32>
    %cst_431 = arith.constant 0.000000e+00 : f32
    %616 = vector.broadcast %cst_431 : f32 to vector<3x96xf32>
    %617 = tpu.concatenate %606, %615, %443, %616 in 1 : vector<3x8xf32>, vector<3x8xf32>, vector<3x16xf32>, vector<3x96xf32> -> vector<3x128xf32>
    %c2_432 = arith.constant 2 : index
    %c0_433 = arith.constant 0 : index
    %c0_434 = arith.constant 0 : index
    %618 = vector.load %arg11[%c2_432, %c0_433, %c0_434] : memref<4x3x128xf32, #tpu.memory_space<vmem>>, vector<1x3x128xf32>
    %619 = vector.shape_cast %618 : vector<1x3x128xf32> to vector<3x128xf32>
    %620 = vector.shape_cast %617 : vector<3x128xf32> to vector<1x3x128xf32>
    tpu.vector_store %arg11[%c2_432, %c0_433, %c0_434], %620 {strides = array<i32>} : memref<4x3x128xf32, #tpu.memory_space<vmem>>, vector<1x3x128xf32>,
    %c3_435 = arith.constant 3 : index
    %c0_436 = arith.constant 0 : index
    %c0_437 = arith.constant 0 : index
    %c0_438 = arith.constant 0 : index
    %621 = vector.load %arg1[%c3_435, %c0_436, %c0_437, %c0_438] : memref<4x3x16x32xbf16, #tpu.memory_space<vmem>>, vector<1x3x16x32xbf16>
    %622 = vector.shape_cast %621 : vector<1x3x16x32xbf16> to vector<3x16x32xbf16>
    %c3_439 = arith.constant 3 : index
    %c0_440 = arith.constant 0 : index
    %c0_441 = arith.constant 0 : index
    %623 = vector.load %arg2[%c3_439, %c0_440, %c0_441] : memref<4x3x16xf32, #tpu.memory_space<vmem>>, vector<1x3x16xf32>
    %624 = vector.shape_cast %623 : vector<1x3x16xf32> to vector<3x16xf32>
    %c1_442 = arith.constant 1 : index
    %c0_443 = arith.constant 0 : index
    %c0_444 = arith.constant 0 : index
    %625 = vector.load %arg12[%c1_442, %c0_443, %c0_444] : memref<2x3x32xf32, #tpu.memory_space<vmem>>, vector<1x3x32xf32>
    %626 = vector.shape_cast %625 : vector<1x3x32xf32> to vector<3x32xf32>
    %627 = vector.shape_cast %622 : vector<3x16x32xbf16> to vector<48x32xbf16>
    %cst_445 = arith.constant dense<0.000000e+00> : vector<48x32xf32>
    %628 = tpu.matmul %627, %3, %cst_445 {dimension_numbers = #tpu.dot_dimension_numbers<[1], [0], [0], [1], [0, 0, 1, 1], [], []>} : vector<48x32xbf16>, vector<32x32xbf16>, vector<48x32xf32> -> vector<48x32xf32>
    %629 = vector.shape_cast %628 : vector<48x32xf32> to vector<3x16x32xf32>
    %cst_446 = arith.constant dense<0.000000e+00> : vector<3x32xf32>
    %630 = tpu.matmul %626, %4, %cst_446 {dimension_numbers = #tpu.dot_dimension_numbers<[1], [0], [0], [1], [0, 0, 1, 1], [], []>} : vector<3x32xf32>, vector<32x32xf32>, vector<3x32xf32> -> vector<3x32xf32>
    %631 = vector.shape_cast %630 : vector<3x32xf32> to vector<3x1x32xf32>
    %632 = vector.broadcast %631 : vector<3x1x32xf32> to vector<3x16x32xf32>
    %633 = arith.addf %629, %632 : vector<3x16x32xf32>
    %634 = math.tanh %633 : vector<3x16x32xf32>
    %635 = vector.broadcast %6 : vector<1x1x32xf32> to vector<3x16x32xf32>
    %636 = arith.mulf %634, %635 : vector<3x16x32xf32>
    %cst_447 = arith.constant dense<0.000000e+00> : vector<3x16xf32>
    %637 = vector.multi_reduction <add>, %636, %cst_447 [2] : vector<3x16x32xf32> to vector<3x16xf32>
    %cst_448 = arith.constant dense<0xFF800000> : vector<3xf32>
    %638 = vector.multi_reduction <maximumf>, %637, %cst_448 [1] : vector<3x16xf32> to vector<3xf32>
    %639 = vector.shape_cast %638 : vector<3xf32> to vector<3x1xf32>
    %640 = vector.broadcast %639 : vector<3x1xf32> to vector<3x16xf32>
    %641 = arith.subf %637, %640 : vector<3x16xf32>
    %642 = math.exp %641 : vector<3x16xf32>
    %cst_449 = arith.constant dense<0.000000e+00> : vector<3xf32>
    %643 = vector.multi_reduction <add>, %642, %cst_449 [1] : vector<3x16xf32> to vector<3xf32>
    %644 = vector.shape_cast %643 : vector<3xf32> to vector<3x1xf32>
    %645 = vector.broadcast %644 : vector<3x1xf32> to vector<3x16xf32>
    %646 = arith.divf %642, %645 : vector<3x16xf32>
    %647 = arith.mulf %646, %624 : vector<3x16xf32>
    %cst_450 = arith.constant dense<0.000000e+00> : vector<3xf32>
    %648 = vector.multi_reduction <add>, %647, %cst_450 [1] : vector<3x16xf32> to vector<3xf32>
    %649 = vector.shape_cast %648 : vector<3xf32> to vector<3x1xf32>
    %cst_451 = arith.constant 9.99999974E-6 : f32
    %650 = vector.broadcast %cst_451 : f32 to vector<3x1xf32>
    %651 = arith.maximumf %649, %650 : vector<3x1xf32>
    %652 = vector.shape_cast %647 : vector<3x16xf32> to vector<3x1x16xf32>
    %653 = arith.extf %622 : vector<3x16x32xbf16> to vector<3x16x32xf32>
    "tpu.trace_start"() <{level = 10 : i32, message = "bkn,bna->bka"}> : () -> ()
    %cst_452 = arith.constant dense<0.000000e+00> : vector<3x1x32xf32>
    %654 = tpu.matmul %652, %653, %cst_452 {dimension_numbers = #tpu.dot_dimension_numbers<[2], [1], [1], [2], [0, 0, 0, 1, 1, 2], [0], [0]>} : vector<3x1x16xf32>, vector<3x16x32xf32>, vector<3x1x32xf32> -> vector<3x1x32xf32>
    "tpu.trace_stop"() : () -> ()
    %655 = vector.shape_cast %654 : vector<3x1x32xf32> to vector<3x32xf32>
    %656 = vector.broadcast %651 : vector<3x1xf32> to vector<3x32xf32>
    %657 = arith.divf %655, %656 : vector<3x32xf32>
    %c0_453 = arith.constant 0 : index
    %c0_454 = arith.constant 0 : index
    %c0_455 = arith.constant 0 : index
    %658 = vector.load %arg12[%c0_453, %c0_454, %c0_455] : memref<2x3x32xf32, #tpu.memory_space<vmem>>, vector<1x3x32xf32>
    %659 = vector.shape_cast %658 : vector<1x3x32xf32> to vector<3x32xf32>
    %c0_456 = arith.constant 0 : index
    %c0_457 = arith.constant 0 : index
    %c0_458 = arith.constant 0 : index
    %660 = vector.load %arg13[%c0_456, %c0_457, %c0_458] : memref<2x3x32xf32, #tpu.memory_space<vmem>>, vector<1x3x32xf32>
    %661 = vector.shape_cast %660 : vector<1x3x32xf32> to vector<3x32xf32>
    %c0_459 = arith.constant 0 : index
    %c0_460 = arith.constant 0 : index
    %c0_461 = arith.constant 0 : index
    %662 = vector.load %arg6[%c0_459, %c0_460, %c0_461] : memref<4x32x32xf32, #tpu.memory_space<vmem>>, vector<1x32x32xf32>
    %663 = vector.shape_cast %662 : vector<1x32x32xf32> to vector<32x32xf32>
    %cst_462 = arith.constant dense<0.000000e+00> : vector<3x32xf32>
    %664 = tpu.matmul %657, %663, %cst_462 {dimension_numbers = #tpu.dot_dimension_numbers<[1], [0], [0], [1], [0, 0, 1, 1], [], []>} : vector<3x32xf32>, vector<32x32xf32>, vector<3x32xf32> -> vector<3x32xf32>
    %c0_463 = arith.constant 0 : index
    %c0_464 = arith.constant 0 : index
    %c0_465 = arith.constant 0 : index
    %665 = vector.load %arg7[%c0_463, %c0_464, %c0_465] : memref<4x32x32xf32, #tpu.memory_space<vmem>>, vector<1x32x32xf32>
    %666 = vector.shape_cast %665 : vector<1x32x32xf32> to vector<32x32xf32>
    %cst_466 = arith.constant dense<0.000000e+00> : vector<3x32xf32>
    %667 = tpu.matmul %659, %666, %cst_466 {dimension_numbers = #tpu.dot_dimension_numbers<[1], [0], [0], [1], [0, 0, 1, 1], [], []>} : vector<3x32xf32>, vector<32x32xf32>, vector<3x32xf32> -> vector<3x32xf32>
    %668 = arith.addf %664, %667 : vector<3x32xf32>
    %c0_467 = arith.constant 0 : index
    %c0_468 = arith.constant 0 : index
    %c0_469 = arith.constant 0 : index
    %669 = vector.load %arg8[%c0_467, %c0_468, %c0_469] : memref<4x1x32xf32, #tpu.memory_space<vmem>>, vector<1x1x32xf32>
    %670 = vector.shape_cast %669 : vector<1x1x32xf32> to vector<1x32xf32>
    %671 = vector.broadcast %670 : vector<1x32xf32> to vector<3x32xf32>
    %672 = arith.addf %668, %671 : vector<3x32xf32>
    %c1_470 = arith.constant 1 : index
    %c0_471 = arith.constant 0 : index
    %c0_472 = arith.constant 0 : index
    %673 = vector.load %arg6[%c1_470, %c0_471, %c0_472] : memref<4x32x32xf32, #tpu.memory_space<vmem>>, vector<1x32x32xf32>
    %674 = vector.shape_cast %673 : vector<1x32x32xf32> to vector<32x32xf32>
    %cst_473 = arith.constant dense<0.000000e+00> : vector<3x32xf32>
    %675 = tpu.matmul %657, %674, %cst_473 {dimension_numbers = #tpu.dot_dimension_numbers<[1], [0], [0], [1], [0, 0, 1, 1], [], []>} : vector<3x32xf32>, vector<32x32xf32>, vector<3x32xf32> -> vector<3x32xf32>
    %c1_474 = arith.constant 1 : index
    %c0_475 = arith.constant 0 : index
    %c0_476 = arith.constant 0 : index
    %676 = vector.load %arg7[%c1_474, %c0_475, %c0_476] : memref<4x32x32xf32, #tpu.memory_space<vmem>>, vector<1x32x32xf32>
    %677 = vector.shape_cast %676 : vector<1x32x32xf32> to vector<32x32xf32>
    %cst_477 = arith.constant dense<0.000000e+00> : vector<3x32xf32>
    %678 = tpu.matmul %659, %677, %cst_477 {dimension_numbers = #tpu.dot_dimension_numbers<[1], [0], [0], [1], [0, 0, 1, 1], [], []>} : vector<3x32xf32>, vector<32x32xf32>, vector<3x32xf32> -> vector<3x32xf32>
    %679 = arith.addf %675, %678 : vector<3x32xf32>
    %c1_478 = arith.constant 1 : index
    %c0_479 = arith.constant 0 : index
    %c0_480 = arith.constant 0 : index
    %680 = vector.load %arg8[%c1_478, %c0_479, %c0_480] : memref<4x1x32xf32, #tpu.memory_space<vmem>>, vector<1x1x32xf32>
    %681 = vector.shape_cast %680 : vector<1x1x32xf32> to vector<1x32xf32>
    %682 = vector.broadcast %681 : vector<1x32xf32> to vector<3x32xf32>
    %683 = arith.addf %679, %682 : vector<3x32xf32>
    %c2_481 = arith.constant 2 : index
    %c0_482 = arith.constant 0 : index
    %c0_483 = arith.constant 0 : index
    %684 = vector.load %arg6[%c2_481, %c0_482, %c0_483] : memref<4x32x32xf32, #tpu.memory_space<vmem>>, vector<1x32x32xf32>
    %685 = vector.shape_cast %684 : vector<1x32x32xf32> to vector<32x32xf32>
    %cst_484 = arith.constant dense<0.000000e+00> : vector<3x32xf32>
    %686 = tpu.matmul %657, %685, %cst_484 {dimension_numbers = #tpu.dot_dimension_numbers<[1], [0], [0], [1], [0, 0, 1, 1], [], []>} : vector<3x32xf32>, vector<32x32xf32>, vector<3x32xf32> -> vector<3x32xf32>
    %c2_485 = arith.constant 2 : index
    %c0_486 = arith.constant 0 : index
    %c0_487 = arith.constant 0 : index
    %687 = vector.load %arg7[%c2_485, %c0_486, %c0_487] : memref<4x32x32xf32, #tpu.memory_space<vmem>>, vector<1x32x32xf32>
    %688 = vector.shape_cast %687 : vector<1x32x32xf32> to vector<32x32xf32>
    %cst_488 = arith.constant dense<0.000000e+00> : vector<3x32xf32>
    %689 = tpu.matmul %659, %688, %cst_488 {dimension_numbers = #tpu.dot_dimension_numbers<[1], [0], [0], [1], [0, 0, 1, 1], [], []>} : vector<3x32xf32>, vector<32x32xf32>, vector<3x32xf32> -> vector<3x32xf32>
    %690 = arith.addf %686, %689 : vector<3x32xf32>
    %c2_489 = arith.constant 2 : index
    %c0_490 = arith.constant 0 : index
    %c0_491 = arith.constant 0 : index
    %691 = vector.load %arg8[%c2_489, %c0_490, %c0_491] : memref<4x1x32xf32, #tpu.memory_space<vmem>>, vector<1x1x32xf32>
    %692 = vector.shape_cast %691 : vector<1x1x32xf32> to vector<1x32xf32>
    %693 = vector.broadcast %692 : vector<1x32xf32> to vector<3x32xf32>
    %694 = arith.addf %690, %693 : vector<3x32xf32>
    %c3_492 = arith.constant 3 : index
    %c0_493 = arith.constant 0 : index
    %c0_494 = arith.constant 0 : index
    %695 = vector.load %arg6[%c3_492, %c0_493, %c0_494] : memref<4x32x32xf32, #tpu.memory_space<vmem>>, vector<1x32x32xf32>
    %696 = vector.shape_cast %695 : vector<1x32x32xf32> to vector<32x32xf32>
    %cst_495 = arith.constant dense<0.000000e+00> : vector<3x32xf32>
    %697 = tpu.matmul %657, %696, %cst_495 {dimension_numbers = #tpu.dot_dimension_numbers<[1], [0], [0], [1], [0, 0, 1, 1], [], []>} : vector<3x32xf32>, vector<32x32xf32>, vector<3x32xf32> -> vector<3x32xf32>
    %c3_496 = arith.constant 3 : index
    %c0_497 = arith.constant 0 : index
    %c0_498 = arith.constant 0 : index
    %698 = vector.load %arg7[%c3_496, %c0_497, %c0_498] : memref<4x32x32xf32, #tpu.memory_space<vmem>>, vector<1x32x32xf32>
    %699 = vector.shape_cast %698 : vector<1x32x32xf32> to vector<32x32xf32>
    %cst_499 = arith.constant dense<0.000000e+00> : vector<3x32xf32>
    %700 = tpu.matmul %659, %699, %cst_499 {dimension_numbers = #tpu.dot_dimension_numbers<[1], [0], [0], [1], [0, 0, 1, 1], [], []>} : vector<3x32xf32>, vector<32x32xf32>, vector<3x32xf32> -> vector<3x32xf32>
    %701 = arith.addf %697, %700 : vector<3x32xf32>
    %c3_500 = arith.constant 3 : index
    %c0_501 = arith.constant 0 : index
    %c0_502 = arith.constant 0 : index
    %702 = vector.load %arg8[%c3_500, %c0_501, %c0_502] : memref<4x1x32xf32, #tpu.memory_space<vmem>>, vector<1x1x32xf32>
    %703 = vector.shape_cast %702 : vector<1x1x32xf32> to vector<1x32xf32>
    %704 = vector.broadcast %703 : vector<1x32xf32> to vector<3x32xf32>
    %705 = arith.addf %701, %704 : vector<3x32xf32>
    %706 = arith.negf %672 : vector<3x32xf32>
    %707 = math.exp %706 : vector<3x32xf32>
    %cst_503 = arith.constant 1.000000e+00 : f32
    %708 = vector.broadcast %cst_503 : f32 to vector<3x32xf32>
    %709 = arith.addf %708, %707 : vector<3x32xf32>
    %710 = arith.divf %708, %709 : vector<3x32xf32>
    %711 = arith.negf %683 : vector<3x32xf32>
    %712 = math.exp %711 : vector<3x32xf32>
    %cst_504 = arith.constant 1.000000e+00 : f32
    %713 = vector.broadcast %cst_504 : f32 to vector<3x32xf32>
    %714 = arith.addf %713, %712 : vector<3x32xf32>
    %715 = arith.divf %713, %714 : vector<3x32xf32>
    %716 = math.tanh %694 : vector<3x32xf32>
    %717 = arith.negf %705 : vector<3x32xf32>
    %718 = math.exp %717 : vector<3x32xf32>
    %cst_505 = arith.constant 1.000000e+00 : f32
    %719 = vector.broadcast %cst_505 : f32 to vector<3x32xf32>
    %720 = arith.addf %719, %718 : vector<3x32xf32>
    %721 = arith.divf %719, %720 : vector<3x32xf32>
    %722 = arith.mulf %715, %661 : vector<3x32xf32>
    %723 = arith.mulf %710, %716 : vector<3x32xf32>
    %724 = arith.addf %722, %723 : vector<3x32xf32>
    %725 = math.tanh %724 : vector<3x32xf32>
    %726 = arith.mulf %721, %725 : vector<3x32xf32>
    %c0_506 = arith.constant 0 : index
    %c0_507 = arith.constant 0 : index
    %c0_508 = arith.constant 0 : index
    %727 = vector.load %arg12[%c0_506, %c0_507, %c0_508] : memref<2x3x32xf32, #tpu.memory_space<vmem>>, vector<1x3x32xf32>
    %728 = vector.shape_cast %727 : vector<1x3x32xf32> to vector<3x32xf32>
    %729 = vector.shape_cast %726 : vector<3x32xf32> to vector<1x3x32xf32>
    tpu.vector_store %arg12[%c0_506, %c0_507, %c0_508], %729 {strides = array<i32>} : memref<2x3x32xf32, #tpu.memory_space<vmem>>, vector<1x3x32xf32>,
    %c0_509 = arith.constant 0 : index
    %c0_510 = arith.constant 0 : index
    %c0_511 = arith.constant 0 : index
    %730 = vector.load %arg13[%c0_509, %c0_510, %c0_511] : memref<2x3x32xf32, #tpu.memory_space<vmem>>, vector<1x3x32xf32>
    %731 = vector.shape_cast %730 : vector<1x3x32xf32> to vector<3x32xf32>
    %732 = vector.shape_cast %724 : vector<3x32xf32> to vector<1x3x32xf32>
    tpu.vector_store %arg13[%c0_509, %c0_510, %c0_511], %732 {strides = array<i32>} : memref<2x3x32xf32, #tpu.memory_space<vmem>>, vector<1x3x32xf32>,
    %c1_512 = arith.constant 1 : index
    %c0_513 = arith.constant 0 : index
    %c0_514 = arith.constant 0 : index
    %733 = vector.load %arg12[%c1_512, %c0_513, %c0_514] : memref<2x3x32xf32, #tpu.memory_space<vmem>>, vector<1x3x32xf32>
    %734 = vector.shape_cast %733 : vector<1x3x32xf32> to vector<3x32xf32>
    %c1_515 = arith.constant 1 : index
    %c0_516 = arith.constant 0 : index
    %c0_517 = arith.constant 0 : index
    %735 = vector.load %arg13[%c1_515, %c0_516, %c0_517] : memref<2x3x32xf32, #tpu.memory_space<vmem>>, vector<1x3x32xf32>
    %736 = vector.shape_cast %735 : vector<1x3x32xf32> to vector<3x32xf32>
    %c0_518 = arith.constant 0 : index
    %c0_519 = arith.constant 0 : index
    %c0_520 = arith.constant 0 : index
    %737 = vector.load %arg6[%c0_518, %c0_519, %c0_520] : memref<4x32x32xf32, #tpu.memory_space<vmem>>, vector<1x32x32xf32>
    %738 = vector.shape_cast %737 : vector<1x32x32xf32> to vector<32x32xf32>
    %cst_521 = arith.constant dense<0.000000e+00> : vector<3x32xf32>
    %739 = tpu.matmul %726, %738, %cst_521 {dimension_numbers = #tpu.dot_dimension_numbers<[1], [0], [0], [1], [0, 0, 1, 1], [], []>} : vector<3x32xf32>, vector<32x32xf32>, vector<3x32xf32> -> vector<3x32xf32>
    %c0_522 = arith.constant 0 : index
    %c0_523 = arith.constant 0 : index
    %c0_524 = arith.constant 0 : index
    %740 = vector.load %arg7[%c0_522, %c0_523, %c0_524] : memref<4x32x32xf32, #tpu.memory_space<vmem>>, vector<1x32x32xf32>
    %741 = vector.shape_cast %740 : vector<1x32x32xf32> to vector<32x32xf32>
    %cst_525 = arith.constant dense<0.000000e+00> : vector<3x32xf32>
    %742 = tpu.matmul %734, %741, %cst_525 {dimension_numbers = #tpu.dot_dimension_numbers<[1], [0], [0], [1], [0, 0, 1, 1], [], []>} : vector<3x32xf32>, vector<32x32xf32>, vector<3x32xf32> -> vector<3x32xf32>
    %743 = arith.addf %739, %742 : vector<3x32xf32>
    %c0_526 = arith.constant 0 : index
    %c0_527 = arith.constant 0 : index
    %c0_528 = arith.constant 0 : index
    %744 = vector.load %arg8[%c0_526, %c0_527, %c0_528] : memref<4x1x32xf32, #tpu.memory_space<vmem>>, vector<1x1x32xf32>
    %745 = vector.shape_cast %744 : vector<1x1x32xf32> to vector<1x32xf32>
    %746 = vector.broadcast %745 : vector<1x32xf32> to vector<3x32xf32>
    %747 = arith.addf %743, %746 : vector<3x32xf32>
    %c1_529 = arith.constant 1 : index
    %c0_530 = arith.constant 0 : index
    %c0_531 = arith.constant 0 : index
    %748 = vector.load %arg6[%c1_529, %c0_530, %c0_531] : memref<4x32x32xf32, #tpu.memory_space<vmem>>, vector<1x32x32xf32>
    %749 = vector.shape_cast %748 : vector<1x32x32xf32> to vector<32x32xf32>
    %cst_532 = arith.constant dense<0.000000e+00> : vector<3x32xf32>
    %750 = tpu.matmul %726, %749, %cst_532 {dimension_numbers = #tpu.dot_dimension_numbers<[1], [0], [0], [1], [0, 0, 1, 1], [], []>} : vector<3x32xf32>, vector<32x32xf32>, vector<3x32xf32> -> vector<3x32xf32>
    %c1_533 = arith.constant 1 : index
    %c0_534 = arith.constant 0 : index
    %c0_535 = arith.constant 0 : index
    %751 = vector.load %arg7[%c1_533, %c0_534, %c0_535] : memref<4x32x32xf32, #tpu.memory_space<vmem>>, vector<1x32x32xf32>
    %752 = vector.shape_cast %751 : vector<1x32x32xf32> to vector<32x32xf32>
    %cst_536 = arith.constant dense<0.000000e+00> : vector<3x32xf32>
    %753 = tpu.matmul %734, %752, %cst_536 {dimension_numbers = #tpu.dot_dimension_numbers<[1], [0], [0], [1], [0, 0, 1, 1], [], []>} : vector<3x32xf32>, vector<32x32xf32>, vector<3x32xf32> -> vector<3x32xf32>
    %754 = arith.addf %750, %753 : vector<3x32xf32>
    %c1_537 = arith.constant 1 : index
    %c0_538 = arith.constant 0 : index
    %c0_539 = arith.constant 0 : index
    %755 = vector.load %arg8[%c1_537, %c0_538, %c0_539] : memref<4x1x32xf32, #tpu.memory_space<vmem>>, vector<1x1x32xf32>
    %756 = vector.shape_cast %755 : vector<1x1x32xf32> to vector<1x32xf32>
    %757 = vector.broadcast %756 : vector<1x32xf32> to vector<3x32xf32>
    %758 = arith.addf %754, %757 : vector<3x32xf32>
    %c2_540 = arith.constant 2 : index
    %c0_541 = arith.constant 0 : index
    %c0_542 = arith.constant 0 : index
    %759 = vector.load %arg6[%c2_540, %c0_541, %c0_542] : memref<4x32x32xf32, #tpu.memory_space<vmem>>, vector<1x32x32xf32>
    %760 = vector.shape_cast %759 : vector<1x32x32xf32> to vector<32x32xf32>
    %cst_543 = arith.constant dense<0.000000e+00> : vector<3x32xf32>
    %761 = tpu.matmul %726, %760, %cst_543 {dimension_numbers = #tpu.dot_dimension_numbers<[1], [0], [0], [1], [0, 0, 1, 1], [], []>} : vector<3x32xf32>, vector<32x32xf32>, vector<3x32xf32> -> vector<3x32xf32>
    %c2_544 = arith.constant 2 : index
    %c0_545 = arith.constant 0 : index
    %c0_546 = arith.constant 0 : index
    %762 = vector.load %arg7[%c2_544, %c0_545, %c0_546] : memref<4x32x32xf32, #tpu.memory_space<vmem>>, vector<1x32x32xf32>
    %763 = vector.shape_cast %762 : vector<1x32x32xf32> to vector<32x32xf32>
    %cst_547 = arith.constant dense<0.000000e+00> : vector<3x32xf32>
    %764 = tpu.matmul %734, %763, %cst_547 {dimension_numbers = #tpu.dot_dimension_numbers<[1], [0], [0], [1], [0, 0, 1, 1], [], []>} : vector<3x32xf32>, vector<32x32xf32>, vector<3x32xf32> -> vector<3x32xf32>
    %765 = arith.addf %761, %764 : vector<3x32xf32>
    %c2_548 = arith.constant 2 : index
    %c0_549 = arith.constant 0 : index
    %c0_550 = arith.constant 0 : index
    %766 = vector.load %arg8[%c2_548, %c0_549, %c0_550] : memref<4x1x32xf32, #tpu.memory_space<vmem>>, vector<1x1x32xf32>
    %767 = vector.shape_cast %766 : vector<1x1x32xf32> to vector<1x32xf32>
    %768 = vector.broadcast %767 : vector<1x32xf32> to vector<3x32xf32>
    %769 = arith.addf %765, %768 : vector<3x32xf32>
    %c3_551 = arith.constant 3 : index
    %c0_552 = arith.constant 0 : index
    %c0_553 = arith.constant 0 : index
    %770 = vector.load %arg6[%c3_551, %c0_552, %c0_553] : memref<4x32x32xf32, #tpu.memory_space<vmem>>, vector<1x32x32xf32>
    %771 = vector.shape_cast %770 : vector<1x32x32xf32> to vector<32x32xf32>
    %cst_554 = arith.constant dense<0.000000e+00> : vector<3x32xf32>
    %772 = tpu.matmul %726, %771, %cst_554 {dimension_numbers = #tpu.dot_dimension_numbers<[1], [0], [0], [1], [0, 0, 1, 1], [], []>} : vector<3x32xf32>, vector<32x32xf32>, vector<3x32xf32> -> vector<3x32xf32>
    %c3_555 = arith.constant 3 : index
    %c0_556 = arith.constant 0 : index
    %c0_557 = arith.constant 0 : index
    %773 = vector.load %arg7[%c3_555, %c0_556, %c0_557] : memref<4x32x32xf32, #tpu.memory_space<vmem>>, vector<1x32x32xf32>
    %774 = vector.shape_cast %773 : vector<1x32x32xf32> to vector<32x32xf32>
    %cst_558 = arith.constant dense<0.000000e+00> : vector<3x32xf32>
    %775 = tpu.matmul %734, %774, %cst_558 {dimension_numbers = #tpu.dot_dimension_numbers<[1], [0], [0], [1], [0, 0, 1, 1], [], []>} : vector<3x32xf32>, vector<32x32xf32>, vector<3x32xf32> -> vector<3x32xf32>
    %776 = arith.addf %772, %775 : vector<3x32xf32>
    %c3_559 = arith.constant 3 : index
    %c0_560 = arith.constant 0 : index
    %c0_561 = arith.constant 0 : index
    %777 = vector.load %arg8[%c3_559, %c0_560, %c0_561] : memref<4x1x32xf32, #tpu.memory_space<vmem>>, vector<1x1x32xf32>
    %778 = vector.shape_cast %777 : vector<1x1x32xf32> to vector<1x32xf32>
    %779 = vector.broadcast %778 : vector<1x32xf32> to vector<3x32xf32>
    %780 = arith.addf %776, %779 : vector<3x32xf32>
    %781 = arith.negf %747 : vector<3x32xf32>
    %782 = math.exp %781 : vector<3x32xf32>
    %cst_562 = arith.constant 1.000000e+00 : f32
    %783 = vector.broadcast %cst_562 : f32 to vector<3x32xf32>
    %784 = arith.addf %783, %782 : vector<3x32xf32>
    %785 = arith.divf %783, %784 : vector<3x32xf32>
    %786 = arith.negf %758 : vector<3x32xf32>
    %787 = math.exp %786 : vector<3x32xf32>
    %cst_563 = arith.constant 1.000000e+00 : f32
    %788 = vector.broadcast %cst_563 : f32 to vector<3x32xf32>
    %789 = arith.addf %788, %787 : vector<3x32xf32>
    %790 = arith.divf %788, %789 : vector<3x32xf32>
    %791 = math.tanh %769 : vector<3x32xf32>
    %792 = arith.negf %780 : vector<3x32xf32>
    %793 = math.exp %792 : vector<3x32xf32>
    %cst_564 = arith.constant 1.000000e+00 : f32
    %794 = vector.broadcast %cst_564 : f32 to vector<3x32xf32>
    %795 = arith.addf %794, %793 : vector<3x32xf32>
    %796 = arith.divf %794, %795 : vector<3x32xf32>
    %797 = arith.mulf %790, %736 : vector<3x32xf32>
    %798 = arith.mulf %785, %791 : vector<3x32xf32>
    %799 = arith.addf %797, %798 : vector<3x32xf32>
    %800 = math.tanh %799 : vector<3x32xf32>
    %801 = arith.mulf %796, %800 : vector<3x32xf32>
    %c1_565 = arith.constant 1 : index
    %c0_566 = arith.constant 0 : index
    %c0_567 = arith.constant 0 : index
    %802 = vector.load %arg12[%c1_565, %c0_566, %c0_567] : memref<2x3x32xf32, #tpu.memory_space<vmem>>, vector<1x3x32xf32>
    %803 = vector.shape_cast %802 : vector<1x3x32xf32> to vector<3x32xf32>
    %804 = vector.shape_cast %801 : vector<3x32xf32> to vector<1x3x32xf32>
    tpu.vector_store %arg12[%c1_565, %c0_566, %c0_567], %804 {strides = array<i32>} : memref<2x3x32xf32, #tpu.memory_space<vmem>>, vector<1x3x32xf32>,
    %c1_568 = arith.constant 1 : index
    %c0_569 = arith.constant 0 : index
    %c0_570 = arith.constant 0 : index
    %805 = vector.load %arg13[%c1_568, %c0_569, %c0_570] : memref<2x3x32xf32, #tpu.memory_space<vmem>>, vector<1x3x32xf32>
    %806 = vector.shape_cast %805 : vector<1x3x32xf32> to vector<3x32xf32>
    %807 = vector.shape_cast %799 : vector<3x32xf32> to vector<1x3x32xf32>
    tpu.vector_store %arg13[%c1_568, %c0_569, %c0_570], %807 {strides = array<i32>} : memref<2x3x32xf32, #tpu.memory_space<vmem>>, vector<1x3x32xf32>,
    %cst_571 = arith.constant dense<0.000000e+00> : vector<3x8xf32>
    %808 = tpu.matmul %801, %7, %cst_571 {dimension_numbers = #tpu.dot_dimension_numbers<[1], [0], [0], [1], [0, 0, 1, 1], [], []>} : vector<3x32xf32>, vector<32x8xf32>, vector<3x8xf32> -> vector<3x8xf32>
    %809 = vector.broadcast %8 : vector<1x8xf32> to vector<3x8xf32>
    %810 = arith.addf %808, %809 : vector<3x8xf32>
    %cst_572 = arith.constant dense<0xFF800000> : vector<3xf32>
    %811 = vector.multi_reduction <maximumf>, %810, %cst_572 [1] : vector<3x8xf32> to vector<3xf32>
    %812 = vector.shape_cast %811 : vector<3xf32> to vector<3x1xf32>
    %813 = vector.broadcast %812 : vector<3x1xf32> to vector<3x8xf32>
    %814 = arith.subf %810, %813 : vector<3x8xf32>
    %815 = math.exp %814 : vector<3x8xf32>
    %cst_573 = arith.constant dense<0.000000e+00> : vector<3xf32>
    %816 = vector.multi_reduction <add>, %815, %cst_573 [1] : vector<3x8xf32> to vector<3xf32>
    %817 = vector.shape_cast %816 : vector<3xf32> to vector<3x1xf32>
    %818 = vector.broadcast %817 : vector<3x1xf32> to vector<3x8xf32>
    %819 = arith.divf %815, %818 : vector<3x8xf32>
    %cst_574 = arith.constant 0.000000e+00 : f32
    %820 = vector.broadcast %cst_574 : f32 to vector<3x96xf32>
    %821 = tpu.concatenate %810, %819, %647, %820 in 1 : vector<3x8xf32>, vector<3x8xf32>, vector<3x16xf32>, vector<3x96xf32> -> vector<3x128xf32>
    %c3_575 = arith.constant 3 : index
    %c0_576 = arith.constant 0 : index
    %c0_577 = arith.constant 0 : index
    %822 = vector.load %arg11[%c3_575, %c0_576, %c0_577] : memref<4x3x128xf32, #tpu.memory_space<vmem>>, vector<1x3x128xf32>
    %823 = vector.shape_cast %822 : vector<1x3x128xf32> to vector<3x128xf32>
    %824 = vector.shape_cast %821 : vector<3x128xf32> to vector<1x3x128xf32>
    tpu.vector_store %arg11[%c3_575, %c0_576, %c0_577], %824 {strides = array<i32>} : memref<4x3x128xf32, #tpu.memory_space<vmem>>, vector<1x3x128xf32>,
    return
  }
  func.func @transform_0(%arg0: i32) -> (i32, i32, i32, i32) {
    %c0_i32 = arith.constant 0 : i32
    %c0_i32_0 = arith.constant 0 : i32
    %c0_i32_1 = arith.constant 0 : i32
    %c0_i32_2 = arith.constant 0 : i32
    return %arg0, %c0_i32, %c0_i32_0, %c0_i32_1 : i32, i32, i32, i32
  }
  func.func @transform_1(%arg0: i32) -> (i32, i32, i32) {
    %c0_i32 = arith.constant 0 : i32
    %c0_i32_0 = arith.constant 0 : i32
    %c0_i32_1 = arith.constant 0 : i32
    return %arg0, %c0_i32, %c0_i32_0 : i32, i32, i32
  }
  func.func @transform_2(%arg0: i32) -> (i32, i32) {
    %c0_i32 = arith.constant 0 : i32
    %c0_i32_0 = arith.constant 0 : i32
    %c0_i32_1 = arith.constant 0 : i32
    return %c0_i32, %c0_i32_0 : i32, i32
  }
  func.func @transform_3(%arg0: i32) -> (i32, i32) {
    %c0_i32 = arith.constant 0 : i32
    %c0_i32_0 = arith.constant 0 : i32
    %c0_i32_1 = arith.constant 0 : i32
    return %c0_i32, %c0_i32_0 : i32, i32
  }
  func.func @transform_4(%arg0: i32) -> (i32, i32) {
    %c0_i32 = arith.constant 0 : i32
    %c0_i32_0 = arith.constant 0 : i32
    %c0_i32_1 = arith.constant 0 : i32
    return %c0_i32, %c0_i32_0 : i32, i32
  }
  func.func @transform_5(%arg0: i32) -> (i32, i32, i32) {
    %c0_i32 = arith.constant 0 : i32
    %c0_i32_0 = arith.constant 0 : i32
    %c0_i32_1 = arith.constant 0 : i32
    %c0_i32_2 = arith.constant 0 : i32
    return %c0_i32, %c0_i32_0, %c0_i32_1 : i32, i32, i32
  }
  func.func @transform_6(%arg0: i32) -> (i32, i32, i32) {
    %c0_i32 = arith.constant 0 : i32
    %c0_i32_0 = arith.constant 0 : i32
    %c0_i32_1 = arith.constant 0 : i32
    %c0_i32_2 = arith.constant 0 : i32
    return %c0_i32, %c0_i32_0, %c0_i32_1 : i32, i32, i32
  }
  func.func @transform_7(%arg0: i32) -> (i32, i32, i32) {
    %c0_i32 = arith.constant 0 : i32
    %c0_i32_0 = arith.constant 0 : i32
    %c0_i32_1 = arith.constant 0 : i32
    %c0_i32_2 = arith.constant 0 : i32
    return %c0_i32, %c0_i32_0, %c0_i32_1 : i32, i32, i32
  }
  func.func @transform_8(%arg0: i32) -> (i32, i32) {
    %c0_i32 = arith.constant 0 : i32
    %c0_i32_0 = arith.constant 0 : i32
    %c0_i32_1 = arith.constant 0 : i32
    return %c0_i32, %c0_i32_0 : i32, i32
  }
  func.func @transform_9(%arg0: i32) -> (i32, i32) {
    %c0_i32 = arith.constant 0 : i32
    %c0_i32_0 = arith.constant 0 : i32
    %c0_i32_1 = arith.constant 0 : i32
    return %c0_i32, %c0_i32_0 : i32, i32
  }
  func.func @transform_10(%arg0: i32) -> (i32, i32, i32) {
    %c0_i32 = arith.constant 0 : i32
    %c0_i32_0 = arith.constant 0 : i32
    %c0_i32_1 = arith.constant 0 : i32
    return %arg0, %c0_i32, %c0_i32_0 : i32, i32, i32
  }
}

</mosaic_0001>

<llo_original>
// kernel: tpu_custom_call.1
$region0: #{tpu_custom_call.1}
  #allocation0 [shape = 'u32[]', space=smem, size = 0x4, offset = 0x4, fixed_abs, tag = 'smem constant byte address 0x4 - core index']
  #allocation1 [shape = 'u32[144,128]{1,0:T(1,128)}', space=vmem, size = 0x12000, scoped, tag = 'internal scratch']
  #allocation2 [shape = 'f32[2,3,32]{2,1,0:T(4,128)}', space=vmem, size = 0x1000, scoped, tag = 'scratch operand']
  #allocation3 [shape = 'f32[2,3,32]{2,1,0:T(4,128)}', space=vmem, size = 0x1000, scoped, tag = 'scratch operand']
  %s0 = inlined_call_operand.hbm [shape: bf16[8,3,16,32], index: 0, kind: input, shape index: {}]
  %s1 = inlined_call_operand.vmem [shape: f32[8,3,16], index: 1, kind: input, shape index: {}]
  %s2 = inlined_call_operand.vmem [shape: bf16[32,32], index: 2, kind: input, shape index: {}]
  %s3 = inlined_call_operand.vmem [shape: f32[32,32], index: 3, kind: input, shape index: {}]
  %s4 = inlined_call_operand.vmem [shape: f32[1,32], index: 4, kind: input, shape index: {}]
  %s5 = inlined_call_operand.hbm [shape: f32[4,32,32], index: 5, kind: input, shape index: {}]
  %s6 = inlined_call_operand.hbm [shape: f32[4,32,32], index: 6, kind: input, shape index: {}]
  %s7 = inlined_call_operand.vmem [shape: f32[4,1,32], index: 7, kind: input, shape index: {}]
  %s8 = inlined_call_operand.vmem [shape: f32[32,8], index: 8, kind: input, shape index: {}]
  %s9 = inlined_call_operand.vmem [shape: f32[1,8], index: 9, kind: input, shape index: {}]
  %s10 = inlined_call_operand.vmem [shape: f32[8,3,128], index: 10, kind: output, shape index: {}]
  %s11 = sld [smem:[#allocation0]]
  $region89: #{tpu_custom_call.1} parent=0
    _
  %s13 = ssub.s32 1, %s11
  %s14 = scalar_select 0, %s13, %s11
  $region1: #{tpu_custom_call.1} parent=0
    #allocation4 [shape = 'u8[98304]{0}', space=vmem, size = 0x18000, scoped, tag = 'input window, operand 0']
    #allocation5 [shape = 's32[2]{0}', space=sflag, size = 0x8, scoped, tag = 'scoped memory for tpu_custom_call.1']
    #allocation6 [shape = 'u8[65536]{0}', space=vmem, size = 0x10000, scoped, tag = 'input window, operand 5, single buffered']
    #allocation7 [shape = 's32[1]{0}', space=sflag, size = 0x4, scoped, tag = 'scoped memory for tpu_custom_call.1']
    #allocation8 [shape = 'u8[65536]{0}', space=vmem, size = 0x10000, scoped, tag = 'input window, operand 6, single buffered']
    %15 = vsyncpa [#allocation5], 0
    %s16 = scalar_lea.sflag [#allocation5], 1
    %17 = vsyncpa %s16, 0
    %18 = vsyncpa [#allocation7], 0
    loop: start=0, step=1, limit=4
    $region2: #{tpu_custom_call.1} parent=1 // loop_pre_header
      _
    $region3: #{tpu_custom_call.1} parent=1 // loop_header
      %s20 = sphi 0, %s24
      %p21 = scmp.ge.s32.totalorder %s20, 4
      %s30 = sphi 0, %s32
      %s33 = sphi 0, %s30
      %s34 = sphi 0, %s33
      %s50 = sphi 0, %s34
      %s56 = sphi 0, %s58
      %s59 = sphi 0, %s56
      %s60 = sphi 0, %s59
      %s76 = sphi 0, %s60
      %s80 = sphi 0, %s80
      %s82 = sphi 0, %s80
      %s83 = sphi 0, %s82
      %s97 = sphi 0, %s83
      %s101 = sphi 0, %s101
      %s103 = sphi 0, %s101
      %s104 = sphi 0, %s103
      %s118 = sphi 0, %s104
      %s122 = sphi 0, %s122
      %s124 = sphi 0, %s122
      %s125 = sphi 0, %s124
      %s139 = sphi 0, %s125
      %s143 = sphi 0, %s143
      %s145 = sphi 0, %s143
      %s146 = sphi 0, %s145
      %s160 = sphi 0, %s146
      %s164 = sphi 0, %s164
      %s166 = sphi 0, %s164
      %s167 = sphi 0, %s166
      %s181 = sphi 0, %s167
      %s185 = sphi 0, %s185
      %s187 = sphi 0, %s185
      %s188 = sphi 0, %s187
      %s202 = sphi 0, %s188
      %s206 = sphi 0, %s206
      %s208 = sphi 0, %s206
      %s209 = sphi 0, %s208
      %s223 = sphi 0, %s209
      %s227 = sphi 0, %s227
      %s229 = sphi 0, %s227
      %s230 = sphi 0, %s229
      %s244 = sphi 0, %s230
      %s250 = sphi 0, %s252
      %s253 = sphi 0, %s250
      %s254 = sphi 0, %s253
      %s270 = sphi 0, %s254
    $region4: #{tpu_custom_call.1} parent=1 // loop_header_branch
      %23 = sbr.rel (%p21) target = $region8
    $region5: #{tpu_custom_call.1} parent=1 // loop_body
      %s25 = ssub.s32 %s20, 1
      %s26 = ssub.s32 %s20, 2
      %s27 = sadd.s32 %s20, 1
      %s28 = ssub.s32 %s20, %s27
      %p29 = scmp.eq.s32.totalorder %s28, 0
      %s31 = sadd.s32 %s30, 1
      %s32 = scalar_select %p29, %s30, %s31
      %p35 = pneg %p29
      %p36 = scmp.eq.s32.totalorder %s20, 1
      %p37 = por %p35, %p36
      %p38 = scmp.ne.s32.totalorder %s30, %s33
      %p39 = scmp.eq.s32.totalorder %s20, 0
      %p40 = por %p38, %p39
      %p41 = scmp.ne.s32.totalorder %s30, %s33
      %p42 = scmp.eq.s32.totalorder %s25, 1
      %p43 = por %p41, %p42
      %p44 = scmp.ne.s32.totalorder %s33, %s34
      %p45 = scmp.eq.s32.totalorder %s25, 0
      %p46 = por %p44, %p45
      %p47 = scmp.ne.s32.totalorder %s33, %s34
      %p48 = scmp.eq.s32.totalorder %s26, 1
      %p49 = por %p47, %p48
      %p51 = scmp.ne.s32.totalorder %s34, %s50
      %p52 = scmp.eq.s32.totalorder %s26, 0
      %p53 = por %p51, %p52
      %s54 = ssub.s32 %s20, %s27
      %p55 = scmp.eq.s32.totalorder %s54, 0
      %s57 = sadd.s32 %s56, 1
      %s58 = scalar_select %p55, %s56, %s57
      %p61 = pneg %p55
      %p62 = scmp.eq.s32.totalorder %s20, 1
      %p63 = por %p61, %p62
      %p64 = scmp.ne.s32.totalorder %s56, %s59
      %p65 = scmp.eq.s32.totalorder %s20, 0
      %p66 = por %p64, %p65
      %p67 = scmp.ne.s32.totalorder %s56, %s59
      %p68 = scmp.eq.s32.totalorder %s25, 1
      %p69 = por %p67, %p68
      %p70 = scmp.ne.s32.totalorder %s59, %s60
      %p71 = scmp.eq.s32.totalorder %s25, 0
      %p72 = por %p70, %p71
      %p73 = scmp.ne.s32.totalorder %s59, %s60
      %p74 = scmp.eq.s32.totalorder %s26, 1
      %p75 = por %p73, %p74
      %p77 = scmp.ne.s32.totalorder %s60, %s76
      %p78 = scmp.eq.s32.totalorder %s26, 0
      %p79 = por %p77, %p78
      %s81 = sadd.s32 %s80, 1
      %p84 = scmp.eq.s32.totalorder %s20, 1
      %p85 = scmp.ne.s32.totalorder %s80, %s82
      %p86 = scmp.eq.s32.totalorder %s20, 0
      %p87 = por %p85, %p86
      %p88 = scmp.ne.s32.totalorder %s80, %s82
      %p89 = scmp.eq.s32.totalorder %s25, 1
      %p90 = por %p88, %p89
      %p91 = scmp.ne.s32.totalorder %s82, %s83
      %p92 = scmp.eq.s32.totalorder %s25, 0
      %p93 = por %p91, %p92
      %p94 = scmp.ne.s32.totalorder %s82, %s83
      %p95 = scmp.eq.s32.totalorder %s26, 1
      %p96 = por %p94, %p95
      %p98 = scmp.ne.s32.totalorder %s83, %s97
      %p99 = scmp.eq.s32.totalorder %s26, 0
      %p100 = por %p98, %p99
      %s102 = sadd.s32 %s101, 1
      %p105 = scmp.eq.s32.totalorder %s20, 1
      %p106 = scmp.ne.s32.totalorder %s101, %s103
      %p107 = scmp.eq.s32.totalorder %s20, 0
      %p108 = por %p106, %p107
      %p109 = scmp.ne.s32.totalorder %s101, %s103
      %p110 = scmp.eq.s32.totalorder %s25, 1
      %p111 = por %p109, %p110
      %p112 = scmp.ne.s32.totalorder %s103, %s104
      %p113 = scmp.eq.s32.totalorder %s25, 0
      %p114 = por %p112, %p113
      %p115 = scmp.ne.s32.totalorder %s103, %s104
      %p116 = scmp.eq.s32.totalorder %s26, 1
      %p117 = por %p115, %p116
      %p119 = scmp.ne.s32.totalorder %s104, %s118
      %p120 = scmp.eq.s32.totalorder %s26, 0
      %p121 = por %p119, %p120
      %s123 = sadd.s32 %s122, 1
      %p126 = scmp.eq.s32.totalorder %s20, 1
      %p127 = scmp.ne.s32.totalorder %s122, %s124
      %p128 = scmp.eq.s32.totalorder %s20, 0
      %p129 = por %p127, %p128
      %p130 = scmp.ne.s32.totalorder %s122, %s124
      %p131 = scmp.eq.s32.totalorder %s25, 1
      %p132 = por %p130, %p131
      %p133 = scmp.ne.s32.totalorder %s124, %s125
      %p134 = scmp.eq.s32.totalorder %s25, 0
      %p135 = por %p133, %p134
      %p136 = scmp.ne.s32.totalorder %s124, %s125
      %p137 = scmp.eq.s32.totalorder %s26, 1
      %p138 = por %p136, %p137
      %p140 = scmp.ne.s32.totalorder %s125, %s139
      %p141 = scmp.eq.s32.totalorder %s26, 0
      %p142 = por %p140, %p141
      %s144 = sadd.s32 %s143, 1
      %p147 = scmp.eq.s32.totalorder %s20, 1
      %p148 = scmp.ne.s32.totalorder %s143, %s145
      %p149 = scmp.eq.s32.totalorder %s20, 0
      %p150 = por %p148, %p149
      %p151 = scmp.ne.s32.totalorder %s143, %s145
      %p152 = scmp.eq.s32.totalorder %s25, 1
      %p153 = por %p151, %p152
      %p154 = scmp.ne.s32.totalorder %s145, %s146
      %p155 = scmp.eq.s32.totalorder %s25, 0
      %p156 = por %p154, %p155
      %p157 = scmp.ne.s32.totalorder %s145, %s146
      %p158 = scmp.eq.s32.totalorder %s26, 1
      %p159 = por %p157, %p158
      %p161 = scmp.ne.s32.totalorder %s146, %s160
      %p162 = scmp.eq.s32.totalorder %s26, 0
      %p163 = por %p161, %p162
      %s165 = sadd.s32 %s164, 1
      %p168 = scmp.eq.s32.totalorder %s20, 1
      %p169 = scmp.ne.s32.totalorder %s164, %s166
      %p170 = scmp.eq.s32.totalorder %s20, 0
      %p171 = por %p169, %p170
      %p172 = scmp.ne.s32.totalorder %s164, %s166
      %p173 = scmp.eq.s32.totalorder %s25, 1
      %p174 = por %p172, %p173
      %p175 = scmp.ne.s32.totalorder %s166, %s167
      %p176 = scmp.eq.s32.totalorder %s25, 0
      %p177 = por %p175, %p176
      %p178 = scmp.ne.s32.totalorder %s166, %s167
      %p179 = scmp.eq.s32.totalorder %s26, 1
      %p180 = por %p178, %p179
      %p182 = scmp.ne.s32.totalorder %s167, %s181
      %p183 = scmp.eq.s32.totalorder %s26, 0
      %p184 = por %p182, %p183
      %s186 = sadd.s32 %s185, 1
      %p189 = scmp.eq.s32.totalorder %s20, 1
      %p190 = scmp.ne.s32.totalorder %s185, %s187
      %p191 = scmp.eq.s32.totalorder %s20, 0
      %p192 = por %p190, %p191
      %p193 = scmp.ne.s32.totalorder %s185, %s187
      %p194 = scmp.eq.s32.totalorder %s25, 1
      %p195 = por %p193, %p194
      %p196 = scmp.ne.s32.totalorder %s187, %s188
      %p197 = scmp.eq.s32.totalorder %s25, 0
      %p198 = por %p196, %p197
      %p199 = scmp.ne.s32.totalorder %s187, %s188
      %p200 = scmp.eq.s32.totalorder %s26, 1
      %p201 = por %p199, %p200
      %p203 = scmp.ne.s32.totalorder %s188, %s202
      %p204 = scmp.eq.s32.totalorder %s26, 0
      %p205 = por %p203, %p204
      %s207 = sadd.s32 %s206, 1
      %p210 = scmp.eq.s32.totalorder %s20, 1
      %p211 = scmp.ne.s32.totalorder %s206, %s208
      %p212 = scmp.eq.s32.totalorder %s20, 0
      %p213 = por %p211, %p212
      %p214 = scmp.ne.s32.totalorder %s206, %s208
      %p215 = scmp.eq.s32.totalorder %s25, 1
      %p216 = por %p214, %p215
      %p217 = scmp.ne.s32.totalorder %s208, %s209
      %p218 = scmp.eq.s32.totalorder %s25, 0
      %p219 = por %p217, %p218
      %p220 = scmp.ne.s32.totalorder %s208, %s209
      %p221 = scmp.eq.s32.totalorder %s26, 1
      %p222 = por %p220, %p221
      %p224 = scmp.ne.s32.totalorder %s209, %s223
      %p225 = scmp.eq.s32.totalorder %s26, 0
      %p226 = por %p224, %p225
      %s228 = sadd.s32 %s227, 1
      %p231 = scmp.eq.s32.totalorder %s20, 1
      %p232 = scmp.ne.s32.totalorder %s227, %s229
      %p233 = scmp.eq.s32.totalorder %s20, 0
      %p234 = por %p232, %p233
      %p235 = scmp.ne.s32.totalorder %s227, %s229
      %p236 = scmp.eq.s32.totalorder %s25, 1
      %p237 = por %p235, %p236
      %p238 = scmp.ne.s32.totalorder %s229, %s230
      %p239 = scmp.eq.s32.totalorder %s25, 0
      %p240 = por %p238, %p239
      %p241 = scmp.ne.s32.totalorder %s229, %s230
      %p242 = scmp.eq.s32.totalorder %s26, 1
      %p243 = por %p241, %p242
      %p245 = scmp.ne.s32.totalorder %s230, %s244
      %p246 = scmp.eq.s32.totalorder %s26, 0
      %p247 = por %p245, %p246
      %s248 = ssub.s32 %s20, %s27
      %p249 = scmp.eq.s32.totalorder %s248, 0
      %s251 = sadd.s32 %s250, 1
      %s252 = scalar_select %p249, %s250, %s251
      %p255 = pneg %p249
      %p256 = scmp.eq.s32.totalorder %s20, 1
      %p257 = por %p255, %p256
      %p258 = scmp.ne.s32.totalorder %s250, %s253
      %p259 = scmp.eq.s32.totalorder %s20, 0
      %p260 = por %p258, %p259
      %p261 = scmp.ne.s32.totalorder %s250, %s253
      %p262 = scmp.eq.s32.totalorder %s25, 1
      %p263 = por %p261, %p262
      %p264 = scmp.ne.s32.totalorder %s253, %s254
      %p265 = scmp.eq.s32.totalorder %s25, 0
      %p266 = por %p264, %p265
      %p267 = scmp.ne.s32.totalorder %s253, %s254
      %p268 = scmp.eq.s32.totalorder %s26, 1
      %p269 = por %p267, %p268
      %p271 = scmp.ne.s32.totalorder %s254, %s270
      %p272 = scmp.eq.s32.totalorder %s26, 0
      %p273 = por %p271, %p272
      %p274 = scmp.le.s32.totalorder 1, %s20
      %p275 = scmp.lt.s32.totalorder %s20, 3
      %p276 = pnand %p274, %p275
      %p277 = pneg %p276
      // Predicated region
      $region9: #{tpu_custom_call.1} parent=5 // pred_check
        _
      $region10: #{tpu_custom_call.1} parent=5 // pred_check_branch
        %279 = sbr.rel (%p276) target = $region12
      $region11: #{tpu_custom_call.1} parent=5 // pred_region
        %s280 = ssub.s32 %s20, 1
        // Predicated region
        $region13: #{tpu_custom_call.1} parent=11 // pred_check
          %p281 = pneg %p93
        $region14: #{tpu_custom_call.1} parent=11 // pred_check_branch
          %283 = sbr.rel (%p281) target = $region16
        $region15: #{tpu_custom_call.1} parent=11 // pred_region
          _
        $region16: #{tpu_custom_call.1} parent=11 // pred_fallthru
          _
        // Predicated region
        $region17: #{tpu_custom_call.1} parent=11 // pred_check
          %p284 = pneg %p114
        $region18: #{tpu_custom_call.1} parent=11 // pred_check_branch
          %286 = sbr.rel (%p284) target = $region20
        $region19: #{tpu_custom_call.1} parent=11 // pred_region
          _
        $region20: #{tpu_custom_call.1} parent=11 // pred_fallthru
          _
        // Predicated region
        $region21: #{tpu_custom_call.1} parent=11 // pred_check
          %p287 = pneg %p135
        $region22: #{tpu_custom_call.1} parent=11 // pred_check_branch
          %289 = sbr.rel (%p287) target = $region24
        $region23: #{tpu_custom_call.1} parent=11 // pred_region
          _
        $region24: #{tpu_custom_call.1} parent=11 // pred_fallthru
          _
        // Predicated region
        $region25: #{tpu_custom_call.1} parent=11 // pred_check
          %p290 = pneg %p156
        $region26: #{tpu_custom_call.1} parent=11 // pred_check_branch
          %292 = sbr.rel (%p290) target = $region28
        $region27: #{tpu_custom_call.1} parent=11 // pred_region
          %s294 = ssub.s32 2048, 2048
          %295 = vsyncadd [#allocation7], %s294
          %s296 = sshll.u32 [#allocation6], 4
          %s297 = int_to_ptr.vmem [resolvable:$true] %s296
          %302 = dma.hbm_to_vmem [thread:$0]  %s5, 2048, %s297, [#allocation7], 128, 128, 8
        $region28: #{tpu_custom_call.1} parent=11 // pred_fallthru
          _
        // Predicated region
        $region29: #{tpu_custom_call.1} parent=11 // pred_check
          %p303 = pneg %p177
        $region30: #{tpu_custom_call.1} parent=11 // pred_check_branch
          %305 = sbr.rel (%p303) target = $region32
        $region31: #{tpu_custom_call.1} parent=11 // pred_region
          %s307 = ssub.s32 2048, 2048
          %308 = vsyncadd [#allocation7], %s307
          %s309 = sshll.u32 [#allocation8], 4
          %s310 = int_to_ptr.vmem [resolvable:$true] %s309
          %315 = dma.hbm_to_vmem [thread:$0]  %s6, 2048, %s310, [#allocation7], 128, 128, 8
        $region32: #{tpu_custom_call.1} parent=11 // pred_fallthru
          _
        // Predicated region
        $region33: #{tpu_custom_call.1} parent=11 // pred_check
          %p316 = pneg %p198
        $region34: #{tpu_custom_call.1} parent=11 // pred_check_branch
          %318 = sbr.rel (%p316) target = $region36
        $region35: #{tpu_custom_call.1} parent=11 // pred_region
          _
        $region36: #{tpu_custom_call.1} parent=11 // pred_fallthru
          _
        // Predicated region
        $region37: #{tpu_custom_call.1} parent=11 // pred_check
          %p319 = pneg %p219
        $region38: #{tpu_custom_call.1} parent=11 // pred_check_branch
          %321 = sbr.rel (%p319) target = $region40
        $region39: #{tpu_custom_call.1} parent=11 // pred_region
          _
        $region40: #{tpu_custom_call.1} parent=11 // pred_fallthru
          _
        // Predicated region
        $region41: #{tpu_custom_call.1} parent=11 // pred_check
          %p322 = pneg %p240
        $region42: #{tpu_custom_call.1} parent=11 // pred_check_branch
          %324 = sbr.rel (%p322) target = $region44
        $region43: #{tpu_custom_call.1} parent=11 // pred_region
          _
        $region44: #{tpu_custom_call.1} parent=11 // pred_fallthru
          _
      $region12: #{tpu_custom_call.1} parent=5 // pred_fallthru
        _
      %p325 = scmp.lt.s32.totalorder %s20, 2
      // Predicated region
      $region45: #{tpu_custom_call.1} parent=5 // pred_check
        %p326 = pneg %p325
      $region46: #{tpu_custom_call.1} parent=5 // pred_check_branch
        %328 = sbr.rel (%p326) target = $region48
      $region47: #{tpu_custom_call.1} parent=5 // pred_region
        // Predicated region
        $region49: #{tpu_custom_call.1} parent=47 // pred_check
          %p329 = pneg %p40
        $region50: #{tpu_custom_call.1} parent=47 // pred_check_branch
          %331 = sbr.rel (%p329) target = $region52
        $region51: #{tpu_custom_call.1} parent=47 // pred_region
          %s332 = sand.u32 %s30, 1
          %s333 = scalar_lea.sflag [#allocation5], %s332
          %s334 = sand.u32 %s30, 1
          %s335 = smul.addr %s334, 96
          %s336 = scalar_lea.vmem [#allocation4], %s335
          %s337 = smul.u32 4, %s20
          %s339 = ssub.s32 1536, 1536
          %340 = vsyncadd %s333, %s339
          %s341 = smul.addr %s337, 6
          %s342 = smul.addr %s341, 64
          %s343 = scalar_lea.hbm %s0, %s342
          %s344 = sshll.u32 %s336, 4
          %s345 = int_to_ptr.vmem [resolvable:$true] %s344
          %350 = dma.hbm_to_vmem [thread:$0]  %s343, 1536, %s345, %s333, 64, 64, 4
        $region52: #{tpu_custom_call.1} parent=47 // pred_fallthru
          _
        // Predicated region
        $region53: #{tpu_custom_call.1} parent=47 // pred_check
          %p351 = pneg %p66
        $region54: #{tpu_custom_call.1} parent=47 // pred_check_branch
          %353 = sbr.rel (%p351) target = $region56
        $region55: #{tpu_custom_call.1} parent=47 // pred_region
          %s354 = smul.u32 4, %s20
          %p355 = scmp.lt.s32.totalorder %s354, 7
          %s356 = scalar_select %p355, %s354, 7
          %s357 = smul.addr %s356, 4
          %s358 = scalar_lea.vmem %s1, %s357
          %s359 = smul.u32 4, %s20
        $region56: #{tpu_custom_call.1} parent=47 // pred_fallthru
          _
      $region48: #{tpu_custom_call.1} parent=5 // pred_fallthru
        _
      %p360 = scmp.le.s32.totalorder 1, %s20
      %p361 = scmp.lt.s32.totalorder %s20, 3
      %p362 = pnand %p360, %p361
      %p363 = pneg %p362
      // Predicated region
      $region57: #{tpu_custom_call.1} parent=5 // pred_check
        _
      $region58: #{tpu_custom_call.1} parent=5 // pred_check_branch
        %365 = sbr.rel (%p362) target = $region60
      $region59: #{tpu_custom_call.1} parent=5 // pred_region
        %s366 = ssub.s32 %s20, 1
        %s367 = sand.u32 %s33, 1
        %s368 = scalar_lea.sflag [#allocation5], %s367
        %s369 = sand.u32 %s33, 1
        %s370 = smul.addr %s369, 96
        %s371 = scalar_lea.vmem [#allocation4], %s370
        // Predicated region
        $region61: #{tpu_custom_call.1} parent=59 // pred_check
          %p372 = pneg %p46
        $region62: #{tpu_custom_call.1} parent=59 // pred_check_branch
          %374 = sbr.rel (%p372) target = $region64
        $region63: #{tpu_custom_call.1} parent=59 // pred_region
          %375 = dma.done %s368, 1536
        $region64: #{tpu_custom_call.1} parent=59 // pred_fallthru
          _
        // Predicated region
        $region65: #{tpu_custom_call.1} parent=59 // pred_check
          %p376 = pneg %p156
        $region66: #{tpu_custom_call.1} parent=59 // pred_check_branch
          %378 = sbr.rel (%p376) target = $region68
        $region67: #{tpu_custom_call.1} parent=59 // pred_region
          %379 = dma.done [#allocation7], 2048
        $region68: #{tpu_custom_call.1} parent=59 // pred_fallthru
          _
        // Predicated region
        $region69: #{tpu_custom_call.1} parent=59 // pred_check
          %p380 = pneg %p177
        $region70: #{tpu_custom_call.1} parent=59 // pred_check_branch
          %382 = sbr.rel (%p380) target = $region72
        $region71: #{tpu_custom_call.1} parent=59 // pred_region
          %383 = dma.done [#allocation7], 2048
        $region72: #{tpu_custom_call.1} parent=59 // pred_fallthru
          _
        %s384 = sand.u32 %s33, 1
        %s385 = scalar_lea.sflag [#allocation5], %s384
        %s386 = sand.u32 %s33, 1
        %s387 = smul.addr %s386, 96
        %s388 = scalar_lea.vmem [#allocation4], %s387
        %p389 = pneg %p46
        %p390 = pneg %p43
        %s391 = smul.u32 4, %s25
        %p392 = scmp.lt.s32.totalorder %s391, 7
        %s393 = scalar_select %p392, %s391, 7
        %s394 = smul.addr %s393, 4
        %s395 = scalar_lea.vmem %s1, %s394
        %p396 = pneg %p72
        %p397 = pneg %p69
        %p398 = pneg %p93
        %p399 = pneg %p90
        %p400 = pneg %p114
        %p401 = pneg %p111
        %p402 = pneg %p135
        %p403 = pneg %p132
        %p404 = pneg %p156
        %p405 = pneg %p153
        %p406 = pneg %p177
        %p407 = pneg %p174
        %p408 = pneg %p198
        %p409 = pneg %p195
        %p410 = pneg %p219
        %p411 = pneg %p216
        %p412 = pneg %p240
        %p413 = pneg %p237
        %p414 = pneg %p266
        %p415 = pneg %p263
        %s416 = smul.u32 4, %s25
        %p417 = scmp.lt.s32.totalorder %s416, 7
        %s418 = scalar_select %p417, %s416, 7
        %s419 = smul.addr %s418, 4
        %s420 = scalar_lea.vmem %s10, %s419
        %s421 = smul.u32 4, %s25
        %s422 = smul.u32 4, %s25
        %p423 = scmp.lt.s32.totalorder %s422, 7
        %s424 = scalar_select %p423, %s422, 7
        %s425 = smul.addr %s424, 4
        %s426 = scalar_lea.vmem %s1, %s425
        %s427 = smul.u32 4, %s25
        %s428 = smul.u32 4, %s25
        %p429 = scmp.lt.s32.totalorder %s428, 7
        %s430 = scalar_select %p429, %s428, 7
        %s431 = smul.addr %s430, 4
        %s432 = scalar_lea.vmem %s10, %s431
        %s433 = smul.u32 4, %s25
        %p435 = scmp.eq.s32.totalorder %s25, 0
        // Predicated region
        $region73: #{tpu_custom_call.1} parent=59 // pred_check
          %p436 = pneg %p435
        $region74: #{tpu_custom_call.1} parent=59 // pred_check_branch
          %438 = sbr.rel (%p436) target = $region76
        $region75: #{tpu_custom_call.1} parent=59 // pred_region
          %vm439 = vcmask 256000
          %440 = vst.msk [vmem:[#allocation2] sm:$0x7] %vm439, 0.0
          %441 = vst.msk [vmem:[#allocation2 + $0x4] sm:$0x7] %vm439, 0.0
          %442 = vst.msk [vmem:[#allocation3] sm:$0x7] %vm439, 0.0
          %443 = vst.msk [vmem:[#allocation3 + $0x4] sm:$0x7] %vm439, 0.0
        $region76: #{tpu_custom_call.1} parent=59 // pred_fallthru
          _
        %v444 = vld [vmem:[%s2] sm:$0xf]
        %v445 = vld [vmem:[%s2 + $0x4] sm:$0xf]
        %v446 = vld [vmem:[%s2 + $0x8] sm:$0xf]
        %v447 = vld [vmem:[%s2 + $0xc] sm:$0xf]
        %v448 = vld [vmem:[%s3] sm:$0xff]
        %v449 = vld [vmem:[%s3 + $0x8] sm:$0xff]
        %v450 = vld [vmem:[%s3 + $0x10] sm:$0xff]
        %v451 = vld [vmem:[%s3 + $0x18] sm:$0xff]
        %v452 = vld [vmem:[%s4] sm:$0x1]
        %v453 = vld [vmem:[%s8] sm:$0xff]
        %v454 = vld [vmem:[%s8 + $0x8] sm:$0xff]
        %v455 = vld [vmem:[%s8 + $0x10] sm:$0xff]
        %v456 = vld [vmem:[%s8 + $0x18] sm:$0xff]
        %v457 = vld [vmem:[%s9] sm:$0x1]
        %v458 = vld [vmem:[%s371] sm:$0xf]
        %v459 = vld [vmem:[%s371 + $0x4] sm:$0xf]
        %v460 = vld [vmem:[%s371 + $0x8] sm:$0xf]
        %v461 = vld [vmem:[%s371 + $0xc] sm:$0xf]
        %v462 = vld [vmem:[%s371 + $0x10] sm:$0xf]
        %v463 = vld [vmem:[%s371 + $0x14] sm:$0xf]
        %v464 = vld [vmem:[%s426] sm:$0x7]
        %s465 = scalar_lea.vmem [#allocation2], 4
        %v466 = vld [vmem:[%s465] sm:$0x7]
        %v473 = vunpack.c.l.b16 %v458
        %v474 = vunpack.c.l.b16 %v459
        %v475 = vunpack.c.l.b16 %v460
        %v476 = vunpack.c.l.b16 %v461
        %v477 = vunpack.c.l.b16 %v462
        %v478 = vunpack.c.l.b16 %v463
        %v479 = vpack.c.b16 %v474, %v473
        %v480 = vpack.c.b16 %v476, %v475
        %v481 = vpack.c.b16 %v478, %v477
        %v486 = vunpack.c.l.b16 %v444
        %v487 = vunpack.c.l.b16 %v445
        %v488 = vunpack.c.l.b16 %v446
        %v489 = vunpack.c.l.b16 %v447
        %v490 = vpack.c.b16 %v487, %v486
        %v491 = vpack.c.b16 %v489, %v488
        %vm494 = vcmask 261120
        %v496 = vsel %vm494, %v479, 0
        %v499 = vsel %vm494, %v480, 0
        %v502 = vsel %vm494, %v481, 0
        %504 = vmatprep.subr.bf16.mxu0 0
        %505 = vmatpush1.bf16.msra.mxu0 %v490
        %506 = vmatprep.subr.bf16.mxu0 0
        %507 = vmatpush1.bf16.msra.mxu0 %v491
        %508 = vmatprep.subr.bf16.mxu0 0
        %509 = vmatpush1.bf16.msra.mxu0 0
        %510 = vmatprep.subr.bf16.mxu0 0
        %511 = vmatpush1.bf16.msra.mxu0 0
        %512 = vmatprep.subr.bf16.mxu0 0
        %513 = vmatpush1.bf16.msra.mxu0 0
        %514 = vmatprep.subr.bf16.mxu0 0
        %515 = vmatpush1.bf16.msra.mxu0 0
        %516 = vmatprep.subr.bf16.mxu0 0
        %517 = vmatpush1.bf16.msra.mxu0 0
        %518 = vmatprep.subr.bf16.mxu0 0
        %519 = vmatpush1.bf16.msra.mxu0 0
        %520 = vmatprep.subr.bf16.mxu0 0
        %521 = vmatpush1.bf16.msra.mxu0 0
        %522 = vmatprep.subr.bf16.mxu0 0
        %523 = vmatpush1.bf16.msra.mxu0 0
        %524 = vmatprep.subr.bf16.mxu0 0
        %525 = vmatpush1.bf16.msra.mxu0 0
        %526 = vmatprep.subr.bf16.mxu0 0
        %527 = vmatpush1.bf16.msra.mxu0 0
        %528 = vmatprep.subr.bf16.mxu0 0
        %529 = vmatpush1.bf16.msra.mxu0 0
        %530 = vmatprep.subr.bf16.mxu0 0
        %531 = vmatpush1.bf16.msra.mxu0 0
        %532 = vmatprep.subr.bf16.mxu0 0
        %533 = vmatpush1.bf16.msra.mxu0 0
        %534 = vmatprep.subr.bf16.mxu0 0
        %535 = vmatpush1.bf16.msra.mxu0 0
        %536 = vmatprep.mubr.bf16.mxu0 0
        %537 = vmatmul.mubr.bf16.gmra.mrb[0].mxu0 %v496
        %v538 = vpop.f32.mrb[0].mxu0
        %v539 = vadd.f32 0.0, %v538
        %v540 = vpop.f32.mrb[0].mxu0
        %v541 = vpop.f32.mrb[0].mxu0
        %v542 = vadd.f32 0.0, %v541
        %v543 = vpop.f32.mrb[0].mxu0
        %544 = vmatprep.mubr.bf16.mxu0 0
        %545 = vmatmul.mubr.bf16.gmra.mrb[0].mxu0 %v499
        %v546 = vpop.f32.mrb[0].mxu0
        %v547 = vadd.f32 0.0, %v546
        %v548 = vpop.f32.mrb[0].mxu0
        %v549 = vpop.f32.mrb[0].mxu0
        %v550 = vadd.f32 0.0, %v549
        %v551 = vpop.f32.mrb[0].mxu0
        %552 = vmatprep.mubr.bf16.mxu0 0
        %553 = vmatmul.mubr.bf16.gmra.mrb[0].mxu0 %v502
        %v554 = vpop.f32.mrb[0].mxu0
        %v555 = vadd.f32 0.0, %v554
        %v556 = vpop.f32.mrb[0].mxu0
        %v557 = vpop.f32.mrb[0].mxu0
        %v558 = vadd.f32 0.0, %v557
        %v559 = vpop.f32.mrb[0].mxu0
        %560 = vdwg.mxu0
        %v562 = vsel %vm494, %v466, 0
        %564 = vmatprep.subr.mxu0 0.0
        %565 = vmatpush1.msra.mxu0 %v448
        %566 = vmatprep.subr.mxu0 0.0
        %567 = vmatpush1.msra.mxu0 %v449
        %568 = vmatprep.subr.mxu0 0.0
        %569 = vmatpush1.msra.mxu0 %v450
        %570 = vmatprep.subr.mxu0 0.0
        %571 = vmatpush1.msra.mxu0 %v451
        %572 = vmatprep.subr.mxu0 0.0
        %573 = vmatpush1.msra.mxu0 0.0
        %574 = vmatprep.subr.mxu0 0.0
        %575 = vmatpush1.msra.mxu0 0.0
        %576 = vmatprep.subr.mxu0 0.0
        %577 = vmatpush1.msra.mxu0 0.0
        %578 = vmatprep.subr.mxu0 0.0
        %579 = vmatpush1.msra.mxu0 0.0
        %580 = vmatprep.subr.mxu0 0.0
        %581 = vmatpush1.msra.mxu0 0.0
        %582 = vmatprep.subr.mxu0 0.0
        %583 = vmatpush1.msra.mxu0 0.0
        %584 = vmatprep.subr.mxu0 0.0
        %585 = vmatpush1.msra.mxu0 0.0
        %586 = vmatprep.subr.mxu0 0.0
        %587 = vmatpush1.msra.mxu0 0.0
        %588 = vmatprep.subr.mxu0 0.0
        %589 = vmatpush1.msra.mxu0 0.0
        %590 = vmatprep.subr.mxu0 0.0
        %591 = vmatpush1.msra.mxu0 0.0
        %592 = vmatprep.subr.mxu0 0.0
        %593 = vmatpush1.msra.mxu0 0.0
        %594 = vmatprep.subr.mxu0 0.0
        %595 = vmatpush1.msra.mxu0 0.0
        %596 = vmatprep.subr.mxu0 0.0
        %597 = vmatpush1.msra.mxu0 0.0
        %598 = vmatprep.subr.mxu0 0.0
        %599 = vmatpush1.msra.mxu0 0.0
        %600 = vmatprep.subr.mxu0 0.0
        %601 = vmatpush1.msra.mxu0 0.0
        %602 = vmatprep.subr.mxu0 0.0
        %603 = vmatpush1.msra.mxu0 0.0
        %604 = vmatprep.subr.mxu0 0.0
        %605 = vmatpush1.msra.mxu0 0.0
        %606 = vmatprep.subr.mxu0 0.0
        %607 = vmatpush1.msra.mxu0 0.0
        %608 = vmatprep.subr.mxu0 0.0
        %609 = vmatpush1.msra.mxu0 0.0
        %610 = vmatprep.subr.mxu0 0.0
        %611 = vmatpush1.msra.mxu0 0.0
        %612 = vmatprep.subr.mxu0 0.0
        %613 = vmatpush1.msra.mxu0 0.0
        %614 = vmatprep.subr.mxu0 0.0
        %615 = vmatpush1.msra.mxu0 0.0
        %616 = vmatprep.subr.mxu0 0.0
        %617 = vmatpush1.msra.mxu0 0.0
        %618 = vmatprep.subr.mxu0 0.0
        %619 = vmatpush1.msra.mxu0 0.0
        %620 = vmatprep.subr.mxu0 0.0
        %621 = vmatpush1.msra.mxu0 0.0
        %622 = vmatprep.subr.mxu0 0.0
        %623 = vmatpush1.msra.mxu0 0.0
        %624 = vmatprep.subr.mxu0 0.0
        %625 = vmatpush1.msra.mxu0 0.0
        %626 = vmatprep.subr.mxu0 0.0
        %627 = vmatpush1.msra.mxu0 0.0
        %628 = vmatprep.mubr.f32.mxu0 0.0
        %629 = vmatmul.mubr.f32.gmra.mrb[0].mxu0 %v562
        %v630 = vpop.f32.mrb[0].mxu0
        %v631 = vadd.f32 0.0, %v630
        %v632 = vpop.f32.mrb[0].mxu0
        %633 = vdwg.mxu0
        %v636 = vunpack.c.l.s4 1966171168
        %v637 = vunpack.c.0.s8 %v636
        %v638 = vlaneseq
        %v639 = vshrl.u32 %v638, 7
        %v640 = vsub.s32 %v637, %v639
        %v641 = vrot.slane %v631, %v640
        %v642 = vcombine.high %v641, %v641
        %v644 = vunpack.c.l.s4 1966171168
        %v645 = vunpack.c.0.s8 %v644
        %v646 = vlaneseq
        %v647 = vshrl.u32 %v646, 7
        %v648 = vsub.s32 %v645, %v647
        %v649 = vrot.slane %v641, %v648
        %v651 = vunpack.c.l.s4 1966171168
        %v652 = vunpack.c.0.s8 %v651
        %v653 = vlaneseq
        %v654 = vshrl.u32 %v653, 7
        %v655 = vsub.s32 %v652, %v654
        %v656 = vrot.slane %v642, %v655
        %v657 = vcombine.high %v649, %v649
        %v658 = vlaneseq
        %v659 = vshrl.u32 %v658, 7
        %v660 = vsub.s32 0, %v659
        %v661 = vrot.slane %v649, %v660
        %v662 = vlaneseq
        %v663 = vshrl.u32 %v662, 7
        %v664 = vsub.s32 0, %v663
        %v665 = vrot.slane %v656, %v664
        %v666 = vlaneseq
        %v667 = vshrl.u32 %v666, 7
        %v668 = vsub.s32 0, %v667
        %v669 = vrot.slane %v657, %v668
        %v673 = vadd.f32 %v539, %v661
        %v674 = vadd.f32 %v542, %v661
        %v675 = vadd.f32 %v547, %v665
        %v676 = vadd.f32 %v550, %v665
        %v677 = vadd.f32 %v555, %v669
        %v678 = vadd.f32 %v558, %v669
        %v679 = vtanh.pop %v673
        %v680 = vtanh.pop %v674
        %v681 = vtanh.pop %v675
        %v682 = vtanh.pop %v676
        %v683 = vtanh.pop %v677
        %v684 = vtanh.pop %v678
        %v686 = vlaneseq
        %v687 = vshrl.u32 %v686, 7
        %v688 = vsub.s32 0, %v687
        %v689 = vrot.slane %v452, %v688
        %v691 = vmul.f32 %v679, %v689
        %v692 = vmul.f32 %v680, %v689
        %v693 = vmul.f32 %v681, %v689
        %v694 = vmul.f32 %v682, %v689
        %v695 = vmul.f32 %v683, %v689
        %v696 = vmul.f32 %v684, %v689
        %v697 = vsel %vm494, %v691, 0.0
        %698 = vadd.xlane.f32.xlu0 %v697
        %v699 = vpop.xlane.xlu0 %698
        %v700 = vsel %vm494, %v692, 0.0
        %701 = vadd.xlane.f32.xlu0 %v700
        %v702 = vpop.xlane.xlu0 %701
        %v703 = vsel %vm494, %v693, 0.0
        %704 = vadd.xlane.f32.xlu0 %v703
        %v705 = vpop.xlane.xlu0 %704
        %v706 = vsel %vm494, %v694, 0.0
        %707 = vadd.xlane.f32.xlu0 %v706
        %v708 = vpop.xlane.xlu0 %707
        %v709 = vsel %vm494, %v695, 0.0
        %710 = vadd.xlane.f32.xlu0 %v709
        %v711 = vpop.xlane.xlu0 %710
        %v712 = vsel %vm494, %v696, 0.0
        %713 = vadd.xlane.f32.xlu0 %v712
        %v714 = vpop.xlane.xlu0 %713
        %v721 = vlaneseq
        %v722 = vand.u32 %v721, 127
        %v723 = vlaneseq
        %v724 = vshrl.u32 %v723, 7
        %v725 = vsub.s32 %v722, %v724
        %v726 = vrot.slane %v699, %v725
        %v727 = vadd.s32 %v722, 4294967288
        %v728 = vlaneseq
        %v729 = vshrl.u32 %v728, 7
        %v730 = vsub.s32 %v727, %v729
        %v731 = vrot.slane %v702, %v730
        %vm732 = vcmask 130112
        %v733 = vsel %vm732, %v731, %v726
        %v734 = vlaneseq
        %v735 = vshrl.u32 %v734, 7
        %v736 = vsub.s32 %v722, %v735
        %v737 = vrot.slane %v705, %v736
        %v738 = vlaneseq
        %v739 = vshrl.u32 %v738, 7
        %v740 = vsub.s32 %v727, %v739
        %v741 = vrot.slane %v708, %v740
        %v742 = vsel %vm732, %v741, %v737
        %v743 = vlaneseq
        %v744 = vshrl.u32 %v743, 7
        %v745 = vsub.s32 %v722, %v744
        %v746 = vrot.slane %v711, %v745
        %v747 = vlaneseq
        %v748 = vshrl.u32 %v747, 7
        %v749 = vsub.s32 %v727, %v748
        %v750 = vrot.slane %v714, %v749
        %v751 = vsel %vm732, %v750, %v746
        %vm752 = vcmask 1041409
        %v753 = vsel %vm752, %v742, %v733
        %vm754 = vcmask 1042434
        %v755 = vsel %vm754, %v751, %v753
        %vm757 = vcmask 124928
        %v758 = vsel %vm757, %v755, -inf
        %759 = vmax.xlane.f32.xlu0 %v758
        %v760 = vpop.xlane.xlu0 %759
        %v762 = vlaneseq
        %v763 = vshrl.u32 %v762, 7
        %v764 = vsub.s32 0, %v763
        %v765 = vrot.slane %v760, %v764
        %v766 = vlaneseq
        %v767 = vshrl.u32 %v766, 7
        %v768 = vsub.s32 1, %v767
        %v769 = vrot.slane %v760, %v768
        %v770 = vlaneseq
        %v771 = vshrl.u32 %v770, 7
        %v772 = vsub.s32 2, %v771
        %v773 = vrot.slane %v760, %v772
        %v777 = vsub.f32 %v699, %v765
        %v778 = vsub.f32 %v702, %v765
        %v779 = vsub.f32 %v705, %v769
        %v780 = vsub.f32 %v708, %v769
        %v781 = vsub.f32 %v711, %v773
        %v782 = vsub.f32 %v714, %v773
        %v783 = vmul.f32 %v777, 1.442695
        %v784 = vpow.pop %v783
        %v785 = vmul.f32 %v778, 1.442695
        %v786 = vpow.pop %v785
        %v787 = vmul.f32 %v779, 1.442695
        %v788 = vpow.pop %v787
        %v789 = vmul.f32 %v780, 1.442695
        %v790 = vpow.pop %v789
        %v791 = vmul.f32 %v781, 1.442695
        %v792 = vpow.pop %v791
        %v793 = vmul.f32 %v782, 1.442695
        %v794 = vpow.pop %v793
        %801 = vset.pattern.permute.xlu0 0
        %802 = vperm.xlu0 %801, %v784
        %v803 = vpop.permute.xlu0 %802
        %804 = vset.pattern.permute.xlu0 0
        %805 = vperm.xlu0 %804, %v786
        %v806 = vpop.permute.xlu0 %805
        %807 = vset.pattern.permute.xlu0 0
        %808 = vperm.xlu0 %807, %v788
        %v809 = vpop.permute.xlu0 %808
        %810 = vset.pattern.permute.xlu0 0
        %811 = vperm.xlu0 %810, %v790
        %v812 = vpop.permute.xlu0 %811
        %813 = vset.pattern.permute.xlu0 0
        %814 = vperm.xlu0 %813, %v792
        %v815 = vpop.permute.xlu0 %814
        %816 = vset.pattern.permute.xlu0 0
        %817 = vperm.xlu0 %816, %v794
        %v818 = vpop.permute.xlu0 %817
        %v819 = vlaneseq
        %v820 = vshrl.u32 %v819, 7
        %v821 = vsub.s32 %v722, %v820
        %v822 = vrot.slane %v803, %v821
        %v823 = vlaneseq
        %v824 = vshrl.u32 %v823, 7
        %v825 = vsub.s32 %v727, %v824
        %v826 = vrot.slane %v806, %v825
        %v827 = vsel %vm732, %v826, %v822
        %v828 = vlaneseq
        %v829 = vshrl.u32 %v828, 7
        %v830 = vsub.s32 %v722, %v829
        %v831 = vrot.slane %v809, %v830
        %v832 = vlaneseq
        %v833 = vshrl.u32 %v832, 7
        %v834 = vsub.s32 %v727, %v833
        %v835 = vrot.slane %v812, %v834
        %v836 = vsel %vm732, %v835, %v831
        %v837 = vlaneseq
        %v838 = vshrl.u32 %v837, 7
        %v839 = vsub.s32 %v722, %v838
        %v840 = vrot.slane %v815, %v839
        %v841 = vlaneseq
        %v842 = vshrl.u32 %v841, 7
        %v843 = vsub.s32 %v727, %v842
        %v844 = vrot.slane %v818, %v843
        %v845 = vsel %vm732, %v844, %v840
        %v846 = vsel %vm752, %v836, %v827
        %v847 = vsel %vm754, %v845, %v846
        %v849 = vsel %vm757, %v847, 0.0
        %850 = vadd.xlane.f32.xlu0 %v849
        %v851 = vpop.xlane.xlu0 %850
        %v853 = vlaneseq
        %v854 = vshrl.u32 %v853, 7
        %v855 = vsub.s32 0, %v854
        %v856 = vrot.slane %v851, %v855
        %v857 = vlaneseq
        %v858 = vshrl.u32 %v857, 7
        %v859 = vsub.s32 1, %v858
        %v860 = vrot.slane %v851, %v859
        %v861 = vlaneseq
        %v862 = vshrl.u32 %v861, 7
        %v863 = vsub.s32 2, %v862
        %v864 = vrot.slane %v851, %v863
        %v868 = vrcp.pop %v856
        %v869 = vmul.f32 %v784, %v868
        %v870 = vmul.f32 %v786, %v868
        %v871 = vrcp.pop %v860
        %v872 = vmul.f32 %v788, %v871
        %v873 = vmul.f32 %v790, %v871
        %v874 = vrcp.pop %v864
        %v875 = vmul.f32 %v792, %v874
        %v876 = vmul.f32 %v794, %v874
        %v878 = vlaneseq
        %v879 = vshrl.u32 %v878, 7
        %v880 = vsub.s32 0, %v879
        %v881 = vrot.slane %v464, %v880
        %883 = vbcast.lane.b32.xlu0 %v881, 256
        %v884 = vpop.permute.xlu0 %883
        %s886 = sor.u32 256, 8
        %887 = vbcast.lane.b32.xlu0 %v881, %s886
        %v888 = vpop.permute.xlu0 %887
        %v889 = vlaneseq
        %v890 = vshrl.u32 %v889, 7
        %v891 = vsub.s32 1, %v890
        %v892 = vrot.slane %v464, %v891
        %894 = vbcast.lane.b32.xlu0 %v892, 256
        %v895 = vpop.permute.xlu0 %894
        %s897 = sor.u32 256, 8
        %898 = vbcast.lane.b32.xlu0 %v892, %s897
        %v899 = vpop.permute.xlu0 %898
        %v900 = vlaneseq
        %v901 = vshrl.u32 %v900, 7
        %v902 = vsub.s32 2, %v901
        %v903 = vrot.slane %v464, %v902
        %905 = vbcast.lane.b32.xlu0 %v903, 256
        %v906 = vpop.permute.xlu0 %905
        %s908 = sor.u32 256, 8
        %909 = vbcast.lane.b32.xlu0 %v903, %s908
        %v910 = vpop.permute.xlu0 %909
        %v917 = vmul.f32 %v869, %v884
        %v918 = vmul.f32 %v870, %v888
        %v919 = vmul.f32 %v872, %v895
        %v920 = vmul.f32 %v873, %v899
        %v921 = vmul.f32 %v875, %v906
        %v922 = vmul.f32 %v876, %v910
        %929 = vset.pattern.permute.xlu0 0
        %930 = vperm.xlu0 %929, %v917
        %v931 = vpop.permute.xlu0 %930
        %932 = vset.pattern.permute.xlu0 0
        %933 = vperm.xlu0 %932, %v918
        %v934 = vpop.permute.xlu0 %933
        %935 = vset.pattern.permute.xlu0 0
        %936 = vperm.xlu0 %935, %v919
        %v937 = vpop.permute.xlu0 %936
        %938 = vset.pattern.permute.xlu0 0
        %939 = vperm.xlu0 %938, %v920
        %v940 = vpop.permute.xlu0 %939
        %941 = vset.pattern.permute.xlu0 0
        %942 = vperm.xlu0 %941, %v921
        %v943 = vpop.permute.xlu0 %942
        %944 = vset.pattern.permute.xlu0 0
        %945 = vperm.xlu0 %944, %v922
        %v946 = vpop.permute.xlu0 %945
        %v947 = vlaneseq
        %v948 = vshrl.u32 %v947, 7
        %v949 = vsub.s32 %v722, %v948
        %v950 = vrot.slane %v931, %v949
        %v951 = vlaneseq
        %v952 = vshrl.u32 %v951, 7
        %v953 = vsub.s32 %v727, %v952
        %v954 = vrot.slane %v934, %v953
        %v955 = vsel %vm732, %v954, %v950
        %v956 = vlaneseq
        %v957 = vshrl.u32 %v956, 7
        %v958 = vsub.s32 %v722, %v957
        %v959 = vrot.slane %v937, %v958
        %v960 = vlaneseq
        %v961 = vshrl.u32 %v960, 7
        %v962 = vsub.s32 %v727, %v961
        %v963 = vrot.slane %v940, %v962
        %v964 = vsel %vm732, %v963, %v959
        %v965 = vlaneseq
        %v966 = vshrl.u32 %v965, 7
        %v967 = vsub.s32 %v722, %v966
        %v968 = vrot.slane %v943, %v967
        %v969 = vlaneseq
        %v970 = vshrl.u32 %v969, 7
        %v971 = vsub.s32 %v727, %v970
        %v972 = vrot.slane %v946, %v971
        %v973 = vsel %vm732, %v972, %v968
        %v974 = vsel %vm752, %v964, %v955
        %v975 = vsel %vm754, %v973, %v974
        %v977 = vsel %vm757, %v975, 0.0
        %978 = vadd.xlane.f32.xlu0 %v977
        %v979 = vpop.xlane.xlu0 %978
        %v980 = vmax.f32 %v979, 1e-05
        %v981 = vunpack.c.l.bf16 %v458
        %v982 = vunpack.c.l.bf16 %v459
        %v983 = vunpack.c.l.bf16 %v460
        %v984 = vunpack.c.l.bf16 %v461
        %v985 = vunpack.c.l.bf16 %v462
        %v986 = vunpack.c.l.bf16 %v463
        %vm987 = vcmask 130048
        %v988 = vsel %vm987, %v955, 0
        %990 = vmatprep.subr.mxu0 0.0
        %991 = vmatpush1.msra.mxu0 %v981
        %992 = vmatprep.subr.mxu0 0.0
        %993 = vmatpush1.msra.mxu0 %v982
        %994 = vmatprep.subr.mxu0 0.0
        %995 = vmatpush1.msra.mxu0 0.0
        %996 = vmatprep.subr.mxu0 0.0
        %997 = vmatpush1.msra.mxu0 0.0
        %998 = vmatprep.subr.mxu0 0.0
        %999 = vmatpush1.msra.mxu0 0.0
        %1000 = vmatprep.subr.mxu0 0.0
        %1001 = vmatpush1.msra.mxu0 0.0
        %1002 = vmatprep.subr.mxu0 0.0
        %1003 = vmatpush1.msra.mxu0 0.0
        %1004 = vmatprep.subr.mxu0 0.0
        %1005 = vmatpush1.msra.mxu0 0.0
        %1006 = vmatprep.subr.mxu0 0.0
        %1007 = vmatpush1.msra.mxu0 0.0
        %1008 = vmatprep.subr.mxu0 0.0
        %1009 = vmatpush1.msra.mxu0 0.0
        %1010 = vmatprep.subr.mxu0 0.0
        %1011 = vmatpush1.msra.mxu0 0.0
        %1012 = vmatprep.subr.mxu0 0.0
        %1013 = vmatpush1.msra.mxu0 0.0
        %1014 = vmatprep.subr.mxu0 0.0
        %1015 = vmatpush1.msra.mxu0 0.0
        %1016 = vmatprep.subr.mxu0 0.0
        %1017 = vmatpush1.msra.mxu0 0.0
        %1018 = vmatprep.subr.mxu0 0.0
        %1019 = vmatpush1.msra.mxu0 0.0
        %1020 = vmatprep.subr.mxu0 0.0
        %1021 = vmatpush1.msra.mxu0 0.0
        %1022 = vmatprep.subr.mxu0 0.0
        %1023 = vmatpush1.msra.mxu0 0.0
        %1024 = vmatprep.subr.mxu0 0.0
        %1025 = vmatpush1.msra.mxu0 0.0
        %1026 = vmatprep.subr.mxu0 0.0
        %1027 = vmatpush1.msra.mxu0 0.0
        %1028 = vmatprep.subr.mxu0 0.0
        %1029 = vmatpush1.msra.mxu0 0.0
        %1030 = vmatprep.subr.mxu0 0.0
        %1031 = vmatpush1.msra.mxu0 0.0
        %1032 = vmatprep.subr.mxu0 0.0
        %1033 = vmatpush1.msra.mxu0 0.0
        %1034 = vmatprep.subr.mxu0 0.0
        %1035 = vmatpush1.msra.mxu0 0.0
        %1036 = vmatprep.subr.mxu0 0.0
        %1037 = vmatpush1.msra.mxu0 0.0
        %1038 = vmatprep.subr.mxu0 0.0
        %1039 = vmatpush1.msra.mxu0 0.0
        %1040 = vmatprep.subr.mxu0 0.0
        %1041 = vmatpush1.msra.mxu0 0.0
        %1042 = vmatprep.subr.mxu0 0.0
        %1043 = vmatpush1.msra.mxu0 0.0
        %1044 = vmatprep.subr.mxu0 0.0
        %1045 = vmatpush1.msra.mxu0 0.0
        %1046 = vmatprep.subr.mxu0 0.0
        %1047 = vmatpush1.msra.mxu0 0.0
        %1048 = vmatprep.subr.mxu0 0.0
        %1049 = vmatpush1.msra.mxu0 0.0
        %1050 = vmatprep.subr.mxu0 0.0
        %1051 = vmatpush1.msra.mxu0 0.0
        %1052 = vmatprep.subr.mxu0 0.0
        %1053 = vmatpush1.msra.mxu0 0.0
        %1054 = vmatprep.mubr.f32.mxu0 0.0
        %1055 = vmatmul.mubr.f32.gmra.mrb[0].mxu0 %v988
        %v1056 = vpop.f32.mrb[0].mxu0
        %v1057 = vadd.f32 0.0, %v1056
        %v1058 = vpop.f32.mrb[0].mxu0
        %1059 = vdwg.mxu0
        %v1060 = vsel %vm987, %v964, 0
        %1062 = vmatprep.subr.mxu0 0.0
        %1063 = vmatpush1.msra.mxu0 %v983
        %1064 = vmatprep.subr.mxu0 0.0
        %1065 = vmatpush1.msra.mxu0 %v984
        %1066 = vmatprep.subr.mxu0 0.0
        %1067 = vmatpush1.msra.mxu0 0.0
        %1068 = vmatprep.subr.mxu0 0.0
        %1069 = vmatpush1.msra.mxu0 0.0
        %1070 = vmatprep.subr.mxu0 0.0
        %1071 = vmatpush1.msra.mxu0 0.0
        %1072 = vmatprep.subr.mxu0 0.0
        %1073 = vmatpush1.msra.mxu0 0.0
        %1074 = vmatprep.subr.mxu0 0.0
        %1075 = vmatpush1.msra.mxu0 0.0
        %1076 = vmatprep.subr.mxu0 0.0
        %1077 = vmatpush1.msra.mxu0 0.0
        %1078 = vmatprep.subr.mxu0 0.0
        %1079 = vmatpush1.msra.mxu0 0.0
        %1080 = vmatprep.subr.mxu0 0.0
        %1081 = vmatpush1.msra.mxu0 0.0
        %1082 = vmatprep.subr.mxu0 0.0
        %1083 = vmatpush1.msra.mxu0 0.0
        %1084 = vmatprep.subr.mxu0 0.0
        %1085 = vmatpush1.msra.mxu0 0.0
        %1086 = vmatprep.subr.mxu0 0.0
        %1087 = vmatpush1.msra.mxu0 0.0
        %1088 = vmatprep.subr.mxu0 0.0
        %1089 = vmatpush1.msra.mxu0 0.0
        %1090 = vmatprep.subr.mxu0 0.0
        %1091 = vmatpush1.msra.mxu0 0.0
        %1092 = vmatprep.subr.mxu0 0.0
        %1093 = vmatpush1.msra.mxu0 0.0
        %1094 = vmatprep.subr.mxu0 0.0
        %1095 = vmatpush1.msra.mxu0 0.0
        %1096 = vmatprep.subr.mxu0 0.0
        %1097 = vmatpush1.msra.mxu0 0.0
        %1098 = vmatprep.subr.mxu0 0.0
        %1099 = vmatpush1.msra.mxu0 0.0
        %1100 = vmatprep.subr.mxu0 0.0
        %1101 = vmatpush1.msra.mxu0 0.0
        %1102 = vmatprep.subr.mxu0 0.0
        %1103 = vmatpush1.msra.mxu0 0.0
        %1104 = vmatprep.subr.mxu0 0.0
        %1105 = vmatpush1.msra.mxu0 0.0
        %1106 = vmatprep.subr.mxu0 0.0
        %1107 = vmatpush1.msra.mxu0 0.0
        %1108 = vmatprep.subr.mxu0 0.0
        %1109 = vmatpush1.msra.mxu0 0.0
        %1110 = vmatprep.subr.mxu0 0.0
        %1111 = vmatpush1.msra.mxu0 0.0
        %1112 = vmatprep.subr.mxu0 0.0
        %1113 = vmatpush1.msra.mxu0 0.0
        %1114 = vmatprep.subr.mxu0 0.0
        %1115 = vmatpush1.msra.mxu0 0.0
        %1116 = vmatprep.subr.mxu0 0.0
        %1117 = vmatpush1.msra.mxu0 0.0
        %1118 = vmatprep.subr.mxu0 0.0
        %1119 = vmatpush1.msra.mxu0 0.0
        %1120 = vmatprep.subr.mxu0 0.0
        %1121 = vmatpush1.msra.mxu0 0.0
        %1122 = vmatprep.subr.mxu0 0.0
        %1123 = vmatpush1.msra.mxu0 0.0
        %1124 = vmatprep.subr.mxu0 0.0
        %1125 = vmatpush1.msra.mxu0 0.0
        %1126 = vmatprep.mubr.f32.mxu0 0.0
        %1127 = vmatmul.mubr.f32.gmra.mrb[0].mxu0 %v1060
        %v1128 = vpop.f32.mrb[0].mxu0
        %v1129 = vadd.f32 0.0, %v1128
        %v1130 = vpop.f32.mrb[0].mxu0
        %1131 = vdwg.mxu0
        %v1132 = vsel %vm987, %v973, 0
        %1134 = vmatprep.subr.mxu0 0.0
        %1135 = vmatpush1.msra.mxu0 %v985
        %1136 = vmatprep.subr.mxu0 0.0
        %1137 = vmatpush1.msra.mxu0 %v986
        %1138 = vmatprep.subr.mxu0 0.0
        %1139 = vmatpush1.msra.mxu0 0.0
        %1140 = vmatprep.subr.mxu0 0.0
        %1141 = vmatpush1.msra.mxu0 0.0
        %1142 = vmatprep.subr.mxu0 0.0
        %1143 = vmatpush1.msra.mxu0 0.0
        %1144 = vmatprep.subr.mxu0 0.0
        %1145 = vmatpush1.msra.mxu0 0.0
        %1146 = vmatprep.subr.mxu0 0.0
        %1147 = vmatpush1.msra.mxu0 0.0
        %1148 = vmatprep.subr.mxu0 0.0
        %1149 = vmatpush1.msra.mxu0 0.0
        %1150 = vmatprep.subr.mxu0 0.0
        %1151 = vmatpush1.msra.mxu0 0.0
        %1152 = vmatprep.subr.mxu0 0.0
        %1153 = vmatpush1.msra.mxu0 0.0
        %1154 = vmatprep.subr.mxu0 0.0
        %1155 = vmatpush1.msra.mxu0 0.0
        %1156 = vmatprep.subr.mxu0 0.0
        %1157 = vmatpush1.msra.mxu0 0.0
        %1158 = vmatprep.subr.mxu0 0.0
        %1159 = vmatpush1.msra.mxu0 0.0
        %1160 = vmatprep.subr.mxu0 0.0
        %1161 = vmatpush1.msra.mxu0 0.0
        %1162 = vmatprep.subr.mxu0 0.0
        %1163 = vmatpush1.msra.mxu0 0.0
        %1164 = vmatprep.subr.mxu0 0.0
        %1165 = vmatpush1.msra.mxu0 0.0
        %1166 = vmatprep.subr.mxu0 0.0
        %1167 = vmatpush1.msra.mxu0 0.0
        %1168 = vmatprep.subr.mxu0 0.0
        %1169 = vmatpush1.msra.mxu0 0.0
        %1170 = vmatprep.subr.mxu0 0.0
        %1171 = vmatpush1.msra.mxu0 0.0
        %1172 = vmatprep.subr.mxu0 0.0
        %1173 = vmatpush1.msra.mxu0 0.0
        %1174 = vmatprep.subr.mxu0 0.0
        %1175 = vmatpush1.msra.mxu0 0.0
        %1176 = vmatprep.subr.mxu0 0.0
        %1177 = vmatpush1.msra.mxu0 0.0
        %1178 = vmatprep.subr.mxu0 0.0
        %1179 = vmatpush1.msra.mxu0 0.0
        %1180 = vmatprep.subr.mxu0 0.0
        %1181 = vmatpush1.msra.mxu0 0.0
        %1182 = vmatprep.subr.mxu0 0.0
        %1183 = vmatpush1.msra.mxu0 0.0
        %1184 = vmatprep.subr.mxu0 0.0
        %1185 = vmatpush1.msra.mxu0 0.0
        %1186 = vmatprep.subr.mxu0 0.0
        %1187 = vmatpush1.msra.mxu0 0.0
        %1188 = vmatprep.subr.mxu0 0.0
        %1189 = vmatpush1.msra.mxu0 0.0
        %1190 = vmatprep.subr.mxu0 0.0
        %1191 = vmatpush1.msra.mxu0 0.0
        %1192 = vmatprep.subr.mxu0 0.0
        %1193 = vmatpush1.msra.mxu0 0.0
        %1194 = vmatprep.subr.mxu0 0.0
        %1195 = vmatpush1.msra.mxu0 0.0
        %1196 = vmatprep.subr.mxu0 0.0
        %1197 = vmatpush1.msra.mxu0 0.0
        %1198 = vmatprep.mubr.f32.mxu0 0.0
        %1199 = vmatmul.mubr.f32.gmra.mrb[0].mxu0 %v1132
        %v1200 = vpop.f32.mrb[0].mxu0
        %v1201 = vadd.f32 0.0, %v1200
        %v1202 = vpop.f32.mrb[0].mxu0
        %1203 = vdwg.mxu0
        %v1205 = vrot.slane %v980, 1
        %v1206 = vrot.slane %v980, 2
        %v1210 = vrcp.pop %v980
        %v1211 = vmul.f32 %v1057, %v1210
        %v1212 = vrcp.pop %v1205
        %v1213 = vmul.f32 %v1129, %v1212
        %v1214 = vrcp.pop %v1206
        %v1215 = vmul.f32 %v1201, %v1214
        %v1216 = vld [vmem:[#allocation2] sm:$0x7]
        %v1217 = vld [vmem:[#allocation3] sm:$0x7]
        %v1218 = vld [vmem:[#allocation6] sm:$0xff]
        %v1219 = vld [vmem:[#allocation6 + $0x8] sm:$0xff]
        %v1220 = vld [vmem:[#allocation6 + $0x10] sm:$0xff]
        %v1221 = vld [vmem:[#allocation6 + $0x18] sm:$0xff]
        %v1222 = vld [vmem:[#allocation8] sm:$0xff]
        %v1223 = vld [vmem:[#allocation8 + $0x8] sm:$0xff]
        %v1224 = vld [vmem:[#allocation8 + $0x10] sm:$0xff]
        %v1225 = vld [vmem:[#allocation8 + $0x18] sm:$0xff]
        %v1227 = vsel %vm494, %v1216, 0
        %1229 = vmatprep.subr.mxu0 0.0
        %1230 = vmatpush1.msra.mxu0 %v1222
        %1231 = vmatprep.subr.mxu0 0.0
        %1232 = vmatpush1.msra.mxu0 %v1223
        %1233 = vmatprep.subr.mxu0 0.0
        %1234 = vmatpush1.msra.mxu0 %v1224
        %1235 = vmatprep.subr.mxu0 0.0
        %1236 = vmatpush1.msra.mxu0 %v1225
        %1237 = vmatprep.subr.mxu0 0.0
        %1238 = vmatpush1.msra.mxu0 0.0
        %1239 = vmatprep.subr.mxu0 0.0
        %1240 = vmatpush1.msra.mxu0 0.0
        %1241 = vmatprep.subr.mxu0 0.0
        %1242 = vmatpush1.msra.mxu0 0.0
        %1243 = vmatprep.subr.mxu0 0.0
        %1244 = vmatpush1.msra.mxu0 0.0
        %1245 = vmatprep.subr.mxu0 0.0
        %1246 = vmatpush1.msra.mxu0 0.0
        %1247 = vmatprep.subr.mxu0 0.0
        %1248 = vmatpush1.msra.mxu0 0.0
        %1249 = vmatprep.subr.mxu0 0.0
        %1250 = vmatpush1.msra.mxu0 0.0
        %1251 = vmatprep.subr.mxu0 0.0
        %1252 = vmatpush1.msra.mxu0 0.0
        %1253 = vmatprep.subr.mxu0 0.0
        %1254 = vmatpush1.msra.mxu0 0.0
        %1255 = vmatprep.subr.mxu0 0.0
        %1256 = vmatpush1.msra.mxu0 0.0
        %1257 = vmatprep.subr.mxu0 0.0
        %1258 = vmatpush1.msra.mxu0 0.0
        %1259 = vmatprep.subr.mxu0 0.0
        %1260 = vmatpush1.msra.mxu0 0.0
        %1261 = vmatprep.subr.mxu0 0.0
        %1262 = vmatpush1.msra.mxu0 0.0
        %1263 = vmatprep.subr.mxu0 0.0
        %1264 = vmatpush1.msra.mxu0 0.0
        %1265 = vmatprep.subr.mxu0 0.0
        %1266 = vmatpush1.msra.mxu0 0.0
        %1267 = vmatprep.subr.mxu0 0.0
        %1268 = vmatpush1.msra.mxu0 0.0
        %1269 = vmatprep.subr.mxu0 0.0
        %1270 = vmatpush1.msra.mxu0 0.0
        %1271 = vmatprep.subr.mxu0 0.0
        %1272 = vmatpush1.msra.mxu0 0.0
        %1273 = vmatprep.subr.mxu0 0.0
        %1274 = vmatpush1.msra.mxu0 0.0
        %1275 = vmatprep.subr.mxu0 0.0
        %1276 = vmatpush1.msra.mxu0 0.0
        %1277 = vmatprep.subr.mxu0 0.0
        %1278 = vmatpush1.msra.mxu0 0.0
        %1279 = vmatprep.subr.mxu0 0.0
        %1280 = vmatpush1.msra.mxu0 0.0
        %1281 = vmatprep.subr.mxu0 0.0
        %1282 = vmatpush1.msra.mxu0 0.0
        %1283 = vmatprep.subr.mxu0 0.0
        %1284 = vmatpush1.msra.mxu0 0.0
        %1285 = vmatprep.subr.mxu0 0.0
        %1286 = vmatpush1.msra.mxu0 0.0
        %1287 = vmatprep.subr.mxu0 0.0
        %1288 = vmatpush1.msra.mxu0 0.0
        %1289 = vmatprep.subr.mxu0 0.0
        %1290 = vmatpush1.msra.mxu0 0.0
        %1291 = vmatprep.subr.mxu0 0.0
        %1292 = vmatpush1.msra.mxu0 0.0
        %1293 = vmatprep.mubr.f32.mxu0 0.0
        %1294 = vmatmul.mubr.f32.gmra.mrb[0].mxu0 %v1227
        %v1295 = vpop.f32.mrb[0].mxu0
        %v1296 = vadd.f32 0.0, %v1295
        %v1297 = vpop.f32.mrb[0].mxu0
        %1298 = vdwg.mxu0
        %v1302 = vrot.slane %v1213, 7
        %v1303 = vsel %vm752, %v1302, %v1211
        %v1304 = vrot.slane %v1215, 6
        %v1305 = vsel %vm754, %v1304, %v1303
        %v1306 = vsel %vm494, %v1305, 0
        %1308 = vmatprep.subr.mxu0 0.0
        %1309 = vmatpush1.msra.mxu0 %v1218
        %1310 = vmatprep.subr.mxu0 0.0
        %1311 = vmatpush1.msra.mxu0 %v1219
        %1312 = vmatprep.subr.mxu0 0.0
        %1313 = vmatpush1.msra.mxu0 %v1220
        %1314 = vmatprep.subr.mxu0 0.0
        %1315 = vmatpush1.msra.mxu0 %v1221
        %1316 = vmatprep.subr.mxu0 0.0
        %1317 = vmatpush1.msra.mxu0 0.0
        %1318 = vmatprep.subr.mxu0 0.0
        %1319 = vmatpush1.msra.mxu0 0.0
        %1320 = vmatprep.subr.mxu0 0.0
        %1321 = vmatpush1.msra.mxu0 0.0
        %1322 = vmatprep.subr.mxu0 0.0
        %1323 = vmatpush1.msra.mxu0 0.0
        %1324 = vmatprep.subr.mxu0 0.0
        %1325 = vmatpush1.msra.mxu0 0.0
        %1326 = vmatprep.subr.mxu0 0.0
        %1327 = vmatpush1.msra.mxu0 0.0
        %1328 = vmatprep.subr.mxu0 0.0
        %1329 = vmatpush1.msra.mxu0 0.0
        %1330 = vmatprep.subr.mxu0 0.0
        %1331 = vmatpush1.msra.mxu0 0.0
        %1332 = vmatprep.subr.mxu0 0.0
        %1333 = vmatpush1.msra.mxu0 0.0
        %1334 = vmatprep.subr.mxu0 0.0
        %1335 = vmatpush1.msra.mxu0 0.0
        %1336 = vmatprep.subr.mxu0 0.0
        %1337 = vmatpush1.msra.mxu0 0.0
        %1338 = vmatprep.subr.mxu0 0.0
        %1339 = vmatpush1.msra.mxu0 0.0
        %1340 = vmatprep.subr.mxu0 0.0
        %1341 = vmatpush1.msra.mxu0 0.0
        %1342 = vmatprep.subr.mxu0 0.0
        %1343 = vmatpush1.msra.mxu0 0.0
        %1344 = vmatprep.subr.mxu0 0.0
        %1345 = vmatpush1.msra.mxu0 0.0
        %1346 = vmatprep.subr.mxu0 0.0
        %1347 = vmatpush1.msra.mxu0 0.0
        %1348 = vmatprep.subr.mxu0 0.0
        %1349 = vmatpush1.msra.mxu0 0.0
        %1350 = vmatprep.subr.mxu0 0.0
        %1351 = vmatpush1.msra.mxu0 0.0
        %1352 = vmatprep.subr.mxu0 0.0
        %1353 = vmatpush1.msra.mxu0 0.0
        %1354 = vmatprep.subr.mxu0 0.0
        %1355 = vmatpush1.msra.mxu0 0.0
        %1356 = vmatprep.subr.mxu0 0.0
        %1357 = vmatpush1.msra.mxu0 0.0
        %1358 = vmatprep.subr.mxu0 0.0
        %1359 = vmatpush1.msra.mxu0 0.0
        %1360 = vmatprep.subr.mxu0 0.0
        %1361 = vmatpush1.msra.mxu0 0.0
        %1362 = vmatprep.subr.mxu0 0.0
        %1363 = vmatpush1.msra.mxu0 0.0
        %1364 = vmatprep.subr.mxu0 0.0
        %1365 = vmatpush1.msra.mxu0 0.0
        %1366 = vmatprep.subr.mxu0 0.0
        %1367 = vmatpush1.msra.mxu0 0.0
        %1368 = vmatprep.subr.mxu0 0.0
        %1369 = vmatpush1.msra.mxu0 0.0
        %1370 = vmatprep.subr.mxu0 0.0
        %1371 = vmatpush1.msra.mxu0 0.0
        %1372 = vmatprep.mubr.f32.mxu0 0.0
        %1373 = vmatmul.mubr.f32.gmra.mrb[0].mxu0 %v1306
        %v1374 = vpop.f32.mrb[0].mxu0
        %v1375 = vadd.f32 %v1296, %v1374
        %v1376 = vpop.f32.mrb[0].mxu0
        %1377 = vdwg.mxu0
        %v1378 = vld [vmem:[%s7] sm:$0x1]
        %v1380 = vlaneseq
        %v1381 = vshrl.u32 %v1380, 7
        %v1382 = vsub.s32 0, %v1381
        %v1383 = vrot.slane %v1378, %v1382
        %v1385 = vadd.f32 %v1375, %v1383
        %s1386 = scalar_lea.vmem [#allocation6], 32
        %v1387 = vld [vmem:[%s1386] sm:$0xff]
        %v1388 = vld [vmem:[%s1386 + $0x8] sm:$0xff]
        %v1389 = vld [vmem:[%s1386 + $0x10] sm:$0xff]
        %v1390 = vld [vmem:[%s1386 + $0x18] sm:$0xff]
        %s1391 = scalar_lea.vmem [#allocation8], 32
        %v1392 = vld [vmem:[%s1391] sm:$0xff]
        %v1393 = vld [vmem:[%s1391 + $0x8] sm:$0xff]
        %v1394 = vld [vmem:[%s1391 + $0x10] sm:$0xff]
        %v1395 = vld [vmem:[%s1391 + $0x18] sm:$0xff]
        %1396 = vmatprep.subr.mxu0 0.0
        %1397 = vmatpush1.msra.mxu0 %v1392
        %1398 = vmatprep.subr.mxu0 0.0
        %1399 = vmatpush1.msra.mxu0 %v1393
        %1400 = vmatprep.subr.mxu0 0.0
        %1401 = vmatpush1.msra.mxu0 %v1394
        %1402 = vmatprep.subr.mxu0 0.0
        %1403 = vmatpush1.msra.mxu0 %v1395
        %1404 = vmatprep.subr.mxu0 0.0
        %1405 = vmatpush1.msra.mxu0 0.0
        %1406 = vmatprep.subr.mxu0 0.0
        %1407 = vmatpush1.msra.mxu0 0.0
        %1408 = vmatprep.subr.mxu0 0.0
        %1409 = vmatpush1.msra.mxu0 0.0
        %1410 = vmatprep.subr.mxu0 0.0
        %1411 = vmatpush1.msra.mxu0 0.0
        %1412 = vmatprep.subr.mxu0 0.0
        %1413 = vmatpush1.msra.mxu0 0.0
        %1414 = vmatprep.subr.mxu0 0.0
        %1415 = vmatpush1.msra.mxu0 0.0
        %1416 = vmatprep.subr.mxu0 0.0
        %1417 = vmatpush1.msra.mxu0 0.0
        %1418 = vmatprep.subr.mxu0 0.0
        %1419 = vmatpush1.msra.mxu0 0.0
        %1420 = vmatprep.subr.mxu0 0.0
        %1421 = vmatpush1.msra.mxu0 0.0
        %1422 = vmatprep.subr.mxu0 0.0
        %1423 = vmatpush1.msra.mxu0 0.0
        %1424 = vmatprep.subr.mxu0 0.0
        %1425 = vmatpush1.msra.mxu0 0.0
        %1426 = vmatprep.subr.mxu0 0.0
        %1427 = vmatpush1.msra.mxu0 0.0
        %1428 = vmatprep.subr.mxu0 0.0
        %1429 = vmatpush1.msra.mxu0 0.0
        %1430 = vmatprep.subr.mxu0 0.0
        %1431 = vmatpush1.msra.mxu0 0.0
        %1432 = vmatprep.subr.mxu0 0.0
        %1433 = vmatpush1.msra.mxu0 0.0
        %1434 = vmatprep.subr.mxu0 0.0
        %1435 = vmatpush1.msra.mxu0 0.0
        %1436 = vmatprep.subr.mxu0 0.0
        %1437 = vmatpush1.msra.mxu0 0.0
        %1438 = vmatprep.subr.mxu0 0.0
        %1439 = vmatpush1.msra.mxu0 0.0
        %1440 = vmatprep.subr.mxu0 0.0
        %1441 = vmatpush1.msra.mxu0 0.0
        %1442 = vmatprep.subr.mxu0 0.0
        %1443 = vmatpush1.msra.mxu0 0.0
        %1444 = vmatprep.subr.mxu0 0.0
        %1445 = vmatpush1.msra.mxu0 0.0
        %1446 = vmatprep.subr.mxu0 0.0
        %1447 = vmatpush1.msra.mxu0 0.0
        %1448 = vmatprep.subr.mxu0 0.0
        %1449 = vmatpush1.msra.mxu0 0.0
        %1450 = vmatprep.subr.mxu0 0.0
        %1451 = vmatpush1.msra.mxu0 0.0
        %1452 = vmatprep.subr.mxu0 0.0
        %1453 = vmatpush1.msra.mxu0 0.0
        %1454 = vmatprep.subr.mxu0 0.0
        %1455 = vmatpush1.msra.mxu0 0.0
        %1456 = vmatprep.subr.mxu0 0.0
        %1457 = vmatpush1.msra.mxu0 0.0
        %1458 = vmatprep.subr.mxu0 0.0
        %1459 = vmatpush1.msra.mxu0 0.0
        %1460 = vmatprep.mubr.f32.mxu0 0.0
        %1461 = vmatmul.mubr.f32.gmra.mrb[0].mxu0 %v1227
        %v1462 = vpop.f32.mrb[0].mxu0
        %v1463 = vadd.f32 0.0, %v1462
        %v1464 = vpop.f32.mrb[0].mxu0
        %1465 = vdwg.mxu0
        %1466 = vmatprep.subr.mxu0 0.0
        %1467 = vmatpush1.msra.mxu0 %v1387
        %1468 = vmatprep.subr.mxu0 0.0
        %1469 = vmatpush1.msra.mxu0 %v1388
        %1470 = vmatprep.subr.mxu0 0.0
        %1471 = vmatpush1.msra.mxu0 %v1389
        %1472 = vmatprep.subr.mxu0 0.0
        %1473 = vmatpush1.msra.mxu0 %v1390
        %1474 = vmatprep.subr.mxu0 0.0
        %1475 = vmatpush1.msra.mxu0 0.0
        %1476 = vmatprep.subr.mxu0 0.0
        %1477 = vmatpush1.msra.mxu0 0.0
        %1478 = vmatprep.subr.mxu0 0.0
        %1479 = vmatpush1.msra.mxu0 0.0
        %1480 = vmatprep.subr.mxu0 0.0
        %1481 = vmatpush1.msra.mxu0 0.0
        %1482 = vmatprep.subr.mxu0 0.0
        %1483 = vmatpush1.msra.mxu0 0.0
        %1484 = vmatprep.subr.mxu0 0.0
        %1485 = vmatpush1.msra.mxu0 0.0
        %1486 = vmatprep.subr.mxu0 0.0
        %1487 = vmatpush1.msra.mxu0 0.0
        %1488 = vmatprep.subr.mxu0 0.0
        %1489 = vmatpush1.msra.mxu0 0.0
        %1490 = vmatprep.subr.mxu0 0.0
        %1491 = vmatpush1.msra.mxu0 0.0
        %1492 = vmatprep.subr.mxu0 0.0
        %1493 = vmatpush1.msra.mxu0 0.0
        %1494 = vmatprep.subr.mxu0 0.0
        %1495 = vmatpush1.msra.mxu0 0.0
        %1496 = vmatprep.subr.mxu0 0.0
        %1497 = vmatpush1.msra.mxu0 0.0
        %1498 = vmatprep.subr.mxu0 0.0
        %1499 = vmatpush1.msra.mxu0 0.0
        %1500 = vmatprep.subr.mxu0 0.0
        %1501 = vmatpush1.msra.mxu0 0.0
        %1502 = vmatprep.subr.mxu0 0.0
        %1503 = vmatpush1.msra.mxu0 0.0
        %1504 = vmatprep.subr.mxu0 0.0
        %1505 = vmatpush1.msra.mxu0 0.0
        %1506 = vmatprep.subr.mxu0 0.0
        %1507 = vmatpush1.msra.mxu0 0.0
        %1508 = vmatprep.subr.mxu0 0.0
        %1509 = vmatpush1.msra.mxu0 0.0
        %1510 = vmatprep.subr.mxu0 0.0
        %1511 = vmatpush1.msra.mxu0 0.0
        %1512 = vmatprep.subr.mxu0 0.0
        %1513 = vmatpush1.msra.mxu0 0.0
        %1514 = vmatprep.subr.mxu0 0.0
        %1515 = vmatpush1.msra.mxu0 0.0
        %1516 = vmatprep.subr.mxu0 0.0
        %1517 = vmatpush1.msra.mxu0 0.0
        %1518 = vmatprep.subr.mxu0 0.0
        %1519 = vmatpush1.msra.mxu0 0.0
        %1520 = vmatprep.subr.mxu0 0.0
        %1521 = vmatpush1.msra.mxu0 0.0
        %1522 = vmatprep.subr.mxu0 0.0
        %1523 = vmatpush1.msra.mxu0 0.0
        %1524 = vmatprep.subr.mxu0 0.0
        %1525 = vmatpush1.msra.mxu0 0.0
        %1526 = vmatprep.subr.mxu0 0.0
        %1527 = vmatpush1.msra.mxu0 0.0
        %1528 = vmatprep.subr.mxu0 0.0
        %1529 = vmatpush1.msra.mxu0 0.0
        %1530 = vmatprep.mubr.f32.mxu0 0.0
        %1531 = vmatmul.mubr.f32.gmra.mrb[0].mxu0 %v1306
        %v1532 = vpop.f32.mrb[0].mxu0
        %v1533 = vadd.f32 %v1463, %v1532
        %v1534 = vpop.f32.mrb[0].mxu0
        %1535 = vdwg.mxu0
        %s1536 = scalar_lea.vmem %s7, 1
        %v1537 = vld [vmem:[%s1536] sm:$0x1]
        %v1539 = vlaneseq
        %v1540 = vshrl.u32 %v1539, 7
        %v1541 = vsub.s32 0, %v1540
        %v1542 = vrot.slane %v1537, %v1541
        %v1544 = vadd.f32 %v1533, %v1542
        %s1545 = scalar_lea.vmem [#allocation6], 64
        %v1546 = vld [vmem:[%s1545] sm:$0xff]
        %v1547 = vld [vmem:[%s1545 + $0x8] sm:$0xff]
        %v1548 = vld [vmem:[%s1545 + $0x10] sm:$0xff]
        %v1549 = vld [vmem:[%s1545 + $0x18] sm:$0xff]
        %s1550 = scalar_lea.vmem [#allocation8], 64
        %v1551 = vld [vmem:[%s1550] sm:$0xff]
        %v1552 = vld [vmem:[%s1550 + $0x8] sm:$0xff]
        %v1553 = vld [vmem:[%s1550 + $0x10] sm:$0xff]
        %v1554 = vld [vmem:[%s1550 + $0x18] sm:$0xff]
        %1555 = vmatprep.subr.mxu0 0.0
        %1556 = vmatpush1.msra.mxu0 %v1551
        %1557 = vmatprep.subr.mxu0 0.0
        %1558 = vmatpush1.msra.mxu0 %v1552
        %1559 = vmatprep.subr.mxu0 0.0
        %1560 = vmatpush1.msra.mxu0 %v1553
        %1561 = vmatprep.subr.mxu0 0.0
        %1562 = vmatpush1.msra.mxu0 %v1554
        %1563 = vmatprep.subr.mxu0 0.0
        %1564 = vmatpush1.msra.mxu0 0.0
        %1565 = vmatprep.subr.mxu0 0.0
        %1566 = vmatpush1.msra.mxu0 0.0
        %1567 = vmatprep.subr.mxu0 0.0
        %1568 = vmatpush1.msra.mxu0 0.0
        %1569 = vmatprep.subr.mxu0 0.0
        %1570 = vmatpush1.msra.mxu0 0.0
        %1571 = vmatprep.subr.mxu0 0.0
        %1572 = vmatpush1.msra.mxu0 0.0
        %1573 = vmatprep.subr.mxu0 0.0
        %1574 = vmatpush1.msra.mxu0 0.0
        %1575 = vmatprep.subr.mxu0 0.0
        %1576 = vmatpush1.msra.mxu0 0.0
        %1577 = vmatprep.subr.mxu0 0.0
        %1578 = vmatpush1.msra.mxu0 0.0
        %1579 = vmatprep.subr.mxu0 0.0
        %1580 = vmatpush1.msra.mxu0 0.0
        %1581 = vmatprep.subr.mxu0 0.0
        %1582 = vmatpush1.msra.mxu0 0.0
        %1583 = vmatprep.subr.mxu0 0.0
        %1584 = vmatpush1.msra.mxu0 0.0
        %1585 = vmatprep.subr.mxu0 0.0
        %1586 = vmatpush1.msra.mxu0 0.0
        %1587 = vmatprep.subr.mxu0 0.0
        %1588 = vmatpush1.msra.mxu0 0.0
        %1589 = vmatprep.subr.mxu0 0.0
        %1590 = vmatpush1.msra.mxu0 0.0
        %1591 = vmatprep.subr.mxu0 0.0
        %1592 = vmatpush1.msra.mxu0 0.0
        %1593 = vmatprep.subr.mxu0 0.0
        %1594 = vmatpush1.msra.mxu0 0.0
        %1595 = vmatprep.subr.mxu0 0.0
        %1596 = vmatpush1.msra.mxu0 0.0
        %1597 = vmatprep.subr.mxu0 0.0
        %1598 = vmatpush1.msra.mxu0 0.0
        %1599 = vmatprep.subr.mxu0 0.0
        %1600 = vmatpush1.msra.mxu0 0.0
        %1601 = vmatprep.subr.mxu0 0.0
        %1602 = vmatpush1.msra.mxu0 0.0
        %1603 = vmatprep.subr.mxu0 0.0
        %1604 = vmatpush1.msra.mxu0 0.0
        %1605 = vmatprep.subr.mxu0 0.0
        %1606 = vmatpush1.msra.mxu0 0.0
        %1607 = vmatprep.subr.mxu0 0.0
        %1608 = vmatpush1.msra.mxu0 0.0
        %1609 = vmatprep.subr.mxu0 0.0
        %1610 = vmatpush1.msra.mxu0 0.0
        %1611 = vmatprep.subr.mxu0 0.0
        %1612 = vmatpush1.msra.mxu0 0.0
        %1613 = vmatprep.subr.mxu0 0.0
        %1614 = vmatpush1.msra.mxu0 0.0
        %1615 = vmatprep.subr.mxu0 0.0
        %1616 = vmatpush1.msra.mxu0 0.0
        %1617 = vmatprep.subr.mxu0 0.0
        %1618 = vmatpush1.msra.mxu0 0.0
        %1619 = vmatprep.mubr.f32.mxu0 0.0
        %1620 = vmatmul.mubr.f32.gmra.mrb[0].mxu0 %v1227
        %v1621 = vpop.f32.mrb[0].mxu0
        %v1622 = vadd.f32 0.0, %v1621
        %v1623 = vpop.f32.mrb[0].mxu0
        %1624 = vdwg.mxu0
        %1625 = vmatprep.subr.mxu0 0.0
        %1626 = vmatpush1.msra.mxu0 %v1546
        %1627 = vmatprep.subr.mxu0 0.0
        %1628 = vmatpush1.msra.mxu0 %v1547
        %1629 = vmatprep.subr.mxu0 0.0
        %1630 = vmatpush1.msra.mxu0 %v1548
        %1631 = vmatprep.subr.mxu0 0.0
        %1632 = vmatpush1.msra.mxu0 %v1549
        %1633 = vmatprep.subr.mxu0 0.0
        %1634 = vmatpush1.msra.mxu0 0.0
        %1635 = vmatprep.subr.mxu0 0.0
        %1636 = vmatpush1.msra.mxu0 0.0
        %1637 = vmatprep.subr.mxu0 0.0
        %1638 = vmatpush1.msra.mxu0 0.0
        %1639 = vmatprep.subr.mxu0 0.0
        %1640 = vmatpush1.msra.mxu0 0.0
        %1641 = vmatprep.subr.mxu0 0.0
        %1642 = vmatpush1.msra.mxu0 0.0
        %1643 = vmatprep.subr.mxu0 0.0
        %1644 = vmatpush1.msra.mxu0 0.0
        %1645 = vmatprep.subr.mxu0 0.0
        %1646 = vmatpush1.msra.mxu0 0.0
        %1647 = vmatprep.subr.mxu0 0.0
        %1648 = vmatpush1.msra.mxu0 0.0
        %1649 = vmatprep.subr.mxu0 0.0
        %1650 = vmatpush1.msra.mxu0 0.0
        %1651 = vmatprep.subr.mxu0 0.0
        %1652 = vmatpush1.msra.mxu0 0.0
        %1653 = vmatprep.subr.mxu0 0.0
        %1654 = vmatpush1.msra.mxu0 0.0
        %1655 = vmatprep.subr.mxu0 0.0
        %1656 = vmatpush1.msra.mxu0 0.0
        %1657 = vmatprep.subr.mxu0 0.0
        %1658 = vmatpush1.msra.mxu0 0.0
        %1659 = vmatprep.subr.mxu0 0.0
        %1660 = vmatpush1.msra.mxu0 0.0
        %1661 = vmatprep.subr.mxu0 0.0
        %1662 = vmatpush1.msra.mxu0 0.0
        %1663 = vmatprep.subr.mxu0 0.0
        %1664 = vmatpush1.msra.mxu0 0.0
        %1665 = vmatprep.subr.mxu0 0.0
        %1666 = vmatpush1.msra.mxu0 0.0
        %1667 = vmatprep.subr.mxu0 0.0
        %1668 = vmatpush1.msra.mxu0 0.0
        %1669 = vmatprep.subr.mxu0 0.0
        %1670 = vmatpush1.msra.mxu0 0.0
        %1671 = vmatprep.subr.mxu0 0.0
        %1672 = vmatpush1.msra.mxu0 0.0
        %1673 = vmatprep.subr.mxu0 0.0
        %1674 = vmatpush1.msra.mxu0 0.0
        %1675 = vmatprep.subr.mxu0 0.0
        %1676 = vmatpush1.msra.mxu0 0.0
        %1677 = vmatprep.subr.mxu0 0.0
        %1678 = vmatpush1.msra.mxu0 0.0
        %1679 = vmatprep.subr.mxu0 0.0
        %1680 = vmatpush1.msra.mxu0 0.0
        %1681 = vmatprep.subr.mxu0 0.0
        %1682 = vmatpush1.msra.mxu0 0.0
        %1683 = vmatprep.subr.mxu0 0.0
        %1684 = vmatpush1.msra.mxu0 0.0
        %1685 = vmatprep.subr.mxu0 0.0
        %1686 = vmatpush1.msra.mxu0 0.0
        %1687 = vmatprep.subr.mxu0 0.0
        %1688 = vmatpush1.msra.mxu0 0.0
        %1689 = vmatprep.mubr.f32.mxu0 0.0
        %1690 = vmatmul.mubr.f32.gmra.mrb[0].mxu0 %v1306
        %v1691 = vpop.f32.mrb[0].mxu0
        %v1692 = vadd.f32 %v1622, %v1691
        %v1693 = vpop.f32.mrb[0].mxu0
        %1694 = vdwg.mxu0
        %s1695 = scalar_lea.vmem %s7, 2
        %v1696 = vld [vmem:[%s1695] sm:$0x1]
        %v1698 = vlaneseq
        %v1699 = vshrl.u32 %v1698, 7
        %v1700 = vsub.s32 0, %v1699
        %v1701 = vrot.slane %v1696, %v1700
        %v1703 = vadd.f32 %v1692, %v1701
        %s1704 = scalar_lea.vmem [#allocation6], 96
        %v1705 = vld [vmem:[%s1704] sm:$0xff]
        %v1706 = vld [vmem:[%s1704 + $0x8] sm:$0xff]
        %v1707 = vld [vmem:[%s1704 + $0x10] sm:$0xff]
        %v1708 = vld [vmem:[%s1704 + $0x18] sm:$0xff]
        %s1709 = scalar_lea.vmem [#allocation8], 96
        %v1710 = vld [vmem:[%s1709] sm:$0xff]
        %v1711 = vld [vmem:[%s1709 + $0x8] sm:$0xff]
        %v1712 = vld [vmem:[%s1709 + $0x10] sm:$0xff]
        %v1713 = vld [vmem:[%s1709 + $0x18] sm:$0xff]
        %1714 = vmatprep.subr.mxu0 0.0
        %1715 = vmatpush1.msra.mxu0 %v1710
        %1716 = vmatprep.subr.mxu0 0.0
        %1717 = vmatpush1.msra.mxu0 %v1711
        %1718 = vmatprep.subr.mxu0 0.0
        %1719 = vmatpush1.msra.mxu0 %v1712
        %1720 = vmatprep.subr.mxu0 0.0
        %1721 = vmatpush1.msra.mxu0 %v1713
        %1722 = vmatprep.subr.mxu0 0.0
        %1723 = vmatpush1.msra.mxu0 0.0
        %1724 = vmatprep.subr.mxu0 0.0
        %1725 = vmatpush1.msra.mxu0 0.0
        %1726 = vmatprep.subr.mxu0 0.0
        %1727 = vmatpush1.msra.mxu0 0.0
        %1728 = vmatprep.subr.mxu0 0.0
        %1729 = vmatpush1.msra.mxu0 0.0
        %1730 = vmatprep.subr.mxu0 0.0
        %1731 = vmatpush1.msra.mxu0 0.0
        %1732 = vmatprep.subr.mxu0 0.0
        %1733 = vmatpush1.msra.mxu0 0.0
        %1734 = vmatprep.subr.mxu0 0.0
        %1735 = vmatpush1.msra.mxu0 0.0
        %1736 = vmatprep.subr.mxu0 0.0
        %1737 = vmatpush1.msra.mxu0 0.0
        %1738 = vmatprep.subr.mxu0 0.0
        %1739 = vmatpush1.msra.mxu0 0.0
        %1740 = vmatprep.subr.mxu0 0.0
        %1741 = vmatpush1.msra.mxu0 0.0
        %1742 = vmatprep.subr.mxu0 0.0
        %1743 = vmatpush1.msra.mxu0 0.0
        %1744 = vmatprep.subr.mxu0 0.0
        %1745 = vmatpush1.msra.mxu0 0.0
        %1746 = vmatprep.subr.mxu0 0.0
        %1747 = vmatpush1.msra.mxu0 0.0
        %1748 = vmatprep.subr.mxu0 0.0
        %1749 = vmatpush1.msra.mxu0 0.0
        %1750 = vmatprep.subr.mxu0 0.0
        %1751 = vmatpush1.msra.mxu0 0.0
        %1752 = vmatprep.subr.mxu0 0.0
        %1753 = vmatpush1.msra.mxu0 0.0
        %1754 = vmatprep.subr.mxu0 0.0
        %1755 = vmatpush1.msra.mxu0 0.0
        %1756 = vmatprep.subr.mxu0 0.0
        %1757 = vmatpush1.msra.mxu0 0.0
        %1758 = vmatprep.subr.mxu0 0.0
        %1759 = vmatpush1.msra.mxu0 0.0
        %1760 = vmatprep.subr.mxu0 0.0
        %1761 = vmatpush1.msra.mxu0 0.0
        %1762 = vmatprep.subr.mxu0 0.0
        %1763 = vmatpush1.msra.mxu0 0.0
        %1764 = vmatprep.subr.mxu0 0.0
        %1765 = vmatpush1.msra.mxu0 0.0
        %1766 = vmatprep.subr.mxu0 0.0
        %1767 = vmatpush1.msra.mxu0 0.0
        %1768 = vmatprep.subr.mxu0 0.0
        %1769 = vmatpush1.msra.mxu0 0.0
        %1770 = vmatprep.subr.mxu0 0.0
        %1771 = vmatpush1.msra.mxu0 0.0
        %1772 = vmatprep.subr.mxu0 0.0
        %1773 = vmatpush1.msra.mxu0 0.0
        %1774 = vmatprep.subr.mxu0 0.0
        %1775 = vmatpush1.msra.mxu0 0.0
        %1776 = vmatprep.subr.mxu0 0.0
        %1777 = vmatpush1.msra.mxu0 0.0
        %1778 = vmatprep.mubr.f32.mxu0 0.0
        %1779 = vmatmul.mubr.f32.gmra.mrb[0].mxu0 %v1227
        %v1780 = vpop.f32.mrb[0].mxu0
        %v1781 = vadd.f32 0.0, %v1780
        %v1782 = vpop.f32.mrb[0].mxu0
        %1783 = vdwg.mxu0
        %1784 = vmatprep.subr.mxu0 0.0
        %1785 = vmatpush1.msra.mxu0 %v1705
        %1786 = vmatprep.subr.mxu0 0.0
        %1787 = vmatpush1.msra.mxu0 %v1706
        %1788 = vmatprep.subr.mxu0 0.0
        %1789 = vmatpush1.msra.mxu0 %v1707
        %1790 = vmatprep.subr.mxu0 0.0
        %1791 = vmatpush1.msra.mxu0 %v1708
        %1792 = vmatprep.subr.mxu0 0.0
        %1793 = vmatpush1.msra.mxu0 0.0
        %1794 = vmatprep.subr.mxu0 0.0
        %1795 = vmatpush1.msra.mxu0 0.0
        %1796 = vmatprep.subr.mxu0 0.0
        %1797 = vmatpush1.msra.mxu0 0.0
        %1798 = vmatprep.subr.mxu0 0.0
        %1799 = vmatpush1.msra.mxu0 0.0
        %1800 = vmatprep.subr.mxu0 0.0
        %1801 = vmatpush1.msra.mxu0 0.0
        %1802 = vmatprep.subr.mxu0 0.0
        %1803 = vmatpush1.msra.mxu0 0.0
        %1804 = vmatprep.subr.mxu0 0.0
        %1805 = vmatpush1.msra.mxu0 0.0
        %1806 = vmatprep.subr.mxu0 0.0
        %1807 = vmatpush1.msra.mxu0 0.0
        %1808 = vmatprep.subr.mxu0 0.0
        %1809 = vmatpush1.msra.mxu0 0.0
        %1810 = vmatprep.subr.mxu0 0.0
        %1811 = vmatpush1.msra.mxu0 0.0
        %1812 = vmatprep.subr.mxu0 0.0
        %1813 = vmatpush1.msra.mxu0 0.0
        %1814 = vmatprep.subr.mxu0 0.0
        %1815 = vmatpush1.msra.mxu0 0.0
        %1816 = vmatprep.subr.mxu0 0.0
        %1817 = vmatpush1.msra.mxu0 0.0
        %1818 = vmatprep.subr.mxu0 0.0
        %1819 = vmatpush1.msra.mxu0 0.0
        %1820 = vmatprep.subr.mxu0 0.0
        %1821 = vmatpush1.msra.mxu0 0.0
        %1822 = vmatprep.subr.mxu0 0.0
        %1823 = vmatpush1.msra.mxu0 0.0
        %1824 = vmatprep.subr.mxu0 0.0
        %1825 = vmatpush1.msra.mxu0 0.0
        %1826 = vmatprep.subr.mxu0 0.0
        %1827 = vmatpush1.msra.mxu0 0.0
        %1828 = vmatprep.subr.mxu0 0.0
        %1829 = vmatpush1.msra.mxu0 0.0
        %1830 = vmatprep.subr.mxu0 0.0
        %1831 = vmatpush1.msra.mxu0 0.0
        %1832 = vmatprep.subr.mxu0 0.0
        %1833 = vmatpush1.msra.mxu0 0.0
        %1834 = vmatprep.subr.mxu0 0.0
        %1835 = vmatpush1.msra.mxu0 0.0
        %1836 = vmatprep.subr.mxu0 0.0
        %1837 = vmatpush1.msra.mxu0 0.0
        %1838 = vmatprep.subr.mxu0 0.0
        %1839 = vmatpush1.msra.mxu0 0.0
        %1840 = vmatprep.subr.mxu0 0.0
        %1841 = vmatpush1.msra.mxu0 0.0
        %1842 = vmatprep.subr.mxu0 0.0
        %1843 = vmatpush1.msra.mxu0 0.0
        %1844 = vmatprep.subr.mxu0 0.0
        %1845 = vmatpush1.msra.mxu0 0.0
        %1846 = vmatprep.subr.mxu0 0.0
        %1847 = vmatpush1.msra.mxu0 0.0
        %1848 = vmatprep.mubr.f32.mxu0 0.0
        %1849 = vmatmul.mubr.f32.gmra.mrb[0].mxu0 %v1306
        %v1850 = vpop.f32.mrb[0].mxu0
        %v1851 = vadd.f32 %v1781, %v1850
        %v1852 = vpop.f32.mrb[0].mxu0
        %1853 = vdwg.mxu0
        %s1854 = scalar_lea.vmem %s7, 3
        %v1855 = vld [vmem:[%s1854] sm:$0x1]
        %v1857 = vlaneseq
        %v1858 = vshrl.u32 %v1857, 7
        %v1859 = vsub.s32 0, %v1858
        %v1860 = vrot.slane %v1855, %v1859
        %v1862 = vadd.f32 %v1851, %v1860
        %v1863 = vxor.u32 %v1385, 2147483648
        %v1864 = vmul.f32 %v1863, 1.442695
        %v1865 = vpow.pop %v1864
        %v1866 = vadd.f32 %v1865, 1.0
        %v1867 = vrcp.pop %v1866
        %v1868 = vmul.f32 1.0, %v1867
        %v1869 = vxor.u32 %v1544, 2147483648
        %v1870 = vmul.f32 %v1869, 1.442695
        %v1871 = vpow.pop %v1870
        %v1872 = vadd.f32 %v1871, 1.0
        %v1873 = vrcp.pop %v1872
        %v1874 = vmul.f32 1.0, %v1873
        %v1875 = vtanh.pop %v1703
        %v1876 = vxor.u32 %v1862, 2147483648
        %v1877 = vmul.f32 %v1876, 1.442695
        %v1878 = vpow.pop %v1877
        %v1879 = vadd.f32 %v1878, 1.0
        %v1880 = vrcp.pop %v1879
        %v1881 = vmul.f32 1.0, %v1880
        %v1882 = vmul.f32 %v1874, %v1217
        %v1883 = vmul.f32 %v1868, %v1875
        %v1884 = vadd.f32 %v1882, %v1883
        %v1885 = vtanh.pop %v1884
        %v1886 = vmul.f32 %v1881, %v1885
        %vm1887 = vcmask 256000
        %1888 = vst.msk [vmem:[#allocation2] sm:$0x7] %vm1887, %v1886
        %1889 = vst.msk [vmem:[#allocation3] sm:$0x7] %vm1887, %v1884
        %v1890 = vld [vmem:[%s465] sm:$0x7]
        %s1891 = scalar_lea.vmem [#allocation3], 4
        %v1892 = vld [vmem:[%s1891] sm:$0x7]
        %v1893 = vld [vmem:[#allocation6] sm:$0xff]
        %v1894 = vld [vmem:[#allocation6 + $0x8] sm:$0xff]
        %v1895 = vld [vmem:[#allocation6 + $0x10] sm:$0xff]
        %v1896 = vld [vmem:[#allocation6 + $0x18] sm:$0xff]
        %v1897 = vld [vmem:[#allocation8] sm:$0xff]
        %v1898 = vld [vmem:[#allocation8 + $0x8] sm:$0xff]
        %v1899 = vld [vmem:[#allocation8 + $0x10] sm:$0xff]
        %v1900 = vld [vmem:[#allocation8 + $0x18] sm:$0xff]
        %v1902 = vsel %vm494, %v1890, 0
        %1904 = vmatprep.subr.mxu0 0.0
        %1905 = vmatpush1.msra.mxu0 %v1897
        %1906 = vmatprep.subr.mxu0 0.0
        %1907 = vmatpush1.msra.mxu0 %v1898
        %1908 = vmatprep.subr.mxu0 0.0
        %1909 = vmatpush1.msra.mxu0 %v1899
        %1910 = vmatprep.subr.mxu0 0.0
        %1911 = vmatpush1.msra.mxu0 %v1900
        %1912 = vmatprep.subr.mxu0 0.0
        %1913 = vmatpush1.msra.mxu0 0.0
        %1914 = vmatprep.subr.mxu0 0.0
        %1915 = vmatpush1.msra.mxu0 0.0
        %1916 = vmatprep.subr.mxu0 0.0
        %1917 = vmatpush1.msra.mxu0 0.0
        %1918 = vmatprep.subr.mxu0 0.0
        %1919 = vmatpush1.msra.mxu0 0.0
        %1920 = vmatprep.subr.mxu0 0.0
        %1921 = vmatpush1.msra.mxu0 0.0
        %1922 = vmatprep.subr.mxu0 0.0
        %1923 = vmatpush1.msra.mxu0 0.0
        %1924 = vmatprep.subr.mxu0 0.0
        %1925 = vmatpush1.msra.mxu0 0.0
        %1926 = vmatprep.subr.mxu0 0.0
        %1927 = vmatpush1.msra.mxu0 0.0
        %1928 = vmatprep.subr.mxu0 0.0
        %1929 = vmatpush1.msra.mxu0 0.0
        %1930 = vmatprep.subr.mxu0 0.0
        %1931 = vmatpush1.msra.mxu0 0.0
        %1932 = vmatprep.subr.mxu0 0.0
        %1933 = vmatpush1.msra.mxu0 0.0
        %1934 = vmatprep.subr.mxu0 0.0
        %1935 = vmatpush1.msra.mxu0 0.0
        %1936 = vmatprep.subr.mxu0 0.0
        %1937 = vmatpush1.msra.mxu0 0.0
        %1938 = vmatprep.subr.mxu0 0.0
        %1939 = vmatpush1.msra.mxu0 0.0
        %1940 = vmatprep.subr.mxu0 0.0
        %1941 = vmatpush1.msra.mxu0 0.0
        %1942 = vmatprep.subr.mxu0 0.0
        %1943 = vmatpush1.msra.mxu0 0.0
        %1944 = vmatprep.subr.mxu0 0.0
        %1945 = vmatpush1.msra.mxu0 0.0
        %1946 = vmatprep.subr.mxu0 0.0
        %1947 = vmatpush1.msra.mxu0 0.0
        %1948 = vmatprep.subr.mxu0 0.0
        %1949 = vmatpush1.msra.mxu0 0.0
        %1950 = vmatprep.subr.mxu0 0.0
        %1951 = vmatpush1.msra.mxu0 0.0
        %1952 = vmatprep.subr.mxu0 0.0
        %1953 = vmatpush1.msra.mxu0 0.0
        %1954 = vmatprep.subr.mxu0 0.0
        %1955 = vmatpush1.msra.mxu0 0.0
        %1956 = vmatprep.subr.mxu0 0.0
        %1957 = vmatpush1.msra.mxu0 0.0
        %1958 = vmatprep.subr.mxu0 0.0
        %1959 = vmatpush1.msra.mxu0 0.0
        %1960 = vmatprep.subr.mxu0 0.0
        %1961 = vmatpush1.msra.mxu0 0.0
        %1962 = vmatprep.subr.mxu0 0.0
        %1963 = vmatpush1.msra.mxu0 0.0
        %1964 = vmatprep.subr.mxu0 0.0
        %1965 = vmatpush1.msra.mxu0 0.0
        %1966 = vmatprep.subr.mxu0 0.0
        %1967 = vmatpush1.msra.mxu0 0.0
        %1968 = vmatprep.mubr.f32.mxu0 0.0
        %1969 = vmatmul.mubr.f32.gmra.mrb[0].mxu0 %v1902
        %v1970 = vpop.f32.mrb[0].mxu0
        %v1971 = vadd.f32 0.0, %v1970
        %v1972 = vpop.f32.mrb[0].mxu0
        %1973 = vdwg.mxu0
        %v1975 = vsel %vm494, %v1886, 0
        %1977 = vmatprep.subr.mxu0 0.0
        %1978 = vmatpush1.msra.mxu0 %v1893
        %1979 = vmatprep.subr.mxu0 0.0
        %1980 = vmatpush1.msra.mxu0 %v1894
        %1981 = vmatprep.subr.mxu0 0.0
        %1982 = vmatpush1.msra.mxu0 %v1895
        %1983 = vmatprep.subr.mxu0 0.0
        %1984 = vmatpush1.msra.mxu0 %v1896
        %1985 = vmatprep.subr.mxu0 0.0
        %1986 = vmatpush1.msra.mxu0 0.0
        %1987 = vmatprep.subr.mxu0 0.0
        %1988 = vmatpush1.msra.mxu0 0.0
        %1989 = vmatprep.subr.mxu0 0.0
        %1990 = vmatpush1.msra.mxu0 0.0
        %1991 = vmatprep.subr.mxu0 0.0
        %1992 = vmatpush1.msra.mxu0 0.0
        %1993 = vmatprep.subr.mxu0 0.0
        %1994 = vmatpush1.msra.mxu0 0.0
        %1995 = vmatprep.subr.mxu0 0.0
        %1996 = vmatpush1.msra.mxu0 0.0
        %1997 = vmatprep.subr.mxu0 0.0
        %1998 = vmatpush1.msra.mxu0 0.0
        %1999 = vmatprep.subr.mxu0 0.0
        %2000 = vmatpush1.msra.mxu0 0.0
        %2001 = vmatprep.subr.mxu0 0.0
        %2002 = vmatpush1.msra.mxu0 0.0
        %2003 = vmatprep.subr.mxu0 0.0
        %2004 = vmatpush1.msra.mxu0 0.0
        %2005 = vmatprep.subr.mxu0 0.0
        %2006 = vmatpush1.msra.mxu0 0.0
        %2007 = vmatprep.subr.mxu0 0.0
        %2008 = vmatpush1.msra.mxu0 0.0
        %2009 = vmatprep.subr.mxu0 0.0
        %2010 = vmatpush1.msra.mxu0 0.0
        %2011 = vmatprep.subr.mxu0 0.0
        %2012 = vmatpush1.msra.mxu0 0.0
        %2013 = vmatprep.subr.mxu0 0.0
        %2014 = vmatpush1.msra.mxu0 0.0
        %2015 = vmatprep.subr.mxu0 0.0
        %2016 = vmatpush1.msra.mxu0 0.0
        %2017 = vmatprep.subr.mxu0 0.0
        %2018 = vmatpush1.msra.mxu0 0.0
        %2019 = vmatprep.subr.mxu0 0.0
        %2020 = vmatpush1.msra.mxu0 0.0
        %2021 = vmatprep.subr.mxu0 0.0
        %2022 = vmatpush1.msra.mxu0 0.0
        %2023 = vmatprep.subr.mxu0 0.0
        %2024 = vmatpush1.msra.mxu0 0.0
        %2025 = vmatprep.subr.mxu0 0.0
        %2026 = vmatpush1.msra.mxu0 0.0
        %2027 = vmatprep.subr.mxu0 0.0
        %2028 = vmatpush1.msra.mxu0 0.0
        %2029 = vmatprep.subr.mxu0 0.0
        %2030 = vmatpush1.msra.mxu0 0.0
        %2031 = vmatprep.subr.mxu0 0.0
        %2032 = vmatpush1.msra.mxu0 0.0
        %2033 = vmatprep.subr.mxu0 0.0
        %2034 = vmatpush1.msra.mxu0 0.0
        %2035 = vmatprep.subr.mxu0 0.0
        %2036 = vmatpush1.msra.mxu0 0.0
        %2037 = vmatprep.subr.mxu0 0.0
        %2038 = vmatpush1.msra.mxu0 0.0
        %2039 = vmatprep.subr.mxu0 0.0
        %2040 = vmatpush1.msra.mxu0 0.0
        %2041 = vmatprep.mubr.f32.mxu0 0.0
        %2042 = vmatmul.mubr.f32.gmra.mrb[0].mxu0 %v1975
        %v2043 = vpop.f32.mrb[0].mxu0
        %v2044 = vadd.f32 %v1971, %v2043
        %v2045 = vpop.f32.mrb[0].mxu0
        %2046 = vdwg.mxu0
        %v2047 = vld [vmem:[%s7] sm:$0x1]
        %v2049 = vlaneseq
        %v2050 = vshrl.u32 %v2049, 7
        %v2051 = vsub.s32 0, %v2050
        %v2052 = vrot.slane %v2047, %v2051
        %v2054 = vadd.f32 %v2044, %v2052
        %v2055 = vld [vmem:[%s1386] sm:$0xff]
        %v2056 = vld [vmem:[%s1386 + $0x8] sm:$0xff]
        %v2057 = vld [vmem:[%s1386 + $0x10] sm:$0xff]
        %v2058 = vld [vmem:[%s1386 + $0x18] sm:$0xff]
        %v2059 = vld [vmem:[%s1391] sm:$0xff]
        %v2060 = vld [vmem:[%s1391 + $0x8] sm:$0xff]
        %v2061 = vld [vmem:[%s1391 + $0x10] sm:$0xff]
        %v2062 = vld [vmem:[%s1391 + $0x18] sm:$0xff]
        %2063 = vmatprep.subr.mxu0 0.0
        %2064 = vmatpush1.msra.mxu0 %v2059
        %2065 = vmatprep.subr.mxu0 0.0
        %2066 = vmatpush1.msra.mxu0 %v2060
        %2067 = vmatprep.subr.mxu0 0.0
        %2068 = vmatpush1.msra.mxu0 %v2061
        %2069 = vmatprep.subr.mxu0 0.0
        %2070 = vmatpush1.msra.mxu0 %v2062
        %2071 = vmatprep.subr.mxu0 0.0
        %2072 = vmatpush1.msra.mxu0 0.0
        %2073 = vmatprep.subr.mxu0 0.0
        %2074 = vmatpush1.msra.mxu0 0.0
        %2075 = vmatprep.subr.mxu0 0.0
        %2076 = vmatpush1.msra.mxu0 0.0
        %2077 = vmatprep.subr.mxu0 0.0
        %2078 = vmatpush1.msra.mxu0 0.0
        %2079 = vmatprep.subr.mxu0 0.0
        %2080 = vmatpush1.msra.mxu0 0.0
        %2081 = vmatprep.subr.mxu0 0.0
        %2082 = vmatpush1.msra.mxu0 0.0
        %2083 = vmatprep.subr.mxu0 0.0
        %2084 = vmatpush1.msra.mxu0 0.0
        %2085 = vmatprep.subr.mxu0 0.0
        %2086 = vmatpush1.msra.mxu0 0.0
        %2087 = vmatprep.subr.mxu0 0.0
        %2088 = vmatpush1.msra.mxu0 0.0
        %2089 = vmatprep.subr.mxu0 0.0
        %2090 = vmatpush1.msra.mxu0 0.0
        %2091 = vmatprep.subr.mxu0 0.0
        %2092 = vmatpush1.msra.mxu0 0.0
        %2093 = vmatprep.subr.mxu0 0.0
        %2094 = vmatpush1.msra.mxu0 0.0
        %2095 = vmatprep.subr.mxu0 0.0
        %2096 = vmatpush1.msra.mxu0 0.0
        %2097 = vmatprep.subr.mxu0 0.0
        %2098 = vmatpush1.msra.mxu0 0.0
        %2099 = vmatprep.subr.mxu0 0.0
        %2100 = vmatpush1.msra.mxu0 0.0
        %2101 = vmatprep.subr.mxu0 0.0
        %2102 = vmatpush1.msra.mxu0 0.0
        %2103 = vmatprep.subr.mxu0 0.0
        %2104 = vmatpush1.msra.mxu0 0.0
        %2105 = vmatprep.subr.mxu0 0.0
        %2106 = vmatpush1.msra.mxu0 0.0
        %2107 = vmatprep.subr.mxu0 0.0
        %2108 = vmatpush1.msra.mxu0 0.0
        %2109 = vmatprep.subr.mxu0 0.0
        %2110 = vmatpush1.msra.mxu0 0.0
        %2111 = vmatprep.subr.mxu0 0.0
        %2112 = vmatpush1.msra.mxu0 0.0
        %2113 = vmatprep.subr.mxu0 0.0
        %2114 = vmatpush1.msra.mxu0 0.0
        %2115 = vmatprep.subr.mxu0 0.0
        %2116 = vmatpush1.msra.mxu0 0.0
        %2117 = vmatprep.subr.mxu0 0.0
        %2118 = vmatpush1.msra.mxu0 0.0
        %2119 = vmatprep.subr.mxu0 0.0
        %2120 = vmatpush1.msra.mxu0 0.0
        %2121 = vmatprep.subr.mxu0 0.0
        %2122 = vmatpush1.msra.mxu0 0.0
        %2123 = vmatprep.subr.mxu0 0.0
        %2124 = vmatpush1.msra.mxu0 0.0
        %2125 = vmatprep.subr.mxu0 0.0
        %2126 = vmatpush1.msra.mxu0 0.0
        %2127 = vmatprep.mubr.f32.mxu0 0.0
        %2128 = vmatmul.mubr.f32.gmra.mrb[0].mxu0 %v1902
        %v2129 = vpop.f32.mrb[0].mxu0
        %v2130 = vadd.f32 0.0, %v2129
        %v2131 = vpop.f32.mrb[0].mxu0
        %2132 = vdwg.mxu0
        %2133 = vmatprep.subr.mxu0 0.0
        %2134 = vmatpush1.msra.mxu0 %v2055
        %2135 = vmatprep.subr.mxu0 0.0
        %2136 = vmatpush1.msra.mxu0 %v2056
        %2137 = vmatprep.subr.mxu0 0.0
        %2138 = vmatpush1.msra.mxu0 %v2057
        %2139 = vmatprep.subr.mxu0 0.0
        %2140 = vmatpush1.msra.mxu0 %v2058
        %2141 = vmatprep.subr.mxu0 0.0
        %2142 = vmatpush1.msra.mxu0 0.0
        %2143 = vmatprep.subr.mxu0 0.0
        %2144 = vmatpush1.msra.mxu0 0.0
        %2145 = vmatprep.subr.mxu0 0.0
        %2146 = vmatpush1.msra.mxu0 0.0
        %2147 = vmatprep.subr.mxu0 0.0
        %2148 = vmatpush1.msra.mxu0 0.0
        %2149 = vmatprep.subr.mxu0 0.0
        %2150 = vmatpush1.msra.mxu0 0.0
        %2151 = vmatprep.subr.mxu0 0.0
        %2152 = vmatpush1.msra.mxu0 0.0
        %2153 = vmatprep.subr.mxu0 0.0
        %2154 = vmatpush1.msra.mxu0 0.0
        %2155 = vmatprep.subr.mxu0 0.0
        %2156 = vmatpush1.msra.mxu0 0.0
        %2157 = vmatprep.subr.mxu0 0.0
        %2158 = vmatpush1.msra.mxu0 0.0
        %2159 = vmatprep.subr.mxu0 0.0
        %2160 = vmatpush1.msra.mxu0 0.0
        %2161 = vmatprep.subr.mxu0 0.0
        %2162 = vmatpush1.msra.mxu0 0.0
        %2163 = vmatprep.subr.mxu0 0.0
        %2164 = vmatpush1.msra.mxu0 0.0
        %2165 = vmatprep.subr.mxu0 0.0
        %2166 = vmatpush1.msra.mxu0 0.0
        %2167 = vmatprep.subr.mxu0 0.0
        %2168 = vmatpush1.msra.mxu0 0.0
        %2169 = vmatprep.subr.mxu0 0.0
        %2170 = vmatpush1.msra.mxu0 0.0
        %2171 = vmatprep.subr.mxu0 0.0
        %2172 = vmatpush1.msra.mxu0 0.0
        %2173 = vmatprep.subr.mxu0 0.0
        %2174 = vmatpush1.msra.mxu0 0.0
        %2175 = vmatprep.subr.mxu0 0.0
        %2176 = vmatpush1.msra.mxu0 0.0
        %2177 = vmatprep.subr.mxu0 0.0
        %2178 = vmatpush1.msra.mxu0 0.0
        %2179 = vmatprep.subr.mxu0 0.0
        %2180 = vmatpush1.msra.mxu0 0.0
        %2181 = vmatprep.subr.mxu0 0.0
        %2182 = vmatpush1.msra.mxu0 0.0
        %2183 = vmatprep.subr.mxu0 0.0
        %2184 = vmatpush1.msra.mxu0 0.0
        %2185 = vmatprep.subr.mxu0 0.0
        %2186 = vmatpush1.msra.mxu0 0.0
        %2187 = vmatprep.subr.mxu0 0.0
        %2188 = vmatpush1.msra.mxu0 0.0
        %2189 = vmatprep.subr.mxu0 0.0
        %2190 = vmatpush1.msra.mxu0 0.0
        %2191 = vmatprep.subr.mxu0 0.0
        %2192 = vmatpush1.msra.mxu0 0.0
        %2193 = vmatprep.subr.mxu0 0.0
        %2194 = vmatpush1.msra.mxu0 0.0
        %2195 = vmatprep.subr.mxu0 0.0
        %2196 = vmatpush1.msra.mxu0 0.0
        %2197 = vmatprep.mubr.f32.mxu0 0.0
        %2198 = vmatmul.mubr.f32.gmra.mrb[0].mxu0 %v1975
        %v2199 = vpop.f32.mrb[0].mxu0
        %v2200 = vadd.f32 %v2130, %v2199
        %v2201 = vpop.f32.mrb[0].mxu0
        %2202 = vdwg.mxu0
        %v2203 = vld [vmem:[%s1536] sm:$0x1]
        %v2205 = vlaneseq
        %v2206 = vshrl.u32 %v2205, 7
        %v2207 = vsub.s32 0, %v2206
        %v2208 = vrot.slane %v2203, %v2207
        %v2210 = vadd.f32 %v2200, %v2208
        %v2211 = vld [vmem:[%s1545] sm:$0xff]
        %v2212 = vld [vmem:[%s1545 + $0x8] sm:$0xff]
        %v2213 = vld [vmem:[%s1545 + $0x10] sm:$0xff]
        %v2214 = vld [vmem:[%s1545 + $0x18] sm:$0xff]
        %v2215 = vld [vmem:[%s1550] sm:$0xff]
        %v2216 = vld [vmem:[%s1550 + $0x8] sm:$0xff]
        %v2217 = vld [vmem:[%s1550 + $0x10] sm:$0xff]
        %v2218 = vld [vmem:[%s1550 + $0x18] sm:$0xff]
        %2219 = vmatprep.subr.mxu0 0.0
        %2220 = vmatpush1.msra.mxu0 %v2215
        %2221 = vmatprep.subr.mxu0 0.0
        %2222 = vmatpush1.msra.mxu0 %v2216
        %2223 = vmatprep.subr.mxu0 0.0
        %2224 = vmatpush1.msra.mxu0 %v2217
        %2225 = vmatprep.subr.mxu0 0.0
        %2226 = vmatpush1.msra.mxu0 %v2218
        %2227 = vmatprep.subr.mxu0 0.0
        %2228 = vmatpush1.msra.mxu0 0.0
        %2229 = vmatprep.subr.mxu0 0.0
        %2230 = vmatpush1.msra.mxu0 0.0
        %2231 = vmatprep.subr.mxu0 0.0
        %2232 = vmatpush1.msra.mxu0 0.0
        %2233 = vmatprep.subr.mxu0 0.0
        %2234 = vmatpush1.msra.mxu0 0.0
        %2235 = vmatprep.subr.mxu0 0.0
        %2236 = vmatpush1.msra.mxu0 0.0
        %2237 = vmatprep.subr.mxu0 0.0
        %2238 = vmatpush1.msra.mxu0 0.0
        %2239 = vmatprep.subr.mxu0 0.0
        %2240 = vmatpush1.msra.mxu0 0.0
        %2241 = vmatprep.subr.mxu0 0.0
        %2242 = vmatpush1.msra.mxu0 0.0
        %2243 = vmatprep.subr.mxu0 0.0
        %2244 = vmatpush1.msra.mxu0 0.0
        %2245 = vmatprep.subr.mxu0 0.0
        %2246 = vmatpush1.msra.mxu0 0.0
        %2247 = vmatprep.subr.mxu0 0.0
        %2248 = vmatpush1.msra.mxu0 0.0
        %2249 = vmatprep.subr.mxu0 0.0
        %2250 = vmatpush1.msra.mxu0 0.0
        %2251 = vmatprep.subr.mxu0 0.0
        %2252 = vmatpush1.msra.mxu0 0.0
        %2253 = vmatprep.subr.mxu0 0.0
        %2254 = vmatpush1.msra.mxu0 0.0
        %2255 = vmatprep.subr.mxu0 0.0
        %2256 = vmatpush1.msra.mxu0 0.0
        %2257 = vmatprep.subr.mxu0 0.0
        %2258 = vmatpush1.msra.mxu0 0.0
        %2259 = vmatprep.subr.mxu0 0.0
        %2260 = vmatpush1.msra.mxu0 0.0
        %2261 = vmatprep.subr.mxu0 0.0
        %2262 = vmatpush1.msra.mxu0 0.0
        %2263 = vmatprep.subr.mxu0 0.0
        %2264 = vmatpush1.msra.mxu0 0.0
        %2265 = vmatprep.subr.mxu0 0.0
        %2266 = vmatpush1.msra.mxu0 0.0
        %2267 = vmatprep.subr.mxu0 0.0
        %2268 = vmatpush1.msra.mxu0 0.0
        %2269 = vmatprep.subr.mxu0 0.0
        %2270 = vmatpush1.msra.mxu0 0.0
        %2271 = vmatprep.subr.mxu0 0.0
        %2272 = vmatpush1.msra.mxu0 0.0
        %2273 = vmatprep.subr.mxu0 0.0
        %2274 = vmatpush1.msra.mxu0 0.0
        %2275 = vmatprep.subr.mxu0 0.0
        %2276 = vmatpush1.msra.mxu0 0.0
        %2277 = vmatprep.subr.mxu0 0.0
        %2278 = vmatpush1.msra.mxu0 0.0
        %2279 = vmatprep.subr.mxu0 0.0
        %2280 = vmatpush1.msra.mxu0 0.0
        %2281 = vmatprep.subr.mxu0 0.0
        %2282 = vmatpush1.msra.mxu0 0.0
        %2283 = vmatprep.mubr.f32.mxu0 0.0
        %2284 = vmatmul.mubr.f32.gmra.mrb[0].mxu0 %v1902
        %v2285 = vpop.f32.mrb[0].mxu0
        %v2286 = vadd.f32 0.0, %v2285
        %v2287 = vpop.f32.mrb[0].mxu0
        %2288 = vdwg.mxu0
        %2289 = vmatprep.subr.mxu0 0.0
        %2290 = vmatpush1.msra.mxu0 %v2211
        %2291 = vmatprep.subr.mxu0 0.0
        %2292 = vmatpush1.msra.mxu0 %v2212
        %2293 = vmatprep.subr.mxu0 0.0
        %2294 = vmatpush1.msra.mxu0 %v2213
        %2295 = vmatprep.subr.mxu0 0.0
        %2296 = vmatpush1.msra.mxu0 %v2214
        %2297 = vmatprep.subr.mxu0 0.0
        %2298 = vmatpush1.msra.mxu0 0.0
        %2299 = vmatprep.subr.mxu0 0.0
        %2300 = vmatpush1.msra.mxu0 0.0
        %2301 = vmatprep.subr.mxu0 0.0
        %2302 = vmatpush1.msra.mxu0 0.0
        %2303 = vmatprep.subr.mxu0 0.0
        %2304 = vmatpush1.msra.mxu0 0.0
        %2305 = vmatprep.subr.mxu0 0.0
        %2306 = vmatpush1.msra.mxu0 0.0
        %2307 = vmatprep.subr.mxu0 0.0
        %2308 = vmatpush1.msra.mxu0 0.0
        %2309 = vmatprep.subr.mxu0 0.0
        %2310 = vmatpush1.msra.mxu0 0.0
        %2311 = vmatprep.subr.mxu0 0.0
        %2312 = vmatpush1.msra.mxu0 0.0
        %2313 = vmatprep.subr.mxu0 0.0
        %2314 = vmatpush1.msra.mxu0 0.0
        %2315 = vmatprep.subr.mxu0 0.0
        %2316 = vmatpush1.msra.mxu0 0.0
        %2317 = vmatprep.subr.mxu0 0.0
        %2318 = vmatpush1.msra.mxu0 0.0
        %2319 = vmatprep.subr.mxu0 0.0
        %2320 = vmatpush1.msra.mxu0 0.0
        %2321 = vmatprep.subr.mxu0 0.0
        %2322 = vmatpush1.msra.mxu0 0.0
        %2323 = vmatprep.subr.mxu0 0.0
        %2324 = vmatpush1.msra.mxu0 0.0
        %2325 = vmatprep.subr.mxu0 0.0
        %2326 = vmatpush1.msra.mxu0 0.0
        %2327 = vmatprep.subr.mxu0 0.0
        %2328 = vmatpush1.msra.mxu0 0.0
        %2329 = vmatprep.subr.mxu0 0.0
        %2330 = vmatpush1.msra.mxu0 0.0
        %2331 = vmatprep.subr.mxu0 0.0
        %2332 = vmatpush1.msra.mxu0 0.0
        %2333 = vmatprep.subr.mxu0 0.0
        %2334 = vmatpush1.msra.mxu0 0.0
        %2335 = vmatprep.subr.mxu0 0.0
        %2336 = vmatpush1.msra.mxu0 0.0
        %2337 = vmatprep.subr.mxu0 0.0
        %2338 = vmatpush1.msra.mxu0 0.0
        %2339 = vmatprep.subr.mxu0 0.0
        %2340 = vmatpush1.msra.mxu0 0.0
        %2341 = vmatprep.subr.mxu0 0.0
        %2342 = vmatpush1.msra.mxu0 0.0
        %2343 = vmatprep.subr.mxu0 0.0
        %2344 = vmatpush1.msra.mxu0 0.0
        %2345 = vmatprep.subr.mxu0 0.0
        %2346 = vmatpush1.msra.mxu0 0.0
        %2347 = vmatprep.subr.mxu0 0.0
        %2348 = vmatpush1.msra.mxu0 0.0
        %2349 = vmatprep.subr.mxu0 0.0
        %2350 = vmatpush1.msra.mxu0 0.0
        %2351 = vmatprep.subr.mxu0 0.0
        %2352 = vmatpush1.msra.mxu0 0.0
        %2353 = vmatprep.mubr.f32.mxu0 0.0
        %2354 = vmatmul.mubr.f32.gmra.mrb[0].mxu0 %v1975
        %v2355 = vpop.f32.mrb[0].mxu0
        %v2356 = vadd.f32 %v2286, %v2355
        %v2357 = vpop.f32.mrb[0].mxu0
        %2358 = vdwg.mxu0
        %v2359 = vld [vmem:[%s1695] sm:$0x1]
        %v2361 = vlaneseq
        %v2362 = vshrl.u32 %v2361, 7
        %v2363 = vsub.s32 0, %v2362
        %v2364 = vrot.slane %v2359, %v2363
        %v2366 = vadd.f32 %v2356, %v2364
        %v2367 = vld [vmem:[%s1704] sm:$0xff]
        %v2368 = vld [vmem:[%s1704 + $0x8] sm:$0xff]
        %v2369 = vld [vmem:[%s1704 + $0x10] sm:$0xff]
        %v2370 = vld [vmem:[%s1704 + $0x18] sm:$0xff]
        %v2371 = vld [vmem:[%s1709] sm:$0xff]
        %v2372 = vld [vmem:[%s1709 + $0x8] sm:$0xff]
        %v2373 = vld [vmem:[%s1709 + $0x10] sm:$0xff]
        %v2374 = vld [vmem:[%s1709 + $0x18] sm:$0xff]
        %2375 = vmatprep.subr.mxu0 0.0
        %2376 = vmatpush1.msra.mxu0 %v2371
        %2377 = vmatprep.subr.mxu0 0.0
        %2378 = vmatpush1.msra.mxu0 %v2372
        %2379 = vmatprep.subr.mxu0 0.0
        %2380 = vmatpush1.msra.mxu0 %v2373
        %2381 = vmatprep.subr.mxu0 0.0
        %2382 = vmatpush1.msra.mxu0 %v2374
        %2383 = vmatprep.subr.mxu0 0.0
        %2384 = vmatpush1.msra.mxu0 0.0
        %2385 = vmatprep.subr.mxu0 0.0
        %2386 = vmatpush1.msra.mxu0 0.0
        %2387 = vmatprep.subr.mxu0 0.0
        %2388 = vmatpush1.msra.mxu0 0.0
        %2389 = vmatprep.subr.mxu0 0.0
        %2390 = vmatpush1.msra.mxu0 0.0
        %2391 = vmatprep.subr.mxu0 0.0
        %2392 = vmatpush1.msra.mxu0 0.0
        %2393 = vmatprep.subr.mxu0 0.0
        %2394 = vmatpush1.msra.mxu0 0.0
        %2395 = vmatprep.subr.mxu0 0.0
        %2396 = vmatpush1.msra.mxu0 0.0
        %2397 = vmatprep.subr.mxu0 0.0
        %2398 = vmatpush1.msra.mxu0 0.0
        %2399 = vmatprep.subr.mxu0 0.0
        %2400 = vmatpush1.msra.mxu0 0.0
        %2401 = vmatprep.subr.mxu0 0.0
        %2402 = vmatpush1.msra.mxu0 0.0
        %2403 = vmatprep.subr.mxu0 0.0
        %2404 = vmatpush1.msra.mxu0 0.0
        %2405 = vmatprep.subr.mxu0 0.0
        %2406 = vmatpush1.msra.mxu0 0.0
        %2407 = vmatprep.subr.mxu0 0.0
        %2408 = vmatpush1.msra.mxu0 0.0
        %2409 = vmatprep.subr.mxu0 0.0
        %2410 = vmatpush1.msra.mxu0 0.0
        %2411 = vmatprep.subr.mxu0 0.0
        %2412 = vmatpush1.msra.mxu0 0.0
        %2413 = vmatprep.subr.mxu0 0.0
        %2414 = vmatpush1.msra.mxu0 0.0
        %2415 = vmatprep.subr.mxu0 0.0
        %2416 = vmatpush1.msra.mxu0 0.0
        %2417 = vmatprep.subr.mxu0 0.0
        %2418 = vmatpush1.msra.mxu0 0.0
        %2419 = vmatprep.subr.mxu0 0.0
        %2420 = vmatpush1.msra.mxu0 0.0
        %2421 = vmatprep.subr.mxu0 0.0
        %2422 = vmatpush1.msra.mxu0 0.0
        %2423 = vmatprep.subr.mxu0 0.0
        %2424 = vmatpush1.msra.mxu0 0.0
        %2425 = vmatprep.subr.mxu0 0.0
        %2426 = vmatpush1.msra.mxu0 0.0
        %2427 = vmatprep.subr.mxu0 0.0
        %2428 = vmatpush1.msra.mxu0 0.0
        %2429 = vmatprep.subr.mxu0 0.0
        %2430 = vmatpush1.msra.mxu0 0.0
        %2431 = vmatprep.subr.mxu0 0.0
        %2432 = vmatpush1.msra.mxu0 0.0
        %2433 = vmatprep.subr.mxu0 0.0
        %2434 = vmatpush1.msra.mxu0 0.0
        %2435 = vmatprep.subr.mxu0 0.0
        %2436 = vmatpush1.msra.mxu0 0.0
        %2437 = vmatprep.subr.mxu0 0.0
        %2438 = vmatpush1.msra.mxu0 0.0
        %2439 = vmatprep.mubr.f32.mxu0 0.0
        %2440 = vmatmul.mubr.f32.gmra.mrb[0].mxu0 %v1902
        %v2441 = vpop.f32.mrb[0].mxu0
        %v2442 = vadd.f32 0.0, %v2441
        %v2443 = vpop.f32.mrb[0].mxu0
        %2444 = vdwg.mxu0
        %2445 = vmatprep.subr.mxu0 0.0
        %2446 = vmatpush1.msra.mxu0 %v2367
        %2447 = vmatprep.subr.mxu0 0.0
        %2448 = vmatpush1.msra.mxu0 %v2368
        %2449 = vmatprep.subr.mxu0 0.0
        %2450 = vmatpush1.msra.mxu0 %v2369
        %2451 = vmatprep.subr.mxu0 0.0
        %2452 = vmatpush1.msra.mxu0 %v2370
        %2453 = vmatprep.subr.mxu0 0.0
        %2454 = vmatpush1.msra.mxu0 0.0
        %2455 = vmatprep.subr.mxu0 0.0
        %2456 = vmatpush1.msra.mxu0 0.0
        %2457 = vmatprep.subr.mxu0 0.0
        %2458 = vmatpush1.msra.mxu0 0.0
        %2459 = vmatprep.subr.mxu0 0.0
        %2460 = vmatpush1.msra.mxu0 0.0
        %2461 = vmatprep.subr.mxu0 0.0
        %2462 = vmatpush1.msra.mxu0 0.0
        %2463 = vmatprep.subr.mxu0 0.0
        %2464 = vmatpush1.msra.mxu0 0.0
        %2465 = vmatprep.subr.mxu0 0.0
        %2466 = vmatpush1.msra.mxu0 0.0
        %2467 = vmatprep.subr.mxu0 0.0
        %2468 = vmatpush1.msra.mxu0 0.0
        %2469 = vmatprep.subr.mxu0 0.0
        %2470 = vmatpush1.msra.mxu0 0.0
        %2471 = vmatprep.subr.mxu0 0.0
        %2472 = vmatpush1.msra.mxu0 0.0
        %2473 = vmatprep.subr.mxu0 0.0
        %2474 = vmatpush1.msra.mxu0 0.0
        %2475 = vmatprep.subr.mxu0 0.0
        %2476 = vmatpush1.msra.mxu0 0.0
        %2477 = vmatprep.subr.mxu0 0.0
        %2478 = vmatpush1.msra.mxu0 0.0
        %2479 = vmatprep.subr.mxu0 0.0
        %2480 = vmatpush1.msra.mxu0 0.0
        %2481 = vmatprep.subr.mxu0 0.0
        %2482 = vmatpush1.msra.mxu0 0.0
        %2483 = vmatprep.subr.mxu0 0.0
        %2484 = vmatpush1.msra.mxu0 0.0
        %2485 = vmatprep.subr.mxu0 0.0
        %2486 = vmatpush1.msra.mxu0 0.0
        %2487 = vmatprep.subr.mxu0 0.0
        %2488 = vmatpush1.msra.mxu0 0.0
        %2489 = vmatprep.subr.mxu0 0.0
        %2490 = vmatpush1.msra.mxu0 0.0
        %2491 = vmatprep.subr.mxu0 0.0
        %2492 = vmatpush1.msra.mxu0 0.0
        %2493 = vmatprep.subr.mxu0 0.0
        %2494 = vmatpush1.msra.mxu0 0.0
        %2495 = vmatprep.subr.mxu0 0.0
        %2496 = vmatpush1.msra.mxu0 0.0
        %2497 = vmatprep.subr.mxu0 0.0
        %2498 = vmatpush1.msra.mxu0 0.0
        %2499 = vmatprep.subr.mxu0 0.0
        %2500 = vmatpush1.msra.mxu0 0.0
        %2501 = vmatprep.subr.mxu0 0.0
        %2502 = vmatpush1.msra.mxu0 0.0
        %2503 = vmatprep.subr.mxu0 0.0
        %2504 = vmatpush1.msra.mxu0 0.0
        %2505 = vmatprep.subr.mxu0 0.0
        %2506 = vmatpush1.msra.mxu0 0.0
        %2507 = vmatprep.subr.mxu0 0.0
        %2508 = vmatpush1.msra.mxu0 0.0
        %2509 = vmatprep.mubr.f32.mxu0 0.0
        %2510 = vmatmul.mubr.f32.gmra.mrb[0].mxu0 %v1975
        %v2511 = vpop.f32.mrb[0].mxu0
        %v2512 = vadd.f32 %v2442, %v2511
        %v2513 = vpop.f32.mrb[0].mxu0
        %2514 = vdwg.mxu0
        %v2515 = vld [vmem:[%s1854] sm:$0x1]
        %v2517 = vlaneseq
        %v2518 = vshrl.u32 %v2517, 7
        %v2519 = vsub.s32 0, %v2518
        %v2520 = vrot.slane %v2515, %v2519
        %v2522 = vadd.f32 %v2512, %v2520
        %v2523 = vxor.u32 %v2054, 2147483648
        %v2524 = vmul.f32 %v2523, 1.442695
        %v2525 = vpow.pop %v2524
        %v2526 = vadd.f32 %v2525, 1.0
        %v2527 = vrcp.pop %v2526
        %v2528 = vmul.f32 1.0, %v2527
        %v2529 = vxor.u32 %v2210, 2147483648
        %v2530 = vmul.f32 %v2529, 1.442695
        %v2531 = vpow.pop %v2530
        %v2532 = vadd.f32 %v2531, 1.0
        %v2533 = vrcp.pop %v2532
        %v2534 = vmul.f32 1.0, %v2533
        %v2535 = vtanh.pop %v2366
        %v2536 = vxor.u32 %v2522, 2147483648
        %v2537 = vmul.f32 %v2536, 1.442695
        %v2538 = vpow.pop %v2537
        %v2539 = vadd.f32 %v2538, 1.0
        %v2540 = vrcp.pop %v2539
        %v2541 = vmul.f32 1.0, %v2540
        %v2542 = vmul.f32 %v2534, %v1892
        %v2543 = vmul.f32 %v2528, %v2535
        %v2544 = vadd.f32 %v2542, %v2543
        %v2545 = vtanh.pop %v2544
        %v2546 = vmul.f32 %v2541, %v2545
        %2547 = vst.msk [vmem:[%s465] sm:$0x7] %vm1887, %v2546
        %2548 = vst.msk [vmem:[%s1891] sm:$0x7] %vm1887, %v2544
        %v2550 = vlaneseq
        %v2551 = vshrl.u32 %v2550, 7
        %v2552 = vsub.s32 0, %v2551
        %v2553 = vrot.slane %v457, %v2552
        %v2556 = vsel %vm494, %v2546, 0
        %2558 = vmatprep.subr.mxu0 0.0
        %2559 = vmatpush1.msra.mxu0 %v453
        %2560 = vmatprep.subr.mxu0 0.0
        %2561 = vmatpush1.msra.mxu0 %v454
        %2562 = vmatprep.subr.mxu0 0.0
        %2563 = vmatpush1.msra.mxu0 %v455
        %2564 = vmatprep.subr.mxu0 0.0
        %2565 = vmatpush1.msra.mxu0 %v456
        %2566 = vmatprep.subr.mxu0 0.0
        %2567 = vmatpush1.msra.mxu0 0.0
        %2568 = vmatprep.subr.mxu0 0.0
        %2569 = vmatpush1.msra.mxu0 0.0
        %2570 = vmatprep.subr.mxu0 0.0
        %2571 = vmatpush1.msra.mxu0 0.0
        %2572 = vmatprep.subr.mxu0 0.0
        %2573 = vmatpush1.msra.mxu0 0.0
        %2574 = vmatprep.subr.mxu0 0.0
        %2575 = vmatpush1.msra.mxu0 0.0
        %2576 = vmatprep.subr.mxu0 0.0
        %2577 = vmatpush1.msra.mxu0 0.0
        %2578 = vmatprep.subr.mxu0 0.0
        %2579 = vmatpush1.msra.mxu0 0.0
        %2580 = vmatprep.subr.mxu0 0.0
        %2581 = vmatpush1.msra.mxu0 0.0
        %2582 = vmatprep.subr.mxu0 0.0
        %2583 = vmatpush1.msra.mxu0 0.0
        %2584 = vmatprep.subr.mxu0 0.0
        %2585 = vmatpush1.msra.mxu0 0.0
        %2586 = vmatprep.subr.mxu0 0.0
        %2587 = vmatpush1.msra.mxu0 0.0
        %2588 = vmatprep.subr.mxu0 0.0
        %2589 = vmatpush1.msra.mxu0 0.0
        %2590 = vmatprep.subr.mxu0 0.0
        %2591 = vmatpush1.msra.mxu0 0.0
        %2592 = vmatprep.subr.mxu0 0.0
        %2593 = vmatpush1.msra.mxu0 0.0
        %2594 = vmatprep.subr.mxu0 0.0
        %2595 = vmatpush1.msra.mxu0 0.0
        %2596 = vmatprep.subr.mxu0 0.0
        %2597 = vmatpush1.msra.mxu0 0.0
        %2598 = vmatprep.subr.mxu0 0.0
        %2599 = vmatpush1.msra.mxu0 0.0
        %2600 = vmatprep.subr.mxu0 0.0
        %2601 = vmatpush1.msra.mxu0 0.0
        %2602 = vmatprep.subr.mxu0 0.0
        %2603 = vmatpush1.msra.mxu0 0.0
        %2604 = vmatprep.subr.mxu0 0.0
        %2605 = vmatpush1.msra.mxu0 0.0
        %2606 = vmatprep.subr.mxu0 0.0
        %2607 = vmatpush1.msra.mxu0 0.0
        %2608 = vmatprep.subr.mxu0 0.0
        %2609 = vmatpush1.msra.mxu0 0.0
        %2610 = vmatprep.subr.mxu0 0.0
        %2611 = vmatpush1.msra.mxu0 0.0
        %2612 = vmatprep.subr.mxu0 0.0
        %2613 = vmatpush1.msra.mxu0 0.0
        %2614 = vmatprep.subr.mxu0 0.0
        %2615 = vmatpush1.msra.mxu0 0.0
        %2616 = vmatprep.subr.mxu0 0.0
        %2617 = vmatpush1.msra.mxu0 0.0
        %2618 = vmatprep.subr.mxu0 0.0
        %2619 = vmatpush1.msra.mxu0 0.0
        %2620 = vmatprep.subr.mxu0 0.0
        %2621 = vmatpush1.msra.mxu0 0.0
        %2622 = vmatprep.mubr.f32.mxu0 0.0
        %2623 = vmatmul.mubr.f32.gmra.mrb[0].mxu0 %v2556
        %v2624 = vpop.f32.mrb[0].mxu0
        %v2625 = vadd.f32 %v2553, %v2624
        %v2626 = vpop.f32.mrb[0].mxu0
        %2627 = vdwg.mxu0
        %vm2628 = vcmask 59392
        %v2629 = vsel %vm2628, %v2625, -inf
        %2630 = vmax.xlane.f32.xlu0 %v2629
        %v2631 = vpop.xlane.xlu0 %2630
        %v2632 = vsub.f32 %v2625, %v2631
        %v2633 = vmul.f32 %v2632, 1.442695
        %v2634 = vpow.pop %v2633
        %v2635 = vsel %vm2628, %v2634, 0.0
        %2636 = vadd.xlane.f32.xlu0 %v2635
        %v2637 = vpop.xlane.xlu0 %2636
        %v2638 = vrcp.pop %v2637
        %v2639 = vmul.f32 %v2634, %v2638
        %2641 = vrot.lane.b32.xlu0 %v2639, 8
        %v2642 = vpop.permute.xlu0 %2641
        %v2644 = vadd.s32 %v722, 4294967280
        %v2645 = vlaneseq
        %v2646 = vshrl.u32 %v2645, 7
        %v2647 = vsub.s32 %v2644, %v2646
        %v2648 = vrot.slane %v931, %v2647
        %v2649 = vadd.s32 %v722, 4294967272
        %v2650 = vlaneseq
        %v2651 = vshrl.u32 %v2650, 7
        %v2652 = vsub.s32 %v2649, %v2651
        %v2653 = vrot.slane %v934, %v2652
        %vm2654 = vcmask 261312
        %v2655 = vsel %vm2654, %v2653, %v2648
        %v2656 = vlaneseq
        %v2657 = vshrl.u32 %v2656, 7
        %v2658 = vsub.s32 %v2644, %v2657
        %v2659 = vrot.slane %v937, %v2658
        %v2660 = vlaneseq
        %v2661 = vshrl.u32 %v2660, 7
        %v2662 = vsub.s32 %v2649, %v2661
        %v2663 = vrot.slane %v940, %v2662
        %v2664 = vsel %vm2654, %v2663, %v2659
        %v2665 = vlaneseq
        %v2666 = vshrl.u32 %v2665, 7
        %v2667 = vsub.s32 %v2644, %v2666
        %v2668 = vrot.slane %v943, %v2667
        %v2669 = vlaneseq
        %v2670 = vshrl.u32 %v2669, 7
        %v2671 = vsub.s32 %v2649, %v2670
        %v2672 = vrot.slane %v946, %v2671
        %v2673 = vsel %vm2654, %v2672, %v2668
        %v2674 = vsel %vm752, %v2664, %v2655
        %v2675 = vsel %vm754, %v2673, %v2674
        %vm2677 = vcmask 64512
        %v2678 = vsel %vm2677, %v2625, %v2642
        %v2679 = vsel %vm987, %v2678, %v2675
        %v2680 = vsel %vm494, %v2679, 0.0
        %2681 = vst [vmem:[%s432] sm:$0x7] %v2680
        %s2682 = scalar_lea.vmem %s371, 24 [#allocation4]
        %v2683 = vld [vmem:[%s2682] sm:$0xf]
        %v2684 = vld [vmem:[%s2682 + $0x4] sm:$0xf]
        %v2685 = vld [vmem:[%s2682 + $0x8] sm:$0xf]
        %v2686 = vld [vmem:[%s2682 + $0xc] sm:$0xf]
        %v2687 = vld [vmem:[%s2682 + $0x10] sm:$0xf]
        %v2688 = vld [vmem:[%s2682 + $0x14] sm:$0xf]
        %s2689 = scalar_lea.vmem %s426, 4
        %v2690 = vld [vmem:[%s2689] sm:$0x7]
        %v2691 = vld [vmem:[%s465] sm:$0x7]
        %v2698 = vunpack.c.l.b16 %v2683
        %v2699 = vunpack.c.l.b16 %v2684
        %v2700 = vunpack.c.l.b16 %v2685
        %v2701 = vunpack.c.l.b16 %v2686
        %v2702 = vunpack.c.l.b16 %v2687
        %v2703 = vunpack.c.l.b16 %v2688
        %v2704 = vpack.c.b16 %v2699, %v2698
        %v2705 = vpack.c.b16 %v2701, %v2700
        %v2706 = vpack.c.b16 %v2703, %v2702
        %v2708 = vsel %vm494, %v2704, 0
        %v2711 = vsel %vm494, %v2705, 0
        %v2714 = vsel %vm494, %v2706, 0
        %2716 = vmatprep.subr.bf16.mxu0 0
        %2717 = vmatpush1.bf16.msra.mxu0 %v490
        %2718 = vmatprep.subr.bf16.mxu0 0
        %2719 = vmatpush1.bf16.msra.mxu0 %v491
        %2720 = vmatprep.subr.bf16.mxu0 0
        %2721 = vmatpush1.bf16.msra.mxu0 0
        %2722 = vmatprep.subr.bf16.mxu0 0
        %2723 = vmatpush1.bf16.msra.mxu0 0
        %2724 = vmatprep.subr.bf16.mxu0 0
        %2725 = vmatpush1.bf16.msra.mxu0 0
        %2726 = vmatprep.subr.bf16.mxu0 0
        %2727 = vmatpush1.bf16.msra.mxu0 0
        %2728 = vmatprep.subr.bf16.mxu0 0
        %2729 = vmatpush1.bf16.msra.mxu0 0
        %2730 = vmatprep.subr.bf16.mxu0 0
        %2731 = vmatpush1.bf16.msra.mxu0 0
        %2732 = vmatprep.subr.bf16.mxu0 0
        %2733 = vmatpush1.bf16.msra.mxu0 0
        %2734 = vmatprep.subr.bf16.mxu0 0
        %2735 = vmatpush1.bf16.msra.mxu0 0
        %2736 = vmatprep.subr.bf16.mxu0 0
        %2737 = vmatpush1.bf16.msra.mxu0 0
        %2738 = vmatprep.subr.bf16.mxu0 0
        %2739 = vmatpush1.bf16.msra.mxu0 0
        %2740 = vmatprep.subr.bf16.mxu0 0
        %2741 = vmatpush1.bf16.msra.mxu0 0
        %2742 = vmatprep.subr.bf16.mxu0 0
        %2743 = vmatpush1.bf16.msra.mxu0 0
        %2744 = vmatprep.subr.bf16.mxu0 0
        %2745 = vmatpush1.bf16.msra.mxu0 0
        %2746 = vmatprep.subr.bf16.mxu0 0
        %2747 = vmatpush1.bf16.msra.mxu0 0
        %2748 = vmatprep.mubr.bf16.mxu0 0
        %2749 = vmatmul.mubr.bf16.gmra.mrb[0].mxu0 %v2708
        %v2750 = vpop.f32.mrb[0].mxu0
        %v2751 = vadd.f32 0.0, %v2750
        %v2752 = vpop.f32.mrb[0].mxu0
        %v2753 = vpop.f32.mrb[0].mxu0
        %v2754 = vadd.f32 0.0, %v2753
        %v2755 = vpop.f32.mrb[0].mxu0
        %2756 = vmatprep.mubr.bf16.mxu0 0
        %2757 = vmatmul.mubr.bf16.gmra.mrb[0].mxu0 %v2711
        %v2758 = vpop.f32.mrb[0].mxu0
        %v2759 = vadd.f32 0.0, %v2758
        %v2760 = vpop.f32.mrb[0].mxu0
        %v2761 = vpop.f32.mrb[0].mxu0
        %v2762 = vadd.f32 0.0, %v2761
        %v2763 = vpop.f32.mrb[0].mxu0
        %2764 = vmatprep.mubr.bf16.mxu0 0
        %2765 = vmatmul.mubr.bf16.gmra.mrb[0].mxu0 %v2714
        %v2766 = vpop.f32.mrb[0].mxu0
        %v2767 = vadd.f32 0.0, %v2766
        %v2768 = vpop.f32.mrb[0].mxu0
        %v2769 = vpop.f32.mrb[0].mxu0
        %v2770 = vadd.f32 0.0, %v2769
        %v2771 = vpop.f32.mrb[0].mxu0
        %2772 = vdwg.mxu0
        %v2774 = vsel %vm494, %v2691, 0
        %2776 = vmatprep.subr.mxu0 0.0
        %2777 = vmatpush1.msra.mxu0 %v448
        %2778 = vmatprep.subr.mxu0 0.0
        %2779 = vmatpush1.msra.mxu0 %v449
        %2780 = vmatprep.subr.mxu0 0.0
        %2781 = vmatpush1.msra.mxu0 %v450
        %2782 = vmatprep.subr.mxu0 0.0
        %2783 = vmatpush1.msra.mxu0 %v451
        %2784 = vmatprep.subr.mxu0 0.0
        %2785 = vmatpush1.msra.mxu0 0.0
        %2786 = vmatprep.subr.mxu0 0.0
        %2787 = vmatpush1.msra.mxu0 0.0
        %2788 = vmatprep.subr.mxu0 0.0
        %2789 = vmatpush1.msra.mxu0 0.0
        %2790 = vmatprep.subr.mxu0 0.0
        %2791 = vmatpush1.msra.mxu0 0.0
        %2792 = vmatprep.subr.mxu0 0.0
        %2793 = vmatpush1.msra.mxu0 0.0
        %2794 = vmatprep.subr.mxu0 0.0
        %2795 = vmatpush1.msra.mxu0 0.0
        %2796 = vmatprep.subr.mxu0 0.0
        %2797 = vmatpush1.msra.mxu0 0.0
        %2798 = vmatprep.subr.mxu0 0.0
        %2799 = vmatpush1.msra.mxu0 0.0
        %2800 = vmatprep.subr.mxu0 0.0
        %2801 = vmatpush1.msra.mxu0 0.0
        %2802 = vmatprep.subr.mxu0 0.0
        %2803 = vmatpush1.msra.mxu0 0.0
        %2804 = vmatprep.subr.mxu0 0.0
        %2805 = vmatpush1.msra.mxu0 0.0
        %2806 = vmatprep.subr.mxu0 0.0
        %2807 = vmatpush1.msra.mxu0 0.0
        %2808 = vmatprep.subr.mxu0 0.0
        %2809 = vmatpush1.msra.mxu0 0.0
        %2810 = vmatprep.subr.mxu0 0.0
        %2811 = vmatpush1.msra.mxu0 0.0
        %2812 = vmatprep.subr.mxu0 0.0
        %2813 = vmatpush1.msra.mxu0 0.0
        %2814 = vmatprep.subr.mxu0 0.0
        %2815 = vmatpush1.msra.mxu0 0.0
        %2816 = vmatprep.subr.mxu0 0.0
        %2817 = vmatpush1.msra.mxu0 0.0
        %2818 = vmatprep.subr.mxu0 0.0
        %2819 = vmatpush1.msra.mxu0 0.0
        %2820 = vmatprep.subr.mxu0 0.0
        %2821 = vmatpush1.msra.mxu0 0.0
        %2822 = vmatprep.subr.mxu0 0.0
        %2823 = vmatpush1.msra.mxu0 0.0
        %2824 = vmatprep.subr.mxu0 0.0
        %2825 = vmatpush1.msra.mxu0 0.0
        %2826 = vmatprep.subr.mxu0 0.0
        %2827 = vmatpush1.msra.mxu0 0.0
        %2828 = vmatprep.subr.mxu0 0.0
        %2829 = vmatpush1.msra.mxu0 0.0
        %2830 = vmatprep.subr.mxu0 0.0
        %2831 = vmatpush1.msra.mxu0 0.0
        %2832 = vmatprep.subr.mxu0 0.0
        %2833 = vmatpush1.msra.mxu0 0.0
        %2834 = vmatprep.subr.mxu0 0.0
        %2835 = vmatpush1.msra.mxu0 0.0
        %2836 = vmatprep.subr.mxu0 0.0
        %2837 = vmatpush1.msra.mxu0 0.0
        %2838 = vmatprep.subr.mxu0 0.0
        %2839 = vmatpush1.msra.mxu0 0.0
        %2840 = vmatprep.mubr.f32.mxu0 0.0
        %2841 = vmatmul.mubr.f32.gmra.mrb[0].mxu0 %v2774
        %v2842 = vpop.f32.mrb[0].mxu0
        %v2843 = vadd.f32 0.0, %v2842
        %v2844 = vpop.f32.mrb[0].mxu0
        %2845 = vdwg.mxu0
        %v2848 = vunpack.c.l.s4 1966171168
        %v2849 = vunpack.c.0.s8 %v2848
        %v2850 = vlaneseq
        %v2851 = vshrl.u32 %v2850, 7
        %v2852 = vsub.s32 %v2849, %v2851
        %v2853 = vrot.slane %v2843, %v2852
        %v2854 = vcombine.high %v2853, %v2853
        %v2856 = vunpack.c.l.s4 1966171168
        %v2857 = vunpack.c.0.s8 %v2856
        %v2858 = vlaneseq
        %v2859 = vshrl.u32 %v2858, 7
        %v2860 = vsub.s32 %v2857, %v2859
        %v2861 = vrot.slane %v2853, %v2860
        %v2863 = vunpack.c.l.s4 1966171168
        %v2864 = vunpack.c.0.s8 %v2863
        %v2865 = vlaneseq
        %v2866 = vshrl.u32 %v2865, 7
        %v2867 = vsub.s32 %v2864, %v2866
        %v2868 = vrot.slane %v2854, %v2867
        %v2869 = vcombine.high %v2861, %v2861
        %v2870 = vlaneseq
        %v2871 = vshrl.u32 %v2870, 7
        %v2872 = vsub.s32 0, %v2871
        %v2873 = vrot.slane %v2861, %v2872
        %v2874 = vlaneseq
        %v2875 = vshrl.u32 %v2874, 7
        %v2876 = vsub.s32 0, %v2875
        %v2877 = vrot.slane %v2868, %v2876
        %v2878 = vlaneseq
        %v2879 = vshrl.u32 %v2878, 7
        %v2880 = vsub.s32 0, %v2879
        %v2881 = vrot.slane %v2869, %v2880
        %v2885 = vadd.f32 %v2751, %v2873
        %v2886 = vadd.f32 %v2754, %v2873
        %v2887 = vadd.f32 %v2759, %v2877
        %v2888 = vadd.f32 %v2762, %v2877
        %v2889 = vadd.f32 %v2767, %v2881
        %v2890 = vadd.f32 %v2770, %v2881
        %v2891 = vtanh.pop %v2885
        %v2892 = vtanh.pop %v2886
        %v2893 = vtanh.pop %v2887
        %v2894 = vtanh.pop %v2888
        %v2895 = vtanh.pop %v2889
        %v2896 = vtanh.pop %v2890
        %v2897 = vmul.f32 %v2891, %v689
        %v2898 = vmul.f32 %v2892, %v689
        %v2899 = vmul.f32 %v2893, %v689
        %v2900 = vmul.f32 %v2894, %v689
        %v2901 = vmul.f32 %v2895, %v689
        %v2902 = vmul.f32 %v2896, %v689
        %v2903 = vsel %vm494, %v2897, 0.0
        %2904 = vadd.xlane.f32.xlu0 %v2903
        %v2905 = vpop.xlane.xlu0 %2904
        %v2906 = vsel %vm494, %v2898, 0.0
        %2907 = vadd.xlane.f32.xlu0 %v2906
        %v2908 = vpop.xlane.xlu0 %2907
        %v2909 = vsel %vm494, %v2899, 0.0
        %2910 = vadd.xlane.f32.xlu0 %v2909
        %v2911 = vpop.xlane.xlu0 %2910
        %v2912 = vsel %vm494, %v2900, 0.0
        %2913 = vadd.xlane.f32.xlu0 %v2912
        %v2914 = vpop.xlane.xlu0 %2913
        %v2915 = vsel %vm494, %v2901, 0.0
        %2916 = vadd.xlane.f32.xlu0 %v2915
        %v2917 = vpop.xlane.xlu0 %2916
        %v2918 = vsel %vm494, %v2902, 0.0
        %2919 = vadd.xlane.f32.xlu0 %v2918
        %v2920 = vpop.xlane.xlu0 %2919
        %v2927 = vlaneseq
        %v2928 = vshrl.u32 %v2927, 7
        %v2929 = vsub.s32 %v722, %v2928
        %v2930 = vrot.slane %v2905, %v2929
        %v2931 = vlaneseq
        %v2932 = vshrl.u32 %v2931, 7
        %v2933 = vsub.s32 %v727, %v2932
        %v2934 = vrot.slane %v2908, %v2933
        %v2935 = vsel %vm732, %v2934, %v2930
        %v2936 = vlaneseq
        %v2937 = vshrl.u32 %v2936, 7
        %v2938 = vsub.s32 %v722, %v2937
        %v2939 = vrot.slane %v2911, %v2938
        %v2940 = vlaneseq
        %v2941 = vshrl.u32 %v2940, 7
        %v2942 = vsub.s32 %v727, %v2941
        %v2943 = vrot.slane %v2914, %v2942
        %v2944 = vsel %vm732, %v2943, %v2939
        %v2945 = vlaneseq
        %v2946 = vshrl.u32 %v2945, 7
        %v2947 = vsub.s32 %v722, %v2946
        %v2948 = vrot.slane %v2917, %v2947
        %v2949 = vlaneseq
        %v2950 = vshrl.u32 %v2949, 7
        %v2951 = vsub.s32 %v727, %v2950
        %v2952 = vrot.slane %v2920, %v2951
        %v2953 = vsel %vm732, %v2952, %v2948
        %v2954 = vsel %vm752, %v2944, %v2935
        %v2955 = vsel %vm754, %v2953, %v2954
        %v2957 = vsel %vm757, %v2955, -inf
        %2958 = vmax.xlane.f32.xlu0 %v2957
        %v2959 = vpop.xlane.xlu0 %2958
        %v2961 = vlaneseq
        %v2962 = vshrl.u32 %v2961, 7
        %v2963 = vsub.s32 0, %v2962
        %v2964 = vrot.slane %v2959, %v2963
        %v2965 = vlaneseq
        %v2966 = vshrl.u32 %v2965, 7
        %v2967 = vsub.s32 1, %v2966
        %v2968 = vrot.slane %v2959, %v2967
        %v2969 = vlaneseq
        %v2970 = vshrl.u32 %v2969, 7
        %v2971 = vsub.s32 2, %v2970
        %v2972 = vrot.slane %v2959, %v2971
        %v2976 = vsub.f32 %v2905, %v2964
        %v2977 = vsub.f32 %v2908, %v2964
        %v2978 = vsub.f32 %v2911, %v2968
        %v2979 = vsub.f32 %v2914, %v2968
        %v2980 = vsub.f32 %v2917, %v2972
        %v2981 = vsub.f32 %v2920, %v2972
        %v2982 = vmul.f32 %v2976, 1.442695
        %v2983 = vpow.pop %v2982
        %v2984 = vmul.f32 %v2977, 1.442695
        %v2985 = vpow.pop %v2984
        %v2986 = vmul.f32 %v2978, 1.442695
        %v2987 = vpow.pop %v2986
        %v2988 = vmul.f32 %v2979, 1.442695
        %v2989 = vpow.pop %v2988
        %v2990 = vmul.f32 %v2980, 1.442695
        %v2991 = vpow.pop %v2990
        %v2992 = vmul.f32 %v2981, 1.442695
        %v2993 = vpow.pop %v2992
        %3000 = vset.pattern.permute.xlu0 0
        %3001 = vperm.xlu0 %3000, %v2983
        %v3002 = vpop.permute.xlu0 %3001
        %3003 = vset.pattern.permute.xlu0 0
        %3004 = vperm.xlu0 %3003, %v2985
        %v3005 = vpop.permute.xlu0 %3004
        %3006 = vset.pattern.permute.xlu0 0
        %3007 = vperm.xlu0 %3006, %v2987
        %v3008 = vpop.permute.xlu0 %3007
        %3009 = vset.pattern.permute.xlu0 0
        %3010 = vperm.xlu0 %3009, %v2989
        %v3011 = vpop.permute.xlu0 %3010
        %3012 = vset.pattern.permute.xlu0 0
        %3013 = vperm.xlu0 %3012, %v2991
        %v3014 = vpop.permute.xlu0 %3013
        %3015 = vset.pattern.permute.xlu0 0
        %3016 = vperm.xlu0 %3015, %v2993
        %v3017 = vpop.permute.xlu0 %3016
        %v3018 = vlaneseq
        %v3019 = vshrl.u32 %v3018, 7
        %v3020 = vsub.s32 %v722, %v3019
        %v3021 = vrot.slane %v3002, %v3020
        %v3022 = vlaneseq
        %v3023 = vshrl.u32 %v3022, 7
        %v3024 = vsub.s32 %v727, %v3023
        %v3025 = vrot.slane %v3005, %v3024
        %v3026 = vsel %vm732, %v3025, %v3021
        %v3027 = vlaneseq
        %v3028 = vshrl.u32 %v3027, 7
        %v3029 = vsub.s32 %v722, %v3028
        %v3030 = vrot.slane %v3008, %v3029
        %v3031 = vlaneseq
        %v3032 = vshrl.u32 %v3031, 7
        %v3033 = vsub.s32 %v727, %v3032
        %v3034 = vrot.slane %v3011, %v3033
        %v3035 = vsel %vm732, %v3034, %v3030
        %v3036 = vlaneseq
        %v3037 = vshrl.u32 %v3036, 7
        %v3038 = vsub.s32 %v722, %v3037
        %v3039 = vrot.slane %v3014, %v3038
        %v3040 = vlaneseq
        %v3041 = vshrl.u32 %v3040, 7
        %v3042 = vsub.s32 %v727, %v3041
        %v3043 = vrot.slane %v3017, %v3042
        %v3044 = vsel %vm732, %v3043, %v3039
        %v3045 = vsel %vm752, %v3035, %v3026
        %v3046 = vsel %vm754, %v3044, %v3045
        %v3048 = vsel %vm757, %v3046, 0.0
        %3049 = vadd.xlane.f32.xlu0 %v3048
        %v3050 = vpop.xlane.xlu0 %3049
        %v3052 = vlaneseq
        %v3053 = vshrl.u32 %v3052, 7
        %v3054 = vsub.s32 0, %v3053
        %v3055 = vrot.slane %v3050, %v3054
        %v3056 = vlaneseq
        %v3057 = vshrl.u32 %v3056, 7
        %v3058 = vsub.s32 1, %v3057
        %v3059 = vrot.slane %v3050, %v3058
        %v3060 = vlaneseq
        %v3061 = vshrl.u32 %v3060, 7
        %v3062 = vsub.s32 2, %v3061
        %v3063 = vrot.slane %v3050, %v3062
        %v3067 = vrcp.pop %v3055
        %v3068 = vmul.f32 %v2983, %v3067
        %v3069 = vmul.f32 %v2985, %v3067
        %v3070 = vrcp.pop %v3059
        %v3071 = vmul.f32 %v2987, %v3070
        %v3072 = vmul.f32 %v2989, %v3070
        %v3073 = vrcp.pop %v3063
        %v3074 = vmul.f32 %v2991, %v3073
        %v3075 = vmul.f32 %v2993, %v3073
        %v3077 = vlaneseq
        %v3078 = vshrl.u32 %v3077, 7
        %v3079 = vsub.s32 0, %v3078
        %v3080 = vrot.slane %v2690, %v3079
        %3082 = vbcast.lane.b32.xlu0 %v3080, 256
        %v3083 = vpop.permute.xlu0 %3082
        %s3085 = sor.u32 256, 8
        %3086 = vbcast.lane.b32.xlu0 %v3080, %s3085
        %v3087 = vpop.permute.xlu0 %3086
        %v3088 = vlaneseq
        %v3089 = vshrl.u32 %v3088, 7
        %v3090 = vsub.s32 1, %v3089
        %v3091 = vrot.slane %v2690, %v3090
        %3093 = vbcast.lane.b32.xlu0 %v3091, 256
        %v3094 = vpop.permute.xlu0 %3093
        %s3096 = sor.u32 256, 8
        %3097 = vbcast.lane.b32.xlu0 %v3091, %s3096
        %v3098 = vpop.permute.xlu0 %3097
        %v3099 = vlaneseq
        %v3100 = vshrl.u32 %v3099, 7
        %v3101 = vsub.s32 2, %v3100
        %v3102 = vrot.slane %v2690, %v3101
        %3104 = vbcast.lane.b32.xlu0 %v3102, 256
        %v3105 = vpop.permute.xlu0 %3104
        %s3107 = sor.u32 256, 8
        %3108 = vbcast.lane.b32.xlu0 %v3102, %s3107
        %v3109 = vpop.permute.xlu0 %3108
        %v3116 = vmul.f32 %v3068, %v3083
        %v3117 = vmul.f32 %v3069, %v3087
        %v3118 = vmul.f32 %v3071, %v3094
        %v3119 = vmul.f32 %v3072, %v3098
        %v3120 = vmul.f32 %v3074, %v3105
        %v3121 = vmul.f32 %v3075, %v3109
        %3128 = vset.pattern.permute.xlu0 0
        %3129 = vperm.xlu0 %3128, %v3116
        %v3130 = vpop.permute.xlu0 %3129
        %3131 = vset.pattern.permute.xlu0 0
        %3132 = vperm.xlu0 %3131, %v3117
        %v3133 = vpop.permute.xlu0 %3132
        %3134 = vset.pattern.permute.xlu0 0
        %3135 = vperm.xlu0 %3134, %v3118
        %v3136 = vpop.permute.xlu0 %3135
        %3137 = vset.pattern.permute.xlu0 0
        %3138 = vperm.xlu0 %3137, %v3119
        %v3139 = vpop.permute.xlu0 %3138
        %3140 = vset.pattern.permute.xlu0 0
        %3141 = vperm.xlu0 %3140, %v3120
        %v3142 = vpop.permute.xlu0 %3141
        %3143 = vset.pattern.permute.xlu0 0
        %3144 = vperm.xlu0 %3143, %v3121
        %v3145 = vpop.permute.xlu0 %3144
        %v3146 = vlaneseq
        %v3147 = vshrl.u32 %v3146, 7
        %v3148 = vsub.s32 %v722, %v3147
        %v3149 = vrot.slane %v3130, %v3148
        %v3150 = vlaneseq
        %v3151 = vshrl.u32 %v3150, 7
        %v3152 = vsub.s32 %v727, %v3151
        %v3153 = vrot.slane %v3133, %v3152
        %v3154 = vsel %vm732, %v3153, %v3149
        %v3155 = vlaneseq
        %v3156 = vshrl.u32 %v3155, 7
        %v3157 = vsub.s32 %v722, %v3156
        %v3158 = vrot.slane %v3136, %v3157
        %v3159 = vlaneseq
        %v3160 = vshrl.u32 %v3159, 7
        %v3161 = vsub.s32 %v727, %v3160
        %v3162 = vrot.slane %v3139, %v3161
        %v3163 = vsel %vm732, %v3162, %v3158
        %v3164 = vlaneseq
        %v3165 = vshrl.u32 %v3164, 7
        %v3166 = vsub.s32 %v722, %v3165
        %v3167 = vrot.slane %v3142, %v3166
        %v3168 = vlaneseq
        %v3169 = vshrl.u32 %v3168, 7
        %v3170 = vsub.s32 %v727, %v3169
        %v3171 = vrot.slane %v3145, %v3170
        %v3172 = vsel %vm732, %v3171, %v3167
        %v3173 = vsel %vm752, %v3163, %v3154
        %v3174 = vsel %vm754, %v3172, %v3173
        %v3176 = vsel %vm757, %v3174, 0.0
        %3177 = vadd.xlane.f32.xlu0 %v3176
        %v3178 = vpop.xlane.xlu0 %3177
        %v3179 = vmax.f32 %v3178, 1e-05
        %v3180 = vunpack.c.l.bf16 %v2683
        %v3181 = vunpack.c.l.bf16 %v2684
        %v3182 = vunpack.c.l.bf16 %v2685
        %v3183 = vunpack.c.l.bf16 %v2686
        %v3184 = vunpack.c.l.bf16 %v2687
        %v3185 = vunpack.c.l.bf16 %v2688
        %v3186 = vsel %vm987, %v3154, 0
        %3188 = vmatprep.subr.mxu0 0.0
        %3189 = vmatpush1.msra.mxu0 %v3180
        %3190 = vmatprep.subr.mxu0 0.0
        %3191 = vmatpush1.msra.mxu0 %v3181
        %3192 = vmatprep.subr.mxu0 0.0
        %3193 = vmatpush1.msra.mxu0 0.0
        %3194 = vmatprep.subr.mxu0 0.0
        %3195 = vmatpush1.msra.mxu0 0.0
        %3196 = vmatprep.subr.mxu0 0.0
        %3197 = vmatpush1.msra.mxu0 0.0
        %3198 = vmatprep.subr.mxu0 0.0
        %3199 = vmatpush1.msra.mxu0 0.0
        %3200 = vmatprep.subr.mxu0 0.0
        %3201 = vmatpush1.msra.mxu0 0.0
        %3202 = vmatprep.subr.mxu0 0.0
        %3203 = vmatpush1.msra.mxu0 0.0
        %3204 = vmatprep.subr.mxu0 0.0
        %3205 = vmatpush1.msra.mxu0 0.0
        %3206 = vmatprep.subr.mxu0 0.0
        %3207 = vmatpush1.msra.mxu0 0.0
        %3208 = vmatprep.subr.mxu0 0.0
        %3209 = vmatpush1.msra.mxu0 0.0
        %3210 = vmatprep.subr.mxu0 0.0
        %3211 = vmatpush1.msra.mxu0 0.0
        %3212 = vmatprep.subr.mxu0 0.0
        %3213 = vmatpush1.msra.mxu0 0.0
        %3214 = vmatprep.subr.mxu0 0.0
        %3215 = vmatpush1.msra.mxu0 0.0
        %3216 = vmatprep.subr.mxu0 0.0
        %3217 = vmatpush1.msra.mxu0 0.0
        %3218 = vmatprep.subr.mxu0 0.0
        %3219 = vmatpush1.msra.mxu0 0.0
        %3220 = vmatprep.subr.mxu0 0.0
        %3221 = vmatpush1.msra.mxu0 0.0
        %3222 = vmatprep.subr.mxu0 0.0
        %3223 = vmatpush1.msra.mxu0 0.0
        %3224 = vmatprep.subr.mxu0 0.0
        %3225 = vmatpush1.msra.mxu0 0.0
        %3226 = vmatprep.subr.mxu0 0.0
        %3227 = vmatpush1.msra.mxu0 0.0
        %3228 = vmatprep.subr.mxu0 0.0
        %3229 = vmatpush1.msra.mxu0 0.0
        %3230 = vmatprep.subr.mxu0 0.0
        %3231 = vmatpush1.msra.mxu0 0.0
        %3232 = vmatprep.subr.mxu0 0.0
        %3233 = vmatpush1.msra.mxu0 0.0
        %3234 = vmatprep.subr.mxu0 0.0
        %3235 = vmatpush1.msra.mxu0 0.0
        %3236 = vmatprep.subr.mxu0 0.0
        %3237 = vmatpush1.msra.mxu0 0.0
        %3238 = vmatprep.subr.mxu0 0.0
        %3239 = vmatpush1.msra.mxu0 0.0
        %3240 = vmatprep.subr.mxu0 0.0
        %3241 = vmatpush1.msra.mxu0 0.0
        %3242 = vmatprep.subr.mxu0 0.0
        %3243 = vmatpush1.msra.mxu0 0.0
        %3244 = vmatprep.subr.mxu0 0.0
        %3245 = vmatpush1.msra.mxu0 0.0
        %3246 = vmatprep.subr.mxu0 0.0
        %3247 = vmatpush1.msra.mxu0 0.0
        %3248 = vmatprep.subr.mxu0 0.0
        %3249 = vmatpush1.msra.mxu0 0.0
        %3250 = vmatprep.subr.mxu0 0.0
        %3251 = vmatpush1.msra.mxu0 0.0
        %3252 = vmatprep.mubr.f32.mxu0 0.0
        %3253 = vmatmul.mubr.f32.gmra.mrb[0].mxu0 %v3186
        %v3254 = vpop.f32.mrb[0].mxu0
        %v3255 = vadd.f32 0.0, %v3254
        %v3256 = vpop.f32.mrb[0].mxu0
        %3257 = vdwg.mxu0
        %v3258 = vsel %vm987, %v3163, 0
        %3260 = vmatprep.subr.mxu0 0.0
        %3261 = vmatpush1.msra.mxu0 %v3182
        %3262 = vmatprep.subr.mxu0 0.0
        %3263 = vmatpush1.msra.mxu0 %v3183
        %3264 = vmatprep.subr.mxu0 0.0
        %3265 = vmatpush1.msra.mxu0 0.0
        %3266 = vmatprep.subr.mxu0 0.0
        %3267 = vmatpush1.msra.mxu0 0.0
        %3268 = vmatprep.subr.mxu0 0.0
        %3269 = vmatpush1.msra.mxu0 0.0
        %3270 = vmatprep.subr.mxu0 0.0
        %3271 = vmatpush1.msra.mxu0 0.0
        %3272 = vmatprep.subr.mxu0 0.0
        %3273 = vmatpush1.msra.mxu0 0.0
        %3274 = vmatprep.subr.mxu0 0.0
        %3275 = vmatpush1.msra.mxu0 0.0
        %3276 = vmatprep.subr.mxu0 0.0
        %3277 = vmatpush1.msra.mxu0 0.0
        %3278 = vmatprep.subr.mxu0 0.0
        %3279 = vmatpush1.msra.mxu0 0.0
        %3280 = vmatprep.subr.mxu0 0.0
        %3281 = vmatpush1.msra.mxu0 0.0
        %3282 = vmatprep.subr.mxu0 0.0
        %3283 = vmatpush1.msra.mxu0 0.0
        %3284 = vmatprep.subr.mxu0 0.0
        %3285 = vmatpush1.msra.mxu0 0.0
        %3286 = vmatprep.subr.mxu0 0.0
        %3287 = vmatpush1.msra.mxu0 0.0
        %3288 = vmatprep.subr.mxu0 0.0
        %3289 = vmatpush1.msra.mxu0 0.0
        %3290 = vmatprep.subr.mxu0 0.0
        %3291 = vmatpush1.msra.mxu0 0.0
        %3292 = vmatprep.subr.mxu0 0.0
        %3293 = vmatpush1.msra.mxu0 0.0
        %3294 = vmatprep.subr.mxu0 0.0
        %3295 = vmatpush1.msra.mxu0 0.0
        %3296 = vmatprep.subr.mxu0 0.0
        %3297 = vmatpush1.msra.mxu0 0.0
        %3298 = vmatprep.subr.mxu0 0.0
        %3299 = vmatpush1.msra.mxu0 0.0
        %3300 = vmatprep.subr.mxu0 0.0
        %3301 = vmatpush1.msra.mxu0 0.0
        %3302 = vmatprep.subr.mxu0 0.0
        %3303 = vmatpush1.msra.mxu0 0.0
        %3304 = vmatprep.subr.mxu0 0.0
        %3305 = vmatpush1.msra.mxu0 0.0
        %3306 = vmatprep.subr.mxu0 0.0
        %3307 = vmatpush1.msra.mxu0 0.0
        %3308 = vmatprep.subr.mxu0 0.0
        %3309 = vmatpush1.msra.mxu0 0.0
        %3310 = vmatprep.subr.mxu0 0.0
        %3311 = vmatpush1.msra.mxu0 0.0
        %3312 = vmatprep.subr.mxu0 0.0
        %3313 = vmatpush1.msra.mxu0 0.0
        %3314 = vmatprep.subr.mxu0 0.0
        %3315 = vmatpush1.msra.mxu0 0.0
        %3316 = vmatprep.subr.mxu0 0.0
        %3317 = vmatpush1.msra.mxu0 0.0
        %3318 = vmatprep.subr.mxu0 0.0
        %3319 = vmatpush1.msra.mxu0 0.0
        %3320 = vmatprep.subr.mxu0 0.0
        %3321 = vmatpush1.msra.mxu0 0.0
        %3322 = vmatprep.subr.mxu0 0.0
        %3323 = vmatpush1.msra.mxu0 0.0
        %3324 = vmatprep.mubr.f32.mxu0 0.0
        %3325 = vmatmul.mubr.f32.gmra.mrb[0].mxu0 %v3258
        %v3326 = vpop.f32.mrb[0].mxu0
        %v3327 = vadd.f32 0.0, %v3326
        %v3328 = vpop.f32.mrb[0].mxu0
        %3329 = vdwg.mxu0
        %v3330 = vsel %vm987, %v3172, 0
        %3332 = vmatprep.subr.mxu0 0.0
        %3333 = vmatpush1.msra.mxu0 %v3184
        %3334 = vmatprep.subr.mxu0 0.0
        %3335 = vmatpush1.msra.mxu0 %v3185
        %3336 = vmatprep.subr.mxu0 0.0
        %3337 = vmatpush1.msra.mxu0 0.0
        %3338 = vmatprep.subr.mxu0 0.0
        %3339 = vmatpush1.msra.mxu0 0.0
        %3340 = vmatprep.subr.mxu0 0.0
        %3341 = vmatpush1.msra.mxu0 0.0
        %3342 = vmatprep.subr.mxu0 0.0
        %3343 = vmatpush1.msra.mxu0 0.0
        %3344 = vmatprep.subr.mxu0 0.0
        %3345 = vmatpush1.msra.mxu0 0.0
        %3346 = vmatprep.subr.mxu0 0.0
        %3347 = vmatpush1.msra.mxu0 0.0
        %3348 = vmatprep.subr.mxu0 0.0
        %3349 = vmatpush1.msra.mxu0 0.0
        %3350 = vmatprep.subr.mxu0 0.0
        %3351 = vmatpush1.msra.mxu0 0.0
        %3352 = vmatprep.subr.mxu0 0.0
        %3353 = vmatpush1.msra.mxu0 0.0
        %3354 = vmatprep.subr.mxu0 0.0
        %3355 = vmatpush1.msra.mxu0 0.0
        %3356 = vmatprep.subr.mxu0 0.0
        %3357 = vmatpush1.msra.mxu0 0.0
        %3358 = vmatprep.subr.mxu0 0.0
        %3359 = vmatpush1.msra.mxu0 0.0
        %3360 = vmatprep.subr.mxu0 0.0
        %3361 = vmatpush1.msra.mxu0 0.0
        %3362 = vmatprep.subr.mxu0 0.0
        %3363 = vmatpush1.msra.mxu0 0.0
        %3364 = vmatprep.subr.mxu0 0.0
        %3365 = vmatpush1.msra.mxu0 0.0
        %3366 = vmatprep.subr.mxu0 0.0
        %3367 = vmatpush1.msra.mxu0 0.0
        %3368 = vmatprep.subr.mxu0 0.0
        %3369 = vmatpush1.msra.mxu0 0.0
        %3370 = vmatprep.subr.mxu0 0.0
        %3371 = vmatpush1.msra.mxu0 0.0
        %3372 = vmatprep.subr.mxu0 0.0
        %3373 = vmatpush1.msra.mxu0 0.0
        %3374 = vmatprep.subr.mxu0 0.0
        %3375 = vmatpush1.msra.mxu0 0.0
        %3376 = vmatprep.subr.mxu0 0.0
        %3377 = vmatpush1.msra.mxu0 0.0
        %3378 = vmatprep.subr.mxu0 0.0
        %3379 = vmatpush1.msra.mxu0 0.0
        %3380 = vmatprep.subr.mxu0 0.0
        %3381 = vmatpush1.msra.mxu0 0.0
        %3382 = vmatprep.subr.mxu0 0.0
        %3383 = vmatpush1.msra.mxu0 0.0
        %3384 = vmatprep.subr.mxu0 0.0
        %3385 = vmatpush1.msra.mxu0 0.0
        %3386 = vmatprep.subr.mxu0 0.0
        %3387 = vmatpush1.msra.mxu0 0.0
        %3388 = vmatprep.subr.mxu0 0.0
        %3389 = vmatpush1.msra.mxu0 0.0
        %3390 = vmatprep.subr.mxu0 0.0
        %3391 = vmatpush1.msra.mxu0 0.0
        %3392 = vmatprep.subr.mxu0 0.0
        %3393 = vmatpush1.msra.mxu0 0.0
        %3394 = vmatprep.subr.mxu0 0.0
        %3395 = vmatpush1.msra.mxu0 0.0
        %3396 = vmatprep.mubr.f32.mxu0 0.0
        %3397 = vmatmul.mubr.f32.gmra.mrb[0].mxu0 %v3330
        %v3398 = vpop.f32.mrb[0].mxu0
        %v3399 = vadd.f32 0.0, %v3398
        %v3400 = vpop.f32.mrb[0].mxu0
        %3401 = vdwg.mxu0
        %v3403 = vrot.slane %v3179, 1
        %v3404 = vrot.slane %v3179, 2
        %v3408 = vrcp.pop %v3179
        %v3409 = vmul.f32 %v3255, %v3408
        %v3410 = vrcp.pop %v3403
        %v3411 = vmul.f32 %v3327, %v3410
        %v3412 = vrcp.pop %v3404
        %v3413 = vmul.f32 %v3399, %v3412
        %v3414 = vld [vmem:[#allocation2] sm:$0x7]
        %v3415 = vld [vmem:[#allocation3] sm:$0x7]
        %v3416 = vld [vmem:[#allocation6] sm:$0xff]
        %v3417 = vld [vmem:[#allocation6 + $0x8] sm:$0xff]
        %v3418 = vld [vmem:[#allocation6 + $0x10] sm:$0xff]
        %v3419 = vld [vmem:[#allocation6 + $0x18] sm:$0xff]
        %v3420 = vld [vmem:[#allocation8] sm:$0xff]
        %v3421 = vld [vmem:[#allocation8 + $0x8] sm:$0xff]
        %v3422 = vld [vmem:[#allocation8 + $0x10] sm:$0xff]
        %v3423 = vld [vmem:[#allocation8 + $0x18] sm:$0xff]
        %v3425 = vsel %vm494, %v3414, 0
        %3427 = vmatprep.subr.mxu0 0.0
        %3428 = vmatpush1.msra.mxu0 %v3420
        %3429 = vmatprep.subr.mxu0 0.0
        %3430 = vmatpush1.msra.mxu0 %v3421
        %3431 = vmatprep.subr.mxu0 0.0
        %3432 = vmatpush1.msra.mxu0 %v3422
        %3433 = vmatprep.subr.mxu0 0.0
        %3434 = vmatpush1.msra.mxu0 %v3423
        %3435 = vmatprep.subr.mxu0 0.0
        %3436 = vmatpush1.msra.mxu0 0.0
        %3437 = vmatprep.subr.mxu0 0.0
        %3438 = vmatpush1.msra.mxu0 0.0
        %3439 = vmatprep.subr.mxu0 0.0
        %3440 = vmatpush1.msra.mxu0 0.0
        %3441 = vmatprep.subr.mxu0 0.0
        %3442 = vmatpush1.msra.mxu0 0.0
        %3443 = vmatprep.subr.mxu0 0.0
        %3444 = vmatpush1.msra.mxu0 0.0
        %3445 = vmatprep.subr.mxu0 0.0
        %3446 = vmatpush1.msra.mxu0 0.0
        %3447 = vmatprep.subr.mxu0 0.0
        %3448 = vmatpush1.msra.mxu0 0.0
        %3449 = vmatprep.subr.mxu0 0.0
        %3450 = vmatpush1.msra.mxu0 0.0
        %3451 = vmatprep.subr.mxu0 0.0
        %3452 = vmatpush1.msra.mxu0 0.0
        %3453 = vmatprep.subr.mxu0 0.0
        %3454 = vmatpush1.msra.mxu0 0.0
        %3455 = vmatprep.subr.mxu0 0.0
        %3456 = vmatpush1.msra.mxu0 0.0
        %3457 = vmatprep.subr.mxu0 0.0
        %3458 = vmatpush1.msra.mxu0 0.0
        %3459 = vmatprep.subr.mxu0 0.0
        %3460 = vmatpush1.msra.mxu0 0.0
        %3461 = vmatprep.subr.mxu0 0.0
        %3462 = vmatpush1.msra.mxu0 0.0
        %3463 = vmatprep.subr.mxu0 0.0
        %3464 = vmatpush1.msra.mxu0 0.0
        %3465 = vmatprep.subr.mxu0 0.0
        %3466 = vmatpush1.msra.mxu0 0.0
        %3467 = vmatprep.subr.mxu0 0.0
        %3468 = vmatpush1.msra.mxu0 0.0
        %3469 = vmatprep.subr.mxu0 0.0
        %3470 = vmatpush1.msra.mxu0 0.0
        %3471 = vmatprep.subr.mxu0 0.0
        %3472 = vmatpush1.msra.mxu0 0.0
        %3473 = vmatprep.subr.mxu0 0.0
        %3474 = vmatpush1.msra.mxu0 0.0
        %3475 = vmatprep.subr.mxu0 0.0
        %3476 = vmatpush1.msra.mxu0 0.0
        %3477 = vmatprep.subr.mxu0 0.0
        %3478 = vmatpush1.msra.mxu0 0.0
        %3479 = vmatprep.subr.mxu0 0.0
        %3480 = vmatpush1.msra.mxu0 0.0
        %3481 = vmatprep.subr.mxu0 0.0
        %3482 = vmatpush1.msra.mxu0 0.0
        %3483 = vmatprep.subr.mxu0 0.0
        %3484 = vmatpush1.msra.mxu0 0.0
        %3485 = vmatprep.subr.mxu0 0.0
        %3486 = vmatpush1.msra.mxu0 0.0
        %3487 = vmatprep.subr.mxu0 0.0
        %3488 = vmatpush1.msra.mxu0 0.0
        %3489 = vmatprep.subr.mxu0 0.0
        %3490 = vmatpush1.msra.mxu0 0.0
        %3491 = vmatprep.mubr.f32.mxu0 0.0
        %3492 = vmatmul.mubr.f32.gmra.mrb[0].mxu0 %v3425
        %v3493 = vpop.f32.mrb[0].mxu0
        %v3494 = vadd.f32 0.0, %v3493
        %v3495 = vpop.f32.mrb[0].mxu0
        %3496 = vdwg.mxu0
        %v3500 = vrot.slane %v3411, 7
        %v3501 = vsel %vm752, %v3500, %v3409
        %v3502 = vrot.slane %v3413, 6
        %v3503 = vsel %vm754, %v3502, %v3501
        %v3504 = vsel %vm494, %v3503, 0
        %3506 = vmatprep.subr.mxu0 0.0
        %3507 = vmatpush1.msra.mxu0 %v3416
        %3508 = vmatprep.subr.mxu0 0.0
        %3509 = vmatpush1.msra.mxu0 %v3417
        %3510 = vmatprep.subr.mxu0 0.0
        %3511 = vmatpush1.msra.mxu0 %v3418
        %3512 = vmatprep.subr.mxu0 0.0
        %3513 = vmatpush1.msra.mxu0 %v3419
        %3514 = vmatprep.subr.mxu0 0.0
        %3515 = vmatpush1.msra.mxu0 0.0
        %3516 = vmatprep.subr.mxu0 0.0
        %3517 = vmatpush1.msra.mxu0 0.0
        %3518 = vmatprep.subr.mxu0 0.0
        %3519 = vmatpush1.msra.mxu0 0.0
        %3520 = vmatprep.subr.mxu0 0.0
        %3521 = vmatpush1.msra.mxu0 0.0
        %3522 = vmatprep.subr.mxu0 0.0
        %3523 = vmatpush1.msra.mxu0 0.0
        %3524 = vmatprep.subr.mxu0 0.0
        %3525 = vmatpush1.msra.mxu0 0.0
        %3526 = vmatprep.subr.mxu0 0.0
        %3527 = vmatpush1.msra.mxu0 0.0
        %3528 = vmatprep.subr.mxu0 0.0
        %3529 = vmatpush1.msra.mxu0 0.0
        %3530 = vmatprep.subr.mxu0 0.0
        %3531 = vmatpush1.msra.mxu0 0.0
        %3532 = vmatprep.subr.mxu0 0.0
        %3533 = vmatpush1.msra.mxu0 0.0
        %3534 = vmatprep.subr.mxu0 0.0
        %3535 = vmatpush1.msra.mxu0 0.0
        %3536 = vmatprep.subr.mxu0 0.0
        %3537 = vmatpush1.msra.mxu0 0.0
        %3538 = vmatprep.subr.mxu0 0.0
        %3539 = vmatpush1.msra.mxu0 0.0
        %3540 = vmatprep.subr.mxu0 0.0
        %3541 = vmatpush1.msra.mxu0 0.0
        %3542 = vmatprep.subr.mxu0 0.0
        %3543 = vmatpush1.msra.mxu0 0.0
        %3544 = vmatprep.subr.mxu0 0.0
        %3545 = vmatpush1.msra.mxu0 0.0
        %3546 = vmatprep.subr.mxu0 0.0
        %3547 = vmatpush1.msra.mxu0 0.0
        %3548 = vmatprep.subr.mxu0 0.0
        %3549 = vmatpush1.msra.mxu0 0.0
        %3550 = vmatprep.subr.mxu0 0.0
        %3551 = vmatpush1.msra.mxu0 0.0
        %3552 = vmatprep.subr.mxu0 0.0
        %3553 = vmatpush1.msra.mxu0 0.0
        %3554 = vmatprep.subr.mxu0 0.0
        %3555 = vmatpush1.msra.mxu0 0.0
        %3556 = vmatprep.subr.mxu0 0.0
        %3557 = vmatpush1.msra.mxu0 0.0
        %3558 = vmatprep.subr.mxu0 0.0
        %3559 = vmatpush1.msra.mxu0 0.0
        %3560 = vmatprep.subr.mxu0 0.0
        %3561 = vmatpush1.msra.mxu0 0.0
        %3562 = vmatprep.subr.mxu0 0.0
        %3563 = vmatpush1.msra.mxu0 0.0
        %3564 = vmatprep.subr.mxu0 0.0
        %3565 = vmatpush1.msra.mxu0 0.0
        %3566 = vmatprep.subr.mxu0 0.0
        %3567 = vmatpush1.msra.mxu0 0.0
        %3568 = vmatprep.subr.mxu0 0.0
        %3569 = vmatpush1.msra.mxu0 0.0
        %3570 = vmatprep.mubr.f32.mxu0 0.0
        %3571 = vmatmul.mubr.f32.gmra.mrb[0].mxu0 %v3504
        %v3572 = vpop.f32.mrb[0].mxu0
        %v3573 = vadd.f32 %v3494, %v3572
        %v3574 = vpop.f32.mrb[0].mxu0
        %3575 = vdwg.mxu0
        %v3576 = vld [vmem:[%s7] sm:$0x1]
        %v3578 = vlaneseq
        %v3579 = vshrl.u32 %v3578, 7
        %v3580 = vsub.s32 0, %v3579
        %v3581 = vrot.slane %v3576, %v3580
        %v3583 = vadd.f32 %v3573, %v3581
        %v3584 = vld [vmem:[%s1386] sm:$0xff]
        %v3585 = vld [vmem:[%s1386 + $0x8] sm:$0xff]
        %v3586 = vld [vmem:[%s1386 + $0x10] sm:$0xff]
        %v3587 = vld [vmem:[%s1386 + $0x18] sm:$0xff]
        %v3588 = vld [vmem:[%s1391] sm:$0xff]
        %v3589 = vld [vmem:[%s1391 + $0x8] sm:$0xff]
        %v3590 = vld [vmem:[%s1391 + $0x10] sm:$0xff]
        %v3591 = vld [vmem:[%s1391 + $0x18] sm:$0xff]
        %3592 = vmatprep.subr.mxu0 0.0
        %3593 = vmatpush1.msra.mxu0 %v3588
        %3594 = vmatprep.subr.mxu0 0.0
        %3595 = vmatpush1.msra.mxu0 %v3589
        %3596 = vmatprep.subr.mxu0 0.0
        %3597 = vmatpush1.msra.mxu0 %v3590
        %3598 = vmatprep.subr.mxu0 0.0
        %3599 = vmatpush1.msra.mxu0 %v3591
        %3600 = vmatprep.subr.mxu0 0.0
        %3601 = vmatpush1.msra.mxu0 0.0
        %3602 = vmatprep.subr.mxu0 0.0
        %3603 = vmatpush1.msra.mxu0 0.0
        %3604 = vmatprep.subr.mxu0 0.0
        %3605 = vmatpush1.msra.mxu0 0.0
        %3606 = vmatprep.subr.mxu0 0.0
        %3607 = vmatpush1.msra.mxu0 0.0
        %3608 = vmatprep.subr.mxu0 0.0
        %3609 = vmatpush1.msra.mxu0 0.0
        %3610 = vmatprep.subr.mxu0 0.0
        %3611 = vmatpush1.msra.mxu0 0.0
        %3612 = vmatprep.subr.mxu0 0.0
        %3613 = vmatpush1.msra.mxu0 0.0
        %3614 = vmatprep.subr.mxu0 0.0
        %3615 = vmatpush1.msra.mxu0 0.0
        %3616 = vmatprep.subr.mxu0 0.0
        %3617 = vmatpush1.msra.mxu0 0.0
        %3618 = vmatprep.subr.mxu0 0.0
        %3619 = vmatpush1.msra.mxu0 0.0
        %3620 = vmatprep.subr.mxu0 0.0
        %3621 = vmatpush1.msra.mxu0 0.0
        %3622 = vmatprep.subr.mxu0 0.0
        %3623 = vmatpush1.msra.mxu0 0.0
        %3624 = vmatprep.subr.mxu0 0.0
        %3625 = vmatpush1.msra.mxu0 0.0
        %3626 = vmatprep.subr.mxu0 0.0
        %3627 = vmatpush1.msra.mxu0 0.0
        %3628 = vmatprep.subr.mxu0 0.0
        %3629 = vmatpush1.msra.mxu0 0.0
        %3630 = vmatprep.subr.mxu0 0.0
        %3631 = vmatpush1.msra.mxu0 0.0
        %3632 = vmatprep.subr.mxu0 0.0
        %3633 = vmatpush1.msra.mxu0 0.0
        %3634 = vmatprep.subr.mxu0 0.0
        %3635 = vmatpush1.msra.mxu0 0.0
        %3636 = vmatprep.subr.mxu0 0.0
        %3637 = vmatpush1.msra.mxu0 0.0
        %3638 = vmatprep.subr.mxu0 0.0
        %3639 = vmatpush1.msra.mxu0 0.0
        %3640 = vmatprep.subr.mxu0 0.0
        %3641 = vmatpush1.msra.mxu0 0.0
        %3642 = vmatprep.subr.mxu0 0.0
        %3643 = vmatpush1.msra.mxu0 0.0
        %3644 = vmatprep.subr.mxu0 0.0
        %3645 = vmatpush1.msra.mxu0 0.0
        %3646 = vmatprep.subr.mxu0 0.0
        %3647 = vmatpush1.msra.mxu0 0.0
        %3648 = vmatprep.subr.mxu0 0.0
        %3649 = vmatpush1.msra.mxu0 0.0
        %3650 = vmatprep.subr.mxu0 0.0
        %3651 = vmatpush1.msra.mxu0 0.0
        %3652 = vmatprep.subr.mxu0 0.0
        %3653 = vmatpush1.msra.mxu0 0.0
        %3654 = vmatprep.subr.mxu0 0.0
        %3655 = vmatpush1.msra.mxu0 0.0
        %3656 = vmatprep.mubr.f32.mxu0 0.0
        %3657 = vmatmul.mubr.f32.gmra.mrb[0].mxu0 %v3425
        %v3658 = vpop.f32.mrb[0].mxu0
        %v3659 = vadd.f32 0.0, %v3658
        %v3660 = vpop.f32.mrb[0].mxu0
        %3661 = vdwg.mxu0
        %3662 = vmatprep.subr.mxu0 0.0
        %3663 = vmatpush1.msra.mxu0 %v3584
        %3664 = vmatprep.subr.mxu0 0.0
        %3665 = vmatpush1.msra.mxu0 %v3585
        %3666 = vmatprep.subr.mxu0 0.0
        %3667 = vmatpush1.msra.mxu0 %v3586
        %3668 = vmatprep.subr.mxu0 0.0
        %3669 = vmatpush1.msra.mxu0 %v3587
        %3670 = vmatprep.subr.mxu0 0.0
        %3671 = vmatpush1.msra.mxu0 0.0
        %3672 = vmatprep.subr.mxu0 0.0
        %3673 = vmatpush1.msra.mxu0 0.0
        %3674 = vmatprep.subr.mxu0 0.0
        %3675 = vmatpush1.msra.mxu0 0.0
        %3676 = vmatprep.subr.mxu0 0.0
        %3677 = vmatpush1.msra.mxu0 0.0
        %3678 = vmatprep.subr.mxu0 0.0
        %3679 = vmatpush1.msra.mxu0 0.0
        %3680 = vmatprep.subr.mxu0 0.0
        %3681 = vmatpush1.msra.mxu0 0.0
        %3682 = vmatprep.subr.mxu0 0.0
        %3683 = vmatpush1.msra.mxu0 0.0
        %3684 = vmatprep.subr.mxu0 0.0
        %3685 = vmatpush1.msra.mxu0 0.0
        %3686 = vmatprep.subr.mxu0 0.0
        %3687 = vmatpush1.msra.mxu0 0.0
        %3688 = vmatprep.subr.mxu0 0.0
        %3689 = vmatpush1.msra.mxu0 0.0
        %3690 = vmatprep.subr.mxu0 0.0
        %3691 = vmatpush1.msra.mxu0 0.0
        %3692 = vmatprep.subr.mxu0 0.0
        %3693 = vmatpush1.msra.mxu0 0.0
        %3694 = vmatprep.subr.mxu0 0.0
        %3695 = vmatpush1.msra.mxu0 0.0
        %3696 = vmatprep.subr.mxu0 0.0
        %3697 = vmatpush1.msra.mxu0 0.0
        %3698 = vmatprep.subr.mxu0 0.0
        %3699 = vmatpush1.msra.mxu0 0.0
        %3700 = vmatprep.subr.mxu0 0.0
        %3701 = vmatpush1.msra.mxu0 0.0
        %3702 = vmatprep.subr.mxu0 0.0
        %3703 = vmatpush1.msra.mxu0 0.0
        %3704 = vmatprep.subr.mxu0 0.0
        %3705 = vmatpush1.msra.mxu0 0.0
        %3706 = vmatprep.subr.mxu0 0.0
        %3707 = vmatpush1.msra.mxu0 0.0
        %3708 = vmatprep.subr.mxu0 0.0
        %3709 = vmatpush1.msra.mxu0 0.0
        %3710 = vmatprep.subr.mxu0 0.0
        %3711 = vmatpush1.msra.mxu0 0.0
        %3712 = vmatprep.subr.mxu0 0.0
        %3713 = vmatpush1.msra.mxu0 0.0
        %3714 = vmatprep.subr.mxu0 0.0
        %3715 = vmatpush1.msra.mxu0 0.0
        %3716 = vmatprep.subr.mxu0 0.0
        %3717 = vmatpush1.msra.mxu0 0.0
        %3718 = vmatprep.subr.mxu0 0.0
        %3719 = vmatpush1.msra.mxu0 0.0
        %3720 = vmatprep.subr.mxu0 0.0
        %3721 = vmatpush1.msra.mxu0 0.0
        %3722 = vmatprep.subr.mxu0 0.0
        %3723 = vmatpush1.msra.mxu0 0.0
        %3724 = vmatprep.subr.mxu0 0.0
        %3725 = vmatpush1.msra.mxu0 0.0
        %3726 = vmatprep.mubr.f32.mxu0 0.0
        %3727 = vmatmul.mubr.f32.gmra.mrb[0].mxu0 %v3504
        %v3728 = vpop.f32.mrb[0].mxu0
        %v3729 = vadd.f32 %v3659, %v3728
        %v3730 = vpop.f32.mrb[0].mxu0
        %3731 = vdwg.mxu0
        %v3732 = vld [vmem:[%s1536] sm:$0x1]
        %v3734 = vlaneseq
        %v3735 = vshrl.u32 %v3734, 7
        %v3736 = vsub.s32 0, %v3735
        %v3737 = vrot.slane %v3732, %v3736
        %v3739 = vadd.f32 %v3729, %v3737
        %v3740 = vld [vmem:[%s1545] sm:$0xff]
        %v3741 = vld [vmem:[%s1545 + $0x8] sm:$0xff]
        %v3742 = vld [vmem:[%s1545 + $0x10] sm:$0xff]
        %v3743 = vld [vmem:[%s1545 + $0x18] sm:$0xff]
        %v3744 = vld [vmem:[%s1550] sm:$0xff]
        %v3745 = vld [vmem:[%s1550 + $0x8] sm:$0xff]
        %v3746 = vld [vmem:[%s1550 + $0x10] sm:$0xff]
        %v3747 = vld [vmem:[%s1550 + $0x18] sm:$0xff]
        %3748 = vmatprep.subr.mxu0 0.0
        %3749 = vmatpush1.msra.mxu0 %v3744
        %3750 = vmatprep.subr.mxu0 0.0
        %3751 = vmatpush1.msra.mxu0 %v3745
        %3752 = vmatprep.subr.mxu0 0.0
        %3753 = vmatpush1.msra.mxu0 %v3746
        %3754 = vmatprep.subr.mxu0 0.0
        %3755 = vmatpush1.msra.mxu0 %v3747
        %3756 = vmatprep.subr.mxu0 0.0
        %3757 = vmatpush1.msra.mxu0 0.0
        %3758 = vmatprep.subr.mxu0 0.0
        %3759 = vmatpush1.msra.mxu0 0.0
        %3760 = vmatprep.subr.mxu0 0.0
        %3761 = vmatpush1.msra.mxu0 0.0
        %3762 = vmatprep.subr.mxu0 0.0
        %3763 = vmatpush1.msra.mxu0 0.0
        %3764 = vmatprep.subr.mxu0 0.0
        %3765 = vmatpush1.msra.mxu0 0.0
        %3766 = vmatprep.subr.mxu0 0.0
        %3767 = vmatpush1.msra.mxu0 0.0
        %3768 = vmatprep.subr.mxu0 0.0
        %3769 = vmatpush1.msra.mxu0 0.0
        %3770 = vmatprep.subr.mxu0 0.0
        %3771 = vmatpush1.msra.mxu0 0.0
        %3772 = vmatprep.subr.mxu0 0.0
        %3773 = vmatpush1.msra.mxu0 0.0
        %3774 = vmatprep.subr.mxu0 0.0
        %3775 = vmatpush1.msra.mxu0 0.0
        %3776 = vmatprep.subr.mxu0 0.0
        %3777 = vmatpush1.msra.mxu0 0.0
        %3778 = vmatprep.subr.mxu0 0.0
        %3779 = vmatpush1.msra.mxu0 0.0
        %3780 = vmatprep.subr.mxu0 0.0
        %3781 = vmatpush1.msra.mxu0 0.0
        %3782 = vmatprep.subr.mxu0 0.0
        %3783 = vmatpush1.msra.mxu0 0.0
        %3784 = vmatprep.subr.mxu0 0.0
        %3785 = vmatpush1.msra.mxu0 0.0
        %3786 = vmatprep.subr.mxu0 0.0
        %3787 = vmatpush1.msra.mxu0 0.0
        %3788 = vmatprep.subr.mxu0 0.0
        %3789 = vmatpush1.msra.mxu0 0.0
        %3790 = vmatprep.subr.mxu0 0.0
        %3791 = vmatpush1.msra.mxu0 0.0
        %3792 = vmatprep.subr.mxu0 0.0
        %3793 = vmatpush1.msra.mxu0 0.0
        %3794 = vmatprep.subr.mxu0 0.0
        %3795 = vmatpush1.msra.mxu0 0.0
        %3796 = vmatprep.subr.mxu0 0.0
        %3797 = vmatpush1.msra.mxu0 0.0
        %3798 = vmatprep.subr.mxu0 0.0
        %3799 = vmatpush1.msra.mxu0 0.0
        %3800 = vmatprep.subr.mxu0 0.0
        %3801 = vmatpush1.msra.mxu0 0.0
        %3802 = vmatprep.subr.mxu0 0.0
        %3803 = vmatpush1.msra.mxu0 0.0
        %3804 = vmatprep.subr.mxu0 0.0
        %3805 = vmatpush1.msra.mxu0 0.0
        %3806 = vmatprep.subr.mxu0 0.0
        %3807 = vmatpush1.msra.mxu0 0.0
        %3808 = vmatprep.subr.mxu0 0.0
        %3809 = vmatpush1.msra.mxu0 0.0
        %3810 = vmatprep.subr.mxu0 0.0
        %3811 = vmatpush1.msra.mxu0 0.0
        %3812 = vmatprep.mubr.f32.mxu0 0.0
        %3813 = vmatmul.mubr.f32.gmra.mrb[0].mxu0 %v3425
        %v3814 = vpop.f32.mrb[0].mxu0
        %v3815 = vadd.f32 0.0, %v3814
        %v3816 = vpop.f32.mrb[0].mxu0
        %3817 = vdwg.mxu0
        %3818 = vmatprep.subr.mxu0 0.0
        %3819 = vmatpush1.msra.mxu0 %v3740
        %3820 = vmatprep.subr.mxu0 0.0
        %3821 = vmatpush1.msra.mxu0 %v3741
        %3822 = vmatprep.subr.mxu0 0.0
        %3823 = vmatpush1.msra.mxu0 %v3742
        %3824 = vmatprep.subr.mxu0 0.0
        %3825 = vmatpush1.msra.mxu0 %v3743
        %3826 = vmatprep.subr.mxu0 0.0
        %3827 = vmatpush1.msra.mxu0 0.0
        %3828 = vmatprep.subr.mxu0 0.0
        %3829 = vmatpush1.msra.mxu0 0.0
        %3830 = vmatprep.subr.mxu0 0.0
        %3831 = vmatpush1.msra.mxu0 0.0
        %3832 = vmatprep.subr.mxu0 0.0
        %3833 = vmatpush1.msra.mxu0 0.0
        %3834 = vmatprep.subr.mxu0 0.0
        %3835 = vmatpush1.msra.mxu0 0.0
        %3836 = vmatprep.subr.mxu0 0.0
        %3837 = vmatpush1.msra.mxu0 0.0
        %3838 = vmatprep.subr.mxu0 0.0
        %3839 = vmatpush1.msra.mxu0 0.0
        %3840 = vmatprep.subr.mxu0 0.0
        %3841 = vmatpush1.msra.mxu0 0.0
        %3842 = vmatprep.subr.mxu0 0.0
        %3843 = vmatpush1.msra.mxu0 0.0
        %3844 = vmatprep.subr.mxu0 0.0
        %3845 = vmatpush1.msra.mxu0 0.0
        %3846 = vmatprep.subr.mxu0 0.0
        %3847 = vmatpush1.msra.mxu0 0.0
        %3848 = vmatprep.subr.mxu0 0.0
        %3849 = vmatpush1.msra.mxu0 0.0
        %3850 = vmatprep.subr.mxu0 0.0
        %3851 = vmatpush1.msra.mxu0 0.0
        %3852 = vmatprep.subr.mxu0 0.0
        %3853 = vmatpush1.msra.mxu0 0.0
        %3854 = vmatprep.subr.mxu0 0.0
        %3855 = vmatpush1.msra.mxu0 0.0
        %3856 = vmatprep.subr.mxu0 0.0
        %3857 = vmatpush1.msra.mxu0 0.0
        %3858 = vmatprep.subr.mxu0 0.0
        %3859 = vmatpush1.msra.mxu0 0.0
        %3860 = vmatprep.subr.mxu0 0.0
        %3861 = vmatpush1.msra.mxu0 0.0
        %3862 = vmatprep.subr.mxu0 0.0
        %3863 = vmatpush1.msra.mxu0 0.0
        %3864 = vmatprep.subr.mxu0 0.0
        %3865 = vmatpush1.msra.mxu0 0.0
        %3866 = vmatprep.subr.mxu0 0.0
        %3867 = vmatpush1.msra.mxu0 0.0
        %3868 = vmatprep.subr.mxu0 0.0
        %3869 = vmatpush1.msra.mxu0 0.0
        %3870 = vmatprep.subr.mxu0 0.0
        %3871 = vmatpush1.msra.mxu0 0.0
        %3872 = vmatprep.subr.mxu0 0.0
        %3873 = vmatpush1.msra.mxu0 0.0
        %3874 = vmatprep.subr.mxu0 0.0
        %3875 = vmatpush1.msra.mxu0 0.0
        %3876 = vmatprep.subr.mxu0 0.0
        %3877 = vmatpush1.msra.mxu0 0.0
        %3878 = vmatprep.subr.mxu0 0.0
        %3879 = vmatpush1.msra.mxu0 0.0
        %3880 = vmatprep.subr.mxu0 0.0
        %3881 = vmatpush1.msra.mxu0 0.0
        %3882 = vmatprep.mubr.f32.mxu0 0.0
        %3883 = vmatmul.mubr.f32.gmra.mrb[0].mxu0 %v3504
        %v3884 = vpop.f32.mrb[0].mxu0
        %v3885 = vadd.f32 %v3815, %v3884
        %v3886 = vpop.f32.mrb[0].mxu0
        %3887 = vdwg.mxu0
        %v3888 = vld [vmem:[%s1695] sm:$0x1]
        %v3890 = vlaneseq
        %v3891 = vshrl.u32 %v3890, 7
        %v3892 = vsub.s32 0, %v3891
        %v3893 = vrot.slane %v3888, %v3892
        %v3895 = vadd.f32 %v3885, %v3893
        %v3896 = vld [vmem:[%s1704] sm:$0xff]
        %v3897 = vld [vmem:[%s1704 + $0x8] sm:$0xff]
        %v3898 = vld [vmem:[%s1704 + $0x10] sm:$0xff]
        %v3899 = vld [vmem:[%s1704 + $0x18] sm:$0xff]
        %v3900 = vld [vmem:[%s1709] sm:$0xff]
        %v3901 = vld [vmem:[%s1709 + $0x8] sm:$0xff]
        %v3902 = vld [vmem:[%s1709 + $0x10] sm:$0xff]
        %v3903 = vld [vmem:[%s1709 + $0x18] sm:$0xff]
        %3904 = vmatprep.subr.mxu0 0.0
        %3905 = vmatpush1.msra.mxu0 %v3900
        %3906 = vmatprep.subr.mxu0 0.0
        %3907 = vmatpush1.msra.mxu0 %v3901
        %3908 = vmatprep.subr.mxu0 0.0
        %3909 = vmatpush1.msra.mxu0 %v3902
        %3910 = vmatprep.subr.mxu0 0.0
        %3911 = vmatpush1.msra.mxu0 %v3903
        %3912 = vmatprep.subr.mxu0 0.0
        %3913 = vmatpush1.msra.mxu0 0.0
        %3914 = vmatprep.subr.mxu0 0.0
        %3915 = vmatpush1.msra.mxu0 0.0
        %3916 = vmatprep.subr.mxu0 0.0
        %3917 = vmatpush1.msra.mxu0 0.0
        %3918 = vmatprep.subr.mxu0 0.0
        %3919 = vmatpush1.msra.mxu0 0.0
        %3920 = vmatprep.subr.mxu0 0.0
        %3921 = vmatpush1.msra.mxu0 0.0
        %3922 = vmatprep.subr.mxu0 0.0
        %3923 = vmatpush1.msra.mxu0 0.0
        %3924 = vmatprep.subr.mxu0 0.0
        %3925 = vmatpush1.msra.mxu0 0.0
        %3926 = vmatprep.subr.mxu0 0.0
        %3927 = vmatpush1.msra.mxu0 0.0
        %3928 = vmatprep.subr.mxu0 0.0
        %3929 = vmatpush1.msra.mxu0 0.0
        %3930 = vmatprep.subr.mxu0 0.0
        %3931 = vmatpush1.msra.mxu0 0.0
        %3932 = vmatprep.subr.mxu0 0.0
        %3933 = vmatpush1.msra.mxu0 0.0
        %3934 = vmatprep.subr.mxu0 0.0
        %3935 = vmatpush1.msra.mxu0 0.0
        %3936 = vmatprep.subr.mxu0 0.0
        %3937 = vmatpush1.msra.mxu0 0.0
        %3938 = vmatprep.subr.mxu0 0.0
        %3939 = vmatpush1.msra.mxu0 0.0
        %3940 = vmatprep.subr.mxu0 0.0
        %3941 = vmatpush1.msra.mxu0 0.0
        %3942 = vmatprep.subr.mxu0 0.0
        %3943 = vmatpush1.msra.mxu0 0.0
        %3944 = vmatprep.subr.mxu0 0.0
        %3945 = vmatpush1.msra.mxu0 0.0
        %3946 = vmatprep.subr.mxu0 0.0
        %3947 = vmatpush1.msra.mxu0 0.0
        %3948 = vmatprep.subr.mxu0 0.0
        %3949 = vmatpush1.msra.mxu0 0.0
        %3950 = vmatprep.subr.mxu0 0.0
        %3951 = vmatpush1.msra.mxu0 0.0
        %3952 = vmatprep.subr.mxu0 0.0
        %3953 = vmatpush1.msra.mxu0 0.0
        %3954 = vmatprep.subr.mxu0 0.0
        %3955 = vmatpush1.msra.mxu0 0.0
        %3956 = vmatprep.subr.mxu0 0.0
        %3957 = vmatpush1.msra.mxu0 0.0
        %3958 = vmatprep.subr.mxu0 0.0
        %3959 = vmatpush1.msra.mxu0 0.0
        %3960 = vmatprep.subr.mxu0 0.0
        %3961 = vmatpush1.msra.mxu0 0.0
        %3962 = vmatprep.subr.mxu0 0.0
        %3963 = vmatpush1.msra.mxu0 0.0
        %3964 = vmatprep.subr.mxu0 0.0
        %3965 = vmatpush1.msra.mxu0 0.0
        %3966 = vmatprep.subr.mxu0 0.0
        %3967 = vmatpush1.msra.mxu0 0.0
        %3968 = vmatprep.mubr.f32.mxu0 0.0
        %3969 = vmatmul.mubr.f32.gmra.mrb[0].mxu0 %v3425
        %v3970 = vpop.f32.mrb[0].mxu0
        %v3971 = vadd.f32 0.0, %v3970
        %v3972 = vpop.f32.mrb[0].mxu0
        %3973 = vdwg.mxu0
        %3974 = vmatprep.subr.mxu0 0.0
        %3975 = vmatpush1.msra.mxu0 %v3896
        %3976 = vmatprep.subr.mxu0 0.0
        %3977 = vmatpush1.msra.mxu0 %v3897
        %3978 = vmatprep.subr.mxu0 0.0
        %3979 = vmatpush1.msra.mxu0 %v3898
        %3980 = vmatprep.subr.mxu0 0.0
        %3981 = vmatpush1.msra.mxu0 %v3899
        %3982 = vmatprep.subr.mxu0 0.0
        %3983 = vmatpush1.msra.mxu0 0.0
        %3984 = vmatprep.subr.mxu0 0.0
        %3985 = vmatpush1.msra.mxu0 0.0
        %3986 = vmatprep.subr.mxu0 0.0
        %3987 = vmatpush1.msra.mxu0 0.0
        %3988 = vmatprep.subr.mxu0 0.0
        %3989 = vmatpush1.msra.mxu0 0.0
        %3990 = vmatprep.subr.mxu0 0.0
        %3991 = vmatpush1.msra.mxu0 0.0
        %3992 = vmatprep.subr.mxu0 0.0
        %3993 = vmatpush1.msra.mxu0 0.0
        %3994 = vmatprep.subr.mxu0 0.0
        %3995 = vmatpush1.msra.mxu0 0.0
        %3996 = vmatprep.subr.mxu0 0.0
        %3997 = vmatpush1.msra.mxu0 0.0
        %3998 = vmatprep.subr.mxu0 0.0
        %3999 = vmatpush1.msra.mxu0 0.0
        %4000 = vmatprep.subr.mxu0 0.0
        %4001 = vmatpush1.msra.mxu0 0.0
        %4002 = vmatprep.subr.mxu0 0.0
        %4003 = vmatpush1.msra.mxu0 0.0
        %4004 = vmatprep.subr.mxu0 0.0
        %4005 = vmatpush1.msra.mxu0 0.0
        %4006 = vmatprep.subr.mxu0 0.0
        %4007 = vmatpush1.msra.mxu0 0.0
        %4008 = vmatprep.subr.mxu0 0.0
        %4009 = vmatpush1.msra.mxu0 0.0
        %4010 = vmatprep.subr.mxu0 0.0
        %4011 = vmatpush1.msra.mxu0 0.0
        %4012 = vmatprep.subr.mxu0 0.0
        %4013 = vmatpush1.msra.mxu0 0.0
        %4014 = vmatprep.subr.mxu0 0.0
        %4015 = vmatpush1.msra.mxu0 0.0
        %4016 = vmatprep.subr.mxu0 0.0
        %4017 = vmatpush1.msra.mxu0 0.0
        %4018 = vmatprep.subr.mxu0 0.0
        %4019 = vmatpush1.msra.mxu0 0.0
        %4020 = vmatprep.subr.mxu0 0.0
        %4021 = vmatpush1.msra.mxu0 0.0
        %4022 = vmatprep.subr.mxu0 0.0
        %4023 = vmatpush1.msra.mxu0 0.0
        %4024 = vmatprep.subr.mxu0 0.0
        %4025 = vmatpush1.msra.mxu0 0.0
        %4026 = vmatprep.subr.mxu0 0.0
        %4027 = vmatpush1.msra.mxu0 0.0
        %4028 = vmatprep.subr.mxu0 0.0
        %4029 = vmatpush1.msra.mxu0 0.0
        %4030 = vmatprep.subr.mxu0 0.0
        %4031 = vmatpush1.msra.mxu0 0.0
        %4032 = vmatprep.subr.mxu0 0.0
        %4033 = vmatpush1.msra.mxu0 0.0
        %4034 = vmatprep.subr.mxu0 0.0
        %4035 = vmatpush1.msra.mxu0 0.0
        %4036 = vmatprep.subr.mxu0 0.0
        %4037 = vmatpush1.msra.mxu0 0.0
        %4038 = vmatprep.mubr.f32.mxu0 0.0
        %4039 = vmatmul.mubr.f32.gmra.mrb[0].mxu0 %v3504
        %v4040 = vpop.f32.mrb[0].mxu0
        %v4041 = vadd.f32 %v3971, %v4040
        %v4042 = vpop.f32.mrb[0].mxu0
        %4043 = vdwg.mxu0
        %v4044 = vld [vmem:[%s1854] sm:$0x1]
        %v4046 = vlaneseq
        %v4047 = vshrl.u32 %v4046, 7
        %v4048 = vsub.s32 0, %v4047
        %v4049 = vrot.slane %v4044, %v4048
        %v4051 = vadd.f32 %v4041, %v4049
        %v4052 = vxor.u32 %v3583, 2147483648
        %v4053 = vmul.f32 %v4052, 1.442695
        %v4054 = vpow.pop %v4053
        %v4055 = vadd.f32 %v4054, 1.0
        %v4056 = vrcp.pop %v4055
        %v4057 = vmul.f32 1.0, %v4056
        %v4058 = vxor.u32 %v3739, 2147483648
        %v4059 = vmul.f32 %v4058, 1.442695
        %v4060 = vpow.pop %v4059
        %v4061 = vadd.f32 %v4060, 1.0
        %v4062 = vrcp.pop %v4061
        %v4063 = vmul.f32 1.0, %v4062
        %v4064 = vtanh.pop %v3895
        %v4065 = vxor.u32 %v4051, 2147483648
        %v4066 = vmul.f32 %v4065, 1.442695
        %v4067 = vpow.pop %v4066
        %v4068 = vadd.f32 %v4067, 1.0
        %v4069 = vrcp.pop %v4068
        %v4070 = vmul.f32 1.0, %v4069
        %v4071 = vmul.f32 %v4063, %v3415
        %v4072 = vmul.f32 %v4057, %v4064
        %v4073 = vadd.f32 %v4071, %v4072
        %v4074 = vtanh.pop %v4073
        %v4075 = vmul.f32 %v4070, %v4074
        %4076 = vst.msk [vmem:[#allocation2] sm:$0x7] %vm1887, %v4075
        %4077 = vst.msk [vmem:[#allocation3] sm:$0x7] %vm1887, %v4073
        %v4078 = vld [vmem:[%s465] sm:$0x7]
        %v4079 = vld [vmem:[%s1891] sm:$0x7]
        %v4080 = vld [vmem:[#allocation6] sm:$0xff]
        %v4081 = vld [vmem:[#allocation6 + $0x8] sm:$0xff]
        %v4082 = vld [vmem:[#allocation6 + $0x10] sm:$0xff]
        %v4083 = vld [vmem:[#allocation6 + $0x18] sm:$0xff]
        %v4084 = vld [vmem:[#allocation8] sm:$0xff]
        %v4085 = vld [vmem:[#allocation8 + $0x8] sm:$0xff]
        %v4086 = vld [vmem:[#allocation8 + $0x10] sm:$0xff]
        %v4087 = vld [vmem:[#allocation8 + $0x18] sm:$0xff]
        %v4089 = vsel %vm494, %v4078, 0
        %4091 = vmatprep.subr.mxu0 0.0
        %4092 = vmatpush1.msra.mxu0 %v4084
        %4093 = vmatprep.subr.mxu0 0.0
        %4094 = vmatpush1.msra.mxu0 %v4085
        %4095 = vmatprep.subr.mxu0 0.0
        %4096 = vmatpush1.msra.mxu0 %v4086
        %4097 = vmatprep.subr.mxu0 0.0
        %4098 = vmatpush1.msra.mxu0 %v4087
        %4099 = vmatprep.subr.mxu0 0.0
        %4100 = vmatpush1.msra.mxu0 0.0
        %4101 = vmatprep.subr.mxu0 0.0
        %4102 = vmatpush1.msra.mxu0 0.0
        %4103 = vmatprep.subr.mxu0 0.0
        %4104 = vmatpush1.msra.mxu0 0.0
        %4105 = vmatprep.subr.mxu0 0.0
        %4106 = vmatpush1.msra.mxu0 0.0
        %4107 = vmatprep.subr.mxu0 0.0
        %4108 = vmatpush1.msra.mxu0 0.0
        %4109 = vmatprep.subr.mxu0 0.0
        %4110 = vmatpush1.msra.mxu0 0.0
        %4111 = vmatprep.subr.mxu0 0.0
        %4112 = vmatpush1.msra.mxu0 0.0
        %4113 = vmatprep.subr.mxu0 0.0
        %4114 = vmatpush1.msra.mxu0 0.0
        %4115 = vmatprep.subr.mxu0 0.0
        %4116 = vmatpush1.msra.mxu0 0.0
        %4117 = vmatprep.subr.mxu0 0.0
        %4118 = vmatpush1.msra.mxu0 0.0
        %4119 = vmatprep.subr.mxu0 0.0
        %4120 = vmatpush1.msra.mxu0 0.0
        %4121 = vmatprep.subr.mxu0 0.0
        %4122 = vmatpush1.msra.mxu0 0.0
        %4123 = vmatprep.subr.mxu0 0.0
        %4124 = vmatpush1.msra.mxu0 0.0
        %4125 = vmatprep.subr.mxu0 0.0
        %4126 = vmatpush1.msra.mxu0 0.0
        %4127 = vmatprep.subr.mxu0 0.0
        %4128 = vmatpush1.msra.mxu0 0.0
        %4129 = vmatprep.subr.mxu0 0.0
        %4130 = vmatpush1.msra.mxu0 0.0
        %4131 = vmatprep.subr.mxu0 0.0
        %4132 = vmatpush1.msra.mxu0 0.0
        %4133 = vmatprep.subr.mxu0 0.0
        %4134 = vmatpush1.msra.mxu0 0.0
        %4135 = vmatprep.subr.mxu0 0.0
        %4136 = vmatpush1.msra.mxu0 0.0
        %4137 = vmatprep.subr.mxu0 0.0
        %4138 = vmatpush1.msra.mxu0 0.0
        %4139 = vmatprep.subr.mxu0 0.0
        %4140 = vmatpush1.msra.mxu0 0.0
        %4141 = vmatprep.subr.mxu0 0.0
        %4142 = vmatpush1.msra.mxu0 0.0
        %4143 = vmatprep.subr.mxu0 0.0
        %4144 = vmatpush1.msra.mxu0 0.0
        %4145 = vmatprep.subr.mxu0 0.0
        %4146 = vmatpush1.msra.mxu0 0.0
        %4147 = vmatprep.subr.mxu0 0.0
        %4148 = vmatpush1.msra.mxu0 0.0
        %4149 = vmatprep.subr.mxu0 0.0
        %4150 = vmatpush1.msra.mxu0 0.0
        %4151 = vmatprep.subr.mxu0 0.0
        %4152 = vmatpush1.msra.mxu0 0.0
        %4153 = vmatprep.subr.mxu0 0.0
        %4154 = vmatpush1.msra.mxu0 0.0
        %4155 = vmatprep.mubr.f32.mxu0 0.0
        %4156 = vmatmul.mubr.f32.gmra.mrb[0].mxu0 %v4089
        %v4157 = vpop.f32.mrb[0].mxu0
        %v4158 = vadd.f32 0.0, %v4157
        %v4159 = vpop.f32.mrb[0].mxu0
        %4160 = vdwg.mxu0
        %v4162 = vsel %vm494, %v4075, 0
        %4164 = vmatprep.subr.mxu0 0.0
        %4165 = vmatpush1.msra.mxu0 %v4080
        %4166 = vmatprep.subr.mxu0 0.0
        %4167 = vmatpush1.msra.mxu0 %v4081
        %4168 = vmatprep.subr.mxu0 0.0
        %4169 = vmatpush1.msra.mxu0 %v4082
        %4170 = vmatprep.subr.mxu0 0.0
        %4171 = vmatpush1.msra.mxu0 %v4083
        %4172 = vmatprep.subr.mxu0 0.0
        %4173 = vmatpush1.msra.mxu0 0.0
        %4174 = vmatprep.subr.mxu0 0.0
        %4175 = vmatpush1.msra.mxu0 0.0
        %4176 = vmatprep.subr.mxu0 0.0
        %4177 = vmatpush1.msra.mxu0 0.0
        %4178 = vmatprep.subr.mxu0 0.0
        %4179 = vmatpush1.msra.mxu0 0.0
        %4180 = vmatprep.subr.mxu0 0.0
        %4181 = vmatpush1.msra.mxu0 0.0
        %4182 = vmatprep.subr.mxu0 0.0
        %4183 = vmatpush1.msra.mxu0 0.0
        %4184 = vmatprep.subr.mxu0 0.0
        %4185 = vmatpush1.msra.mxu0 0.0
        %4186 = vmatprep.subr.mxu0 0.0
        %4187 = vmatpush1.msra.mxu0 0.0
        %4188 = vmatprep.subr.mxu0 0.0
        %4189 = vmatpush1.msra.mxu0 0.0
        %4190 = vmatprep.subr.mxu0 0.0
        %4191 = vmatpush1.msra.mxu0 0.0
        %4192 = vmatprep.subr.mxu0 0.0
        %4193 = vmatpush1.msra.mxu0 0.0
        %4194 = vmatprep.subr.mxu0 0.0
        %4195 = vmatpush1.msra.mxu0 0.0
        %4196 = vmatprep.subr.mxu0 0.0
        %4197 = vmatpush1.msra.mxu0 0.0
        %4198 = vmatprep.subr.mxu0 0.0
        %4199 = vmatpush1.msra.mxu0 0.0
        %4200 = vmatprep.subr.mxu0 0.0
        %4201 = vmatpush1.msra.mxu0 0.0
        %4202 = vmatprep.subr.mxu0 0.0
        %4203 = vmatpush1.msra.mxu0 0.0
        %4204 = vmatprep.subr.mxu0 0.0
        %4205 = vmatpush1.msra.mxu0 0.0
        %4206 = vmatprep.subr.mxu0 0.0
        %4207 = vmatpush1.msra.mxu0 0.0
        %4208 = vmatprep.subr.mxu0 0.0
        %4209 = vmatpush1.msra.mxu0 0.0
        %4210 = vmatprep.subr.mxu0 0.0
        %4211 = vmatpush1.msra.mxu0 0.0
        %4212 = vmatprep.subr.mxu0 0.0
        %4213 = vmatpush1.msra.mxu0 0.0
        %4214 = vmatprep.subr.mxu0 0.0
        %4215 = vmatpush1.msra.mxu0 0.0
        %4216 = vmatprep.subr.mxu0 0.0
        %4217 = vmatpush1.msra.mxu0 0.0
        %4218 = vmatprep.subr.mxu0 0.0
        %4219 = vmatpush1.msra.mxu0 0.0
        %4220 = vmatprep.subr.mxu0 0.0
        %4221 = vmatpush1.msra.mxu0 0.0
        %4222 = vmatprep.subr.mxu0 0.0
        %4223 = vmatpush1.msra.mxu0 0.0
        %4224 = vmatprep.subr.mxu0 0.0
        %4225 = vmatpush1.msra.mxu0 0.0
        %4226 = vmatprep.subr.mxu0 0.0
        %4227 = vmatpush1.msra.mxu0 0.0
        %4228 = vmatprep.mubr.f32.mxu0 0.0
        %4229 = vmatmul.mubr.f32.gmra.mrb[0].mxu0 %v4162
        %v4230 = vpop.f32.mrb[0].mxu0
        %v4231 = vadd.f32 %v4158, %v4230
        %v4232 = vpop.f32.mrb[0].mxu0
        %4233 = vdwg.mxu0
        %v4234 = vld [vmem:[%s7] sm:$0x1]
        %v4236 = vlaneseq
        %v4237 = vshrl.u32 %v4236, 7
        %v4238 = vsub.s32 0, %v4237
        %v4239 = vrot.slane %v4234, %v4238
        %v4241 = vadd.f32 %v4231, %v4239
        %v4242 = vld [vmem:[%s1386] sm:$0xff]
        %v4243 = vld [vmem:[%s1386 + $0x8] sm:$0xff]
        %v4244 = vld [vmem:[%s1386 + $0x10] sm:$0xff]
        %v4245 = vld [vmem:[%s1386 + $0x18] sm:$0xff]
        %v4246 = vld [vmem:[%s1391] sm:$0xff]
        %v4247 = vld [vmem:[%s1391 + $0x8] sm:$0xff]
        %v4248 = vld [vmem:[%s1391 + $0x10] sm:$0xff]
        %v4249 = vld [vmem:[%s1391 + $0x18] sm:$0xff]
        %4250 = vmatprep.subr.mxu0 0.0
        %4251 = vmatpush1.msra.mxu0 %v4246
        %4252 = vmatprep.subr.mxu0 0.0
        %4253 = vmatpush1.msra.mxu0 %v4247
        %4254 = vmatprep.subr.mxu0 0.0
        %4255 = vmatpush1.msra.mxu0 %v4248
        %4256 = vmatprep.subr.mxu0 0.0
        %4257 = vmatpush1.msra.mxu0 %v4249
        %4258 = vmatprep.subr.mxu0 0.0
        %4259 = vmatpush1.msra.mxu0 0.0
        %4260 = vmatprep.subr.mxu0 0.0
        %4261 = vmatpush1.msra.mxu0 0.0
        %4262 = vmatprep.subr.mxu0 0.0
        %4263 = vmatpush1.msra.mxu0 0.0
        %4264 = vmatprep.subr.mxu0 0.0
        %4265 = vmatpush1.msra.mxu0 0.0
        %4266 = vmatprep.subr.mxu0 0.0
        %4267 = vmatpush1.msra.mxu0 0.0
        %4268 = vmatprep.subr.mxu0 0.0
        %4269 = vmatpush1.msra.mxu0 0.0
        %4270 = vmatprep.subr.mxu0 0.0
        %4271 = vmatpush1.msra.mxu0 0.0
        %4272 = vmatprep.subr.mxu0 0.0
        %4273 = vmatpush1.msra.mxu0 0.0
        %4274 = vmatprep.subr.mxu0 0.0
        %4275 = vmatpush1.msra.mxu0 0.0
        %4276 = vmatprep.subr.mxu0 0.0
        %4277 = vmatpush1.msra.mxu0 0.0
        %4278 = vmatprep.subr.mxu0 0.0
        %4279 = vmatpush1.msra.mxu0 0.0
        %4280 = vmatprep.subr.mxu0 0.0
        %4281 = vmatpush1.msra.mxu0 0.0
        %4282 = vmatprep.subr.mxu0 0.0
        %4283 = vmatpush1.msra.mxu0 0.0
        %4284 = vmatprep.subr.mxu0 0.0
        %4285 = vmatpush1.msra.mxu0 0.0
        %4286 = vmatprep.subr.mxu0 0.0
        %4287 = vmatpush1.msra.mxu0 0.0
        %4288 = vmatprep.subr.mxu0 0.0
        %4289 = vmatpush1.msra.mxu0 0.0
        %4290 = vmatprep.subr.mxu0 0.0
        %4291 = vmatpush1.msra.mxu0 0.0
        %4292 = vmatprep.subr.mxu0 0.0
        %4293 = vmatpush1.msra.mxu0 0.0
        %4294 = vmatprep.subr.mxu0 0.0
        %4295 = vmatpush1.msra.mxu0 0.0
        %4296 = vmatprep.subr.mxu0 0.0
        %4297 = vmatpush1.msra.mxu0 0.0
        %4298 = vmatprep.subr.mxu0 0.0
        %4299 = vmatpush1.msra.mxu0 0.0
        %4300 = vmatprep.subr.mxu0 0.0
        %4301 = vmatpush1.msra.mxu0 0.0
        %4302 = vmatprep.subr.mxu0 0.0
        %4303 = vmatpush1.msra.mxu0 0.0
        %4304 = vmatprep.subr.mxu0 0.0
        %4305 = vmatpush1.msra.mxu0 0.0
        %4306 = vmatprep.subr.mxu0 0.0
        %4307 = vmatpush1.msra.mxu0 0.0
        %4308 = vmatprep.subr.mxu0 0.0
        %4309 = vmatpush1.msra.mxu0 0.0
        %4310 = vmatprep.subr.mxu0 0.0
        %4311 = vmatpush1.msra.mxu0 0.0
        %4312 = vmatprep.subr.mxu0 0.0
        %4313 = vmatpush1.msra.mxu0 0.0
        %4314 = vmatprep.mubr.f32.mxu0 0.0
        %4315 = vmatmul.mubr.f32.gmra.mrb[0].mxu0 %v4089
        %v4316 = vpop.f32.mrb[0].mxu0
        %v4317 = vadd.f32 0.0, %v4316
        %v4318 = vpop.f32.mrb[0].mxu0
        %4319 = vdwg.mxu0
        %4320 = vmatprep.subr.mxu0 0.0
        %4321 = vmatpush1.msra.mxu0 %v4242
        %4322 = vmatprep.subr.mxu0 0.0
        %4323 = vmatpush1.msra.mxu0 %v4243
        %4324 = vmatprep.subr.mxu0 0.0
        %4325 = vmatpush1.msra.mxu0 %v4244
        %4326 = vmatprep.subr.mxu0 0.0
        %4327 = vmatpush1.msra.mxu0 %v4245
        %4328 = vmatprep.subr.mxu0 0.0
        %4329 = vmatpush1.msra.mxu0 0.0
        %4330 = vmatprep.subr.mxu0 0.0
        %4331 = vmatpush1.msra.mxu0 0.0
        %4332 = vmatprep.subr.mxu0 0.0
        %4333 = vmatpush1.msra.mxu0 0.0
        %4334 = vmatprep.subr.mxu0 0.0
        %4335 = vmatpush1.msra.mxu0 0.0
        %4336 = vmatprep.subr.mxu0 0.0
        %4337 = vmatpush1.msra.mxu0 0.0
        %4338 = vmatprep.subr.mxu0 0.0
        %4339 = vmatpush1.msra.mxu0 0.0
        %4340 = vmatprep.subr.mxu0 0.0
        %4341 = vmatpush1.msra.mxu0 0.0
        %4342 = vmatprep.subr.mxu0 0.0
        %4343 = vmatpush1.msra.mxu0 0.0
        %4344 = vmatprep.subr.mxu0 0.0
        %4345 = vmatpush1.msra.mxu0 0.0
        %4346 = vmatprep.subr.mxu0 0.0
        %4347 = vmatpush1.msra.mxu0 0.0
        %4348 = vmatprep.subr.mxu0 0.0
        %4349 = vmatpush1.msra.mxu0 0.0
        %4350 = vmatprep.subr.mxu0 0.0
        %4351 = vmatpush1.msra.mxu0 0.0
        %4352 = vmatprep.subr.mxu0 0.0
        %4353 = vmatpush1.msra.mxu0 0.0
        %4354 = vmatprep.subr.mxu0 0.0
        %4355 = vmatpush1.msra.mxu0 0.0
        %4356 = vmatprep.subr.mxu0 0.0
        %4357 = vmatpush1.msra.mxu0 0.0
        %4358 = vmatprep.subr.mxu0 0.0
        %4359 = vmatpush1.msra.mxu0 0.0
        %4360 = vmatprep.subr.mxu0 0.0
        %4361 = vmatpush1.msra.mxu0 0.0
        %4362 = vmatprep.subr.mxu0 0.0
        %4363 = vmatpush1.msra.mxu0 0.0
        %4364 = vmatprep.subr.mxu0 0.0
        %4365 = vmatpush1.msra.mxu0 0.0
        %4366 = vmatprep.subr.mxu0 0.0
        %4367 = vmatpush1.msra.mxu0 0.0
        %4368 = vmatprep.subr.mxu0 0.0
        %4369 = vmatpush1.msra.mxu0 0.0
        %4370 = vmatprep.subr.mxu0 0.0
        %4371 = vmatpush1.msra.mxu0 0.0
        %4372 = vmatprep.subr.mxu0 0.0
        %4373 = vmatpush1.msra.mxu0 0.0
        %4374 = vmatprep.subr.mxu0 0.0
        %4375 = vmatpush1.msra.mxu0 0.0
        %4376 = vmatprep.subr.mxu0 0.0
        %4377 = vmatpush1.msra.mxu0 0.0
        %4378 = vmatprep.subr.mxu0 0.0
        %4379 = vmatpush1.msra.mxu0 0.0
        %4380 = vmatprep.subr.mxu0 0.0
        %4381 = vmatpush1.msra.mxu0 0.0
        %4382 = vmatprep.subr.mxu0 0.0
        %4383 = vmatpush1.msra.mxu0 0.0
        %4384 = vmatprep.mubr.f32.mxu0 0.0
        %4385 = vmatmul.mubr.f32.gmra.mrb[0].mxu0 %v4162
        %v4386 = vpop.f32.mrb[0].mxu0
        %v4387 = vadd.f32 %v4317, %v4386
        %v4388 = vpop.f32.mrb[0].mxu0
        %4389 = vdwg.mxu0
        %v4390 = vld [vmem:[%s1536] sm:$0x1]
        %v4392 = vlaneseq
        %v4393 = vshrl.u32 %v4392, 7
        %v4394 = vsub.s32 0, %v4393
        %v4395 = vrot.slane %v4390, %v4394
        %v4397 = vadd.f32 %v4387, %v4395
        %v4398 = vld [vmem:[%s1545] sm:$0xff]
        %v4399 = vld [vmem:[%s1545 + $0x8] sm:$0xff]
        %v4400 = vld [vmem:[%s1545 + $0x10] sm:$0xff]
        %v4401 = vld [vmem:[%s1545 + $0x18] sm:$0xff]
        %v4402 = vld [vmem:[%s1550] sm:$0xff]
        %v4403 = vld [vmem:[%s1550 + $0x8] sm:$0xff]
        %v4404 = vld [vmem:[%s1550 + $0x10] sm:$0xff]
        %v4405 = vld [vmem:[%s1550 + $0x18] sm:$0xff]
        %4406 = vmatprep.subr.mxu0 0.0
        %4407 = vmatpush1.msra.mxu0 %v4402
        %4408 = vmatprep.subr.mxu0 0.0
        %4409 = vmatpush1.msra.mxu0 %v4403
        %4410 = vmatprep.subr.mxu0 0.0
        %4411 = vmatpush1.msra.mxu0 %v4404
        %4412 = vmatprep.subr.mxu0 0.0
        %4413 = vmatpush1.msra.mxu0 %v4405
        %4414 = vmatprep.subr.mxu0 0.0
        %4415 = vmatpush1.msra.mxu0 0.0
        %4416 = vmatprep.subr.mxu0 0.0
        %4417 = vmatpush1.msra.mxu0 0.0
        %4418 = vmatprep.subr.mxu0 0.0
        %4419 = vmatpush1.msra.mxu0 0.0
        %4420 = vmatprep.subr.mxu0 0.0
        %4421 = vmatpush1.msra.mxu0 0.0
        %4422 = vmatprep.subr.mxu0 0.0
        %4423 = vmatpush1.msra.mxu0 0.0
        %4424 = vmatprep.subr.mxu0 0.0
        %4425 = vmatpush1.msra.mxu0 0.0
        %4426 = vmatprep.subr.mxu0 0.0
        %4427 = vmatpush1.msra.mxu0 0.0
        %4428 = vmatprep.subr.mxu0 0.0
        %4429 = vmatpush1.msra.mxu0 0.0
        %4430 = vmatprep.subr.mxu0 0.0
        %4431 = vmatpush1.msra.mxu0 0.0
        %4432 = vmatprep.subr.mxu0 0.0
        %4433 = vmatpush1.msra.mxu0 0.0
        %4434 = vmatprep.subr.mxu0 0.0
        %4435 = vmatpush1.msra.mxu0 0.0
        %4436 = vmatprep.subr.mxu0 0.0
        %4437 = vmatpush1.msra.mxu0 0.0
        %4438 = vmatprep.subr.mxu0 0.0
        %4439 = vmatpush1.msra.mxu0 0.0
        %4440 = vmatprep.subr.mxu0 0.0
        %4441 = vmatpush1.msra.mxu0 0.0
        %4442 = vmatprep.subr.mxu0 0.0
        %4443 = vmatpush1.msra.mxu0 0.0
        %4444 = vmatprep.subr.mxu0 0.0
        %4445 = vmatpush1.msra.mxu0 0.0
        %4446 = vmatprep.subr.mxu0 0.0
        %4447 = vmatpush1.msra.mxu0 0.0
        %4448 = vmatprep.subr.mxu0 0.0
        %4449 = vmatpush1.msra.mxu0 0.0
        %4450 = vmatprep.subr.mxu0 0.0
        %4451 = vmatpush1.msra.mxu0 0.0
        %4452 = vmatprep.subr.mxu0 0.0
        %4453 = vmatpush1.msra.mxu0 0.0
        %4454 = vmatprep.subr.mxu0 0.0
        %4455 = vmatpush1.msra.mxu0 0.0
        %4456 = vmatprep.subr.mxu0 0.0
        %4457 = vmatpush1.msra.mxu0 0.0
        %4458 = vmatprep.subr.mxu0 0.0
        %4459 = vmatpush1.msra.mxu0 0.0
        %4460 = vmatprep.subr.mxu0 0.0
        %4461 = vmatpush1.msra.mxu0 0.0
        %4462 = vmatprep.subr.mxu0 0.0
        %4463 = vmatpush1.msra.mxu0 0.0
        %4464 = vmatprep.subr.mxu0 0.0
        %4465 = vmatpush1.msra.mxu0 0.0
        %4466 = vmatprep.subr.mxu0 0.0
        %4467 = vmatpush1.msra.mxu0 0.0
        %4468 = vmatprep.subr.mxu0 0.0
        %4469 = vmatpush1.msra.mxu0 0.0
        %4470 = vmatprep.mubr.f32.mxu0 0.0
        %4471 = vmatmul.mubr.f32.gmra.mrb[0].mxu0 %v4089
        %v4472 = vpop.f32.mrb[0].mxu0
        %v4473 = vadd.f32 0.0, %v4472
        %v4474 = vpop.f32.mrb[0].mxu0
        %4475 = vdwg.mxu0
        %4476 = vmatprep.subr.mxu0 0.0
        %4477 = vmatpush1.msra.mxu0 %v4398
        %4478 = vmatprep.subr.mxu0 0.0
        %4479 = vmatpush1.msra.mxu0 %v4399
        %4480 = vmatprep.subr.mxu0 0.0
        %4481 = vmatpush1.msra.mxu0 %v4400
        %4482 = vmatprep.subr.mxu0 0.0
        %4483 = vmatpush1.msra.mxu0 %v4401
        %4484 = vmatprep.subr.mxu0 0.0
        %4485 = vmatpush1.msra.mxu0 0.0
        %4486 = vmatprep.subr.mxu0 0.0
        %4487 = vmatpush1.msra.mxu0 0.0
        %4488 = vmatprep.subr.mxu0 0.0
        %4489 = vmatpush1.msra.mxu0 0.0
        %4490 = vmatprep.subr.mxu0 0.0
        %4491 = vmatpush1.msra.mxu0 0.0
        %4492 = vmatprep.subr.mxu0 0.0
        %4493 = vmatpush1.msra.mxu0 0.0
        %4494 = vmatprep.subr.mxu0 0.0
        %4495 = vmatpush1.msra.mxu0 0.0
        %4496 = vmatprep.subr.mxu0 0.0
        %4497 = vmatpush1.msra.mxu0 0.0
        %4498 = vmatprep.subr.mxu0 0.0
        %4499 = vmatpush1.msra.mxu0 0.0
        %4500 = vmatprep.subr.mxu0 0.0
        %4501 = vmatpush1.msra.mxu0 0.0
        %4502 = vmatprep.subr.mxu0 0.0
        %4503 = vmatpush1.msra.mxu0 0.0
        %4504 = vmatprep.subr.mxu0 0.0
        %4505 = vmatpush1.msra.mxu0 0.0
        %4506 = vmatprep.subr.mxu0 0.0
        %4507 = vmatpush1.msra.mxu0 0.0
        %4508 = vmatprep.subr.mxu0 0.0
        %4509 = vmatpush1.msra.mxu0 0.0
        %4510 = vmatprep.subr.mxu0 0.0
        %4511 = vmatpush1.msra.mxu0 0.0
        %4512 = vmatprep.subr.mxu0 0.0
        %4513 = vmatpush1.msra.mxu0 0.0
        %4514 = vmatprep.subr.mxu0 0.0
        %4515 = vmatpush1.msra.mxu0 0.0
        %4516 = vmatprep.subr.mxu0 0.0
        %4517 = vmatpush1.msra.mxu0 0.0
        %4518 = vmatprep.subr.mxu0 0.0
        %4519 = vmatpush1.msra.mxu0 0.0
        %4520 = vmatprep.subr.mxu0 0.0
        %4521 = vmatpush1.msra.mxu0 0.0
        %4522 = vmatprep.subr.mxu0 0.0
        %4523 = vmatpush1.msra.mxu0 0.0
        %4524 = vmatprep.subr.mxu0 0.0
        %4525 = vmatpush1.msra.mxu0 0.0
        %4526 = vmatprep.subr.mxu0 0.0
        %4527 = vmatpush1.msra.mxu0 0.0
        %4528 = vmatprep.subr.mxu0 0.0
        %4529 = vmatpush1.msra.mxu0 0.0
        %4530 = vmatprep.subr.mxu0 0.0
        %4531 = vmatpush1.msra.mxu0 0.0
        %4532 = vmatprep.subr.mxu0 0.0
        %4533 = vmatpush1.msra.mxu0 0.0
        %4534 = vmatprep.subr.mxu0 0.0
        %4535 = vmatpush1.msra.mxu0 0.0
        %4536 = vmatprep.subr.mxu0 0.0
        %4537 = vmatpush1.msra.mxu0 0.0
        %4538 = vmatprep.subr.mxu0 0.0
        %4539 = vmatpush1.msra.mxu0 0.0
        %4540 = vmatprep.mubr.f32.mxu0 0.0
        %4541 = vmatmul.mubr.f32.gmra.mrb[0].mxu0 %v4162
        %v4542 = vpop.f32.mrb[0].mxu0
        %v4543 = vadd.f32 %v4473, %v4542
        %v4544 = vpop.f32.mrb[0].mxu0
        %4545 = vdwg.mxu0
        %v4546 = vld [vmem:[%s1695] sm:$0x1]
        %v4548 = vlaneseq
        %v4549 = vshrl.u32 %v4548, 7
        %v4550 = vsub.s32 0, %v4549
        %v4551 = vrot.slane %v4546, %v4550
        %v4553 = vadd.f32 %v4543, %v4551
        %v4554 = vld [vmem:[%s1704] sm:$0xff]
        %v4555 = vld [vmem:[%s1704 + $0x8] sm:$0xff]
        %v4556 = vld [vmem:[%s1704 + $0x10] sm:$0xff]
        %v4557 = vld [vmem:[%s1704 + $0x18] sm:$0xff]
        %v4558 = vld [vmem:[%s1709] sm:$0xff]
        %v4559 = vld [vmem:[%s1709 + $0x8] sm:$0xff]
        %v4560 = vld [vmem:[%s1709 + $0x10] sm:$0xff]
        %v4561 = vld [vmem:[%s1709 + $0x18] sm:$0xff]
        %4562 = vmatprep.subr.mxu0 0.0
        %4563 = vmatpush1.msra.mxu0 %v4558
        %4564 = vmatprep.subr.mxu0 0.0
        %4565 = vmatpush1.msra.mxu0 %v4559
        %4566 = vmatprep.subr.mxu0 0.0
        %4567 = vmatpush1.msra.mxu0 %v4560
        %4568 = vmatprep.subr.mxu0 0.0
        %4569 = vmatpush1.msra.mxu0 %v4561
        %4570 = vmatprep.subr.mxu0 0.0
        %4571 = vmatpush1.msra.mxu0 0.0
        %4572 = vmatprep.subr.mxu0 0.0
        %4573 = vmatpush1.msra.mxu0 0.0
        %4574 = vmatprep.subr.mxu0 0.0
        %4575 = vmatpush1.msra.mxu0 0.0
        %4576 = vmatprep.subr.mxu0 0.0
        %4577 = vmatpush1.msra.mxu0 0.0
        %4578 = vmatprep.subr.mxu0 0.0
        %4579 = vmatpush1.msra.mxu0 0.0
        %4580 = vmatprep.subr.mxu0 0.0
        %4581 = vmatpush1.msra.mxu0 0.0
        %4582 = vmatprep.subr.mxu0 0.0
        %4583 = vmatpush1.msra.mxu0 0.0
        %4584 = vmatprep.subr.mxu0 0.0
        %4585 = vmatpush1.msra.mxu0 0.0
        %4586 = vmatprep.subr.mxu0 0.0
        %4587 = vmatpush1.msra.mxu0 0.0
        %4588 = vmatprep.subr.mxu0 0.0
        %4589 = vmatpush1.msra.mxu0 0.0
        %4590 = vmatprep.subr.mxu0 0.0
        %4591 = vmatpush1.msra.mxu0 0.0
        %4592 = vmatprep.subr.mxu0 0.0
        %4593 = vmatpush1.msra.mxu0 0.0
        %4594 = vmatprep.subr.mxu0 0.0
        %4595 = vmatpush1.msra.mxu0 0.0
        %4596 = vmatprep.subr.mxu0 0.0
        %4597 = vmatpush1.msra.mxu0 0.0
        %4598 = vmatprep.subr.mxu0 0.0
        %4599 = vmatpush1.msra.mxu0 0.0
        %4600 = vmatprep.subr.mxu0 0.0
        %4601 = vmatpush1.msra.mxu0 0.0
        %4602 = vmatprep.subr.mxu0 0.0
        %4603 = vmatpush1.msra.mxu0 0.0
        %4604 = vmatprep.subr.mxu0 0.0
        %4605 = vmatpush1.msra.mxu0 0.0
        %4606 = vmatprep.subr.mxu0 0.0
        %4607 = vmatpush1.msra.mxu0 0.0
        %4608 = vmatprep.subr.mxu0 0.0
        %4609 = vmatpush1.msra.mxu0 0.0
        %4610 = vmatprep.subr.mxu0 0.0
        %4611 = vmatpush1.msra.mxu0 0.0
        %4612 = vmatprep.subr.mxu0 0.0
        %4613 = vmatpush1.msra.mxu0 0.0
        %4614 = vmatprep.subr.mxu0 0.0
        %4615 = vmatpush1.msra.mxu0 0.0
        %4616 = vmatprep.subr.mxu0 0.0
        %4617 = vmatpush1.msra.mxu0 0.0
        %4618 = vmatprep.subr.mxu0 0.0
        %4619 = vmatpush1.msra.mxu0 0.0
        %4620 = vmatprep.subr.mxu0 0.0
        %4621 = vmatpush1.msra.mxu0 0.0
        %4622 = vmatprep.subr.mxu0 0.0
        %4623 = vmatpush1.msra.mxu0 0.0
        %4624 = vmatprep.subr.mxu0 0.0
        %4625 = vmatpush1.msra.mxu0 0.0
        %4626 = vmatprep.mubr.f32.mxu0 0.0
        %4627 = vmatmul.mubr.f32.gmra.mrb[0].mxu0 %v4089
        %v4628 = vpop.f32.mrb[0].mxu0
        %v4629 = vadd.f32 0.0, %v4628
        %v4630 = vpop.f32.mrb[0].mxu0
        %4631 = vdwg.mxu0
        %4632 = vmatprep.subr.mxu0 0.0
        %4633 = vmatpush1.msra.mxu0 %v4554
        %4634 = vmatprep.subr.mxu0 0.0
        %4635 = vmatpush1.msra.mxu0 %v4555
        %4636 = vmatprep.subr.mxu0 0.0
        %4637 = vmatpush1.msra.mxu0 %v4556
        %4638 = vmatprep.subr.mxu0 0.0
        %4639 = vmatpush1.msra.mxu0 %v4557
        %4640 = vmatprep.subr.mxu0 0.0
        %4641 = vmatpush1.msra.mxu0 0.0
        %4642 = vmatprep.subr.mxu0 0.0
        %4643 = vmatpush1.msra.mxu0 0.0
        %4644 = vmatprep.subr.mxu0 0.0
        %4645 = vmatpush1.msra.mxu0 0.0
        %4646 = vmatprep.subr.mxu0 0.0
        %4647 = vmatpush1.msra.mxu0 0.0
        %4648 = vmatprep.subr.mxu0 0.0
        %4649 = vmatpush1.msra.mxu0 0.0
        %4650 = vmatprep.subr.mxu0 0.0
        %4651 = vmatpush1.msra.mxu0 0.0
        %4652 = vmatprep.subr.mxu0 0.0
        %4653 = vmatpush1.msra.mxu0 0.0
        %4654 = vmatprep.subr.mxu0 0.0
        %4655 = vmatpush1.msra.mxu0 0.0
        %4656 = vmatprep.subr.mxu0 0.0
        %4657 = vmatpush1.msra.mxu0 0.0
        %4658 = vmatprep.subr.mxu0 0.0
        %4659 = vmatpush1.msra.mxu0 0.0
        %4660 = vmatprep.subr.mxu0 0.0
        %4661 = vmatpush1.msra.mxu0 0.0
        %4662 = vmatprep.subr.mxu0 0.0
        %4663 = vmatpush1.msra.mxu0 0.0
        %4664 = vmatprep.subr.mxu0 0.0
        %4665 = vmatpush1.msra.mxu0 0.0
        %4666 = vmatprep.subr.mxu0 0.0
        %4667 = vmatpush1.msra.mxu0 0.0
        %4668 = vmatprep.subr.mxu0 0.0
        %4669 = vmatpush1.msra.mxu0 0.0
        %4670 = vmatprep.subr.mxu0 0.0
        %4671 = vmatpush1.msra.mxu0 0.0
        %4672 = vmatprep.subr.mxu0 0.0
        %4673 = vmatpush1.msra.mxu0 0.0
        %4674 = vmatprep.subr.mxu0 0.0
        %4675 = vmatpush1.msra.mxu0 0.0
        %4676 = vmatprep.subr.mxu0 0.0
        %4677 = vmatpush1.msra.mxu0 0.0
        %4678 = vmatprep.subr.mxu0 0.0
        %4679 = vmatpush1.msra.mxu0 0.0
        %4680 = vmatprep.subr.mxu0 0.0
        %4681 = vmatpush1.msra.mxu0 0.0
        %4682 = vmatprep.subr.mxu0 0.0
        %4683 = vmatpush1.msra.mxu0 0.0
        %4684 = vmatprep.subr.mxu0 0.0
        %4685 = vmatpush1.msra.mxu0 0.0
        %4686 = vmatprep.subr.mxu0 0.0
        %4687 = vmatpush1.msra.mxu0 0.0
        %4688 = vmatprep.subr.mxu0 0.0
        %4689 = vmatpush1.msra.mxu0 0.0
        %4690 = vmatprep.subr.mxu0 0.0
        %4691 = vmatpush1.msra.mxu0 0.0
        %4692 = vmatprep.subr.mxu0 0.0
        %4693 = vmatpush1.msra.mxu0 0.0
        %4694 = vmatprep.subr.mxu0 0.0
        %4695 = vmatpush1.msra.mxu0 0.0
        %4696 = vmatprep.mubr.f32.mxu0 0.0
        %4697 = vmatmul.mubr.f32.gmra.mrb[0].mxu0 %v4162
        %v4698 = vpop.f32.mrb[0].mxu0
        %v4699 = vadd.f32 %v4629, %v4698
        %v4700 = vpop.f32.mrb[0].mxu0
        %4701 = vdwg.mxu0
        %v4702 = vld [vmem:[%s1854] sm:$0x1]
        %v4704 = vlaneseq
        %v4705 = vshrl.u32 %v4704, 7
        %v4706 = vsub.s32 0, %v4705
        %v4707 = vrot.slane %v4702, %v4706
        %v4709 = vadd.f32 %v4699, %v4707
        %v4710 = vxor.u32 %v4241, 2147483648
        %v4711 = vmul.f32 %v4710, 1.442695
        %v4712 = vpow.pop %v4711
        %v4713 = vadd.f32 %v4712, 1.0
        %v4714 = vrcp.pop %v4713
        %v4715 = vmul.f32 1.0, %v4714
        %v4716 = vxor.u32 %v4397, 2147483648
        %v4717 = vmul.f32 %v4716, 1.442695
        %v4718 = vpow.pop %v4717
        %v4719 = vadd.f32 %v4718, 1.0
        %v4720 = vrcp.pop %v4719
        %v4721 = vmul.f32 1.0, %v4720
        %v4722 = vtanh.pop %v4553
        %v4723 = vxor.u32 %v4709, 2147483648
        %v4724 = vmul.f32 %v4723, 1.442695
        %v4725 = vpow.pop %v4724
        %v4726 = vadd.f32 %v4725, 1.0
        %v4727 = vrcp.pop %v4726
        %v4728 = vmul.f32 1.0, %v4727
        %v4729 = vmul.f32 %v4721, %v4079
        %v4730 = vmul.f32 %v4715, %v4722
        %v4731 = vadd.f32 %v4729, %v4730
        %v4732 = vtanh.pop %v4731
        %v4733 = vmul.f32 %v4728, %v4732
        %4734 = vst.msk [vmem:[%s465] sm:$0x7] %vm1887, %v4733
        %4735 = vst.msk [vmem:[%s1891] sm:$0x7] %vm1887, %v4731
        %v4737 = vsel %vm494, %v4733, 0
        %4739 = vmatprep.subr.mxu0 0.0
        %4740 = vmatpush1.msra.mxu0 %v453
        %4741 = vmatprep.subr.mxu0 0.0
        %4742 = vmatpush1.msra.mxu0 %v454
        %4743 = vmatprep.subr.mxu0 0.0
        %4744 = vmatpush1.msra.mxu0 %v455
        %4745 = vmatprep.subr.mxu0 0.0
        %4746 = vmatpush1.msra.mxu0 %v456
        %4747 = vmatprep.subr.mxu0 0.0
        %4748 = vmatpush1.msra.mxu0 0.0
        %4749 = vmatprep.subr.mxu0 0.0
        %4750 = vmatpush1.msra.mxu0 0.0
        %4751 = vmatprep.subr.mxu0 0.0
        %4752 = vmatpush1.msra.mxu0 0.0
        %4753 = vmatprep.subr.mxu0 0.0
        %4754 = vmatpush1.msra.mxu0 0.0
        %4755 = vmatprep.subr.mxu0 0.0
        %4756 = vmatpush1.msra.mxu0 0.0
        %4757 = vmatprep.subr.mxu0 0.0
        %4758 = vmatpush1.msra.mxu0 0.0
        %4759 = vmatprep.subr.mxu0 0.0
        %4760 = vmatpush1.msra.mxu0 0.0
        %4761 = vmatprep.subr.mxu0 0.0
        %4762 = vmatpush1.msra.mxu0 0.0
        %4763 = vmatprep.subr.mxu0 0.0
        %4764 = vmatpush1.msra.mxu0 0.0
        %4765 = vmatprep.subr.mxu0 0.0
        %4766 = vmatpush1.msra.mxu0 0.0
        %4767 = vmatprep.subr.mxu0 0.0
        %4768 = vmatpush1.msra.mxu0 0.0
        %4769 = vmatprep.subr.mxu0 0.0
        %4770 = vmatpush1.msra.mxu0 0.0
        %4771 = vmatprep.subr.mxu0 0.0
        %4772 = vmatpush1.msra.mxu0 0.0
        %4773 = vmatprep.subr.mxu0 0.0
        %4774 = vmatpush1.msra.mxu0 0.0
        %4775 = vmatprep.subr.mxu0 0.0
        %4776 = vmatpush1.msra.mxu0 0.0
        %4777 = vmatprep.subr.mxu0 0.0
        %4778 = vmatpush1.msra.mxu0 0.0
        %4779 = vmatprep.subr.mxu0 0.0
        %4780 = vmatpush1.msra.mxu0 0.0
        %4781 = vmatprep.subr.mxu0 0.0
        %4782 = vmatpush1.msra.mxu0 0.0
        %4783 = vmatprep.subr.mxu0 0.0
        %4784 = vmatpush1.msra.mxu0 0.0
        %4785 = vmatprep.subr.mxu0 0.0
        %4786 = vmatpush1.msra.mxu0 0.0
        %4787 = vmatprep.subr.mxu0 0.0
        %4788 = vmatpush1.msra.mxu0 0.0
        %4789 = vmatprep.subr.mxu0 0.0
        %4790 = vmatpush1.msra.mxu0 0.0
        %4791 = vmatprep.subr.mxu0 0.0
        %4792 = vmatpush1.msra.mxu0 0.0
        %4793 = vmatprep.subr.mxu0 0.0
        %4794 = vmatpush1.msra.mxu0 0.0
        %4795 = vmatprep.subr.mxu0 0.0
        %4796 = vmatpush1.msra.mxu0 0.0
        %4797 = vmatprep.subr.mxu0 0.0
        %4798 = vmatpush1.msra.mxu0 0.0
        %4799 = vmatprep.subr.mxu0 0.0
        %4800 = vmatpush1.msra.mxu0 0.0
        %4801 = vmatprep.subr.mxu0 0.0
        %4802 = vmatpush1.msra.mxu0 0.0
        %4803 = vmatprep.mubr.f32.mxu0 0.0
        %4804 = vmatmul.mubr.f32.gmra.mrb[0].mxu0 %v4737
        %v4805 = vpop.f32.mrb[0].mxu0
        %v4806 = vadd.f32 %v2553, %v4805
        %v4807 = vpop.f32.mrb[0].mxu0
        %4808 = vdwg.mxu0
        %v4809 = vsel %vm2628, %v4806, -inf
        %4810 = vmax.xlane.f32.xlu0 %v4809
        %v4811 = vpop.xlane.xlu0 %4810
        %v4812 = vsub.f32 %v4806, %v4811
        %v4813 = vmul.f32 %v4812, 1.442695
        %v4814 = vpow.pop %v4813
        %v4815 = vsel %vm2628, %v4814, 0.0
        %4816 = vadd.xlane.f32.xlu0 %v4815
        %v4817 = vpop.xlane.xlu0 %4816
        %v4818 = vrcp.pop %v4817
        %v4819 = vmul.f32 %v4814, %v4818
        %4821 = vrot.lane.b32.xlu0 %v4819, 8
        %v4822 = vpop.permute.xlu0 %4821
        %v4824 = vlaneseq
        %v4825 = vshrl.u32 %v4824, 7
        %v4826 = vsub.s32 %v2644, %v4825
        %v4827 = vrot.slane %v3130, %v4826
        %v4828 = vlaneseq
        %v4829 = vshrl.u32 %v4828, 7
        %v4830 = vsub.s32 %v2649, %v4829
        %v4831 = vrot.slane %v3133, %v4830
        %v4832 = vsel %vm2654, %v4831, %v4827
        %v4833 = vlaneseq
        %v4834 = vshrl.u32 %v4833, 7
        %v4835 = vsub.s32 %v2644, %v4834
        %v4836 = vrot.slane %v3136, %v4835
        %v4837 = vlaneseq
        %v4838 = vshrl.u32 %v4837, 7
        %v4839 = vsub.s32 %v2649, %v4838
        %v4840 = vrot.slane %v3139, %v4839
        %v4841 = vsel %vm2654, %v4840, %v4836
        %v4842 = vlaneseq
        %v4843 = vshrl.u32 %v4842, 7
        %v4844 = vsub.s32 %v2644, %v4843
        %v4845 = vrot.slane %v3142, %v4844
        %v4846 = vlaneseq
        %v4847 = vshrl.u32 %v4846, 7
        %v4848 = vsub.s32 %v2649, %v4847
        %v4849 = vrot.slane %v3145, %v4848
        %v4850 = vsel %vm2654, %v4849, %v4845
        %v4851 = vsel %vm752, %v4841, %v4832
        %v4852 = vsel %vm754, %v4850, %v4851
        %v4854 = vsel %vm2677, %v4806, %v4822
        %v4855 = vsel %vm987, %v4854, %v4852
        %v4856 = vsel %vm494, %v4855, 0.0
        %s4857 = scalar_lea.vmem %s432, 4
        %4858 = vst [vmem:[%s4857] sm:$0x7] %v4856
        %s4859 = scalar_lea.vmem %s371, 48 [#allocation4]
        %v4860 = vld [vmem:[%s4859] sm:$0xf]
        %v4861 = vld [vmem:[%s4859 + $0x4] sm:$0xf]
        %v4862 = vld [vmem:[%s4859 + $0x8] sm:$0xf]
        %v4863 = vld [vmem:[%s4859 + $0xc] sm:$0xf]
        %v4864 = vld [vmem:[%s4859 + $0x10] sm:$0xf]
        %v4865 = vld [vmem:[%s4859 + $0x14] sm:$0xf]
        %s4866 = scalar_lea.vmem %s426, 8
        %v4867 = vld [vmem:[%s4866] sm:$0x7]
        %v4868 = vld [vmem:[%s465] sm:$0x7]
        %v4875 = vunpack.c.l.b16 %v4860
        %v4876 = vunpack.c.l.b16 %v4861
        %v4877 = vunpack.c.l.b16 %v4862
        %v4878 = vunpack.c.l.b16 %v4863
        %v4879 = vunpack.c.l.b16 %v4864
        %v4880 = vunpack.c.l.b16 %v4865
        %v4881 = vpack.c.b16 %v4876, %v4875
        %v4882 = vpack.c.b16 %v4878, %v4877
        %v4883 = vpack.c.b16 %v4880, %v4879
        %v4885 = vsel %vm494, %v4881, 0
        %v4888 = vsel %vm494, %v4882, 0
        %v4891 = vsel %vm494, %v4883, 0
        %4893 = vmatprep.subr.bf16.mxu0 0
        %4894 = vmatpush1.bf16.msra.mxu0 %v490
        %4895 = vmatprep.subr.bf16.mxu0 0
        %4896 = vmatpush1.bf16.msra.mxu0 %v491
        %4897 = vmatprep.subr.bf16.mxu0 0
        %4898 = vmatpush1.bf16.msra.mxu0 0
        %4899 = vmatprep.subr.bf16.mxu0 0
        %4900 = vmatpush1.bf16.msra.mxu0 0
        %4901 = vmatprep.subr.bf16.mxu0 0
        %4902 = vmatpush1.bf16.msra.mxu0 0
        %4903 = vmatprep.subr.bf16.mxu0 0
        %4904 = vmatpush1.bf16.msra.mxu0 0
        %4905 = vmatprep.subr.bf16.mxu0 0
        %4906 = vmatpush1.bf16.msra.mxu0 0
        %4907 = vmatprep.subr.bf16.mxu0 0
        %4908 = vmatpush1.bf16.msra.mxu0 0
        %4909 = vmatprep.subr.bf16.mxu0 0
        %4910 = vmatpush1.bf16.msra.mxu0 0
        %4911 = vmatprep.subr.bf16.mxu0 0
        %4912 = vmatpush1.bf16.msra.mxu0 0
        %4913 = vmatprep.subr.bf16.mxu0 0
        %4914 = vmatpush1.bf16.msra.mxu0 0
        %4915 = vmatprep.subr.bf16.mxu0 0
        %4916 = vmatpush1.bf16.msra.mxu0 0
        %4917 = vmatprep.subr.bf16.mxu0 0
        %4918 = vmatpush1.bf16.msra.mxu0 0
        %4919 = vmatprep.subr.bf16.mxu0 0
        %4920 = vmatpush1.bf16.msra.mxu0 0
        %4921 = vmatprep.subr.bf16.mxu0 0
        %4922 = vmatpush1.bf16.msra.mxu0 0
        %4923 = vmatprep.subr.bf16.mxu0 0
        %4924 = vmatpush1.bf16.msra.mxu0 0
        %4925 = vmatprep.mubr.bf16.mxu0 0
        %4926 = vmatmul.mubr.bf16.gmra.mrb[0].mxu0 %v4885
        %v4927 = vpop.f32.mrb[0].mxu0
        %v4928 = vadd.f32 0.0, %v4927
        %v4929 = vpop.f32.mrb[0].mxu0
        %v4930 = vpop.f32.mrb[0].mxu0
        %v4931 = vadd.f32 0.0, %v4930
        %v4932 = vpop.f32.mrb[0].mxu0
        %4933 = vmatprep.mubr.bf16.mxu0 0
        %4934 = vmatmul.mubr.bf16.gmra.mrb[0].mxu0 %v4888
        %v4935 = vpop.f32.mrb[0].mxu0
        %v4936 = vadd.f32 0.0, %v4935
        %v4937 = vpop.f32.mrb[0].mxu0
        %v4938 = vpop.f32.mrb[0].mxu0
        %v4939 = vadd.f32 0.0, %v4938
        %v4940 = vpop.f32.mrb[0].mxu0
        %4941 = vmatprep.mubr.bf16.mxu0 0
        %4942 = vmatmul.mubr.bf16.gmra.mrb[0].mxu0 %v4891
        %v4943 = vpop.f32.mrb[0].mxu0
        %v4944 = vadd.f32 0.0, %v4943
        %v4945 = vpop.f32.mrb[0].mxu0
        %v4946 = vpop.f32.mrb[0].mxu0
        %v4947 = vadd.f32 0.0, %v4946
        %v4948 = vpop.f32.mrb[0].mxu0
        %4949 = vdwg.mxu0
        %v4951 = vsel %vm494, %v4868, 0
        %4953 = vmatprep.subr.mxu0 0.0
        %4954 = vmatpush1.msra.mxu0 %v448
        %4955 = vmatprep.subr.mxu0 0.0
        %4956 = vmatpush1.msra.mxu0 %v449
        %4957 = vmatprep.subr.mxu0 0.0
        %4958 = vmatpush1.msra.mxu0 %v450
        %4959 = vmatprep.subr.mxu0 0.0
        %4960 = vmatpush1.msra.mxu0 %v451
        %4961 = vmatprep.subr.mxu0 0.0
        %4962 = vmatpush1.msra.mxu0 0.0
        %4963 = vmatprep.subr.mxu0 0.0
        %4964 = vmatpush1.msra.mxu0 0.0
        %4965 = vmatprep.subr.mxu0 0.0
        %4966 = vmatpush1.msra.mxu0 0.0
        %4967 = vmatprep.subr.mxu0 0.0
        %4968 = vmatpush1.msra.mxu0 0.0
        %4969 = vmatprep.subr.mxu0 0.0
        %4970 = vmatpush1.msra.mxu0 0.0
        %4971 = vmatprep.subr.mxu0 0.0
        %4972 = vmatpush1.msra.mxu0 0.0
        %4973 = vmatprep.subr.mxu0 0.0
        %4974 = vmatpush1.msra.mxu0 0.0
        %4975 = vmatprep.subr.mxu0 0.0
        %4976 = vmatpush1.msra.mxu0 0.0
        %4977 = vmatprep.subr.mxu0 0.0
        %4978 = vmatpush1.msra.mxu0 0.0
        %4979 = vmatprep.subr.mxu0 0.0
        %4980 = vmatpush1.msra.mxu0 0.0
        %4981 = vmatprep.subr.mxu0 0.0
        %4982 = vmatpush1.msra.mxu0 0.0
        %4983 = vmatprep.subr.mxu0 0.0
        %4984 = vmatpush1.msra.mxu0 0.0
        %4985 = vmatprep.subr.mxu0 0.0
        %4986 = vmatpush1.msra.mxu0 0.0
        %4987 = vmatprep.subr.mxu0 0.0
        %4988 = vmatpush1.msra.mxu0 0.0
        %4989 = vmatprep.subr.mxu0 0.0
        %4990 = vmatpush1.msra.mxu0 0.0
        %4991 = vmatprep.subr.mxu0 0.0
        %4992 = vmatpush1.msra.mxu0 0.0
        %4993 = vmatprep.subr.mxu0 0.0
        %4994 = vmatpush1.msra.mxu0 0.0
        %4995 = vmatprep.subr.mxu0 0.0
        %4996 = vmatpush1.msra.mxu0 0.0
        %4997 = vmatprep.subr.mxu0 0.0
        %4998 = vmatpush1.msra.mxu0 0.0
        %4999 = vmatprep.subr.mxu0 0.0
        %5000 = vmatpush1.msra.mxu0 0.0
        %5001 = vmatprep.subr.mxu0 0.0
        %5002 = vmatpush1.msra.mxu0 0.0
        %5003 = vmatprep.subr.mxu0 0.0
        %5004 = vmatpush1.msra.mxu0 0.0
        %5005 = vmatprep.subr.mxu0 0.0
        %5006 = vmatpush1.msra.mxu0 0.0
        %5007 = vmatprep.subr.mxu0 0.0
        %5008 = vmatpush1.msra.mxu0 0.0
        %5009 = vmatprep.subr.mxu0 0.0
        %5010 = vmatpush1.msra.mxu0 0.0
        %5011 = vmatprep.subr.mxu0 0.0
        %5012 = vmatpush1.msra.mxu0 0.0
        %5013 = vmatprep.subr.mxu0 0.0
        %5014 = vmatpush1.msra.mxu0 0.0
        %5015 = vmatprep.subr.mxu0 0.0
        %5016 = vmatpush1.msra.mxu0 0.0
        %5017 = vmatprep.mubr.f32.mxu0 0.0
        %5018 = vmatmul.mubr.f32.gmra.mrb[0].mxu0 %v4951
        %v5019 = vpop.f32.mrb[0].mxu0
        %v5020 = vadd.f32 0.0, %v5019
        %v5021 = vpop.f32.mrb[0].mxu0
        %5022 = vdwg.mxu0
        %v5025 = vunpack.c.l.s4 1966171168
        %v5026 = vunpack.c.0.s8 %v5025
        %v5027 = vlaneseq
        %v5028 = vshrl.u32 %v5027, 7
        %v5029 = vsub.s32 %v5026, %v5028
        %v5030 = vrot.slane %v5020, %v5029
        %v5031 = vcombine.high %v5030, %v5030
        %v5033 = vunpack.c.l.s4 1966171168
        %v5034 = vunpack.c.0.s8 %v5033
        %v5035 = vlaneseq
        %v5036 = vshrl.u32 %v5035, 7
        %v5037 = vsub.s32 %v5034, %v5036
        %v5038 = vrot.slane %v5030, %v5037
        %v5040 = vunpack.c.l.s4 1966171168
        %v5041 = vunpack.c.0.s8 %v5040
        %v5042 = vlaneseq
        %v5043 = vshrl.u32 %v5042, 7
        %v5044 = vsub.s32 %v5041, %v5043
        %v5045 = vrot.slane %v5031, %v5044
        %v5046 = vcombine.high %v5038, %v5038
        %v5047 = vlaneseq
        %v5048 = vshrl.u32 %v5047, 7
        %v5049 = vsub.s32 0, %v5048
        %v5050 = vrot.slane %v5038, %v5049
        %v5051 = vlaneseq
        %v5052 = vshrl.u32 %v5051, 7
        %v5053 = vsub.s32 0, %v5052
        %v5054 = vrot.slane %v5045, %v5053
        %v5055 = vlaneseq
        %v5056 = vshrl.u32 %v5055, 7
        %v5057 = vsub.s32 0, %v5056
        %v5058 = vrot.slane %v5046, %v5057
        %v5062 = vadd.f32 %v4928, %v5050
        %v5063 = vadd.f32 %v4931, %v5050
        %v5064 = vadd.f32 %v4936, %v5054
        %v5065 = vadd.f32 %v4939, %v5054
        %v5066 = vadd.f32 %v4944, %v5058
        %v5067 = vadd.f32 %v4947, %v5058
        %v5068 = vtanh.pop %v5062
        %v5069 = vtanh.pop %v5063
        %v5070 = vtanh.pop %v5064
        %v5071 = vtanh.pop %v5065
        %v5072 = vtanh.pop %v5066
        %v5073 = vtanh.pop %v5067
        %v5074 = vmul.f32 %v5068, %v689
        %v5075 = vmul.f32 %v5069, %v689
        %v5076 = vmul.f32 %v5070, %v689
        %v5077 = vmul.f32 %v5071, %v689
        %v5078 = vmul.f32 %v5072, %v689
        %v5079 = vmul.f32 %v5073, %v689
        %v5080 = vsel %vm494, %v5074, 0.0
        %5081 = vadd.xlane.f32.xlu0 %v5080
        %v5082 = vpop.xlane.xlu0 %5081
        %v5083 = vsel %vm494, %v5075, 0.0
        %5084 = vadd.xlane.f32.xlu0 %v5083
        %v5085 = vpop.xlane.xlu0 %5084
        %v5086 = vsel %vm494, %v5076, 0.0
        %5087 = vadd.xlane.f32.xlu0 %v5086
        %v5088 = vpop.xlane.xlu0 %5087
        %v5089 = vsel %vm494, %v5077, 0.0
        %5090 = vadd.xlane.f32.xlu0 %v5089
        %v5091 = vpop.xlane.xlu0 %5090
        %v5092 = vsel %vm494, %v5078, 0.0
        %5093 = vadd.xlane.f32.xlu0 %v5092
        %v5094 = vpop.xlane.xlu0 %5093
        %v5095 = vsel %vm494, %v5079, 0.0
        %5096 = vadd.xlane.f32.xlu0 %v5095
        %v5097 = vpop.xlane.xlu0 %5096
        %v5104 = vlaneseq
        %v5105 = vshrl.u32 %v5104, 7
        %v5106 = vsub.s32 %v722, %v5105
        %v5107 = vrot.slane %v5082, %v5106
        %v5108 = vlaneseq
        %v5109 = vshrl.u32 %v5108, 7
        %v5110 = vsub.s32 %v727, %v5109
        %v5111 = vrot.slane %v5085, %v5110
        %v5112 = vsel %vm732, %v5111, %v5107
        %v5113 = vlaneseq
        %v5114 = vshrl.u32 %v5113, 7
        %v5115 = vsub.s32 %v722, %v5114
        %v5116 = vrot.slane %v5088, %v5115
        %v5117 = vlaneseq
        %v5118 = vshrl.u32 %v5117, 7
        %v5119 = vsub.s32 %v727, %v5118
        %v5120 = vrot.slane %v5091, %v5119
        %v5121 = vsel %vm732, %v5120, %v5116
        %v5122 = vlaneseq
        %v5123 = vshrl.u32 %v5122, 7
        %v5124 = vsub.s32 %v722, %v5123
        %v5125 = vrot.slane %v5094, %v5124
        %v5126 = vlaneseq
        %v5127 = vshrl.u32 %v5126, 7
        %v5128 = vsub.s32 %v727, %v5127
        %v5129 = vrot.slane %v5097, %v5128
        %v5130 = vsel %vm732, %v5129, %v5125
        %v5131 = vsel %vm752, %v5121, %v5112
        %v5132 = vsel %vm754, %v5130, %v5131
        %v5134 = vsel %vm757, %v5132, -inf
        %5135 = vmax.xlane.f32.xlu0 %v5134
        %v5136 = vpop.xlane.xlu0 %5135
        %v5138 = vlaneseq
        %v5139 = vshrl.u32 %v5138, 7
        %v5140 = vsub.s32 0, %v5139
        %v5141 = vrot.slane %v5136, %v5140
        %v5142 = vlaneseq
        %v5143 = vshrl.u32 %v5142, 7
        %v5144 = vsub.s32 1, %v5143
        %v5145 = vrot.slane %v5136, %v5144
        %v5146 = vlaneseq
        %v5147 = vshrl.u32 %v5146, 7
        %v5148 = vsub.s32 2, %v5147
        %v5149 = vrot.slane %v5136, %v5148
        %v5153 = vsub.f32 %v5082, %v5141
        %v5154 = vsub.f32 %v5085, %v5141
        %v5155 = vsub.f32 %v5088, %v5145
        %v5156 = vsub.f32 %v5091, %v5145
        %v5157 = vsub.f32 %v5094, %v5149
        %v5158 = vsub.f32 %v5097, %v5149
        %v5159 = vmul.f32 %v5153, 1.442695
        %v5160 = vpow.pop %v5159
        %v5161 = vmul.f32 %v5154, 1.442695
        %v5162 = vpow.pop %v5161
        %v5163 = vmul.f32 %v5155, 1.442695
        %v5164 = vpow.pop %v5163
        %v5165 = vmul.f32 %v5156, 1.442695
        %v5166 = vpow.pop %v5165
        %v5167 = vmul.f32 %v5157, 1.442695
        %v5168 = vpow.pop %v5167
        %v5169 = vmul.f32 %v5158, 1.442695
        %v5170 = vpow.pop %v5169
        %5177 = vset.pattern.permute.xlu0 0
        %5178 = vperm.xlu0 %5177, %v5160
        %v5179 = vpop.permute.xlu0 %5178
        %5180 = vset.pattern.permute.xlu0 0
        %5181 = vperm.xlu0 %5180, %v5162
        %v5182 = vpop.permute.xlu0 %5181
        %5183 = vset.pattern.permute.xlu0 0
        %5184 = vperm.xlu0 %5183, %v5164
        %v5185 = vpop.permute.xlu0 %5184
        %5186 = vset.pattern.permute.xlu0 0
        %5187 = vperm.xlu0 %5186, %v5166
        %v5188 = vpop.permute.xlu0 %5187
        %5189 = vset.pattern.permute.xlu0 0
        %5190 = vperm.xlu0 %5189, %v5168
        %v5191 = vpop.permute.xlu0 %5190
        %5192 = vset.pattern.permute.xlu0 0
        %5193 = vperm.xlu0 %5192, %v5170
        %v5194 = vpop.permute.xlu0 %5193
        %v5195 = vlaneseq
        %v5196 = vshrl.u32 %v5195, 7
        %v5197 = vsub.s32 %v722, %v5196
        %v5198 = vrot.slane %v5179, %v5197
        %v5199 = vlaneseq
        %v5200 = vshrl.u32 %v5199, 7
        %v5201 = vsub.s32 %v727, %v5200
        %v5202 = vrot.slane %v5182, %v5201
        %v5203 = vsel %vm732, %v5202, %v5198
        %v5204 = vlaneseq
        %v5205 = vshrl.u32 %v5204, 7
        %v5206 = vsub.s32 %v722, %v5205
        %v5207 = vrot.slane %v5185, %v5206
        %v5208 = vlaneseq
        %v5209 = vshrl.u32 %v5208, 7
        %v5210 = vsub.s32 %v727, %v5209
        %v5211 = vrot.slane %v5188, %v5210
        %v5212 = vsel %vm732, %v5211, %v5207
        %v5213 = vlaneseq
        %v5214 = vshrl.u32 %v5213, 7
        %v5215 = vsub.s32 %v722, %v5214
        %v5216 = vrot.slane %v5191, %v5215
        %v5217 = vlaneseq
        %v5218 = vshrl.u32 %v5217, 7
        %v5219 = vsub.s32 %v727, %v5218
        %v5220 = vrot.slane %v5194, %v5219
        %v5221 = vsel %vm732, %v5220, %v5216
        %v5222 = vsel %vm752, %v5212, %v5203
        %v5223 = vsel %vm754, %v5221, %v5222
        %v5225 = vsel %vm757, %v5223, 0.0
        %5226 = vadd.xlane.f32.xlu0 %v5225
        %v5227 = vpop.xlane.xlu0 %5226
        %v5229 = vlaneseq
        %v5230 = vshrl.u32 %v5229, 7
        %v5231 = vsub.s32 0, %v5230
        %v5232 = vrot.slane %v5227, %v5231
        %v5233 = vlaneseq
        %v5234 = vshrl.u32 %v5233, 7
        %v5235 = vsub.s32 1, %v5234
        %v5236 = vrot.slane %v5227, %v5235
        %v5237 = vlaneseq
        %v5238 = vshrl.u32 %v5237, 7
        %v5239 = vsub.s32 2, %v5238
        %v5240 = vrot.slane %v5227, %v5239
        %v5244 = vrcp.pop %v5232
        %v5245 = vmul.f32 %v5160, %v5244
        %v5246 = vmul.f32 %v5162, %v5244
        %v5247 = vrcp.pop %v5236
        %v5248 = vmul.f32 %v5164, %v5247
        %v5249 = vmul.f32 %v5166, %v5247
        %v5250 = vrcp.pop %v5240
        %v5251 = vmul.f32 %v5168, %v5250
        %v5252 = vmul.f32 %v5170, %v5250
        %v5254 = vlaneseq
        %v5255 = vshrl.u32 %v5254, 7
        %v5256 = vsub.s32 0, %v5255
        %v5257 = vrot.slane %v4867, %v5256
        %5259 = vbcast.lane.b32.xlu0 %v5257, 256
        %v5260 = vpop.permute.xlu0 %5259
        %s5262 = sor.u32 256, 8
        %5263 = vbcast.lane.b32.xlu0 %v5257, %s5262
        %v5264 = vpop.permute.xlu0 %5263
        %v5265 = vlaneseq
        %v5266 = vshrl.u32 %v5265, 7
        %v5267 = vsub.s32 1, %v5266
        %v5268 = vrot.slane %v4867, %v5267
        %5270 = vbcast.lane.b32.xlu0 %v5268, 256
        %v5271 = vpop.permute.xlu0 %5270
        %s5273 = sor.u32 256, 8
        %5274 = vbcast.lane.b32.xlu0 %v5268, %s5273
        %v5275 = vpop.permute.xlu0 %5274
        %v5276 = vlaneseq
        %v5277 = vshrl.u32 %v5276, 7
        %v5278 = vsub.s32 2, %v5277
        %v5279 = vrot.slane %v4867, %v5278
        %5281 = vbcast.lane.b32.xlu0 %v5279, 256
        %v5282 = vpop.permute.xlu0 %5281
        %s5284 = sor.u32 256, 8
        %5285 = vbcast.lane.b32.xlu0 %v5279, %s5284
        %v5286 = vpop.permute.xlu0 %5285
        %v5293 = vmul.f32 %v5245, %v5260
        %v5294 = vmul.f32 %v5246, %v5264
        %v5295 = vmul.f32 %v5248, %v5271
        %v5296 = vmul.f32 %v5249, %v5275
        %v5297 = vmul.f32 %v5251, %v5282
        %v5298 = vmul.f32 %v5252, %v5286
        %5305 = vset.pattern.permute.xlu0 0
        %5306 = vperm.xlu0 %5305, %v5293
        %v5307 = vpop.permute.xlu0 %5306
        %5308 = vset.pattern.permute.xlu0 0
        %5309 = vperm.xlu0 %5308, %v5294
        %v5310 = vpop.permute.xlu0 %5309
        %5311 = vset.pattern.permute.xlu0 0
        %5312 = vperm.xlu0 %5311, %v5295
        %v5313 = vpop.permute.xlu0 %5312
        %5314 = vset.pattern.permute.xlu0 0
        %5315 = vperm.xlu0 %5314, %v5296
        %v5316 = vpop.permute.xlu0 %5315
        %5317 = vset.pattern.permute.xlu0 0
        %5318 = vperm.xlu0 %5317, %v5297
        %v5319 = vpop.permute.xlu0 %5318
        %5320 = vset.pattern.permute.xlu0 0
        %5321 = vperm.xlu0 %5320, %v5298
        %v5322 = vpop.permute.xlu0 %5321
        %v5323 = vlaneseq
        %v5324 = vshrl.u32 %v5323, 7
        %v5325 = vsub.s32 %v722, %v5324
        %v5326 = vrot.slane %v5307, %v5325
        %v5327 = vlaneseq
        %v5328 = vshrl.u32 %v5327, 7
        %v5329 = vsub.s32 %v727, %v5328
        %v5330 = vrot.slane %v5310, %v5329
        %v5331 = vsel %vm732, %v5330, %v5326
        %v5332 = vlaneseq
        %v5333 = vshrl.u32 %v5332, 7
        %v5334 = vsub.s32 %v722, %v5333
        %v5335 = vrot.slane %v5313, %v5334
        %v5336 = vlaneseq
        %v5337 = vshrl.u32 %v5336, 7
        %v5338 = vsub.s32 %v727, %v5337
        %v5339 = vrot.slane %v5316, %v5338
        %v5340 = vsel %vm732, %v5339, %v5335
        %v5341 = vlaneseq
        %v5342 = vshrl.u32 %v5341, 7
        %v5343 = vsub.s32 %v722, %v5342
        %v5344 = vrot.slane %v5319, %v5343
        %v5345 = vlaneseq
        %v5346 = vshrl.u32 %v5345, 7
        %v5347 = vsub.s32 %v727, %v5346
        %v5348 = vrot.slane %v5322, %v5347
        %v5349 = vsel %vm732, %v5348, %v5344
        %v5350 = vsel %vm752, %v5340, %v5331
        %v5351 = vsel %vm754, %v5349, %v5350
        %v5353 = vsel %vm757, %v5351, 0.0
        %5354 = vadd.xlane.f32.xlu0 %v5353
        %v5355 = vpop.xlane.xlu0 %5354
        %v5356 = vmax.f32 %v5355, 1e-05
        %v5357 = vunpack.c.l.bf16 %v4860
        %v5358 = vunpack.c.l.bf16 %v4861
        %v5359 = vunpack.c.l.bf16 %v4862
        %v5360 = vunpack.c.l.bf16 %v4863
        %v5361 = vunpack.c.l.bf16 %v4864
        %v5362 = vunpack.c.l.bf16 %v4865
        %v5363 = vsel %vm987, %v5331, 0
        %5365 = vmatprep.subr.mxu0 0.0
        %5366 = vmatpush1.msra.mxu0 %v5357
        %5367 = vmatprep.subr.mxu0 0.0
        %5368 = vmatpush1.msra.mxu0 %v5358
        %5369 = vmatprep.subr.mxu0 0.0
        %5370 = vmatpush1.msra.mxu0 0.0
        %5371 = vmatprep.subr.mxu0 0.0
        %5372 = vmatpush1.msra.mxu0 0.0
        %5373 = vmatprep.subr.mxu0 0.0
        %5374 = vmatpush1.msra.mxu0 0.0
        %5375 = vmatprep.subr.mxu0 0.0
        %5376 = vmatpush1.msra.mxu0 0.0
        %5377 = vmatprep.subr.mxu0 0.0
        %5378 = vmatpush1.msra.mxu0 0.0
        %5379 = vmatprep.subr.mxu0 0.0
        %5380 = vmatpush1.msra.mxu0 0.0
        %5381 = vmatprep.subr.mxu0 0.0
        %5382 = vmatpush1.msra.mxu0 0.0
        %5383 = vmatprep.subr.mxu0 0.0
        %5384 = vmatpush1.msra.mxu0 0.0
        %5385 = vmatprep.subr.mxu0 0.0
        %5386 = vmatpush1.msra.mxu0 0.0
        %5387 = vmatprep.subr.mxu0 0.0
        %5388 = vmatpush1.msra.mxu0 0.0
        %5389 = vmatprep.subr.mxu0 0.0
        %5390 = vmatpush1.msra.mxu0 0.0
        %5391 = vmatprep.subr.mxu0 0.0
        %5392 = vmatpush1.msra.mxu0 0.0
        %5393 = vmatprep.subr.mxu0 0.0
        %5394 = vmatpush1.msra.mxu0 0.0
        %5395 = vmatprep.subr.mxu0 0.0
        %5396 = vmatpush1.msra.mxu0 0.0
        %5397 = vmatprep.subr.mxu0 0.0
        %5398 = vmatpush1.msra.mxu0 0.0
        %5399 = vmatprep.subr.mxu0 0.0
        %5400 = vmatpush1.msra.mxu0 0.0
        %5401 = vmatprep.subr.mxu0 0.0
        %5402 = vmatpush1.msra.mxu0 0.0
        %5403 = vmatprep.subr.mxu0 0.0
        %5404 = vmatpush1.msra.mxu0 0.0
        %5405 = vmatprep.subr.mxu0 0.0
        %5406 = vmatpush1.msra.mxu0 0.0
        %5407 = vmatprep.subr.mxu0 0.0
        %5408 = vmatpush1.msra.mxu0 0.0
        %5409 = vmatprep.subr.mxu0 0.0
        %5410 = vmatpush1.msra.mxu0 0.0
        %5411 = vmatprep.subr.mxu0 0.0
        %5412 = vmatpush1.msra.mxu0 0.0
        %5413 = vmatprep.subr.mxu0 0.0
        %5414 = vmatpush1.msra.mxu0 0.0
        %5415 = vmatprep.subr.mxu0 0.0
        %5416 = vmatpush1.msra.mxu0 0.0
        %5417 = vmatprep.subr.mxu0 0.0
        %5418 = vmatpush1.msra.mxu0 0.0
        %5419 = vmatprep.subr.mxu0 0.0
        %5420 = vmatpush1.msra.mxu0 0.0
        %5421 = vmatprep.subr.mxu0 0.0
        %5422 = vmatpush1.msra.mxu0 0.0
        %5423 = vmatprep.subr.mxu0 0.0
        %5424 = vmatpush1.msra.mxu0 0.0
        %5425 = vmatprep.subr.mxu0 0.0
        %5426 = vmatpush1.msra.mxu0 0.0
        %5427 = vmatprep.subr.mxu0 0.0
        %5428 = vmatpush1.msra.mxu0 0.0
        %5429 = vmatprep.mubr.f32.mxu0 0.0
        %5430 = vmatmul.mubr.f32.gmra.mrb[0].mxu0 %v5363
        %v5431 = vpop.f32.mrb[0].mxu0
        %v5432 = vadd.f32 0.0, %v5431
        %v5433 = vpop.f32.mrb[0].mxu0
        %5434 = vdwg.mxu0
        %v5435 = vsel %vm987, %v5340, 0
        %5437 = vmatprep.subr.mxu0 0.0
        %5438 = vmatpush1.msra.mxu0 %v5359
        %5439 = vmatprep.subr.mxu0 0.0
        %5440 = vmatpush1.msra.mxu0 %v5360
        %5441 = vmatprep.subr.mxu0 0.0
        %5442 = vmatpush1.msra.mxu0 0.0
        %5443 = vmatprep.subr.mxu0 0.0
        %5444 = vmatpush1.msra.mxu0 0.0
        %5445 = vmatprep.subr.mxu0 0.0
        %5446 = vmatpush1.msra.mxu0 0.0
        %5447 = vmatprep.subr.mxu0 0.0
        %5448 = vmatpush1.msra.mxu0 0.0
        %5449 = vmatprep.subr.mxu0 0.0
        %5450 = vmatpush1.msra.mxu0 0.0
        %5451 = vmatprep.subr.mxu0 0.0
        %5452 = vmatpush1.msra.mxu0 0.0
        %5453 = vmatprep.subr.mxu0 0.0
        %5454 = vmatpush1.msra.mxu0 0.0
        %5455 = vmatprep.subr.mxu0 0.0
        %5456 = vmatpush1.msra.mxu0 0.0
        %5457 = vmatprep.subr.mxu0 0.0
        %5458 = vmatpush1.msra.mxu0 0.0
        %5459 = vmatprep.subr.mxu0 0.0
        %5460 = vmatpush1.msra.mxu0 0.0
        %5461 = vmatprep.subr.mxu0 0.0
        %5462 = vmatpush1.msra.mxu0 0.0
        %5463 = vmatprep.subr.mxu0 0.0
        %5464 = vmatpush1.msra.mxu0 0.0
        %5465 = vmatprep.subr.mxu0 0.0
        %5466 = vmatpush1.msra.mxu0 0.0
        %5467 = vmatprep.subr.mxu0 0.0
        %5468 = vmatpush1.msra.mxu0 0.0
        %5469 = vmatprep.subr.mxu0 0.0
        %5470 = vmatpush1.msra.mxu0 0.0
        %5471 = vmatprep.subr.mxu0 0.0
        %5472 = vmatpush1.msra.mxu0 0.0
        %5473 = vmatprep.subr.mxu0 0.0
        %5474 = vmatpush1.msra.mxu0 0.0
        %5475 = vmatprep.subr.mxu0 0.0
        %5476 = vmatpush1.msra.mxu0 0.0
        %5477 = vmatprep.subr.mxu0 0.0
        %5478 = vmatpush1.msra.mxu0 0.0
        %5479 = vmatprep.subr.mxu0 0.0
        %5480 = vmatpush1.msra.mxu0 0.0
        %5481 = vmatprep.subr.mxu0 0.0
        %5482 = vmatpush1.msra.mxu0 0.0
        %5483 = vmatprep.subr.mxu0 0.0
        %5484 = vmatpush1.msra.mxu0 0.0
        %5485 = vmatprep.subr.mxu0 0.0
        %5486 = vmatpush1.msra.mxu0 0.0
        %5487 = vmatprep.subr.mxu0 0.0
        %5488 = vmatpush1.msra.mxu0 0.0
        %5489 = vmatprep.subr.mxu0 0.0
        %5490 = vmatpush1.msra.mxu0 0.0
        %5491 = vmatprep.subr.mxu0 0.0
        %5492 = vmatpush1.msra.mxu0 0.0
        %5493 = vmatprep.subr.mxu0 0.0
        %5494 = vmatpush1.msra.mxu0 0.0
        %5495 = vmatprep.subr.mxu0 0.0
        %5496 = vmatpush1.msra.mxu0 0.0
        %5497 = vmatprep.subr.mxu0 0.0
        %5498 = vmatpush1.msra.mxu0 0.0
        %5499 = vmatprep.subr.mxu0 0.0
        %5500 = vmatpush1.msra.mxu0 0.0
        %5501 = vmatprep.mubr.f32.mxu0 0.0
        %5502 = vmatmul.mubr.f32.gmra.mrb[0].mxu0 %v5435
        %v5503 = vpop.f32.mrb[0].mxu0
        %v5504 = vadd.f32 0.0, %v5503
        %v5505 = vpop.f32.mrb[0].mxu0
        %5506 = vdwg.mxu0
        %v5507 = vsel %vm987, %v5349, 0
        %5509 = vmatprep.subr.mxu0 0.0
        %5510 = vmatpush1.msra.mxu0 %v5361
        %5511 = vmatprep.subr.mxu0 0.0
        %5512 = vmatpush1.msra.mxu0 %v5362
        %5513 = vmatprep.subr.mxu0 0.0
        %5514 = vmatpush1.msra.mxu0 0.0
        %5515 = vmatprep.subr.mxu0 0.0
        %5516 = vmatpush1.msra.mxu0 0.0
        %5517 = vmatprep.subr.mxu0 0.0
        %5518 = vmatpush1.msra.mxu0 0.0
        %5519 = vmatprep.subr.mxu0 0.0
        %5520 = vmatpush1.msra.mxu0 0.0
        %5521 = vmatprep.subr.mxu0 0.0
        %5522 = vmatpush1.msra.mxu0 0.0
        %5523 = vmatprep.subr.mxu0 0.0
        %5524 = vmatpush1.msra.mxu0 0.0
        %5525 = vmatprep.subr.mxu0 0.0
        %5526 = vmatpush1.msra.mxu0 0.0
        %5527 = vmatprep.subr.mxu0 0.0
        %5528 = vmatpush1.msra.mxu0 0.0
        %5529 = vmatprep.subr.mxu0 0.0
        %5530 = vmatpush1.msra.mxu0 0.0
        %5531 = vmatprep.subr.mxu0 0.0
        %5532 = vmatpush1.msra.mxu0 0.0
        %5533 = vmatprep.subr.mxu0 0.0
        %5534 = vmatpush1.msra.mxu0 0.0
        %5535 = vmatprep.subr.mxu0 0.0
        %5536 = vmatpush1.msra.mxu0 0.0
        %5537 = vmatprep.subr.mxu0 0.0
        %5538 = vmatpush1.msra.mxu0 0.0
        %5539 = vmatprep.subr.mxu0 0.0
        %5540 = vmatpush1.msra.mxu0 0.0
        %5541 = vmatprep.subr.mxu0 0.0
        %5542 = vmatpush1.msra.mxu0 0.0
        %5543 = vmatprep.subr.mxu0 0.0
        %5544 = vmatpush1.msra.mxu0 0.0
        %5545 = vmatprep.subr.mxu0 0.0
        %5546 = vmatpush1.msra.mxu0 0.0
        %5547 = vmatprep.subr.mxu0 0.0
        %5548 = vmatpush1.msra.mxu0 0.0
        %5549 = vmatprep.subr.mxu0 0.0
        %5550 = vmatpush1.msra.mxu0 0.0
        %5551 = vmatprep.subr.mxu0 0.0
        %5552 = vmatpush1.msra.mxu0 0.0
        %5553 = vmatprep.subr.mxu0 0.0
        %5554 = vmatpush1.msra.mxu0 0.0
        %5555 = vmatprep.subr.mxu0 0.0
        %5556 = vmatpush1.msra.mxu0 0.0
        %5557 = vmatprep.subr.mxu0 0.0
        %5558 = vmatpush1.msra.mxu0 0.0
        %5559 = vmatprep.subr.mxu0 0.0
        %5560 = vmatpush1.msra.mxu0 0.0
        %5561 = vmatprep.subr.mxu0 0.0
        %5562 = vmatpush1.msra.mxu0 0.0
        %5563 = vmatprep.subr.mxu0 0.0
        %5564 = vmatpush1.msra.mxu0 0.0
        %5565 = vmatprep.subr.mxu0 0.0
        %5566 = vmatpush1.msra.mxu0 0.0
        %5567 = vmatprep.subr.mxu0 0.0
        %5568 = vmatpush1.msra.mxu0 0.0
        %5569 = vmatprep.subr.mxu0 0.0
        %5570 = vmatpush1.msra.mxu0 0.0
        %5571 = vmatprep.subr.mxu0 0.0
        %5572 = vmatpush1.msra.mxu0 0.0
        %5573 = vmatprep.mubr.f32.mxu0 0.0
        %5574 = vmatmul.mubr.f32.gmra.mrb[0].mxu0 %v5507
        %v5575 = vpop.f32.mrb[0].mxu0
        %v5576 = vadd.f32 0.0, %v5575
        %v5577 = vpop.f32.mrb[0].mxu0
        %5578 = vdwg.mxu0
        %v5580 = vrot.slane %v5356, 1
        %v5581 = vrot.slane %v5356, 2
        %v5585 = vrcp.pop %v5356
        %v5586 = vmul.f32 %v5432, %v5585
        %v5587 = vrcp.pop %v5580
        %v5588 = vmul.f32 %v5504, %v5587
        %v5589 = vrcp.pop %v5581
        %v5590 = vmul.f32 %v5576, %v5589
        %v5591 = vld [vmem:[#allocation2] sm:$0x7]
        %v5592 = vld [vmem:[#allocation3] sm:$0x7]
        %v5593 = vld [vmem:[#allocation6] sm:$0xff]
        %v5594 = vld [vmem:[#allocation6 + $0x8] sm:$0xff]
        %v5595 = vld [vmem:[#allocation6 + $0x10] sm:$0xff]
        %v5596 = vld [vmem:[#allocation6 + $0x18] sm:$0xff]
        %v5597 = vld [vmem:[#allocation8] sm:$0xff]
        %v5598 = vld [vmem:[#allocation8 + $0x8] sm:$0xff]
        %v5599 = vld [vmem:[#allocation8 + $0x10] sm:$0xff]
        %v5600 = vld [vmem:[#allocation8 + $0x18] sm:$0xff]
        %v5602 = vsel %vm494, %v5591, 0
        %5604 = vmatprep.subr.mxu0 0.0
        %5605 = vmatpush1.msra.mxu0 %v5597
        %5606 = vmatprep.subr.mxu0 0.0
        %5607 = vmatpush1.msra.mxu0 %v5598
        %5608 = vmatprep.subr.mxu0 0.0
        %5609 = vmatpush1.msra.mxu0 %v5599
        %5610 = vmatprep.subr.mxu0 0.0
        %5611 = vmatpush1.msra.mxu0 %v5600
        %5612 = vmatprep.subr.mxu0 0.0
        %5613 = vmatpush1.msra.mxu0 0.0
        %5614 = vmatprep.subr.mxu0 0.0
        %5615 = vmatpush1.msra.mxu0 0.0
        %5616 = vmatprep.subr.mxu0 0.0
        %5617 = vmatpush1.msra.mxu0 0.0
        %5618 = vmatprep.subr.mxu0 0.0
        %5619 = vmatpush1.msra.mxu0 0.0
        %5620 = vmatprep.subr.mxu0 0.0
        %5621 = vmatpush1.msra.mxu0 0.0
        %5622 = vmatprep.subr.mxu0 0.0
        %5623 = vmatpush1.msra.mxu0 0.0
        %5624 = vmatprep.subr.mxu0 0.0
        %5625 = vmatpush1.msra.mxu0 0.0
        %5626 = vmatprep.subr.mxu0 0.0
        %5627 = vmatpush1.msra.mxu0 0.0
        %5628 = vmatprep.subr.mxu0 0.0
        %5629 = vmatpush1.msra.mxu0 0.0
        %5630 = vmatprep.subr.mxu0 0.0
        %5631 = vmatpush1.msra.mxu0 0.0
        %5632 = vmatprep.subr.mxu0 0.0
        %5633 = vmatpush1.msra.mxu0 0.0
        %5634 = vmatprep.subr.mxu0 0.0
        %5635 = vmatpush1.msra.mxu0 0.0
        %5636 = vmatprep.subr.mxu0 0.0
        %5637 = vmatpush1.msra.mxu0 0.0
        %5638 = vmatprep.subr.mxu0 0.0
        %5639 = vmatpush1.msra.mxu0 0.0
        %5640 = vmatprep.subr.mxu0 0.0
        %5641 = vmatpush1.msra.mxu0 0.0
        %5642 = vmatprep.subr.mxu0 0.0
        %5643 = vmatpush1.msra.mxu0 0.0
        %5644 = vmatprep.subr.mxu0 0.0
        %5645 = vmatpush1.msra.mxu0 0.0
        %5646 = vmatprep.subr.mxu0 0.0
        %5647 = vmatpush1.msra.mxu0 0.0
        %5648 = vmatprep.subr.mxu0 0.0
        %5649 = vmatpush1.msra.mxu0 0.0
        %5650 = vmatprep.subr.mxu0 0.0
        %5651 = vmatpush1.msra.mxu0 0.0
        %5652 = vmatprep.subr.mxu0 0.0
        %5653 = vmatpush1.msra.mxu0 0.0
        %5654 = vmatprep.subr.mxu0 0.0
        %5655 = vmatpush1.msra.mxu0 0.0
        %5656 = vmatprep.subr.mxu0 0.0
        %5657 = vmatpush1.msra.mxu0 0.0
        %5658 = vmatprep.subr.mxu0 0.0
        %5659 = vmatpush1.msra.mxu0 0.0
        %5660 = vmatprep.subr.mxu0 0.0
        %5661 = vmatpush1.msra.mxu0 0.0
        %5662 = vmatprep.subr.mxu0 0.0
        %5663 = vmatpush1.msra.mxu0 0.0
        %5664 = vmatprep.subr.mxu0 0.0
        %5665 = vmatpush1.msra.mxu0 0.0
        %5666 = vmatprep.subr.mxu0 0.0
        %5667 = vmatpush1.msra.mxu0 0.0
        %5668 = vmatprep.mubr.f32.mxu0 0.0
        %5669 = vmatmul.mubr.f32.gmra.mrb[0].mxu0 %v5602
        %v5670 = vpop.f32.mrb[0].mxu0
        %v5671 = vadd.f32 0.0, %v5670
        %v5672 = vpop.f32.mrb[0].mxu0
        %5673 = vdwg.mxu0
        %v5677 = vrot.slane %v5588, 7
        %v5678 = vsel %vm752, %v5677, %v5586
        %v5679 = vrot.slane %v5590, 6
        %v5680 = vsel %vm754, %v5679, %v5678
        %v5681 = vsel %vm494, %v5680, 0
        %5683 = vmatprep.subr.mxu0 0.0
        %5684 = vmatpush1.msra.mxu0 %v5593
        %5685 = vmatprep.subr.mxu0 0.0
        %5686 = vmatpush1.msra.mxu0 %v5594
        %5687 = vmatprep.subr.mxu0 0.0
        %5688 = vmatpush1.msra.mxu0 %v5595
        %5689 = vmatprep.subr.mxu0 0.0
        %5690 = vmatpush1.msra.mxu0 %v5596
        %5691 = vmatprep.subr.mxu0 0.0
        %5692 = vmatpush1.msra.mxu0 0.0
        %5693 = vmatprep.subr.mxu0 0.0
        %5694 = vmatpush1.msra.mxu0 0.0
        %5695 = vmatprep.subr.mxu0 0.0
        %5696 = vmatpush1.msra.mxu0 0.0
        %5697 = vmatprep.subr.mxu0 0.0
        %5698 = vmatpush1.msra.mxu0 0.0
        %5699 = vmatprep.subr.mxu0 0.0
        %5700 = vmatpush1.msra.mxu0 0.0
        %5701 = vmatprep.subr.mxu0 0.0
        %5702 = vmatpush1.msra.mxu0 0.0
        %5703 = vmatprep.subr.mxu0 0.0
        %5704 = vmatpush1.msra.mxu0 0.0
        %5705 = vmatprep.subr.mxu0 0.0
        %5706 = vmatpush1.msra.mxu0 0.0
        %5707 = vmatprep.subr.mxu0 0.0
        %5708 = vmatpush1.msra.mxu0 0.0
        %5709 = vmatprep.subr.mxu0 0.0
        %5710 = vmatpush1.msra.mxu0 0.0
        %5711 = vmatprep.subr.mxu0 0.0
        %5712 = vmatpush1.msra.mxu0 0.0
        %5713 = vmatprep.subr.mxu0 0.0
        %5714 = vmatpush1.msra.mxu0 0.0
        %5715 = vmatprep.subr.mxu0 0.0
        %5716 = vmatpush1.msra.mxu0 0.0
        %5717 = vmatprep.subr.mxu0 0.0
        %5718 = vmatpush1.msra.mxu0 0.0
        %5719 = vmatprep.subr.mxu0 0.0
        %5720 = vmatpush1.msra.mxu0 0.0
        %5721 = vmatprep.subr.mxu0 0.0
        %5722 = vmatpush1.msra.mxu0 0.0
        %5723 = vmatprep.subr.mxu0 0.0
        %5724 = vmatpush1.msra.mxu0 0.0
        %5725 = vmatprep.subr.mxu0 0.0
        %5726 = vmatpush1.msra.mxu0 0.0
        %5727 = vmatprep.subr.mxu0 0.0
        %5728 = vmatpush1.msra.mxu0 0.0
        %5729 = vmatprep.subr.mxu0 0.0
        %5730 = vmatpush1.msra.mxu0 0.0
        %5731 = vmatprep.subr.mxu0 0.0
        %5732 = vmatpush1.msra.mxu0 0.0
        %5733 = vmatprep.subr.mxu0 0.0
        %5734 = vmatpush1.msra.mxu0 0.0
        %5735 = vmatprep.subr.mxu0 0.0
        %5736 = vmatpush1.msra.mxu0 0.0
        %5737 = vmatprep.subr.mxu0 0.0
        %5738 = vmatpush1.msra.mxu0 0.0
        %5739 = vmatprep.subr.mxu0 0.0
        %5740 = vmatpush1.msra.mxu0 0.0
        %5741 = vmatprep.subr.mxu0 0.0
        %5742 = vmatpush1.msra.mxu0 0.0
        %5743 = vmatprep.subr.mxu0 0.0
        %5744 = vmatpush1.msra.mxu0 0.0
        %5745 = vmatprep.subr.mxu0 0.0
        %5746 = vmatpush1.msra.mxu0 0.0
        %5747 = vmatprep.mubr.f32.mxu0 0.0
        %5748 = vmatmul.mubr.f32.gmra.mrb[0].mxu0 %v5681
        %v5749 = vpop.f32.mrb[0].mxu0
        %v5750 = vadd.f32 %v5671, %v5749
        %v5751 = vpop.f32.mrb[0].mxu0
        %5752 = vdwg.mxu0
        %v5753 = vld [vmem:[%s7] sm:$0x1]
        %v5755 = vlaneseq
        %v5756 = vshrl.u32 %v5755, 7
        %v5757 = vsub.s32 0, %v5756
        %v5758 = vrot.slane %v5753, %v5757
        %v5760 = vadd.f32 %v5750, %v5758
        %v5761 = vld [vmem:[%s1386] sm:$0xff]
        %v5762 = vld [vmem:[%s1386 + $0x8] sm:$0xff]
        %v5763 = vld [vmem:[%s1386 + $0x10] sm:$0xff]
        %v5764 = vld [vmem:[%s1386 + $0x18] sm:$0xff]
        %v5765 = vld [vmem:[%s1391] sm:$0xff]
        %v5766 = vld [vmem:[%s1391 + $0x8] sm:$0xff]
        %v5767 = vld [vmem:[%s1391 + $0x10] sm:$0xff]
        %v5768 = vld [vmem:[%s1391 + $0x18] sm:$0xff]
        %5769 = vmatprep.subr.mxu0 0.0
        %5770 = vmatpush1.msra.mxu0 %v5765
        %5771 = vmatprep.subr.mxu0 0.0
        %5772 = vmatpush1.msra.mxu0 %v5766
        %5773 = vmatprep.subr.mxu0 0.0
        %5774 = vmatpush1.msra.mxu0 %v5767
        %5775 = vmatprep.subr.mxu0 0.0
        %5776 = vmatpush1.msra.mxu0 %v5768
        %5777 = vmatprep.subr.mxu0 0.0
        %5778 = vmatpush1.msra.mxu0 0.0
        %5779 = vmatprep.subr.mxu0 0.0
        %5780 = vmatpush1.msra.mxu0 0.0
        %5781 = vmatprep.subr.mxu0 0.0
        %5782 = vmatpush1.msra.mxu0 0.0
        %5783 = vmatprep.subr.mxu0 0.0
        %5784 = vmatpush1.msra.mxu0 0.0
        %5785 = vmatprep.subr.mxu0 0.0
        %5786 = vmatpush1.msra.mxu0 0.0
        %5787 = vmatprep.subr.mxu0 0.0
        %5788 = vmatpush1.msra.mxu0 0.0
        %5789 = vmatprep.subr.mxu0 0.0
        %5790 = vmatpush1.msra.mxu0 0.0
        %5791 = vmatprep.subr.mxu0 0.0
        %5792 = vmatpush1.msra.mxu0 0.0
        %5793 = vmatprep.subr.mxu0 0.0
        %5794 = vmatpush1.msra.mxu0 0.0
        %5795 = vmatprep.subr.mxu0 0.0
        %5796 = vmatpush1.msra.mxu0 0.0
        %5797 = vmatprep.subr.mxu0 0.0
        %5798 = vmatpush1.msra.mxu0 0.0
        %5799 = vmatprep.subr.mxu0 0.0
        %5800 = vmatpush1.msra.mxu0 0.0
        %5801 = vmatprep.subr.mxu0 0.0
        %5802 = vmatpush1.msra.mxu0 0.0
        %5803 = vmatprep.subr.mxu0 0.0
        %5804 = vmatpush1.msra.mxu0 0.0
        %5805 = vmatprep.subr.mxu0 0.0
        %5806 = vmatpush1.msra.mxu0 0.0
        %5807 = vmatprep.subr.mxu0 0.0
        %5808 = vmatpush1.msra.mxu0 0.0
        %5809 = vmatprep.subr.mxu0 0.0
        %5810 = vmatpush1.msra.mxu0 0.0
        %5811 = vmatprep.subr.mxu0 0.0
        %5812 = vmatpush1.msra.mxu0 0.0
        %5813 = vmatprep.subr.mxu0 0.0
        %5814 = vmatpush1.msra.mxu0 0.0
        %5815 = vmatprep.subr.mxu0 0.0
        %5816 = vmatpush1.msra.mxu0 0.0
        %5817 = vmatprep.subr.mxu0 0.0
        %5818 = vmatpush1.msra.mxu0 0.0
        %5819 = vmatprep.subr.mxu0 0.0
        %5820 = vmatpush1.msra.mxu0 0.0
        %5821 = vmatprep.subr.mxu0 0.0
        %5822 = vmatpush1.msra.mxu0 0.0
        %5823 = vmatprep.subr.mxu0 0.0
        %5824 = vmatpush1.msra.mxu0 0.0
        %5825 = vmatprep.subr.mxu0 0.0
        %5826 = vmatpush1.msra.mxu0 0.0
        %5827 = vmatprep.subr.mxu0 0.0
        %5828 = vmatpush1.msra.mxu0 0.0
        %5829 = vmatprep.subr.mxu0 0.0
        %5830 = vmatpush1.msra.mxu0 0.0
        %5831 = vmatprep.subr.mxu0 0.0
        %5832 = vmatpush1.msra.mxu0 0.0
        %5833 = vmatprep.mubr.f32.mxu0 0.0
        %5834 = vmatmul.mubr.f32.gmra.mrb[0].mxu0 %v5602
        %v5835 = vpop.f32.mrb[0].mxu0
        %v5836 = vadd.f32 0.0, %v5835
        %v5837 = vpop.f32.mrb[0].mxu0
        %5838 = vdwg.mxu0
        %5839 = vmatprep.subr.mxu0 0.0
        %5840 = vmatpush1.msra.mxu0 %v5761
        %5841 = vmatprep.subr.mxu0 0.0
        %5842 = vmatpush1.msra.mxu0 %v5762
        %5843 = vmatprep.subr.mxu0 0.0
        %5844 = vmatpush1.msra.mxu0 %v5763
        %5845 = vmatprep.subr.mxu0 0.0
        %5846 = vmatpush1.msra.mxu0 %v5764
        %5847 = vmatprep.subr.mxu0 0.0
        %5848 = vmatpush1.msra.mxu0 0.0
        %5849 = vmatprep.subr.mxu0 0.0
        %5850 = vmatpush1.msra.mxu0 0.0
        %5851 = vmatprep.subr.mxu0 0.0
        %5852 = vmatpush1.msra.mxu0 0.0
        %5853 = vmatprep.subr.mxu0 0.0
        %5854 = vmatpush1.msra.mxu0 0.0
        %5855 = vmatprep.subr.mxu0 0.0
        %5856 = vmatpush1.msra.mxu0 0.0
        %5857 = vmatprep.subr.mxu0 0.0
        %5858 = vmatpush1.msra.mxu0 0.0
        %5859 = vmatprep.subr.mxu0 0.0
        %5860 = vmatpush1.msra.mxu0 0.0
        %5861 = vmatprep.subr.mxu0 0.0
        %5862 = vmatpush1.msra.mxu0 0.0
        %5863 = vmatprep.subr.mxu0 0.0
        %5864 = vmatpush1.msra.mxu0 0.0
        %5865 = vmatprep.subr.mxu0 0.0
        %5866 = vmatpush1.msra.mxu0 0.0
        %5867 = vmatprep.subr.mxu0 0.0
        %5868 = vmatpush1.msra.mxu0 0.0
        %5869 = vmatprep.subr.mxu0 0.0
        %5870 = vmatpush1.msra.mxu0 0.0
        %5871 = vmatprep.subr.mxu0 0.0
        %5872 = vmatpush1.msra.mxu0 0.0
        %5873 = vmatprep.subr.mxu0 0.0
        %5874 = vmatpush1.msra.mxu0 0.0
        %5875 = vmatprep.subr.mxu0 0.0
        %5876 = vmatpush1.msra.mxu0 0.0
        %5877 = vmatprep.subr.mxu0 0.0
        %5878 = vmatpush1.msra.mxu0 0.0
        %5879 = vmatprep.subr.mxu0 0.0
        %5880 = vmatpush1.msra.mxu0 0.0
        %5881 = vmatprep.subr.mxu0 0.0
        %5882 = vmatpush1.msra.mxu0 0.0
        %5883 = vmatprep.subr.mxu0 0.0
        %5884 = vmatpush1.msra.mxu0 0.0
        %5885 = vmatprep.subr.mxu0 0.0
        %5886 = vmatpush1.msra.mxu0 0.0
        %5887 = vmatprep.subr.mxu0 0.0
        %5888 = vmatpush1.msra.mxu0 0.0
        %5889 = vmatprep.subr.mxu0 0.0
        %5890 = vmatpush1.msra.mxu0 0.0
        %5891 = vmatprep.subr.mxu0 0.0
        %5892 = vmatpush1.msra.mxu0 0.0
        %5893 = vmatprep.subr.mxu0 0.0
        %5894 = vmatpush1.msra.mxu0 0.0
        %5895 = vmatprep.subr.mxu0 0.0
        %5896 = vmatpush1.msra.mxu0 0.0
        %5897 = vmatprep.subr.mxu0 0.0
        %5898 = vmatpush1.msra.mxu0 0.0
        %5899 = vmatprep.subr.mxu0 0.0
        %5900 = vmatpush1.msra.mxu0 0.0
        %5901 = vmatprep.subr.mxu0 0.0
        %5902 = vmatpush1.msra.mxu0 0.0
        %5903 = vmatprep.mubr.f32.mxu0 0.0
        %5904 = vmatmul.mubr.f32.gmra.mrb[0].mxu0 %v5681
        %v5905 = vpop.f32.mrb[0].mxu0
        %v5906 = vadd.f32 %v5836, %v5905
        %v5907 = vpop.f32.mrb[0].mxu0
        %5908 = vdwg.mxu0
        %v5909 = vld [vmem:[%s1536] sm:$0x1]
        %v5911 = vlaneseq
        %v5912 = vshrl.u32 %v5911, 7
        %v5913 = vsub.s32 0, %v5912
        %v5914 = vrot.slane %v5909, %v5913
        %v5916 = vadd.f32 %v5906, %v5914
        %v5917 = vld [vmem:[%s1545] sm:$0xff]
        %v5918 = vld [vmem:[%s1545 + $0x8] sm:$0xff]
        %v5919 = vld [vmem:[%s1545 + $0x10] sm:$0xff]
        %v5920 = vld [vmem:[%s1545 + $0x18] sm:$0xff]
        %v5921 = vld [vmem:[%s1550] sm:$0xff]
        %v5922 = vld [vmem:[%s1550 + $0x8] sm:$0xff]
        %v5923 = vld [vmem:[%s1550 + $0x10] sm:$0xff]
        %v5924 = vld [vmem:[%s1550 + $0x18] sm:$0xff]
        %5925 = vmatprep.subr.mxu0 0.0
        %5926 = vmatpush1.msra.mxu0 %v5921
        %5927 = vmatprep.subr.mxu0 0.0
        %5928 = vmatpush1.msra.mxu0 %v5922
        %5929 = vmatprep.subr.mxu0 0.0
        %5930 = vmatpush1.msra.mxu0 %v5923
        %5931 = vmatprep.subr.mxu0 0.0
        %5932 = vmatpush1.msra.mxu0 %v5924
        %5933 = vmatprep.subr.mxu0 0.0
        %5934 = vmatpush1.msra.mxu0 0.0
        %5935 = vmatprep.subr.mxu0 0.0
        %5936 = vmatpush1.msra.mxu0 0.0
        %5937 = vmatprep.subr.mxu0 0.0
        %5938 = vmatpush1.msra.mxu0 0.0
        %5939 = vmatprep.subr.mxu0 0.0
        %5940 = vmatpush1.msra.mxu0 0.0
        %5941 = vmatprep.subr.mxu0 0.0
        %5942 = vmatpush1.msra.mxu0 0.0
        %5943 = vmatprep.subr.mxu0 0.0
        %5944 = vmatpush1.msra.mxu0 0.0
        %5945 = vmatprep.subr.mxu0 0.0
        %5946 = vmatpush1.msra.mxu0 0.0
        %5947 = vmatprep.subr.mxu0 0.0
        %5948 = vmatpush1.msra.mxu0 0.0
        %5949 = vmatprep.subr.mxu0 0.0
        %5950 = vmatpush1.msra.mxu0 0.0
        %5951 = vmatprep.subr.mxu0 0.0
        %5952 = vmatpush1.msra.mxu0 0.0
        %5953 = vmatprep.subr.mxu0 0.0
        %5954 = vmatpush1.msra.mxu0 0.0
        %5955 = vmatprep.subr.mxu0 0.0
        %5956 = vmatpush1.msra.mxu0 0.0
        %5957 = vmatprep.subr.mxu0 0.0
        %5958 = vmatpush1.msra.mxu0 0.0
        %5959 = vmatprep.subr.mxu0 0.0
        %5960 = vmatpush1.msra.mxu0 0.0
        %5961 = vmatprep.subr.mxu0 0.0
        %5962 = vmatpush1.msra.mxu0 0.0
        %5963 = vmatprep.subr.mxu0 0.0
        %5964 = vmatpush1.msra.mxu0 0.0
        %5965 = vmatprep.subr.mxu0 0.0
        %5966 = vmatpush1.msra.mxu0 0.0
        %5967 = vmatprep.subr.mxu0 0.0
        %5968 = vmatpush1.msra.mxu0 0.0
        %5969 = vmatprep.subr.mxu0 0.0
        %5970 = vmatpush1.msra.mxu0 0.0
        %5971 = vmatprep.subr.mxu0 0.0
        %5972 = vmatpush1.msra.mxu0 0.0
        %5973 = vmatprep.subr.mxu0 0.0
        %5974 = vmatpush1.msra.mxu0 0.0
        %5975 = vmatprep.subr.mxu0 0.0
        %5976 = vmatpush1.msra.mxu0 0.0
        %5977 = vmatprep.subr.mxu0 0.0
        %5978 = vmatpush1.msra.mxu0 0.0
        %5979 = vmatprep.subr.mxu0 0.0
        %5980 = vmatpush1.msra.mxu0 0.0
        %5981 = vmatprep.subr.mxu0 0.0
        %5982 = vmatpush1.msra.mxu0 0.0
        %5983 = vmatprep.subr.mxu0 0.0
        %5984 = vmatpush1.msra.mxu0 0.0
        %5985 = vmatprep.subr.mxu0 0.0
        %5986 = vmatpush1.msra.mxu0 0.0
        %5987 = vmatprep.subr.mxu0 0.0
        %5988 = vmatpush1.msra.mxu0 0.0
        %5989 = vmatprep.mubr.f32.mxu0 0.0
        %5990 = vmatmul.mubr.f32.gmra.mrb[0].mxu0 %v5602
        %v5991 = vpop.f32.mrb[0].mxu0
        %v5992 = vadd.f32 0.0, %v5991
        %v5993 = vpop.f32.mrb[0].mxu0
        %5994 = vdwg.mxu0
        %5995 = vmatprep.subr.mxu0 0.0
        %5996 = vmatpush1.msra.mxu0 %v5917
        %5997 = vmatprep.subr.mxu0 0.0
        %5998 = vmatpush1.msra.mxu0 %v5918
        %5999 = vmatprep.subr.mxu0 0.0
        %6000 = vmatpush1.msra.mxu0 %v5919
        %6001 = vmatprep.subr.mxu0 0.0
        %6002 = vmatpush1.msra.mxu0 %v5920
        %6003 = vmatprep.subr.mxu0 0.0
        %6004 = vmatpush1.msra.mxu0 0.0
        %6005 = vmatprep.subr.mxu0 0.0
        %6006 = vmatpush1.msra.mxu0 0.0
        %6007 = vmatprep.subr.mxu0 0.0
        %6008 = vmatpush1.msra.mxu0 0.0
        %6009 = vmatprep.subr.mxu0 0.0
        %6010 = vmatpush1.msra.mxu0 0.0
        %6011 = vmatprep.subr.mxu0 0.0
        %6012 = vmatpush1.msra.mxu0 0.0
        %6013 = vmatprep.subr.mxu0 0.0
        %6014 = vmatpush1.msra.mxu0 0.0
        %6015 = vmatprep.subr.mxu0 0.0
        %6016 = vmatpush1.msra.mxu0 0.0
        %6017 = vmatprep.subr.mxu0 0.0
        %6018 = vmatpush1.msra.mxu0 0.0
        %6019 = vmatprep.subr.mxu0 0.0
        %6020 = vmatpush1.msra.mxu0 0.0
        %6021 = vmatprep.subr.mxu0 0.0
        %6022 = vmatpush1.msra.mxu0 0.0
        %6023 = vmatprep.subr.mxu0 0.0
        %6024 = vmatpush1.msra.mxu0 0.0
        %6025 = vmatprep.subr.mxu0 0.0
        %6026 = vmatpush1.msra.mxu0 0.0
        %6027 = vmatprep.subr.mxu0 0.0
        %6028 = vmatpush1.msra.mxu0 0.0
        %6029 = vmatprep.subr.mxu0 0.0
        %6030 = vmatpush1.msra.mxu0 0.0
        %6031 = vmatprep.subr.mxu0 0.0
        %6032 = vmatpush1.msra.mxu0 0.0
        %6033 = vmatprep.subr.mxu0 0.0
        %6034 = vmatpush1.msra.mxu0 0.0
        %6035 = vmatprep.subr.mxu0 0.0
        %6036 = vmatpush1.msra.mxu0 0.0
        %6037 = vmatprep.subr.mxu0 0.0
        %6038 = vmatpush1.msra.mxu0 0.0
        %6039 = vmatprep.subr.mxu0 0.0
        %6040 = vmatpush1.msra.mxu0 0.0
        %6041 = vmatprep.subr.mxu0 0.0
        %6042 = vmatpush1.msra.mxu0 0.0
        %6043 = vmatprep.subr.mxu0 0.0
        %6044 = vmatpush1.msra.mxu0 0.0
        %6045 = vmatprep.subr.mxu0 0.0
        %6046 = vmatpush1.msra.mxu0 0.0
        %6047 = vmatprep.subr.mxu0 0.0
        %6048 = vmatpush1.msra.mxu0 0.0
        %6049 = vmatprep.subr.mxu0 0.0
        %6050 = vmatpush1.msra.mxu0 0.0
        %6051 = vmatprep.subr.mxu0 0.0
        %6052 = vmatpush1.msra.mxu0 0.0
        %6053 = vmatprep.subr.mxu0 0.0
        %6054 = vmatpush1.msra.mxu0 0.0
        %6055 = vmatprep.subr.mxu0 0.0
        %6056 = vmatpush1.msra.mxu0 0.0
        %6057 = vmatprep.subr.mxu0 0.0
        %6058 = vmatpush1.msra.mxu0 0.0
        %6059 = vmatprep.mubr.f32.mxu0 0.0
        %6060 = vmatmul.mubr.f32.gmra.mrb[0].mxu0 %v5681
        %v6061 = vpop.f32.mrb[0].mxu0
        %v6062 = vadd.f32 %v5992, %v6061
        %v6063 = vpop.f32.mrb[0].mxu0
        %6064 = vdwg.mxu0
        %v6065 = vld [vmem:[%s1695] sm:$0x1]
        %v6067 = vlaneseq
        %v6068 = vshrl.u32 %v6067, 7
        %v6069 = vsub.s32 0, %v6068
        %v6070 = vrot.slane %v6065, %v6069
        %v6072 = vadd.f32 %v6062, %v6070
        %v6073 = vld [vmem:[%s1704] sm:$0xff]
        %v6074 = vld [vmem:[%s1704 + $0x8] sm:$0xff]
        %v6075 = vld [vmem:[%s1704 + $0x10] sm:$0xff]
        %v6076 = vld [vmem:[%s1704 + $0x18] sm:$0xff]
        %v6077 = vld [vmem:[%s1709] sm:$0xff]
        %v6078 = vld [vmem:[%s1709 + $0x8] sm:$0xff]
        %v6079 = vld [vmem:[%s1709 + $0x10] sm:$0xff]
        %v6080 = vld [vmem:[%s1709 + $0x18] sm:$0xff]
        %6081 = vmatprep.subr.mxu0 0.0
        %6082 = vmatpush1.msra.mxu0 %v6077
        %6083 = vmatprep.subr.mxu0 0.0
        %6084 = vmatpush1.msra.mxu0 %v6078
        %6085 = vmatprep.subr.mxu0 0.0
        %6086 = vmatpush1.msra.mxu0 %v6079
        %6087 = vmatprep.subr.mxu0 0.0
        %6088 = vmatpush1.msra.mxu0 %v6080
        %6089 = vmatprep.subr.mxu0 0.0
        %6090 = vmatpush1.msra.mxu0 0.0
        %6091 = vmatprep.subr.mxu0 0.0
        %6092 = vmatpush1.msra.mxu0 0.0
        %6093 = vmatprep.subr.mxu0 0.0
        %6094 = vmatpush1.msra.mxu0 0.0
        %6095 = vmatprep.subr.mxu0 0.0
        %6096 = vmatpush1.msra.mxu0 0.0
        %6097 = vmatprep.subr.mxu0 0.0
        %6098 = vmatpush1.msra.mxu0 0.0
        %6099 = vmatprep.subr.mxu0 0.0
        %6100 = vmatpush1.msra.mxu0 0.0
        %6101 = vmatprep.subr.mxu0 0.0
        %6102 = vmatpush1.msra.mxu0 0.0
        %6103 = vmatprep.subr.mxu0 0.0
        %6104 = vmatpush1.msra.mxu0 0.0
        %6105 = vmatprep.subr.mxu0 0.0
        %6106 = vmatpush1.msra.mxu0 0.0
        %6107 = vmatprep.subr.mxu0 0.0
        %6108 = vmatpush1.msra.mxu0 0.0
        %6109 = vmatprep.subr.mxu0 0.0
        %6110 = vmatpush1.msra.mxu0 0.0
        %6111 = vmatprep.subr.mxu0 0.0
        %6112 = vmatpush1.msra.mxu0 0.0
        %6113 = vmatprep.subr.mxu0 0.0
        %6114 = vmatpush1.msra.mxu0 0.0
        %6115 = vmatprep.subr.mxu0 0.0
        %6116 = vmatpush1.msra.mxu0 0.0
        %6117 = vmatprep.subr.mxu0 0.0
        %6118 = vmatpush1.msra.mxu0 0.0
        %6119 = vmatprep.subr.mxu0 0.0
        %6120 = vmatpush1.msra.mxu0 0.0
        %6121 = vmatprep.subr.mxu0 0.0
        %6122 = vmatpush1.msra.mxu0 0.0
        %6123 = vmatprep.subr.mxu0 0.0
        %6124 = vmatpush1.msra.mxu0 0.0
        %6125 = vmatprep.subr.mxu0 0.0
        %6126 = vmatpush1.msra.mxu0 0.0
        %6127 = vmatprep.subr.mxu0 0.0
        %6128 = vmatpush1.msra.mxu0 0.0
        %6129 = vmatprep.subr.mxu0 0.0
        %6130 = vmatpush1.msra.mxu0 0.0
        %6131 = vmatprep.subr.mxu0 0.0
        %6132 = vmatpush1.msra.mxu0 0.0
        %6133 = vmatprep.subr.mxu0 0.0
        %6134 = vmatpush1.msra.mxu0 0.0
        %6135 = vmatprep.subr.mxu0 0.0
        %6136 = vmatpush1.msra.mxu0 0.0
        %6137 = vmatprep.subr.mxu0 0.0
        %6138 = vmatpush1.msra.mxu0 0.0
        %6139 = vmatprep.subr.mxu0 0.0
        %6140 = vmatpush1.msra.mxu0 0.0
        %6141 = vmatprep.subr.mxu0 0.0
        %6142 = vmatpush1.msra.mxu0 0.0
        %6143 = vmatprep.subr.mxu0 0.0
        %6144 = vmatpush1.msra.mxu0 0.0
        %6145 = vmatprep.mubr.f32.mxu0 0.0
        %6146 = vmatmul.mubr.f32.gmra.mrb[0].mxu0 %v5602
        %v6147 = vpop.f32.mrb[0].mxu0
        %v6148 = vadd.f32 0.0, %v6147
        %v6149 = vpop.f32.mrb[0].mxu0
        %6150 = vdwg.mxu0
        %6151 = vmatprep.subr.mxu0 0.0
        %6152 = vmatpush1.msra.mxu0 %v6073
        %6153 = vmatprep.subr.mxu0 0.0
        %6154 = vmatpush1.msra.mxu0 %v6074
        %6155 = vmatprep.subr.mxu0 0.0
        %6156 = vmatpush1.msra.mxu0 %v6075
        %6157 = vmatprep.subr.mxu0 0.0
        %6158 = vmatpush1.msra.mxu0 %v6076
        %6159 = vmatprep.subr.mxu0 0.0
        %6160 = vmatpush1.msra.mxu0 0.0
        %6161 = vmatprep.subr.mxu0 0.0
        %6162 = vmatpush1.msra.mxu0 0.0
        %6163 = vmatprep.subr.mxu0 0.0
        %6164 = vmatpush1.msra.mxu0 0.0
        %6165 = vmatprep.subr.mxu0 0.0
        %6166 = vmatpush1.msra.mxu0 0.0
        %6167 = vmatprep.subr.mxu0 0.0
        %6168 = vmatpush1.msra.mxu0 0.0
        %6169 = vmatprep.subr.mxu0 0.0
        %6170 = vmatpush1.msra.mxu0 0.0
        %6171 = vmatprep.subr.mxu0 0.0
        %6172 = vmatpush1.msra.mxu0 0.0
        %6173 = vmatprep.subr.mxu0 0.0
        %6174 = vmatpush1.msra.mxu0 0.0
        %6175 = vmatprep.subr.mxu0 0.0
        %6176 = vmatpush1.msra.mxu0 0.0
        %6177 = vmatprep.subr.mxu0 0.0
        %6178 = vmatpush1.msra.mxu0 0.0
        %6179 = vmatprep.subr.mxu0 0.0
        %6180 = vmatpush1.msra.mxu0 0.0
        %6181 = vmatprep.subr.mxu0 0.0
        %6182 = vmatpush1.msra.mxu0 0.0
        %6183 = vmatprep.subr.mxu0 0.0
        %6184 = vmatpush1.msra.mxu0 0.0
        %6185 = vmatprep.subr.mxu0 0.0
        %6186 = vmatpush1.msra.mxu0 0.0
        %6187 = vmatprep.subr.mxu0 0.0
        %6188 = vmatpush1.msra.mxu0 0.0
        %6189 = vmatprep.subr.mxu0 0.0
        %6190 = vmatpush1.msra.mxu0 0.0
        %6191 = vmatprep.subr.mxu0 0.0
        %6192 = vmatpush1.msra.mxu0 0.0
        %6193 = vmatprep.subr.mxu0 0.0
        %6194 = vmatpush1.msra.mxu0 0.0
        %6195 = vmatprep.subr.mxu0 0.0
        %6196 = vmatpush1.msra.mxu0 0.0
        %6197 = vmatprep.subr.mxu0 0.0
        %6198 = vmatpush1.msra.mxu0 0.0
        %6199 = vmatprep.subr.mxu0 0.0
        %6200 = vmatpush1.msra.mxu0 0.0
        %6201 = vmatprep.subr.mxu0 0.0
        %6202 = vmatpush1.msra.mxu0 0.0
        %6203 = vmatprep.subr.mxu0 0.0
        %6204 = vmatpush1.msra.mxu0 0.0
        %6205 = vmatprep.subr.mxu0 0.0
        %6206 = vmatpush1.msra.mxu0 0.0
        %6207 = vmatprep.subr.mxu0 0.0
        %6208 = vmatpush1.msra.mxu0 0.0
        %6209 = vmatprep.subr.mxu0 0.0
        %6210 = vmatpush1.msra.mxu0 0.0
        %6211 = vmatprep.subr.mxu0 0.0
        %6212 = vmatpush1.msra.mxu0 0.0
        %6213 = vmatprep.subr.mxu0 0.0
        %6214 = vmatpush1.msra.mxu0 0.0
        %6215 = vmatprep.mubr.f32.mxu0 0.0
        %6216 = vmatmul.mubr.f32.gmra.mrb[0].mxu0 %v5681
        %v6217 = vpop.f32.mrb[0].mxu0
        %v6218 = vadd.f32 %v6148, %v6217
        %v6219 = vpop.f32.mrb[0].mxu0
        %6220 = vdwg.mxu0
        %v6221 = vld [vmem:[%s1854] sm:$0x1]
        %v6223 = vlaneseq
        %v6224 = vshrl.u32 %v6223, 7
        %v6225 = vsub.s32 0, %v6224
        %v6226 = vrot.slane %v6221, %v6225
        %v6228 = vadd.f32 %v6218, %v6226
        %v6229 = vxor.u32 %v5760, 2147483648
        %v6230 = vmul.f32 %v6229, 1.442695
        %v6231 = vpow.pop %v6230
        %v6232 = vadd.f32 %v6231, 1.0
        %v6233 = vrcp.pop %v6232
        %v6234 = vmul.f32 1.0, %v6233
        %v6235 = vxor.u32 %v5916, 2147483648
        %v6236 = vmul.f32 %v6235, 1.442695
        %v6237 = vpow.pop %v6236
        %v6238 = vadd.f32 %v6237, 1.0
        %v6239 = vrcp.pop %v6238
        %v6240 = vmul.f32 1.0, %v6239
        %v6241 = vtanh.pop %v6072
        %v6242 = vxor.u32 %v6228, 2147483648
        %v6243 = vmul.f32 %v6242, 1.442695
        %v6244 = vpow.pop %v6243
        %v6245 = vadd.f32 %v6244, 1.0
        %v6246 = vrcp.pop %v6245
        %v6247 = vmul.f32 1.0, %v6246
        %v6248 = vmul.f32 %v6240, %v5592
        %v6249 = vmul.f32 %v6234, %v6241
        %v6250 = vadd.f32 %v6248, %v6249
        %v6251 = vtanh.pop %v6250
        %v6252 = vmul.f32 %v6247, %v6251
        %6253 = vst.msk [vmem:[#allocation2] sm:$0x7] %vm1887, %v6252
        %6254 = vst.msk [vmem:[#allocation3] sm:$0x7] %vm1887, %v6250
        %v6255 = vld [vmem:[%s465] sm:$0x7]
        %v6256 = vld [vmem:[%s1891] sm:$0x7]
        %v6257 = vld [vmem:[#allocation6] sm:$0xff]
        %v6258 = vld [vmem:[#allocation6 + $0x8] sm:$0xff]
        %v6259 = vld [vmem:[#allocation6 + $0x10] sm:$0xff]
        %v6260 = vld [vmem:[#allocation6 + $0x18] sm:$0xff]
        %v6261 = vld [vmem:[#allocation8] sm:$0xff]
        %v6262 = vld [vmem:[#allocation8 + $0x8] sm:$0xff]
        %v6263 = vld [vmem:[#allocation8 + $0x10] sm:$0xff]
        %v6264 = vld [vmem:[#allocation8 + $0x18] sm:$0xff]
        %v6266 = vsel %vm494, %v6255, 0
        %6268 = vmatprep.subr.mxu0 0.0
        %6269 = vmatpush1.msra.mxu0 %v6261
        %6270 = vmatprep.subr.mxu0 0.0
        %6271 = vmatpush1.msra.mxu0 %v6262
        %6272 = vmatprep.subr.mxu0 0.0
        %6273 = vmatpush1.msra.mxu0 %v6263
        %6274 = vmatprep.subr.mxu0 0.0
        %6275 = vmatpush1.msra.mxu0 %v6264
        %6276 = vmatprep.subr.mxu0 0.0
        %6277 = vmatpush1.msra.mxu0 0.0
        %6278 = vmatprep.subr.mxu0 0.0
        %6279 = vmatpush1.msra.mxu0 0.0
        %6280 = vmatprep.subr.mxu0 0.0
        %6281 = vmatpush1.msra.mxu0 0.0
        %6282 = vmatprep.subr.mxu0 0.0
        %6283 = vmatpush1.msra.mxu0 0.0
        %6284 = vmatprep.subr.mxu0 0.0
        %6285 = vmatpush1.msra.mxu0 0.0
        %6286 = vmatprep.subr.mxu0 0.0
        %6287 = vmatpush1.msra.mxu0 0.0
        %6288 = vmatprep.subr.mxu0 0.0
        %6289 = vmatpush1.msra.mxu0 0.0
        %6290 = vmatprep.subr.mxu0 0.0
        %6291 = vmatpush1.msra.mxu0 0.0
        %6292 = vmatprep.subr.mxu0 0.0
        %6293 = vmatpush1.msra.mxu0 0.0
        %6294 = vmatprep.subr.mxu0 0.0
        %6295 = vmatpush1.msra.mxu0 0.0
        %6296 = vmatprep.subr.mxu0 0.0
        %6297 = vmatpush1.msra.mxu0 0.0
        %6298 = vmatprep.subr.mxu0 0.0
        %6299 = vmatpush1.msra.mxu0 0.0
        %6300 = vmatprep.subr.mxu0 0.0
        %6301 = vmatpush1.msra.mxu0 0.0
        %6302 = vmatprep.subr.mxu0 0.0
        %6303 = vmatpush1.msra.mxu0 0.0
        %6304 = vmatprep.subr.mxu0 0.0
        %6305 = vmatpush1.msra.mxu0 0.0
        %6306 = vmatprep.subr.mxu0 0.0
        %6307 = vmatpush1.msra.mxu0 0.0
        %6308 = vmatprep.subr.mxu0 0.0
        %6309 = vmatpush1.msra.mxu0 0.0
        %6310 = vmatprep.subr.mxu0 0.0
        %6311 = vmatpush1.msra.mxu0 0.0
        %6312 = vmatprep.subr.mxu0 0.0
        %6313 = vmatpush1.msra.mxu0 0.0
        %6314 = vmatprep.subr.mxu0 0.0
        %6315 = vmatpush1.msra.mxu0 0.0
        %6316 = vmatprep.subr.mxu0 0.0
        %6317 = vmatpush1.msra.mxu0 0.0
        %6318 = vmatprep.subr.mxu0 0.0
        %6319 = vmatpush1.msra.mxu0 0.0
        %6320 = vmatprep.subr.mxu0 0.0
        %6321 = vmatpush1.msra.mxu0 0.0
        %6322 = vmatprep.subr.mxu0 0.0
        %6323 = vmatpush1.msra.mxu0 0.0
        %6324 = vmatprep.subr.mxu0 0.0
        %6325 = vmatpush1.msra.mxu0 0.0
        %6326 = vmatprep.subr.mxu0 0.0
        %6327 = vmatpush1.msra.mxu0 0.0
        %6328 = vmatprep.subr.mxu0 0.0
        %6329 = vmatpush1.msra.mxu0 0.0
        %6330 = vmatprep.subr.mxu0 0.0
        %6331 = vmatpush1.msra.mxu0 0.0
        %6332 = vmatprep.mubr.f32.mxu0 0.0
        %6333 = vmatmul.mubr.f32.gmra.mrb[0].mxu0 %v6266
        %v6334 = vpop.f32.mrb[0].mxu0
        %v6335 = vadd.f32 0.0, %v6334
        %v6336 = vpop.f32.mrb[0].mxu0
        %6337 = vdwg.mxu0
        %v6339 = vsel %vm494, %v6252, 0
        %6341 = vmatprep.subr.mxu0 0.0
        %6342 = vmatpush1.msra.mxu0 %v6257
        %6343 = vmatprep.subr.mxu0 0.0
        %6344 = vmatpush1.msra.mxu0 %v6258
        %6345 = vmatprep.subr.mxu0 0.0
        %6346 = vmatpush1.msra.mxu0 %v6259
        %6347 = vmatprep.subr.mxu0 0.0
        %6348 = vmatpush1.msra.mxu0 %v6260
        %6349 = vmatprep.subr.mxu0 0.0
        %6350 = vmatpush1.msra.mxu0 0.0
        %6351 = vmatprep.subr.mxu0 0.0
        %6352 = vmatpush1.msra.mxu0 0.0
        %6353 = vmatprep.subr.mxu0 0.0
        %6354 = vmatpush1.msra.mxu0 0.0
        %6355 = vmatprep.subr.mxu0 0.0
        %6356 = vmatpush1.msra.mxu0 0.0
        %6357 = vmatprep.subr.mxu0 0.0
        %6358 = vmatpush1.msra.mxu0 0.0
        %6359 = vmatprep.subr.mxu0 0.0
        %6360 = vmatpush1.msra.mxu0 0.0
        %6361 = vmatprep.subr.mxu0 0.0
        %6362 = vmatpush1.msra.mxu0 0.0
        %6363 = vmatprep.subr.mxu0 0.0
        %6364 = vmatpush1.msra.mxu0 0.0
        %6365 = vmatprep.subr.mxu0 0.0
        %6366 = vmatpush1.msra.mxu0 0.0
        %6367 = vmatprep.subr.mxu0 0.0
        %6368 = vmatpush1.msra.mxu0 0.0
        %6369 = vmatprep.subr.mxu0 0.0
        %6370 = vmatpush1.msra.mxu0 0.0
        %6371 = vmatprep.subr.mxu0 0.0
        %6372 = vmatpush1.msra.mxu0 0.0
        %6373 = vmatprep.subr.mxu0 0.0
        %6374 = vmatpush1.msra.mxu0 0.0
        %6375 = vmatprep.subr.mxu0 0.0
        %6376 = vmatpush1.msra.mxu0 0.0
        %6377 = vmatprep.subr.mxu0 0.0
        %6378 = vmatpush1.msra.mxu0 0.0
        %6379 = vmatprep.subr.mxu0 0.0
        %6380 = vmatpush1.msra.mxu0 0.0
        %6381 = vmatprep.subr.mxu0 0.0
        %6382 = vmatpush1.msra.mxu0 0.0
        %6383 = vmatprep.subr.mxu0 0.0
        %6384 = vmatpush1.msra.mxu0 0.0
        %6385 = vmatprep.subr.mxu0 0.0
        %6386 = vmatpush1.msra.mxu0 0.0
        %6387 = vmatprep.subr.mxu0 0.0
        %6388 = vmatpush1.msra.mxu0 0.0
        %6389 = vmatprep.subr.mxu0 0.0
        %6390 = vmatpush1.msra.mxu0 0.0
        %6391 = vmatprep.subr.mxu0 0.0
        %6392 = vmatpush1.msra.mxu0 0.0
        %6393 = vmatprep.subr.mxu0 0.0
        %6394 = vmatpush1.msra.mxu0 0.0
        %6395 = vmatprep.subr.mxu0 0.0
        %6396 = vmatpush1.msra.mxu0 0.0
        %6397 = vmatprep.subr.mxu0 0.0
        %6398 = vmatpush1.msra.mxu0 0.0
        %6399 = vmatprep.subr.mxu0 0.0
        %6400 = vmatpush1.msra.mxu0 0.0
        %6401 = vmatprep.subr.mxu0 0.0
        %6402 = vmatpush1.msra.mxu0 0.0
        %6403 = vmatprep.subr.mxu0 0.0
        %6404 = vmatpush1.msra.mxu0 0.0
        %6405 = vmatprep.mubr.f32.mxu0 0.0
        %6406 = vmatmul.mubr.f32.gmra.mrb[0].mxu0 %v6339
        %v6407 = vpop.f32.mrb[0].mxu0
        %v6408 = vadd.f32 %v6335, %v6407
        %v6409 = vpop.f32.mrb[0].mxu0
        %6410 = vdwg.mxu0
        %v6411 = vld [vmem:[%s7] sm:$0x1]
        %v6413 = vlaneseq
        %v6414 = vshrl.u32 %v6413, 7
        %v6415 = vsub.s32 0, %v6414
        %v6416 = vrot.slane %v6411, %v6415
        %v6418 = vadd.f32 %v6408, %v6416
        %v6419 = vld [vmem:[%s1386] sm:$0xff]
        %v6420 = vld [vmem:[%s1386 + $0x8] sm:$0xff]
        %v6421 = vld [vmem:[%s1386 + $0x10] sm:$0xff]
        %v6422 = vld [vmem:[%s1386 + $0x18] sm:$0xff]
        %v6423 = vld [vmem:[%s1391] sm:$0xff]
        %v6424 = vld [vmem:[%s1391 + $0x8] sm:$0xff]
        %v6425 = vld [vmem:[%s1391 + $0x10] sm:$0xff]
        %v6426 = vld [vmem:[%s1391 + $0x18] sm:$0xff]
        %6427 = vmatprep.subr.mxu0 0.0
        %6428 = vmatpush1.msra.mxu0 %v6423
        %6429 = vmatprep.subr.mxu0 0.0
        %6430 = vmatpush1.msra.mxu0 %v6424
        %6431 = vmatprep.subr.mxu0 0.0
        %6432 = vmatpush1.msra.mxu0 %v6425
        %6433 = vmatprep.subr.mxu0 0.0
        %6434 = vmatpush1.msra.mxu0 %v6426
        %6435 = vmatprep.subr.mxu0 0.0
        %6436 = vmatpush1.msra.mxu0 0.0
        %6437 = vmatprep.subr.mxu0 0.0
        %6438 = vmatpush1.msra.mxu0 0.0
        %6439 = vmatprep.subr.mxu0 0.0
        %6440 = vmatpush1.msra.mxu0 0.0
        %6441 = vmatprep.subr.mxu0 0.0
        %6442 = vmatpush1.msra.mxu0 0.0
        %6443 = vmatprep.subr.mxu0 0.0
        %6444 = vmatpush1.msra.mxu0 0.0
        %6445 = vmatprep.subr.mxu0 0.0
        %6446 = vmatpush1.msra.mxu0 0.0
        %6447 = vmatprep.subr.mxu0 0.0
        %6448 = vmatpush1.msra.mxu0 0.0
        %6449 = vmatprep.subr.mxu0 0.0
        %6450 = vmatpush1.msra.mxu0 0.0
        %6451 = vmatprep.subr.mxu0 0.0
        %6452 = vmatpush1.msra.mxu0 0.0
        %6453 = vmatprep.subr.mxu0 0.0
        %6454 = vmatpush1.msra.mxu0 0.0
        %6455 = vmatprep.subr.mxu0 0.0
        %6456 = vmatpush1.msra.mxu0 0.0
        %6457 = vmatprep.subr.mxu0 0.0
        %6458 = vmatpush1.msra.mxu0 0.0
        %6459 = vmatprep.subr.mxu0 0.0
        %6460 = vmatpush1.msra.mxu0 0.0
        %6461 = vmatprep.subr.mxu0 0.0
        %6462 = vmatpush1.msra.mxu0 0.0
        %6463 = vmatprep.subr.mxu0 0.0
        %6464 = vmatpush1.msra.mxu0 0.0
        %6465 = vmatprep.subr.mxu0 0.0
        %6466 = vmatpush1.msra.mxu0 0.0
        %6467 = vmatprep.subr.mxu0 0.0
        %6468 = vmatpush1.msra.mxu0 0.0
        %6469 = vmatprep.subr.mxu0 0.0
        %6470 = vmatpush1.msra.mxu0 0.0
        %6471 = vmatprep.subr.mxu0 0.0
        %6472 = vmatpush1.msra.mxu0 0.0
        %6473 = vmatprep.subr.mxu0 0.0
        %6474 = vmatpush1.msra.mxu0 0.0
        %6475 = vmatprep.subr.mxu0 0.0
        %6476 = vmatpush1.msra.mxu0 0.0
        %6477 = vmatprep.subr.mxu0 0.0
        %6478 = vmatpush1.msra.mxu0 0.0
        %6479 = vmatprep.subr.mxu0 0.0
        %6480 = vmatpush1.msra.mxu0 0.0
        %6481 = vmatprep.subr.mxu0 0.0
        %6482 = vmatpush1.msra.mxu0 0.0
        %6483 = vmatprep.subr.mxu0 0.0
        %6484 = vmatpush1.msra.mxu0 0.0
        %6485 = vmatprep.subr.mxu0 0.0
        %6486 = vmatpush1.msra.mxu0 0.0
        %6487 = vmatprep.subr.mxu0 0.0
        %6488 = vmatpush1.msra.mxu0 0.0
        %6489 = vmatprep.subr.mxu0 0.0
        %6490 = vmatpush1.msra.mxu0 0.0
        %6491 = vmatprep.mubr.f32.mxu0 0.0
        %6492 = vmatmul.mubr.f32.gmra.mrb[0].mxu0 %v6266
        %v6493 = vpop.f32.mrb[0].mxu0
        %v6494 = vadd.f32 0.0, %v6493
        %v6495 = vpop.f32.mrb[0].mxu0
        %6496 = vdwg.mxu0
        %6497 = vmatprep.subr.mxu0 0.0
        %6498 = vmatpush1.msra.mxu0 %v6419
        %6499 = vmatprep.subr.mxu0 0.0
        %6500 = vmatpush1.msra.mxu0 %v6420
        %6501 = vmatprep.subr.mxu0 0.0
        %6502 = vmatpush1.msra.mxu0 %v6421
        %6503 = vmatprep.subr.mxu0 0.0
        %6504 = vmatpush1.msra.mxu0 %v6422
        %6505 = vmatprep.subr.mxu0 0.0
        %6506 = vmatpush1.msra.mxu0 0.0
        %6507 = vmatprep.subr.mxu0 0.0
        %6508 = vmatpush1.msra.mxu0 0.0
        %6509 = vmatprep.subr.mxu0 0.0
        %6510 = vmatpush1.msra.mxu0 0.0
        %6511 = vmatprep.subr.mxu0 0.0
        %6512 = vmatpush1.msra.mxu0 0.0
        %6513 = vmatprep.subr.mxu0 0.0
        %6514 = vmatpush1.msra.mxu0 0.0
        %6515 = vmatprep.subr.mxu0 0.0
        %6516 = vmatpush1.msra.mxu0 0.0
        %6517 = vmatprep.subr.mxu0 0.0
        %6518 = vmatpush1.msra.mxu0 0.0
        %6519 = vmatprep.subr.mxu0 0.0
        %6520 = vmatpush1.msra.mxu0 0.0
        %6521 = vmatprep.subr.mxu0 0.0
        %6522 = vmatpush1.msra.mxu0 0.0
        %6523 = vmatprep.subr.mxu0 0.0
        %6524 = vmatpush1.msra.mxu0 0.0
        %6525 = vmatprep.subr.mxu0 0.0
        %6526 = vmatpush1.msra.mxu0 0.0
        %6527 = vmatprep.subr.mxu0 0.0
        %6528 = vmatpush1.msra.mxu0 0.0
        %6529 = vmatprep.subr.mxu0 0.0
        %6530 = vmatpush1.msra.mxu0 0.0
        %6531 = vmatprep.subr.mxu0 0.0
        %6532 = vmatpush1.msra.mxu0 0.0
        %6533 = vmatprep.subr.mxu0 0.0
        %6534 = vmatpush1.msra.mxu0 0.0
        %6535 = vmatprep.subr.mxu0 0.0
        %6536 = vmatpush1.msra.mxu0 0.0
        %6537 = vmatprep.subr.mxu0 0.0
        %6538 = vmatpush1.msra.mxu0 0.0
        %6539 = vmatprep.subr.mxu0 0.0
        %6540 = vmatpush1.msra.mxu0 0.0
        %6541 = vmatprep.subr.mxu0 0.0
        %6542 = vmatpush1.msra.mxu0 0.0
        %6543 = vmatprep.subr.mxu0 0.0
        %6544 = vmatpush1.msra.mxu0 0.0
        %6545 = vmatprep.subr.mxu0 0.0
        %6546 = vmatpush1.msra.mxu0 0.0
        %6547 = vmatprep.subr.mxu0 0.0
        %6548 = vmatpush1.msra.mxu0 0.0
        %6549 = vmatprep.subr.mxu0 0.0
        %6550 = vmatpush1.msra.mxu0 0.0
        %6551 = vmatprep.subr.mxu0 0.0
        %6552 = vmatpush1.msra.mxu0 0.0
        %6553 = vmatprep.subr.mxu0 0.0
        %6554 = vmatpush1.msra.mxu0 0.0
        %6555 = vmatprep.subr.mxu0 0.0
        %6556 = vmatpush1.msra.mxu0 0.0
        %6557 = vmatprep.subr.mxu0 0.0
        %6558 = vmatpush1.msra.mxu0 0.0
        %6559 = vmatprep.subr.mxu0 0.0
        %6560 = vmatpush1.msra.mxu0 0.0
        %6561 = vmatprep.mubr.f32.mxu0 0.0
        %6562 = vmatmul.mubr.f32.gmra.mrb[0].mxu0 %v6339
        %v6563 = vpop.f32.mrb[0].mxu0
        %v6564 = vadd.f32 %v6494, %v6563
        %v6565 = vpop.f32.mrb[0].mxu0
        %6566 = vdwg.mxu0
        %v6567 = vld [vmem:[%s1536] sm:$0x1]
        %v6569 = vlaneseq
        %v6570 = vshrl.u32 %v6569, 7
        %v6571 = vsub.s32 0, %v6570
        %v6572 = vrot.slane %v6567, %v6571
        %v6574 = vadd.f32 %v6564, %v6572
        %v6575 = vld [vmem:[%s1545] sm:$0xff]
        %v6576 = vld [vmem:[%s1545 + $0x8] sm:$0xff]
        %v6577 = vld [vmem:[%s1545 + $0x10] sm:$0xff]
        %v6578 = vld [vmem:[%s1545 + $0x18] sm:$0xff]
        %v6579 = vld [vmem:[%s1550] sm:$0xff]
        %v6580 = vld [vmem:[%s1550 + $0x8] sm:$0xff]
        %v6581 = vld [vmem:[%s1550 + $0x10] sm:$0xff]
        %v6582 = vld [vmem:[%s1550 + $0x18] sm:$0xff]
        %6583 = vmatprep.subr.mxu0 0.0
        %6584 = vmatpush1.msra.mxu0 %v6579
        %6585 = vmatprep.subr.mxu0 0.0
        %6586 = vmatpush1.msra.mxu0 %v6580
        %6587 = vmatprep.subr.mxu0 0.0
        %6588 = vmatpush1.msra.mxu0 %v6581
        %6589 = vmatprep.subr.mxu0 0.0
        %6590 = vmatpush1.msra.mxu0 %v6582
        %6591 = vmatprep.subr.mxu0 0.0
        %6592 = vmatpush1.msra.mxu0 0.0
        %6593 = vmatprep.subr.mxu0 0.0
        %6594 = vmatpush1.msra.mxu0 0.0
        %6595 = vmatprep.subr.mxu0 0.0
        %6596 = vmatpush1.msra.mxu0 0.0
        %6597 = vmatprep.subr.mxu0 0.0
        %6598 = vmatpush1.msra.mxu0 0.0
        %6599 = vmatprep.subr.mxu0 0.0
        %6600 = vmatpush1.msra.mxu0 0.0
        %6601 = vmatprep.subr.mxu0 0.0
        %6602 = vmatpush1.msra.mxu0 0.0
        %6603 = vmatprep.subr.mxu0 0.0
        %6604 = vmatpush1.msra.mxu0 0.0
        %6605 = vmatprep.subr.mxu0 0.0
        %6606 = vmatpush1.msra.mxu0 0.0
        %6607 = vmatprep.subr.mxu0 0.0
        %6608 = vmatpush1.msra.mxu0 0.0
        %6609 = vmatprep.subr.mxu0 0.0
        %6610 = vmatpush1.msra.mxu0 0.0
        %6611 = vmatprep.subr.mxu0 0.0
        %6612 = vmatpush1.msra.mxu0 0.0
        %6613 = vmatprep.subr.mxu0 0.0
        %6614 = vmatpush1.msra.mxu0 0.0
        %6615 = vmatprep.subr.mxu0 0.0
        %6616 = vmatpush1.msra.mxu0 0.0
        %6617 = vmatprep.subr.mxu0 0.0
        %6618 = vmatpush1.msra.mxu0 0.0
        %6619 = vmatprep.subr.mxu0 0.0
        %6620 = vmatpush1.msra.mxu0 0.0
        %6621 = vmatprep.subr.mxu0 0.0
        %6622 = vmatpush1.msra.mxu0 0.0
        %6623 = vmatprep.subr.mxu0 0.0
        %6624 = vmatpush1.msra.mxu0 0.0
        %6625 = vmatprep.subr.mxu0 0.0
        %6626 = vmatpush1.msra.mxu0 0.0
        %6627 = vmatprep.subr.mxu0 0.0
        %6628 = vmatpush1.msra.mxu0 0.0
        %6629 = vmatprep.subr.mxu0 0.0
        %6630 = vmatpush1.msra.mxu0 0.0
        %6631 = vmatprep.subr.mxu0 0.0
        %6632 = vmatpush1.msra.mxu0 0.0
        %6633 = vmatprep.subr.mxu0 0.0
        %6634 = vmatpush1.msra.mxu0 0.0
        %6635 = vmatprep.subr.mxu0 0.0
        %6636 = vmatpush1.msra.mxu0 0.0
        %6637 = vmatprep.subr.mxu0 0.0
        %6638 = vmatpush1.msra.mxu0 0.0
        %6639 = vmatprep.subr.mxu0 0.0
        %6640 = vmatpush1.msra.mxu0 0.0
        %6641 = vmatprep.subr.mxu0 0.0
        %6642 = vmatpush1.msra.mxu0 0.0
        %6643 = vmatprep.subr.mxu0 0.0
        %6644 = vmatpush1.msra.mxu0 0.0
        %6645 = vmatprep.subr.mxu0 0.0
        %6646 = vmatpush1.msra.mxu0 0.0
        %6647 = vmatprep.mubr.f32.mxu0 0.0
        %6648 = vmatmul.mubr.f32.gmra.mrb[0].mxu0 %v6266
        %v6649 = vpop.f32.mrb[0].mxu0
        %v6650 = vadd.f32 0.0, %v6649
        %v6651 = vpop.f32.mrb[0].mxu0
        %6652 = vdwg.mxu0
        %6653 = vmatprep.subr.mxu0 0.0
        %6654 = vmatpush1.msra.mxu0 %v6575
        %6655 = vmatprep.subr.mxu0 0.0
        %6656 = vmatpush1.msra.mxu0 %v6576
        %6657 = vmatprep.subr.mxu0 0.0
        %6658 = vmatpush1.msra.mxu0 %v6577
        %6659 = vmatprep.subr.mxu0 0.0
        %6660 = vmatpush1.msra.mxu0 %v6578
        %6661 = vmatprep.subr.mxu0 0.0
        %6662 = vmatpush1.msra.mxu0 0.0
        %6663 = vmatprep.subr.mxu0 0.0
        %6664 = vmatpush1.msra.mxu0 0.0
        %6665 = vmatprep.subr.mxu0 0.0
        %6666 = vmatpush1.msra.mxu0 0.0
        %6667 = vmatprep.subr.mxu0 0.0
        %6668 = vmatpush1.msra.mxu0 0.0
        %6669 = vmatprep.subr.mxu0 0.0
        %6670 = vmatpush1.msra.mxu0 0.0
        %6671 = vmatprep.subr.mxu0 0.0
        %6672 = vmatpush1.msra.mxu0 0.0
        %6673 = vmatprep.subr.mxu0 0.0
        %6674 = vmatpush1.msra.mxu0 0.0
        %6675 = vmatprep.subr.mxu0 0.0
        %6676 = vmatpush1.msra.mxu0 0.0
        %6677 = vmatprep.subr.mxu0 0.0
        %6678 = vmatpush1.msra.mxu0 0.0
        %6679 = vmatprep.subr.mxu0 0.0
        %6680 = vmatpush1.msra.mxu0 0.0
        %6681 = vmatprep.subr.mxu0 0.0
        %6682 = vmatpush1.msra.mxu0 0.0
        %6683 = vmatprep.subr.mxu0 0.0
        %6684 = vmatpush1.msra.mxu0 0.0
        %6685 = vmatprep.subr.mxu0 0.0
        %6686 = vmatpush1.msra.mxu0 0.0
        %6687 = vmatprep.subr.mxu0 0.0
        %6688 = vmatpush1.msra.mxu0 0.0
        %6689 = vmatprep.subr.mxu0 0.0
        %6690 = vmatpush1.msra.mxu0 0.0
        %6691 = vmatprep.subr.mxu0 0.0
        %6692 = vmatpush1.msra.mxu0 0.0
        %6693 = vmatprep.subr.mxu0 0.0
        %6694 = vmatpush1.msra.mxu0 0.0
        %6695 = vmatprep.subr.mxu0 0.0
        %6696 = vmatpush1.msra.mxu0 0.0
        %6697 = vmatprep.subr.mxu0 0.0
        %6698 = vmatpush1.msra.mxu0 0.0
        %6699 = vmatprep.subr.mxu0 0.0
        %6700 = vmatpush1.msra.mxu0 0.0
        %6701 = vmatprep.subr.mxu0 0.0
        %6702 = vmatpush1.msra.mxu0 0.0
        %6703 = vmatprep.subr.mxu0 0.0
        %6704 = vmatpush1.msra.mxu0 0.0
        %6705 = vmatprep.subr.mxu0 0.0
        %6706 = vmatpush1.msra.mxu0 0.0
        %6707 = vmatprep.subr.mxu0 0.0
        %6708 = vmatpush1.msra.mxu0 0.0
        %6709 = vmatprep.subr.mxu0 0.0
        %6710 = vmatpush1.msra.mxu0 0.0
        %6711 = vmatprep.subr.mxu0 0.0
        %6712 = vmatpush1.msra.mxu0 0.0
        %6713 = vmatprep.subr.mxu0 0.0
        %6714 = vmatpush1.msra.mxu0 0.0
        %6715 = vmatprep.subr.mxu0 0.0
        %6716 = vmatpush1.msra.mxu0 0.0
        %6717 = vmatprep.mubr.f32.mxu0 0.0
        %6718 = vmatmul.mubr.f32.gmra.mrb[0].mxu0 %v6339
        %v6719 = vpop.f32.mrb[0].mxu0
        %v6720 = vadd.f32 %v6650, %v6719
        %v6721 = vpop.f32.mrb[0].mxu0
        %6722 = vdwg.mxu0
        %v6723 = vld [vmem:[%s1695] sm:$0x1]
        %v6725 = vlaneseq
        %v6726 = vshrl.u32 %v6725, 7
        %v6727 = vsub.s32 0, %v6726
        %v6728 = vrot.slane %v6723, %v6727
        %v6730 = vadd.f32 %v6720, %v6728
        %v6731 = vld [vmem:[%s1704] sm:$0xff]
        %v6732 = vld [vmem:[%s1704 + $0x8] sm:$0xff]
        %v6733 = vld [vmem:[%s1704 + $0x10] sm:$0xff]
        %v6734 = vld [vmem:[%s1704 + $0x18] sm:$0xff]
        %v6735 = vld [vmem:[%s1709] sm:$0xff]
        %v6736 = vld [vmem:[%s1709 + $0x8] sm:$0xff]
        %v6737 = vld [vmem:[%s1709 + $0x10] sm:$0xff]
        %v6738 = vld [vmem:[%s1709 + $0x18] sm:$0xff]
        %6739 = vmatprep.subr.mxu0 0.0
        %6740 = vmatpush1.msra.mxu0 %v6735
        %6741 = vmatprep.subr.mxu0 0.0
        %6742 = vmatpush1.msra.mxu0 %v6736
        %6743 = vmatprep.subr.mxu0 0.0
        %6744 = vmatpush1.msra.mxu0 %v6737
        %6745 = vmatprep.subr.mxu0 0.0
        %6746 = vmatpush1.msra.mxu0 %v6738
        %6747 = vmatprep.subr.mxu0 0.0
        %6748 = vmatpush1.msra.mxu0 0.0
        %6749 = vmatprep.subr.mxu0 0.0
        %6750 = vmatpush1.msra.mxu0 0.0
        %6751 = vmatprep.subr.mxu0 0.0
        %6752 = vmatpush1.msra.mxu0 0.0
        %6753 = vmatprep.subr.mxu0 0.0
        %6754 = vmatpush1.msra.mxu0 0.0
        %6755 = vmatprep.subr.mxu0 0.0
        %6756 = vmatpush1.msra.mxu0 0.0
        %6757 = vmatprep.subr.mxu0 0.0
        %6758 = vmatpush1.msra.mxu0 0.0
        %6759 = vmatprep.subr.mxu0 0.0
        %6760 = vmatpush1.msra.mxu0 0.0
        %6761 = vmatprep.subr.mxu0 0.0
        %6762 = vmatpush1.msra.mxu0 0.0
        %6763 = vmatprep.subr.mxu0 0.0
        %6764 = vmatpush1.msra.mxu0 0.0
        %6765 = vmatprep.subr.mxu0 0.0
        %6766 = vmatpush1.msra.mxu0 0.0
        %6767 = vmatprep.subr.mxu0 0.0
        %6768 = vmatpush1.msra.mxu0 0.0
        %6769 = vmatprep.subr.mxu0 0.0
        %6770 = vmatpush1.msra.mxu0 0.0
        %6771 = vmatprep.subr.mxu0 0.0
        %6772 = vmatpush1.msra.mxu0 0.0
        %6773 = vmatprep.subr.mxu0 0.0
        %6774 = vmatpush1.msra.mxu0 0.0
        %6775 = vmatprep.subr.mxu0 0.0
        %6776 = vmatpush1.msra.mxu0 0.0
        %6777 = vmatprep.subr.mxu0 0.0
        %6778 = vmatpush1.msra.mxu0 0.0
        %6779 = vmatprep.subr.mxu0 0.0
        %6780 = vmatpush1.msra.mxu0 0.0
        %6781 = vmatprep.subr.mxu0 0.0
        %6782 = vmatpush1.msra.mxu0 0.0
        %6783 = vmatprep.subr.mxu0 0.0
        %6784 = vmatpush1.msra.mxu0 0.0
        %6785 = vmatprep.subr.mxu0 0.0
        %6786 = vmatpush1.msra.mxu0 0.0
        %6787 = vmatprep.subr.mxu0 0.0
        %6788 = vmatpush1.msra.mxu0 0.0
        %6789 = vmatprep.subr.mxu0 0.0
        %6790 = vmatpush1.msra.mxu0 0.0
        %6791 = vmatprep.subr.mxu0 0.0
        %6792 = vmatpush1.msra.mxu0 0.0
        %6793 = vmatprep.subr.mxu0 0.0
        %6794 = vmatpush1.msra.mxu0 0.0
        %6795 = vmatprep.subr.mxu0 0.0
        %6796 = vmatpush1.msra.mxu0 0.0
        %6797 = vmatprep.subr.mxu0 0.0
        %6798 = vmatpush1.msra.mxu0 0.0
        %6799 = vmatprep.subr.mxu0 0.0
        %6800 = vmatpush1.msra.mxu0 0.0
        %6801 = vmatprep.subr.mxu0 0.0
        %6802 = vmatpush1.msra.mxu0 0.0
        %6803 = vmatprep.mubr.f32.mxu0 0.0
        %6804 = vmatmul.mubr.f32.gmra.mrb[0].mxu0 %v6266
        %v6805 = vpop.f32.mrb[0].mxu0
        %v6806 = vadd.f32 0.0, %v6805
        %v6807 = vpop.f32.mrb[0].mxu0
        %6808 = vdwg.mxu0
        %6809 = vmatprep.subr.mxu0 0.0
        %6810 = vmatpush1.msra.mxu0 %v6731
        %6811 = vmatprep.subr.mxu0 0.0
        %6812 = vmatpush1.msra.mxu0 %v6732
        %6813 = vmatprep.subr.mxu0 0.0
        %6814 = vmatpush1.msra.mxu0 %v6733
        %6815 = vmatprep.subr.mxu0 0.0
        %6816 = vmatpush1.msra.mxu0 %v6734
        %6817 = vmatprep.subr.mxu0 0.0
        %6818 = vmatpush1.msra.mxu0 0.0
        %6819 = vmatprep.subr.mxu0 0.0
        %6820 = vmatpush1.msra.mxu0 0.0
        %6821 = vmatprep.subr.mxu0 0.0
        %6822 = vmatpush1.msra.mxu0 0.0
        %6823 = vmatprep.subr.mxu0 0.0
        %6824 = vmatpush1.msra.mxu0 0.0
        %6825 = vmatprep.subr.mxu0 0.0
        %6826 = vmatpush1.msra.mxu0 0.0
        %6827 = vmatprep.subr.mxu0 0.0
        %6828 = vmatpush1.msra.mxu0 0.0
        %6829 = vmatprep.subr.mxu0 0.0
        %6830 = vmatpush1.msra.mxu0 0.0
        %6831 = vmatprep.subr.mxu0 0.0
        %6832 = vmatpush1.msra.mxu0 0.0
        %6833 = vmatprep.subr.mxu0 0.0
        %6834 = vmatpush1.msra.mxu0 0.0
        %6835 = vmatprep.subr.mxu0 0.0
        %6836 = vmatpush1.msra.mxu0 0.0
        %6837 = vmatprep.subr.mxu0 0.0
        %6838 = vmatpush1.msra.mxu0 0.0
        %6839 = vmatprep.subr.mxu0 0.0
        %6840 = vmatpush1.msra.mxu0 0.0
        %6841 = vmatprep.subr.mxu0 0.0
        %6842 = vmatpush1.msra.mxu0 0.0
        %6843 = vmatprep.subr.mxu0 0.0
        %6844 = vmatpush1.msra.mxu0 0.0
        %6845 = vmatprep.subr.mxu0 0.0
        %6846 = vmatpush1.msra.mxu0 0.0
        %6847 = vmatprep.subr.mxu0 0.0
        %6848 = vmatpush1.msra.mxu0 0.0
        %6849 = vmatprep.subr.mxu0 0.0
        %6850 = vmatpush1.msra.mxu0 0.0
        %6851 = vmatprep.subr.mxu0 0.0
        %6852 = vmatpush1.msra.mxu0 0.0
        %6853 = vmatprep.subr.mxu0 0.0
        %6854 = vmatpush1.msra.mxu0 0.0
        %6855 = vmatprep.subr.mxu0 0.0
        %6856 = vmatpush1.msra.mxu0 0.0
        %6857 = vmatprep.subr.mxu0 0.0
        %6858 = vmatpush1.msra.mxu0 0.0
        %6859 = vmatprep.subr.mxu0 0.0
        %6860 = vmatpush1.msra.mxu0 0.0
        %6861 = vmatprep.subr.mxu0 0.0
        %6862 = vmatpush1.msra.mxu0 0.0
        %6863 = vmatprep.subr.mxu0 0.0
        %6864 = vmatpush1.msra.mxu0 0.0
        %6865 = vmatprep.subr.mxu0 0.0
        %6866 = vmatpush1.msra.mxu0 0.0
        %6867 = vmatprep.subr.mxu0 0.0
        %6868 = vmatpush1.msra.mxu0 0.0
        %6869 = vmatprep.subr.mxu0 0.0
        %6870 = vmatpush1.msra.mxu0 0.0
        %6871 = vmatprep.subr.mxu0 0.0
        %6872 = vmatpush1.msra.mxu0 0.0
        %6873 = vmatprep.mubr.f32.mxu0 0.0
        %6874 = vmatmul.mubr.f32.gmra.mrb[0].mxu0 %v6339
        %v6875 = vpop.f32.mrb[0].mxu0
        %v6876 = vadd.f32 %v6806, %v6875
        %v6877 = vpop.f32.mrb[0].mxu0
        %6878 = vdwg.mxu0
        %v6879 = vld [vmem:[%s1854] sm:$0x1]
        %v6881 = vlaneseq
        %v6882 = vshrl.u32 %v6881, 7
        %v6883 = vsub.s32 0, %v6882
        %v6884 = vrot.slane %v6879, %v6883
        %v6886 = vadd.f32 %v6876, %v6884
        %v6887 = vxor.u32 %v6418, 2147483648
        %v6888 = vmul.f32 %v6887, 1.442695
        %v6889 = vpow.pop %v6888
        %v6890 = vadd.f32 %v6889, 1.0
        %v6891 = vrcp.pop %v6890
        %v6892 = vmul.f32 1.0, %v6891
        %v6893 = vxor.u32 %v6574, 2147483648
        %v6894 = vmul.f32 %v6893, 1.442695
        %v6895 = vpow.pop %v6894
        %v6896 = vadd.f32 %v6895, 1.0
        %v6897 = vrcp.pop %v6896
        %v6898 = vmul.f32 1.0, %v6897
        %v6899 = vtanh.pop %v6730
        %v6900 = vxor.u32 %v6886, 2147483648
        %v6901 = vmul.f32 %v6900, 1.442695
        %v6902 = vpow.pop %v6901
        %v6903 = vadd.f32 %v6902, 1.0
        %v6904 = vrcp.pop %v6903
        %v6905 = vmul.f32 1.0, %v6904
        %v6906 = vmul.f32 %v6898, %v6256
        %v6907 = vmul.f32 %v6892, %v6899
        %v6908 = vadd.f32 %v6906, %v6907
        %v6909 = vtanh.pop %v6908
        %v6910 = vmul.f32 %v6905, %v6909
        %6911 = vst.msk [vmem:[%s465] sm:$0x7] %vm1887, %v6910
        %6912 = vst.msk [vmem:[%s1891] sm:$0x7] %vm1887, %v6908
        %v6914 = vsel %vm494, %v6910, 0
        %6916 = vmatprep.subr.mxu0 0.0
        %6917 = vmatpush1.msra.mxu0 %v453
        %6918 = vmatprep.subr.mxu0 0.0
        %6919 = vmatpush1.msra.mxu0 %v454
        %6920 = vmatprep.subr.mxu0 0.0
        %6921 = vmatpush1.msra.mxu0 %v455
        %6922 = vmatprep.subr.mxu0 0.0
        %6923 = vmatpush1.msra.mxu0 %v456
        %6924 = vmatprep.subr.mxu0 0.0
        %6925 = vmatpush1.msra.mxu0 0.0
        %6926 = vmatprep.subr.mxu0 0.0
        %6927 = vmatpush1.msra.mxu0 0.0
        %6928 = vmatprep.subr.mxu0 0.0
        %6929 = vmatpush1.msra.mxu0 0.0
        %6930 = vmatprep.subr.mxu0 0.0
        %6931 = vmatpush1.msra.mxu0 0.0
        %6932 = vmatprep.subr.mxu0 0.0
        %6933 = vmatpush1.msra.mxu0 0.0
        %6934 = vmatprep.subr.mxu0 0.0
        %6935 = vmatpush1.msra.mxu0 0.0
        %6936 = vmatprep.subr.mxu0 0.0
        %6937 = vmatpush1.msra.mxu0 0.0
        %6938 = vmatprep.subr.mxu0 0.0
        %6939 = vmatpush1.msra.mxu0 0.0
        %6940 = vmatprep.subr.mxu0 0.0
        %6941 = vmatpush1.msra.mxu0 0.0
        %6942 = vmatprep.subr.mxu0 0.0
        %6943 = vmatpush1.msra.mxu0 0.0
        %6944 = vmatprep.subr.mxu0 0.0
        %6945 = vmatpush1.msra.mxu0 0.0
        %6946 = vmatprep.subr.mxu0 0.0
        %6947 = vmatpush1.msra.mxu0 0.0
        %6948 = vmatprep.subr.mxu0 0.0
        %6949 = vmatpush1.msra.mxu0 0.0
        %6950 = vmatprep.subr.mxu0 0.0
        %6951 = vmatpush1.msra.mxu0 0.0
        %6952 = vmatprep.subr.mxu0 0.0
        %6953 = vmatpush1.msra.mxu0 0.0
        %6954 = vmatprep.subr.mxu0 0.0
        %6955 = vmatpush1.msra.mxu0 0.0
        %6956 = vmatprep.subr.mxu0 0.0
        %6957 = vmatpush1.msra.mxu0 0.0
        %6958 = vmatprep.subr.mxu0 0.0
        %6959 = vmatpush1.msra.mxu0 0.0
        %6960 = vmatprep.subr.mxu0 0.0
        %6961 = vmatpush1.msra.mxu0 0.0
        %6962 = vmatprep.subr.mxu0 0.0
        %6963 = vmatpush1.msra.mxu0 0.0
        %6964 = vmatprep.subr.mxu0 0.0
        %6965 = vmatpush1.msra.mxu0 0.0
        %6966 = vmatprep.subr.mxu0 0.0
        %6967 = vmatpush1.msra.mxu0 0.0
        %6968 = vmatprep.subr.mxu0 0.0
        %6969 = vmatpush1.msra.mxu0 0.0
        %6970 = vmatprep.subr.mxu0 0.0
        %6971 = vmatpush1.msra.mxu0 0.0
        %6972 = vmatprep.subr.mxu0 0.0
        %6973 = vmatpush1.msra.mxu0 0.0
        %6974 = vmatprep.subr.mxu0 0.0
        %6975 = vmatpush1.msra.mxu0 0.0
        %6976 = vmatprep.subr.mxu0 0.0
        %6977 = vmatpush1.msra.mxu0 0.0
        %6978 = vmatprep.subr.mxu0 0.0
        %6979 = vmatpush1.msra.mxu0 0.0
        %6980 = vmatprep.mubr.f32.mxu0 0.0
        %6981 = vmatmul.mubr.f32.gmra.mrb[0].mxu0 %v6914
        %v6982 = vpop.f32.mrb[0].mxu0
        %v6983 = vadd.f32 %v2553, %v6982
        %v6984 = vpop.f32.mrb[0].mxu0
        %6985 = vdwg.mxu0
        %v6986 = vsel %vm2628, %v6983, -inf
        %6987 = vmax.xlane.f32.xlu0 %v6986
        %v6988 = vpop.xlane.xlu0 %6987
        %v6989 = vsub.f32 %v6983, %v6988
        %v6990 = vmul.f32 %v6989, 1.442695
        %v6991 = vpow.pop %v6990
        %v6992 = vsel %vm2628, %v6991, 0.0
        %6993 = vadd.xlane.f32.xlu0 %v6992
        %v6994 = vpop.xlane.xlu0 %6993
        %v6995 = vrcp.pop %v6994
        %v6996 = vmul.f32 %v6991, %v6995
        %6998 = vrot.lane.b32.xlu0 %v6996, 8
        %v6999 = vpop.permute.xlu0 %6998
        %v7001 = vlaneseq
        %v7002 = vshrl.u32 %v7001, 7
        %v7003 = vsub.s32 %v2644, %v7002
        %v7004 = vrot.slane %v5307, %v7003
        %v7005 = vlaneseq
        %v7006 = vshrl.u32 %v7005, 7
        %v7007 = vsub.s32 %v2649, %v7006
        %v7008 = vrot.slane %v5310, %v7007
        %v7009 = vsel %vm2654, %v7008, %v7004
        %v7010 = vlaneseq
        %v7011 = vshrl.u32 %v7010, 7
        %v7012 = vsub.s32 %v2644, %v7011
        %v7013 = vrot.slane %v5313, %v7012
        %v7014 = vlaneseq
        %v7015 = vshrl.u32 %v7014, 7
        %v7016 = vsub.s32 %v2649, %v7015
        %v7017 = vrot.slane %v5316, %v7016
        %v7018 = vsel %vm2654, %v7017, %v7013
        %v7019 = vlaneseq
        %v7020 = vshrl.u32 %v7019, 7
        %v7021 = vsub.s32 %v2644, %v7020
        %v7022 = vrot.slane %v5319, %v7021
        %v7023 = vlaneseq
        %v7024 = vshrl.u32 %v7023, 7
        %v7025 = vsub.s32 %v2649, %v7024
        %v7026 = vrot.slane %v5322, %v7025
        %v7027 = vsel %vm2654, %v7026, %v7022
        %v7028 = vsel %vm752, %v7018, %v7009
        %v7029 = vsel %vm754, %v7027, %v7028
        %v7031 = vsel %vm2677, %v6983, %v6999
        %v7032 = vsel %vm987, %v7031, %v7029
        %v7033 = vsel %vm494, %v7032, 0.0
        %s7034 = scalar_lea.vmem %s432, 8
        %7035 = vst [vmem:[%s7034] sm:$0x7] %v7033
        %s7036 = scalar_lea.vmem %s371, 72 [#allocation4]
        %v7037 = vld [vmem:[%s7036] sm:$0xf]
        %v7038 = vld [vmem:[%s7036 + $0x4] sm:$0xf]
        %v7039 = vld [vmem:[%s7036 + $0x8] sm:$0xf]
        %v7040 = vld [vmem:[%s7036 + $0xc] sm:$0xf]
        %v7041 = vld [vmem:[%s7036 + $0x10] sm:$0xf]
        %v7042 = vld [vmem:[%s7036 + $0x14] sm:$0xf]
        %s7043 = scalar_lea.vmem %s426, 12
        %v7044 = vld [vmem:[%s7043] sm:$0x7]
        %v7045 = vld [vmem:[%s465] sm:$0x7]
        %v7052 = vunpack.c.l.b16 %v7037
        %v7053 = vunpack.c.l.b16 %v7038
        %v7054 = vunpack.c.l.b16 %v7039
        %v7055 = vunpack.c.l.b16 %v7040
        %v7056 = vunpack.c.l.b16 %v7041
        %v7057 = vunpack.c.l.b16 %v7042
        %v7058 = vpack.c.b16 %v7053, %v7052
        %v7059 = vpack.c.b16 %v7055, %v7054
        %v7060 = vpack.c.b16 %v7057, %v7056
        %v7062 = vsel %vm494, %v7058, 0
        %v7065 = vsel %vm494, %v7059, 0
        %v7068 = vsel %vm494, %v7060, 0
        %7070 = vmatprep.subr.bf16.mxu0 0
        %7071 = vmatpush1.bf16.msra.mxu0 %v490
        %7072 = vmatprep.subr.bf16.mxu0 0
        %7073 = vmatpush1.bf16.msra.mxu0 %v491
        %7074 = vmatprep.subr.bf16.mxu0 0
        %7075 = vmatpush1.bf16.msra.mxu0 0
        %7076 = vmatprep.subr.bf16.mxu0 0
        %7077 = vmatpush1.bf16.msra.mxu0 0
        %7078 = vmatprep.subr.bf16.mxu0 0
        %7079 = vmatpush1.bf16.msra.mxu0 0
        %7080 = vmatprep.subr.bf16.mxu0 0
        %7081 = vmatpush1.bf16.msra.mxu0 0
        %7082 = vmatprep.subr.bf16.mxu0 0
        %7083 = vmatpush1.bf16.msra.mxu0 0
        %7084 = vmatprep.subr.bf16.mxu0 0
        %7085 = vmatpush1.bf16.msra.mxu0 0
        %7086 = vmatprep.subr.bf16.mxu0 0
        %7087 = vmatpush1.bf16.msra.mxu0 0
        %7088 = vmatprep.subr.bf16.mxu0 0
        %7089 = vmatpush1.bf16.msra.mxu0 0
        %7090 = vmatprep.subr.bf16.mxu0 0
        %7091 = vmatpush1.bf16.msra.mxu0 0
        %7092 = vmatprep.subr.bf16.mxu0 0
        %7093 = vmatpush1.bf16.msra.mxu0 0
        %7094 = vmatprep.subr.bf16.mxu0 0
        %7095 = vmatpush1.bf16.msra.mxu0 0
        %7096 = vmatprep.subr.bf16.mxu0 0
        %7097 = vmatpush1.bf16.msra.mxu0 0
        %7098 = vmatprep.subr.bf16.mxu0 0
        %7099 = vmatpush1.bf16.msra.mxu0 0
        %7100 = vmatprep.subr.bf16.mxu0 0
        %7101 = vmatpush1.bf16.msra.mxu0 0
        %7102 = vmatprep.mubr.bf16.mxu0 0
        %7103 = vmatmul.mubr.bf16.gmra.mrb[0].mxu0 %v7062
        %v7104 = vpop.f32.mrb[0].mxu0
        %v7105 = vadd.f32 0.0, %v7104
        %v7106 = vpop.f32.mrb[0].mxu0
        %v7107 = vpop.f32.mrb[0].mxu0
        %v7108 = vadd.f32 0.0, %v7107
        %v7109 = vpop.f32.mrb[0].mxu0
        %7110 = vmatprep.mubr.bf16.mxu0 0
        %7111 = vmatmul.mubr.bf16.gmra.mrb[0].mxu0 %v7065
        %v7112 = vpop.f32.mrb[0].mxu0
        %v7113 = vadd.f32 0.0, %v7112
        %v7114 = vpop.f32.mrb[0].mxu0
        %v7115 = vpop.f32.mrb[0].mxu0
        %v7116 = vadd.f32 0.0, %v7115
        %v7117 = vpop.f32.mrb[0].mxu0
        %7118 = vmatprep.mubr.bf16.mxu0 0
        %7119 = vmatmul.mubr.bf16.gmra.mrb[0].mxu0 %v7068
        %v7120 = vpop.f32.mrb[0].mxu0
        %v7121 = vadd.f32 0.0, %v7120
        %v7122 = vpop.f32.mrb[0].mxu0
        %v7123 = vpop.f32.mrb[0].mxu0
        %v7124 = vadd.f32 0.0, %v7123
        %v7125 = vpop.f32.mrb[0].mxu0
        %7126 = vdwg.mxu0
        %v7128 = vsel %vm494, %v7045, 0
        %7130 = vmatprep.subr.mxu0 0.0
        %7131 = vmatpush1.msra.mxu0 %v448
        %7132 = vmatprep.subr.mxu0 0.0
        %7133 = vmatpush1.msra.mxu0 %v449
        %7134 = vmatprep.subr.mxu0 0.0
        %7135 = vmatpush1.msra.mxu0 %v450
        %7136 = vmatprep.subr.mxu0 0.0
        %7137 = vmatpush1.msra.mxu0 %v451
        %7138 = vmatprep.subr.mxu0 0.0
        %7139 = vmatpush1.msra.mxu0 0.0
        %7140 = vmatprep.subr.mxu0 0.0
        %7141 = vmatpush1.msra.mxu0 0.0
        %7142 = vmatprep.subr.mxu0 0.0
        %7143 = vmatpush1.msra.mxu0 0.0
        %7144 = vmatprep.subr.mxu0 0.0
        %7145 = vmatpush1.msra.mxu0 0.0
        %7146 = vmatprep.subr.mxu0 0.0
        %7147 = vmatpush1.msra.mxu0 0.0
        %7148 = vmatprep.subr.mxu0 0.0
        %7149 = vmatpush1.msra.mxu0 0.0
        %7150 = vmatprep.subr.mxu0 0.0
        %7151 = vmatpush1.msra.mxu0 0.0
        %7152 = vmatprep.subr.mxu0 0.0
        %7153 = vmatpush1.msra.mxu0 0.0
        %7154 = vmatprep.subr.mxu0 0.0
        %7155 = vmatpush1.msra.mxu0 0.0
        %7156 = vmatprep.subr.mxu0 0.0
        %7157 = vmatpush1.msra.mxu0 0.0
        %7158 = vmatprep.subr.mxu0 0.0
        %7159 = vmatpush1.msra.mxu0 0.0
        %7160 = vmatprep.subr.mxu0 0.0
        %7161 = vmatpush1.msra.mxu0 0.0
        %7162 = vmatprep.subr.mxu0 0.0
        %7163 = vmatpush1.msra.mxu0 0.0
        %7164 = vmatprep.subr.mxu0 0.0
        %7165 = vmatpush1.msra.mxu0 0.0
        %7166 = vmatprep.subr.mxu0 0.0
        %7167 = vmatpush1.msra.mxu0 0.0
        %7168 = vmatprep.subr.mxu0 0.0
        %7169 = vmatpush1.msra.mxu0 0.0
        %7170 = vmatprep.subr.mxu0 0.0
        %7171 = vmatpush1.msra.mxu0 0.0
        %7172 = vmatprep.subr.mxu0 0.0
        %7173 = vmatpush1.msra.mxu0 0.0
        %7174 = vmatprep.subr.mxu0 0.0
        %7175 = vmatpush1.msra.mxu0 0.0
        %7176 = vmatprep.subr.mxu0 0.0
        %7177 = vmatpush1.msra.mxu0 0.0
        %7178 = vmatprep.subr.mxu0 0.0
        %7179 = vmatpush1.msra.mxu0 0.0
        %7180 = vmatprep.subr.mxu0 0.0
        %7181 = vmatpush1.msra.mxu0 0.0
        %7182 = vmatprep.subr.mxu0 0.0
        %7183 = vmatpush1.msra.mxu0 0.0
        %7184 = vmatprep.subr.mxu0 0.0
        %7185 = vmatpush1.msra.mxu0 0.0
        %7186 = vmatprep.subr.mxu0 0.0
        %7187 = vmatpush1.msra.mxu0 0.0
        %7188 = vmatprep.subr.mxu0 0.0
        %7189 = vmatpush1.msra.mxu0 0.0
        %7190 = vmatprep.subr.mxu0 0.0
        %7191 = vmatpush1.msra.mxu0 0.0
        %7192 = vmatprep.subr.mxu0 0.0
        %7193 = vmatpush1.msra.mxu0 0.0
        %7194 = vmatprep.mubr.f32.mxu0 0.0
        %7195 = vmatmul.mubr.f32.gmra.mrb[0].mxu0 %v7128
        %v7196 = vpop.f32.mrb[0].mxu0
        %v7197 = vadd.f32 0.0, %v7196
        %v7198 = vpop.f32.mrb[0].mxu0
        %7199 = vdwg.mxu0
        %v7202 = vunpack.c.l.s4 1966171168
        %v7203 = vunpack.c.0.s8 %v7202
        %v7204 = vlaneseq
        %v7205 = vshrl.u32 %v7204, 7
        %v7206 = vsub.s32 %v7203, %v7205
        %v7207 = vrot.slane %v7197, %v7206
        %v7208 = vcombine.high %v7207, %v7207
        %v7210 = vunpack.c.l.s4 1966171168
        %v7211 = vunpack.c.0.s8 %v7210
        %v7212 = vlaneseq
        %v7213 = vshrl.u32 %v7212, 7
        %v7214 = vsub.s32 %v7211, %v7213
        %v7215 = vrot.slane %v7207, %v7214
        %v7217 = vunpack.c.l.s4 1966171168
        %v7218 = vunpack.c.0.s8 %v7217
        %v7219 = vlaneseq
        %v7220 = vshrl.u32 %v7219, 7
        %v7221 = vsub.s32 %v7218, %v7220
        %v7222 = vrot.slane %v7208, %v7221
        %v7223 = vcombine.high %v7215, %v7215
        %v7224 = vlaneseq
        %v7225 = vshrl.u32 %v7224, 7
        %v7226 = vsub.s32 0, %v7225
        %v7227 = vrot.slane %v7215, %v7226
        %v7228 = vlaneseq
        %v7229 = vshrl.u32 %v7228, 7
        %v7230 = vsub.s32 0, %v7229
        %v7231 = vrot.slane %v7222, %v7230
        %v7232 = vlaneseq
        %v7233 = vshrl.u32 %v7232, 7
        %v7234 = vsub.s32 0, %v7233
        %v7235 = vrot.slane %v7223, %v7234
        %v7239 = vadd.f32 %v7105, %v7227
        %v7240 = vadd.f32 %v7108, %v7227
        %v7241 = vadd.f32 %v7113, %v7231
        %v7242 = vadd.f32 %v7116, %v7231
        %v7243 = vadd.f32 %v7121, %v7235
        %v7244 = vadd.f32 %v7124, %v7235
        %v7245 = vtanh.pop %v7239
        %v7246 = vtanh.pop %v7240
        %v7247 = vtanh.pop %v7241
        %v7248 = vtanh.pop %v7242
        %v7249 = vtanh.pop %v7243
        %v7250 = vtanh.pop %v7244
        %v7251 = vmul.f32 %v7245, %v689
        %v7252 = vmul.f32 %v7246, %v689
        %v7253 = vmul.f32 %v7247, %v689
        %v7254 = vmul.f32 %v7248, %v689
        %v7255 = vmul.f32 %v7249, %v689
        %v7256 = vmul.f32 %v7250, %v689
        %v7257 = vsel %vm494, %v7251, 0.0
        %7258 = vadd.xlane.f32.xlu0 %v7257
        %v7259 = vpop.xlane.xlu0 %7258
        %v7260 = vsel %vm494, %v7252, 0.0
        %7261 = vadd.xlane.f32.xlu0 %v7260
        %v7262 = vpop.xlane.xlu0 %7261
        %v7263 = vsel %vm494, %v7253, 0.0
        %7264 = vadd.xlane.f32.xlu0 %v7263
        %v7265 = vpop.xlane.xlu0 %7264
        %v7266 = vsel %vm494, %v7254, 0.0
        %7267 = vadd.xlane.f32.xlu0 %v7266
        %v7268 = vpop.xlane.xlu0 %7267
        %v7269 = vsel %vm494, %v7255, 0.0
        %7270 = vadd.xlane.f32.xlu0 %v7269
        %v7271 = vpop.xlane.xlu0 %7270
        %v7272 = vsel %vm494, %v7256, 0.0
        %7273 = vadd.xlane.f32.xlu0 %v7272
        %v7274 = vpop.xlane.xlu0 %7273
        %v7281 = vlaneseq
        %v7282 = vshrl.u32 %v7281, 7
        %v7283 = vsub.s32 %v722, %v7282
        %v7284 = vrot.slane %v7259, %v7283
        %v7285 = vlaneseq
        %v7286 = vshrl.u32 %v7285, 7
        %v7287 = vsub.s32 %v727, %v7286
        %v7288 = vrot.slane %v7262, %v7287
        %v7289 = vsel %vm732, %v7288, %v7284
        %v7290 = vlaneseq
        %v7291 = vshrl.u32 %v7290, 7
        %v7292 = vsub.s32 %v722, %v7291
        %v7293 = vrot.slane %v7265, %v7292
        %v7294 = vlaneseq
        %v7295 = vshrl.u32 %v7294, 7
        %v7296 = vsub.s32 %v727, %v7295
        %v7297 = vrot.slane %v7268, %v7296
        %v7298 = vsel %vm732, %v7297, %v7293
        %v7299 = vlaneseq
        %v7300 = vshrl.u32 %v7299, 7
        %v7301 = vsub.s32 %v722, %v7300
        %v7302 = vrot.slane %v7271, %v7301
        %v7303 = vlaneseq
        %v7304 = vshrl.u32 %v7303, 7
        %v7305 = vsub.s32 %v727, %v7304
        %v7306 = vrot.slane %v7274, %v7305
        %v7307 = vsel %vm732, %v7306, %v7302
        %v7308 = vsel %vm752, %v7298, %v7289
        %v7309 = vsel %vm754, %v7307, %v7308
        %v7311 = vsel %vm757, %v7309, -inf
        %7312 = vmax.xlane.f32.xlu0 %v7311
        %v7313 = vpop.xlane.xlu0 %7312
        %v7315 = vlaneseq
        %v7316 = vshrl.u32 %v7315, 7
        %v7317 = vsub.s32 0, %v7316
        %v7318 = vrot.slane %v7313, %v7317
        %v7319 = vlaneseq
        %v7320 = vshrl.u32 %v7319, 7
        %v7321 = vsub.s32 1, %v7320
        %v7322 = vrot.slane %v7313, %v7321
        %v7323 = vlaneseq
        %v7324 = vshrl.u32 %v7323, 7
        %v7325 = vsub.s32 2, %v7324
        %v7326 = vrot.slane %v7313, %v7325
        %v7330 = vsub.f32 %v7259, %v7318
        %v7331 = vsub.f32 %v7262, %v7318
        %v7332 = vsub.f32 %v7265, %v7322
        %v7333 = vsub.f32 %v7268, %v7322
        %v7334 = vsub.f32 %v7271, %v7326
        %v7335 = vsub.f32 %v7274, %v7326
        %v7336 = vmul.f32 %v7330, 1.442695
        %v7337 = vpow.pop %v7336
        %v7338 = vmul.f32 %v7331, 1.442695
        %v7339 = vpow.pop %v7338
        %v7340 = vmul.f32 %v7332, 1.442695
        %v7341 = vpow.pop %v7340
        %v7342 = vmul.f32 %v7333, 1.442695
        %v7343 = vpow.pop %v7342
        %v7344 = vmul.f32 %v7334, 1.442695
        %v7345 = vpow.pop %v7344
        %v7346 = vmul.f32 %v7335, 1.442695
        %v7347 = vpow.pop %v7346
        %7354 = vset.pattern.permute.xlu0 0
        %7355 = vperm.xlu0 %7354, %v7337
        %v7356 = vpop.permute.xlu0 %7355
        %7357 = vset.pattern.permute.xlu0 0
        %7358 = vperm.xlu0 %7357, %v7339
        %v7359 = vpop.permute.xlu0 %7358
        %7360 = vset.pattern.permute.xlu0 0
        %7361 = vperm.xlu0 %7360, %v7341
        %v7362 = vpop.permute.xlu0 %7361
        %7363 = vset.pattern.permute.xlu0 0
        %7364 = vperm.xlu0 %7363, %v7343
        %v7365 = vpop.permute.xlu0 %7364
        %7366 = vset.pattern.permute.xlu0 0
        %7367 = vperm.xlu0 %7366, %v7345
        %v7368 = vpop.permute.xlu0 %7367
        %7369 = vset.pattern.permute.xlu0 0
        %7370 = vperm.xlu0 %7369, %v7347
        %v7371 = vpop.permute.xlu0 %7370
        %v7372 = vlaneseq
        %v7373 = vshrl.u32 %v7372, 7
        %v7374 = vsub.s32 %v722, %v7373
        %v7375 = vrot.slane %v7356, %v7374
        %v7376 = vlaneseq
        %v7377 = vshrl.u32 %v7376, 7
        %v7378 = vsub.s32 %v727, %v7377
        %v7379 = vrot.slane %v7359, %v7378
        %v7380 = vsel %vm732, %v7379, %v7375
        %v7381 = vlaneseq
        %v7382 = vshrl.u32 %v7381, 7
        %v7383 = vsub.s32 %v722, %v7382
        %v7384 = vrot.slane %v7362, %v7383
        %v7385 = vlaneseq
        %v7386 = vshrl.u32 %v7385, 7
        %v7387 = vsub.s32 %v727, %v7386
        %v7388 = vrot.slane %v7365, %v7387
        %v7389 = vsel %vm732, %v7388, %v7384
        %v7390 = vlaneseq
        %v7391 = vshrl.u32 %v7390, 7
        %v7392 = vsub.s32 %v722, %v7391
        %v7393 = vrot.slane %v7368, %v7392
        %v7394 = vlaneseq
        %v7395 = vshrl.u32 %v7394, 7
        %v7396 = vsub.s32 %v727, %v7395
        %v7397 = vrot.slane %v7371, %v7396
        %v7398 = vsel %vm732, %v7397, %v7393
        %v7399 = vsel %vm752, %v7389, %v7380
        %v7400 = vsel %vm754, %v7398, %v7399
        %v7402 = vsel %vm757, %v7400, 0.0
        %7403 = vadd.xlane.f32.xlu0 %v7402
        %v7404 = vpop.xlane.xlu0 %7403
        %v7406 = vlaneseq
        %v7407 = vshrl.u32 %v7406, 7
        %v7408 = vsub.s32 0, %v7407
        %v7409 = vrot.slane %v7404, %v7408
        %v7410 = vlaneseq
        %v7411 = vshrl.u32 %v7410, 7
        %v7412 = vsub.s32 1, %v7411
        %v7413 = vrot.slane %v7404, %v7412
        %v7414 = vlaneseq
        %v7415 = vshrl.u32 %v7414, 7
        %v7416 = vsub.s32 2, %v7415
        %v7417 = vrot.slane %v7404, %v7416
        %v7421 = vrcp.pop %v7409
        %v7422 = vmul.f32 %v7337, %v7421
        %v7423 = vmul.f32 %v7339, %v7421
        %v7424 = vrcp.pop %v7413
        %v7425 = vmul.f32 %v7341, %v7424
        %v7426 = vmul.f32 %v7343, %v7424
        %v7427 = vrcp.pop %v7417
        %v7428 = vmul.f32 %v7345, %v7427
        %v7429 = vmul.f32 %v7347, %v7427
        %v7431 = vlaneseq
        %v7432 = vshrl.u32 %v7431, 7
        %v7433 = vsub.s32 0, %v7432
        %v7434 = vrot.slane %v7044, %v7433
        %7436 = vbcast.lane.b32.xlu0 %v7434, 256
        %v7437 = vpop.permute.xlu0 %7436
        %s7439 = sor.u32 256, 8
        %7440 = vbcast.lane.b32.xlu0 %v7434, %s7439
        %v7441 = vpop.permute.xlu0 %7440
        %v7442 = vlaneseq
        %v7443 = vshrl.u32 %v7442, 7
        %v7444 = vsub.s32 1, %v7443
        %v7445 = vrot.slane %v7044, %v7444
        %7447 = vbcast.lane.b32.xlu0 %v7445, 256
        %v7448 = vpop.permute.xlu0 %7447
        %s7450 = sor.u32 256, 8
        %7451 = vbcast.lane.b32.xlu0 %v7445, %s7450
        %v7452 = vpop.permute.xlu0 %7451
        %v7453 = vlaneseq
        %v7454 = vshrl.u32 %v7453, 7
        %v7455 = vsub.s32 2, %v7454
        %v7456 = vrot.slane %v7044, %v7455
        %7458 = vbcast.lane.b32.xlu0 %v7456, 256
        %v7459 = vpop.permute.xlu0 %7458
        %s7461 = sor.u32 256, 8
        %7462 = vbcast.lane.b32.xlu0 %v7456, %s7461
        %v7463 = vpop.permute.xlu0 %7462
        %v7470 = vmul.f32 %v7422, %v7437
        %v7471 = vmul.f32 %v7423, %v7441
        %v7472 = vmul.f32 %v7425, %v7448
        %v7473 = vmul.f32 %v7426, %v7452
        %v7474 = vmul.f32 %v7428, %v7459
        %v7475 = vmul.f32 %v7429, %v7463
        %7482 = vset.pattern.permute.xlu0 0
        %7483 = vperm.xlu0 %7482, %v7470
        %v7484 = vpop.permute.xlu0 %7483
        %7485 = vset.pattern.permute.xlu0 0
        %7486 = vperm.xlu0 %7485, %v7471
        %v7487 = vpop.permute.xlu0 %7486
        %7488 = vset.pattern.permute.xlu0 0
        %7489 = vperm.xlu0 %7488, %v7472
        %v7490 = vpop.permute.xlu0 %7489
        %7491 = vset.pattern.permute.xlu0 0
        %7492 = vperm.xlu0 %7491, %v7473
        %v7493 = vpop.permute.xlu0 %7492
        %7494 = vset.pattern.permute.xlu0 0
        %7495 = vperm.xlu0 %7494, %v7474
        %v7496 = vpop.permute.xlu0 %7495
        %7497 = vset.pattern.permute.xlu0 0
        %7498 = vperm.xlu0 %7497, %v7475
        %v7499 = vpop.permute.xlu0 %7498
        %v7500 = vlaneseq
        %v7501 = vshrl.u32 %v7500, 7
        %v7502 = vsub.s32 %v722, %v7501
        %v7503 = vrot.slane %v7484, %v7502
        %v7504 = vlaneseq
        %v7505 = vshrl.u32 %v7504, 7
        %v7506 = vsub.s32 %v727, %v7505
        %v7507 = vrot.slane %v7487, %v7506
        %v7508 = vsel %vm732, %v7507, %v7503
        %v7509 = vlaneseq
        %v7510 = vshrl.u32 %v7509, 7
        %v7511 = vsub.s32 %v722, %v7510
        %v7512 = vrot.slane %v7490, %v7511
        %v7513 = vlaneseq
        %v7514 = vshrl.u32 %v7513, 7
        %v7515 = vsub.s32 %v727, %v7514
        %v7516 = vrot.slane %v7493, %v7515
        %v7517 = vsel %vm732, %v7516, %v7512
        %v7518 = vlaneseq
        %v7519 = vshrl.u32 %v7518, 7
        %v7520 = vsub.s32 %v722, %v7519
        %v7521 = vrot.slane %v7496, %v7520
        %v7522 = vlaneseq
        %v7523 = vshrl.u32 %v7522, 7
        %v7524 = vsub.s32 %v727, %v7523
        %v7525 = vrot.slane %v7499, %v7524
        %v7526 = vsel %vm732, %v7525, %v7521
        %v7527 = vsel %vm752, %v7517, %v7508
        %v7528 = vsel %vm754, %v7526, %v7527
        %v7530 = vsel %vm757, %v7528, 0.0
        %7531 = vadd.xlane.f32.xlu0 %v7530
        %v7532 = vpop.xlane.xlu0 %7531
        %v7533 = vmax.f32 %v7532, 1e-05
        %v7534 = vunpack.c.l.bf16 %v7037
        %v7535 = vunpack.c.l.bf16 %v7038
        %v7536 = vunpack.c.l.bf16 %v7039
        %v7537 = vunpack.c.l.bf16 %v7040
        %v7538 = vunpack.c.l.bf16 %v7041
        %v7539 = vunpack.c.l.bf16 %v7042
        %v7540 = vsel %vm987, %v7508, 0
        %7542 = vmatprep.subr.mxu0 0.0
        %7543 = vmatpush1.msra.mxu0 %v7534
        %7544 = vmatprep.subr.mxu0 0.0
        %7545 = vmatpush1.msra.mxu0 %v7535
        %7546 = vmatprep.subr.mxu0 0.0
        %7547 = vmatpush1.msra.mxu0 0.0
        %7548 = vmatprep.subr.mxu0 0.0
        %7549 = vmatpush1.msra.mxu0 0.0
        %7550 = vmatprep.subr.mxu0 0.0
        %7551 = vmatpush1.msra.mxu0 0.0
        %7552 = vmatprep.subr.mxu0 0.0
        %7553 = vmatpush1.msra.mxu0 0.0
        %7554 = vmatprep.subr.mxu0 0.0
        %7555 = vmatpush1.msra.mxu0 0.0
        %7556 = vmatprep.subr.mxu0 0.0
        %7557 = vmatpush1.msra.mxu0 0.0
        %7558 = vmatprep.subr.mxu0 0.0
        %7559 = vmatpush1.msra.mxu0 0.0
        %7560 = vmatprep.subr.mxu0 0.0
        %7561 = vmatpush1.msra.mxu0 0.0
        %7562 = vmatprep.subr.mxu0 0.0
        %7563 = vmatpush1.msra.mxu0 0.0
        %7564 = vmatprep.subr.mxu0 0.0
        %7565 = vmatpush1.msra.mxu0 0.0
        %7566 = vmatprep.subr.mxu0 0.0
        %7567 = vmatpush1.msra.mxu0 0.0
        %7568 = vmatprep.subr.mxu0 0.0
        %7569 = vmatpush1.msra.mxu0 0.0
        %7570 = vmatprep.subr.mxu0 0.0
        %7571 = vmatpush1.msra.mxu0 0.0
        %7572 = vmatprep.subr.mxu0 0.0
        %7573 = vmatpush1.msra.mxu0 0.0
        %7574 = vmatprep.subr.mxu0 0.0
        %7575 = vmatpush1.msra.mxu0 0.0
        %7576 = vmatprep.subr.mxu0 0.0
        %7577 = vmatpush1.msra.mxu0 0.0
        %7578 = vmatprep.subr.mxu0 0.0
        %7579 = vmatpush1.msra.mxu0 0.0
        %7580 = vmatprep.subr.mxu0 0.0
        %7581 = vmatpush1.msra.mxu0 0.0
        %7582 = vmatprep.subr.mxu0 0.0
        %7583 = vmatpush1.msra.mxu0 0.0
        %7584 = vmatprep.subr.mxu0 0.0
        %7585 = vmatpush1.msra.mxu0 0.0
        %7586 = vmatprep.subr.mxu0 0.0
        %7587 = vmatpush1.msra.mxu0 0.0
        %7588 = vmatprep.subr.mxu0 0.0
        %7589 = vmatpush1.msra.mxu0 0.0
        %7590 = vmatprep.subr.mxu0 0.0
        %7591 = vmatpush1.msra.mxu0 0.0
        %7592 = vmatprep.subr.mxu0 0.0
        %7593 = vmatpush1.msra.mxu0 0.0
        %7594 = vmatprep.subr.mxu0 0.0
        %7595 = vmatpush1.msra.mxu0 0.0
        %7596 = vmatprep.subr.mxu0 0.0
        %7597 = vmatpush1.msra.mxu0 0.0
        %7598 = vmatprep.subr.mxu0 0.0
        %7599 = vmatpush1.msra.mxu0 0.0
        %7600 = vmatprep.subr.mxu0 0.0
        %7601 = vmatpush1.msra.mxu0 0.0
        %7602 = vmatprep.subr.mxu0 0.0
        %7603 = vmatpush1.msra.mxu0 0.0
        %7604 = vmatprep.subr.mxu0 0.0
        %7605 = vmatpush1.msra.mxu0 0.0
        %7606 = vmatprep.mubr.f32.mxu0 0.0
        %7607 = vmatmul.mubr.f32.gmra.mrb[0].mxu0 %v7540
        %v7608 = vpop.f32.mrb[0].mxu0
        %v7609 = vadd.f32 0.0, %v7608
        %v7610 = vpop.f32.mrb[0].mxu0
        %7611 = vdwg.mxu0
        %v7612 = vsel %vm987, %v7517, 0
        %7614 = vmatprep.subr.mxu0 0.0
        %7615 = vmatpush1.msra.mxu0 %v7536
        %7616 = vmatprep.subr.mxu0 0.0
        %7617 = vmatpush1.msra.mxu0 %v7537
        %7618 = vmatprep.subr.mxu0 0.0
        %7619 = vmatpush1.msra.mxu0 0.0
        %7620 = vmatprep.subr.mxu0 0.0
        %7621 = vmatpush1.msra.mxu0 0.0
        %7622 = vmatprep.subr.mxu0 0.0
        %7623 = vmatpush1.msra.mxu0 0.0
        %7624 = vmatprep.subr.mxu0 0.0
        %7625 = vmatpush1.msra.mxu0 0.0
        %7626 = vmatprep.subr.mxu0 0.0
        %7627 = vmatpush1.msra.mxu0 0.0
        %7628 = vmatprep.subr.mxu0 0.0
        %7629 = vmatpush1.msra.mxu0 0.0
        %7630 = vmatprep.subr.mxu0 0.0
        %7631 = vmatpush1.msra.mxu0 0.0
        %7632 = vmatprep.subr.mxu0 0.0
        %7633 = vmatpush1.msra.mxu0 0.0
        %7634 = vmatprep.subr.mxu0 0.0
        %7635 = vmatpush1.msra.mxu0 0.0
        %7636 = vmatprep.subr.mxu0 0.0
        %7637 = vmatpush1.msra.mxu0 0.0
        %7638 = vmatprep.subr.mxu0 0.0
        %7639 = vmatpush1.msra.mxu0 0.0
        %7640 = vmatprep.subr.mxu0 0.0
        %7641 = vmatpush1.msra.mxu0 0.0
        %7642 = vmatprep.subr.mxu0 0.0
        %7643 = vmatpush1.msra.mxu0 0.0
        %7644 = vmatprep.subr.mxu0 0.0
        %7645 = vmatpush1.msra.mxu0 0.0
        %7646 = vmatprep.subr.mxu0 0.0
        %7647 = vmatpush1.msra.mxu0 0.0
        %7648 = vmatprep.subr.mxu0 0.0
        %7649 = vmatpush1.msra.mxu0 0.0
        %7650 = vmatprep.subr.mxu0 0.0
        %7651 = vmatpush1.msra.mxu0 0.0
        %7652 = vmatprep.subr.mxu0 0.0
        %7653 = vmatpush1.msra.mxu0 0.0
        %7654 = vmatprep.subr.mxu0 0.0
        %7655 = vmatpush1.msra.mxu0 0.0
        %7656 = vmatprep.subr.mxu0 0.0
        %7657 = vmatpush1.msra.mxu0 0.0
        %7658 = vmatprep.subr.mxu0 0.0
        %7659 = vmatpush1.msra.mxu0 0.0
        %7660 = vmatprep.subr.mxu0 0.0
        %7661 = vmatpush1.msra.mxu0 0.0
        %7662 = vmatprep.subr.mxu0 0.0
        %7663 = vmatpush1.msra.mxu0 0.0
        %7664 = vmatprep.subr.mxu0 0.0
        %7665 = vmatpush1.msra.mxu0 0.0
        %7666 = vmatprep.subr.mxu0 0.0
        %7667 = vmatpush1.msra.mxu0 0.0
        %7668 = vmatprep.subr.mxu0 0.0
        %7669 = vmatpush1.msra.mxu0 0.0
        %7670 = vmatprep.subr.mxu0 0.0
        %7671 = vmatpush1.msra.mxu0 0.0
        %7672 = vmatprep.subr.mxu0 0.0
        %7673 = vmatpush1.msra.mxu0 0.0
        %7674 = vmatprep.subr.mxu0 0.0
        %7675 = vmatpush1.msra.mxu0 0.0
        %7676 = vmatprep.subr.mxu0 0.0
        %7677 = vmatpush1.msra.mxu0 0.0
        %7678 = vmatprep.mubr.f32.mxu0 0.0
        %7679 = vmatmul.mubr.f32.gmra.mrb[0].mxu0 %v7612
        %v7680 = vpop.f32.mrb[0].mxu0
        %v7681 = vadd.f32 0.0, %v7680
        %v7682 = vpop.f32.mrb[0].mxu0
        %7683 = vdwg.mxu0
        %v7684 = vsel %vm987, %v7526, 0
        %7686 = vmatprep.subr.mxu0 0.0
        %7687 = vmatpush1.msra.mxu0 %v7538
        %7688 = vmatprep.subr.mxu0 0.0
        %7689 = vmatpush1.msra.mxu0 %v7539
        %7690 = vmatprep.subr.mxu0 0.0
        %7691 = vmatpush1.msra.mxu0 0.0
        %7692 = vmatprep.subr.mxu0 0.0
        %7693 = vmatpush1.msra.mxu0 0.0
        %7694 = vmatprep.subr.mxu0 0.0
        %7695 = vmatpush1.msra.mxu0 0.0
        %7696 = vmatprep.subr.mxu0 0.0
        %7697 = vmatpush1.msra.mxu0 0.0
        %7698 = vmatprep.subr.mxu0 0.0
        %7699 = vmatpush1.msra.mxu0 0.0
        %7700 = vmatprep.subr.mxu0 0.0
        %7701 = vmatpush1.msra.mxu0 0.0
        %7702 = vmatprep.subr.mxu0 0.0
        %7703 = vmatpush1.msra.mxu0 0.0
        %7704 = vmatprep.subr.mxu0 0.0
        %7705 = vmatpush1.msra.mxu0 0.0
        %7706 = vmatprep.subr.mxu0 0.0
        %7707 = vmatpush1.msra.mxu0 0.0
        %7708 = vmatprep.subr.mxu0 0.0
        %7709 = vmatpush1.msra.mxu0 0.0
        %7710 = vmatprep.subr.mxu0 0.0
        %7711 = vmatpush1.msra.mxu0 0.0
        %7712 = vmatprep.subr.mxu0 0.0
        %7713 = vmatpush1.msra.mxu0 0.0
        %7714 = vmatprep.subr.mxu0 0.0
        %7715 = vmatpush1.msra.mxu0 0.0
        %7716 = vmatprep.subr.mxu0 0.0
        %7717 = vmatpush1.msra.mxu0 0.0
        %7718 = vmatprep.subr.mxu0 0.0
        %7719 = vmatpush1.msra.mxu0 0.0
        %7720 = vmatprep.subr.mxu0 0.0
        %7721 = vmatpush1.msra.mxu0 0.0
        %7722 = vmatprep.subr.mxu0 0.0
        %7723 = vmatpush1.msra.mxu0 0.0
        %7724 = vmatprep.subr.mxu0 0.0
        %7725 = vmatpush1.msra.mxu0 0.0
        %7726 = vmatprep.subr.mxu0 0.0
        %7727 = vmatpush1.msra.mxu0 0.0
        %7728 = vmatprep.subr.mxu0 0.0
        %7729 = vmatpush1.msra.mxu0 0.0
        %7730 = vmatprep.subr.mxu0 0.0
        %7731 = vmatpush1.msra.mxu0 0.0
        %7732 = vmatprep.subr.mxu0 0.0
        %7733 = vmatpush1.msra.mxu0 0.0
        %7734 = vmatprep.subr.mxu0 0.0
        %7735 = vmatpush1.msra.mxu0 0.0
        %7736 = vmatprep.subr.mxu0 0.0
        %7737 = vmatpush1.msra.mxu0 0.0
        %7738 = vmatprep.subr.mxu0 0.0
        %7739 = vmatpush1.msra.mxu0 0.0
        %7740 = vmatprep.subr.mxu0 0.0
        %7741 = vmatpush1.msra.mxu0 0.0
        %7742 = vmatprep.subr.mxu0 0.0
        %7743 = vmatpush1.msra.mxu0 0.0
        %7744 = vmatprep.subr.mxu0 0.0
        %7745 = vmatpush1.msra.mxu0 0.0
        %7746 = vmatprep.subr.mxu0 0.0
        %7747 = vmatpush1.msra.mxu0 0.0
        %7748 = vmatprep.subr.mxu0 0.0
        %7749 = vmatpush1.msra.mxu0 0.0
        %7750 = vmatprep.mubr.f32.mxu0 0.0
        %7751 = vmatmul.mubr.f32.gmra.mrb[0].mxu0 %v7684
        %v7752 = vpop.f32.mrb[0].mxu0
        %v7753 = vadd.f32 0.0, %v7752
        %v7754 = vpop.f32.mrb[0].mxu0
        %7755 = vdwg.mxu0
        %v7757 = vrot.slane %v7533, 1
        %v7758 = vrot.slane %v7533, 2
        %v7762 = vrcp.pop %v7533
        %v7763 = vmul.f32 %v7609, %v7762
        %v7764 = vrcp.pop %v7757
        %v7765 = vmul.f32 %v7681, %v7764
        %v7766 = vrcp.pop %v7758
        %v7767 = vmul.f32 %v7753, %v7766
        %v7768 = vld [vmem:[#allocation2] sm:$0x7]
        %v7769 = vld [vmem:[#allocation3] sm:$0x7]
        %v7770 = vld [vmem:[#allocation6] sm:$0xff]
        %v7771 = vld [vmem:[#allocation6 + $0x8] sm:$0xff]
        %v7772 = vld [vmem:[#allocation6 + $0x10] sm:$0xff]
        %v7773 = vld [vmem:[#allocation6 + $0x18] sm:$0xff]
        %v7774 = vld [vmem:[#allocation8] sm:$0xff]
        %v7775 = vld [vmem:[#allocation8 + $0x8] sm:$0xff]
        %v7776 = vld [vmem:[#allocation8 + $0x10] sm:$0xff]
        %v7777 = vld [vmem:[#allocation8 + $0x18] sm:$0xff]
        %v7779 = vsel %vm494, %v7768, 0
        %7781 = vmatprep.subr.mxu0 0.0
        %7782 = vmatpush1.msra.mxu0 %v7774
        %7783 = vmatprep.subr.mxu0 0.0
        %7784 = vmatpush1.msra.mxu0 %v7775
        %7785 = vmatprep.subr.mxu0 0.0
        %7786 = vmatpush1.msra.mxu0 %v7776
        %7787 = vmatprep.subr.mxu0 0.0
        %7788 = vmatpush1.msra.mxu0 %v7777
        %7789 = vmatprep.subr.mxu0 0.0
        %7790 = vmatpush1.msra.mxu0 0.0
        %7791 = vmatprep.subr.mxu0 0.0
        %7792 = vmatpush1.msra.mxu0 0.0
        %7793 = vmatprep.subr.mxu0 0.0
        %7794 = vmatpush1.msra.mxu0 0.0
        %7795 = vmatprep.subr.mxu0 0.0
        %7796 = vmatpush1.msra.mxu0 0.0
        %7797 = vmatprep.subr.mxu0 0.0
        %7798 = vmatpush1.msra.mxu0 0.0
        %7799 = vmatprep.subr.mxu0 0.0
        %7800 = vmatpush1.msra.mxu0 0.0
        %7801 = vmatprep.subr.mxu0 0.0
        %7802 = vmatpush1.msra.mxu0 0.0
        %7803 = vmatprep.subr.mxu0 0.0
        %7804 = vmatpush1.msra.mxu0 0.0
        %7805 = vmatprep.subr.mxu0 0.0
        %7806 = vmatpush1.msra.mxu0 0.0
        %7807 = vmatprep.subr.mxu0 0.0
        %7808 = vmatpush1.msra.mxu0 0.0
        %7809 = vmatprep.subr.mxu0 0.0
        %7810 = vmatpush1.msra.mxu0 0.0
        %7811 = vmatprep.subr.mxu0 0.0
        %7812 = vmatpush1.msra.mxu0 0.0
        %7813 = vmatprep.subr.mxu0 0.0
        %7814 = vmatpush1.msra.mxu0 0.0
        %7815 = vmatprep.subr.mxu0 0.0
        %7816 = vmatpush1.msra.mxu0 0.0
        %7817 = vmatprep.subr.mxu0 0.0
        %7818 = vmatpush1.msra.mxu0 0.0
        %7819 = vmatprep.subr.mxu0 0.0
        %7820 = vmatpush1.msra.mxu0 0.0
        %7821 = vmatprep.subr.mxu0 0.0
        %7822 = vmatpush1.msra.mxu0 0.0
        %7823 = vmatprep.subr.mxu0 0.0
        %7824 = vmatpush1.msra.mxu0 0.0
        %7825 = vmatprep.subr.mxu0 0.0
        %7826 = vmatpush1.msra.mxu0 0.0
        %7827 = vmatprep.subr.mxu0 0.0
        %7828 = vmatpush1.msra.mxu0 0.0
        %7829 = vmatprep.subr.mxu0 0.0
        %7830 = vmatpush1.msra.mxu0 0.0
        %7831 = vmatprep.subr.mxu0 0.0
        %7832 = vmatpush1.msra.mxu0 0.0
        %7833 = vmatprep.subr.mxu0 0.0
        %7834 = vmatpush1.msra.mxu0 0.0
        %7835 = vmatprep.subr.mxu0 0.0
        %7836 = vmatpush1.msra.mxu0 0.0
        %7837 = vmatprep.subr.mxu0 0.0
        %7838 = vmatpush1.msra.mxu0 0.0
        %7839 = vmatprep.subr.mxu0 0.0
        %7840 = vmatpush1.msra.mxu0 0.0
        %7841 = vmatprep.subr.mxu0 0.0
        %7842 = vmatpush1.msra.mxu0 0.0
        %7843 = vmatprep.subr.mxu0 0.0
        %7844 = vmatpush1.msra.mxu0 0.0
        %7845 = vmatprep.mubr.f32.mxu0 0.0
        %7846 = vmatmul.mubr.f32.gmra.mrb[0].mxu0 %v7779
        %v7847 = vpop.f32.mrb[0].mxu0
        %v7848 = vadd.f32 0.0, %v7847
        %v7849 = vpop.f32.mrb[0].mxu0
        %7850 = vdwg.mxu0
        %v7854 = vrot.slane %v7765, 7
        %v7855 = vsel %vm752, %v7854, %v7763
        %v7856 = vrot.slane %v7767, 6
        %v7857 = vsel %vm754, %v7856, %v7855
        %v7858 = vsel %vm494, %v7857, 0
        %7860 = vmatprep.subr.mxu0 0.0
        %7861 = vmatpush1.msra.mxu0 %v7770
        %7862 = vmatprep.subr.mxu0 0.0
        %7863 = vmatpush1.msra.mxu0 %v7771
        %7864 = vmatprep.subr.mxu0 0.0
        %7865 = vmatpush1.msra.mxu0 %v7772
        %7866 = vmatprep.subr.mxu0 0.0
        %7867 = vmatpush1.msra.mxu0 %v7773
        %7868 = vmatprep.subr.mxu0 0.0
        %7869 = vmatpush1.msra.mxu0 0.0
        %7870 = vmatprep.subr.mxu0 0.0
        %7871 = vmatpush1.msra.mxu0 0.0
        %7872 = vmatprep.subr.mxu0 0.0
        %7873 = vmatpush1.msra.mxu0 0.0
        %7874 = vmatprep.subr.mxu0 0.0
        %7875 = vmatpush1.msra.mxu0 0.0
        %7876 = vmatprep.subr.mxu0 0.0
        %7877 = vmatpush1.msra.mxu0 0.0
        %7878 = vmatprep.subr.mxu0 0.0
        %7879 = vmatpush1.msra.mxu0 0.0
        %7880 = vmatprep.subr.mxu0 0.0
        %7881 = vmatpush1.msra.mxu0 0.0
        %7882 = vmatprep.subr.mxu0 0.0
        %7883 = vmatpush1.msra.mxu0 0.0
        %7884 = vmatprep.subr.mxu0 0.0
        %7885 = vmatpush1.msra.mxu0 0.0
        %7886 = vmatprep.subr.mxu0 0.0
        %7887 = vmatpush1.msra.mxu0 0.0
        %7888 = vmatprep.subr.mxu0 0.0
        %7889 = vmatpush1.msra.mxu0 0.0
        %7890 = vmatprep.subr.mxu0 0.0
        %7891 = vmatpush1.msra.mxu0 0.0
        %7892 = vmatprep.subr.mxu0 0.0
        %7893 = vmatpush1.msra.mxu0 0.0
        %7894 = vmatprep.subr.mxu0 0.0
        %7895 = vmatpush1.msra.mxu0 0.0
        %7896 = vmatprep.subr.mxu0 0.0
        %7897 = vmatpush1.msra.mxu0 0.0
        %7898 = vmatprep.subr.mxu0 0.0
        %7899 = vmatpush1.msra.mxu0 0.0
        %7900 = vmatprep.subr.mxu0 0.0
        %7901 = vmatpush1.msra.mxu0 0.0
        %7902 = vmatprep.subr.mxu0 0.0
        %7903 = vmatpush1.msra.mxu0 0.0
        %7904 = vmatprep.subr.mxu0 0.0
        %7905 = vmatpush1.msra.mxu0 0.0
        %7906 = vmatprep.subr.mxu0 0.0
        %7907 = vmatpush1.msra.mxu0 0.0
        %7908 = vmatprep.subr.mxu0 0.0
        %7909 = vmatpush1.msra.mxu0 0.0
        %7910 = vmatprep.subr.mxu0 0.0
        %7911 = vmatpush1.msra.mxu0 0.0
        %7912 = vmatprep.subr.mxu0 0.0
        %7913 = vmatpush1.msra.mxu0 0.0
        %7914 = vmatprep.subr.mxu0 0.0
        %7915 = vmatpush1.msra.mxu0 0.0
        %7916 = vmatprep.subr.mxu0 0.0
        %7917 = vmatpush1.msra.mxu0 0.0
        %7918 = vmatprep.subr.mxu0 0.0
        %7919 = vmatpush1.msra.mxu0 0.0
        %7920 = vmatprep.subr.mxu0 0.0
        %7921 = vmatpush1.msra.mxu0 0.0
        %7922 = vmatprep.subr.mxu0 0.0
        %7923 = vmatpush1.msra.mxu0 0.0
        %7924 = vmatprep.mubr.f32.mxu0 0.0
        %7925 = vmatmul.mubr.f32.gmra.mrb[0].mxu0 %v7858
        %v7926 = vpop.f32.mrb[0].mxu0
        %v7927 = vadd.f32 %v7848, %v7926
        %v7928 = vpop.f32.mrb[0].mxu0
        %7929 = vdwg.mxu0
        %v7930 = vld [vmem:[%s7] sm:$0x1]
        %v7932 = vlaneseq
        %v7933 = vshrl.u32 %v7932, 7
        %v7934 = vsub.s32 0, %v7933
        %v7935 = vrot.slane %v7930, %v7934
        %v7937 = vadd.f32 %v7927, %v7935
        %v7938 = vld [vmem:[%s1386] sm:$0xff]
        %v7939 = vld [vmem:[%s1386 + $0x8] sm:$0xff]
        %v7940 = vld [vmem:[%s1386 + $0x10] sm:$0xff]
        %v7941 = vld [vmem:[%s1386 + $0x18] sm:$0xff]
        %v7942 = vld [vmem:[%s1391] sm:$0xff]
        %v7943 = vld [vmem:[%s1391 + $0x8] sm:$0xff]
        %v7944 = vld [vmem:[%s1391 + $0x10] sm:$0xff]
        %v7945 = vld [vmem:[%s1391 + $0x18] sm:$0xff]
        %7946 = vmatprep.subr.mxu0 0.0
        %7947 = vmatpush1.msra.mxu0 %v7942
        %7948 = vmatprep.subr.mxu0 0.0
        %7949 = vmatpush1.msra.mxu0 %v7943
        %7950 = vmatprep.subr.mxu0 0.0
        %7951 = vmatpush1.msra.mxu0 %v7944
        %7952 = vmatprep.subr.mxu0 0.0
        %7953 = vmatpush1.msra.mxu0 %v7945
        %7954 = vmatprep.subr.mxu0 0.0
        %7955 = vmatpush1.msra.mxu0 0.0
        %7956 = vmatprep.subr.mxu0 0.0
        %7957 = vmatpush1.msra.mxu0 0.0
        %7958 = vmatprep.subr.mxu0 0.0
        %7959 = vmatpush1.msra.mxu0 0.0
        %7960 = vmatprep.subr.mxu0 0.0
        %7961 = vmatpush1.msra.mxu0 0.0
        %7962 = vmatprep.subr.mxu0 0.0
        %7963 = vmatpush1.msra.mxu0 0.0
        %7964 = vmatprep.subr.mxu0 0.0
        %7965 = vmatpush1.msra.mxu0 0.0
        %7966 = vmatprep.subr.mxu0 0.0
        %7967 = vmatpush1.msra.mxu0 0.0
        %7968 = vmatprep.subr.mxu0 0.0
        %7969 = vmatpush1.msra.mxu0 0.0
        %7970 = vmatprep.subr.mxu0 0.0
        %7971 = vmatpush1.msra.mxu0 0.0
        %7972 = vmatprep.subr.mxu0 0.0
        %7973 = vmatpush1.msra.mxu0 0.0
        %7974 = vmatprep.subr.mxu0 0.0
        %7975 = vmatpush1.msra.mxu0 0.0
        %7976 = vmatprep.subr.mxu0 0.0
        %7977 = vmatpush1.msra.mxu0 0.0
        %7978 = vmatprep.subr.mxu0 0.0
        %7979 = vmatpush1.msra.mxu0 0.0
        %7980 = vmatprep.subr.mxu0 0.0
        %7981 = vmatpush1.msra.mxu0 0.0
        %7982 = vmatprep.subr.mxu0 0.0
        %7983 = vmatpush1.msra.mxu0 0.0
        %7984 = vmatprep.subr.mxu0 0.0
        %7985 = vmatpush1.msra.mxu0 0.0
        %7986 = vmatprep.subr.mxu0 0.0
        %7987 = vmatpush1.msra.mxu0 0.0
        %7988 = vmatprep.subr.mxu0 0.0
        %7989 = vmatpush1.msra.mxu0 0.0
        %7990 = vmatprep.subr.mxu0 0.0
        %7991 = vmatpush1.msra.mxu0 0.0
        %7992 = vmatprep.subr.mxu0 0.0
        %7993 = vmatpush1.msra.mxu0 0.0
        %7994 = vmatprep.subr.mxu0 0.0
        %7995 = vmatpush1.msra.mxu0 0.0
        %7996 = vmatprep.subr.mxu0 0.0
        %7997 = vmatpush1.msra.mxu0 0.0
        %7998 = vmatprep.subr.mxu0 0.0
        %7999 = vmatpush1.msra.mxu0 0.0
        %8000 = vmatprep.subr.mxu0 0.0
        %8001 = vmatpush1.msra.mxu0 0.0
        %8002 = vmatprep.subr.mxu0 0.0
        %8003 = vmatpush1.msra.mxu0 0.0
        %8004 = vmatprep.subr.mxu0 0.0
        %8005 = vmatpush1.msra.mxu0 0.0
        %8006 = vmatprep.subr.mxu0 0.0
        %8007 = vmatpush1.msra.mxu0 0.0
        %8008 = vmatprep.subr.mxu0 0.0
        %8009 = vmatpush1.msra.mxu0 0.0
        %8010 = vmatprep.mubr.f32.mxu0 0.0
        %8011 = vmatmul.mubr.f32.gmra.mrb[0].mxu0 %v7779
        %v8012 = vpop.f32.mrb[0].mxu0
        %v8013 = vadd.f32 0.0, %v8012
        %v8014 = vpop.f32.mrb[0].mxu0
        %8015 = vdwg.mxu0
        %8016 = vmatprep.subr.mxu0 0.0
        %8017 = vmatpush1.msra.mxu0 %v7938
        %8018 = vmatprep.subr.mxu0 0.0
        %8019 = vmatpush1.msra.mxu0 %v7939
        %8020 = vmatprep.subr.mxu0 0.0
        %8021 = vmatpush1.msra.mxu0 %v7940
        %8022 = vmatprep.subr.mxu0 0.0
        %8023 = vmatpush1.msra.mxu0 %v7941
        %8024 = vmatprep.subr.mxu0 0.0
        %8025 = vmatpush1.msra.mxu0 0.0
        %8026 = vmatprep.subr.mxu0 0.0
        %8027 = vmatpush1.msra.mxu0 0.0
        %8028 = vmatprep.subr.mxu0 0.0
        %8029 = vmatpush1.msra.mxu0 0.0
        %8030 = vmatprep.subr.mxu0 0.0
        %8031 = vmatpush1.msra.mxu0 0.0
        %8032 = vmatprep.subr.mxu0 0.0
        %8033 = vmatpush1.msra.mxu0 0.0
        %8034 = vmatprep.subr.mxu0 0.0
        %8035 = vmatpush1.msra.mxu0 0.0
        %8036 = vmatprep.subr.mxu0 0.0
        %8037 = vmatpush1.msra.mxu0 0.0
        %8038 = vmatprep.subr.mxu0 0.0
        %8039 = vmatpush1.msra.mxu0 0.0
        %8040 = vmatprep.subr.mxu0 0.0
        %8041 = vmatpush1.msra.mxu0 0.0
        %8042 = vmatprep.subr.mxu0 0.0
        %8043 = vmatpush1.msra.mxu0 0.0
        %8044 = vmatprep.subr.mxu0 0.0
        %8045 = vmatpush1.msra.mxu0 0.0
        %8046 = vmatprep.subr.mxu0 0.0
        %8047 = vmatpush1.msra.mxu0 0.0
        %8048 = vmatprep.subr.mxu0 0.0
        %8049 = vmatpush1.msra.mxu0 0.0
        %8050 = vmatprep.subr.mxu0 0.0
        %8051 = vmatpush1.msra.mxu0 0.0
        %8052 = vmatprep.subr.mxu0 0.0
        %8053 = vmatpush1.msra.mxu0 0.0
        %8054 = vmatprep.subr.mxu0 0.0
        %8055 = vmatpush1.msra.mxu0 0.0
        %8056 = vmatprep.subr.mxu0 0.0
        %8057 = vmatpush1.msra.mxu0 0.0
        %8058 = vmatprep.subr.mxu0 0.0
        %8059 = vmatpush1.msra.mxu0 0.0
        %8060 = vmatprep.subr.mxu0 0.0
        %8061 = vmatpush1.msra.mxu0 0.0
        %8062 = vmatprep.subr.mxu0 0.0
        %8063 = vmatpush1.msra.mxu0 0.0
        %8064 = vmatprep.subr.mxu0 0.0
        %8065 = vmatpush1.msra.mxu0 0.0
        %8066 = vmatprep.subr.mxu0 0.0
        %8067 = vmatpush1.msra.mxu0 0.0
        %8068 = vmatprep.subr.mxu0 0.0
        %8069 = vmatpush1.msra.mxu0 0.0
        %8070 = vmatprep.subr.mxu0 0.0
        %8071 = vmatpush1.msra.mxu0 0.0
        %8072 = vmatprep.subr.mxu0 0.0
        %8073 = vmatpush1.msra.mxu0 0.0
        %8074 = vmatprep.subr.mxu0 0.0
        %8075 = vmatpush1.msra.mxu0 0.0
        %8076 = vmatprep.subr.mxu0 0.0
        %8077 = vmatpush1.msra.mxu0 0.0
        %8078 = vmatprep.subr.mxu0 0.0
        %8079 = vmatpush1.msra.mxu0 0.0
        %8080 = vmatprep.mubr.f32.mxu0 0.0
        %8081 = vmatmul.mubr.f32.gmra.mrb[0].mxu0 %v7858
        %v8082 = vpop.f32.mrb[0].mxu0
        %v8083 = vadd.f32 %v8013, %v8082
        %v8084 = vpop.f32.mrb[0].mxu0
        %8085 = vdwg.mxu0
        %v8086 = vld [vmem:[%s1536] sm:$0x1]
        %v8088 = vlaneseq
        %v8089 = vshrl.u32 %v8088, 7
        %v8090 = vsub.s32 0, %v8089
        %v8091 = vrot.slane %v8086, %v8090
        %v8093 = vadd.f32 %v8083, %v8091
        %v8094 = vld [vmem:[%s1545] sm:$0xff]
        %v8095 = vld [vmem:[%s1545 + $0x8] sm:$0xff]
        %v8096 = vld [vmem:[%s1545 + $0x10] sm:$0xff]
        %v8097 = vld [vmem:[%s1545 + $0x18] sm:$0xff]
        %v8098 = vld [vmem:[%s1550] sm:$0xff]
        %v8099 = vld [vmem:[%s1550 + $0x8] sm:$0xff]
        %v8100 = vld [vmem:[%s1550 + $0x10] sm:$0xff]
        %v8101 = vld [vmem:[%s1550 + $0x18] sm:$0xff]
        %8102 = vmatprep.subr.mxu0 0.0
        %8103 = vmatpush1.msra.mxu0 %v8098
        %8104 = vmatprep.subr.mxu0 0.0
        %8105 = vmatpush1.msra.mxu0 %v8099
        %8106 = vmatprep.subr.mxu0 0.0
        %8107 = vmatpush1.msra.mxu0 %v8100
        %8108 = vmatprep.subr.mxu0 0.0
        %8109 = vmatpush1.msra.mxu0 %v8101
        %8110 = vmatprep.subr.mxu0 0.0
        %8111 = vmatpush1.msra.mxu0 0.0
        %8112 = vmatprep.subr.mxu0 0.0
        %8113 = vmatpush1.msra.mxu0 0.0
        %8114 = vmatprep.subr.mxu0 0.0
        %8115 = vmatpush1.msra.mxu0 0.0
        %8116 = vmatprep.subr.mxu0 0.0
        %8117 = vmatpush1.msra.mxu0 0.0
        %8118 = vmatprep.subr.mxu0 0.0
        %8119 = vmatpush1.msra.mxu0 0.0
        %8120 = vmatprep.subr.mxu0 0.0
        %8121 = vmatpush1.msra.mxu0 0.0
        %8122 = vmatprep.subr.mxu0 0.0
        %8123 = vmatpush1.msra.mxu0 0.0
        %8124 = vmatprep.subr.mxu0 0.0
        %8125 = vmatpush1.msra.mxu0 0.0
        %8126 = vmatprep.subr.mxu0 0.0
        %8127 = vmatpush1.msra.mxu0 0.0
        %8128 = vmatprep.subr.mxu0 0.0
        %8129 = vmatpush1.msra.mxu0 0.0
        %8130 = vmatprep.subr.mxu0 0.0
        %8131 = vmatpush1.msra.mxu0 0.0
        %8132 = vmatprep.subr.mxu0 0.0
        %8133 = vmatpush1.msra.mxu0 0.0
        %8134 = vmatprep.subr.mxu0 0.0
        %8135 = vmatpush1.msra.mxu0 0.0
        %8136 = vmatprep.subr.mxu0 0.0
        %8137 = vmatpush1.msra.mxu0 0.0
        %8138 = vmatprep.subr.mxu0 0.0
        %8139 = vmatpush1.msra.mxu0 0.0
        %8140 = vmatprep.subr.mxu0 0.0
        %8141 = vmatpush1.msra.mxu0 0.0
        %8142 = vmatprep.subr.mxu0 0.0
        %8143 = vmatpush1.msra.mxu0 0.0
        %8144 = vmatprep.subr.mxu0 0.0
        %8145 = vmatpush1.msra.mxu0 0.0
        %8146 = vmatprep.subr.mxu0 0.0
        %8147 = vmatpush1.msra.mxu0 0.0
        %8148 = vmatprep.subr.mxu0 0.0
        %8149 = vmatpush1.msra.mxu0 0.0
        %8150 = vmatprep.subr.mxu0 0.0
        %8151 = vmatpush1.msra.mxu0 0.0
        %8152 = vmatprep.subr.mxu0 0.0
        %8153 = vmatpush1.msra.mxu0 0.0
        %8154 = vmatprep.subr.mxu0 0.0
        %8155 = vmatpush1.msra.mxu0 0.0
        %8156 = vmatprep.subr.mxu0 0.0
        %8157 = vmatpush1.msra.mxu0 0.0
        %8158 = vmatprep.subr.mxu0 0.0
        %8159 = vmatpush1.msra.mxu0 0.0
        %8160 = vmatprep.subr.mxu0 0.0
        %8161 = vmatpush1.msra.mxu0 0.0
        %8162 = vmatprep.subr.mxu0 0.0
        %8163 = vmatpush1.msra.mxu0 0.0
        %8164 = vmatprep.subr.mxu0 0.0
        %8165 = vmatpush1.msra.mxu0 0.0
        %8166 = vmatprep.mubr.f32.mxu0 0.0
        %8167 = vmatmul.mubr.f32.gmra.mrb[0].mxu0 %v7779
        %v8168 = vpop.f32.mrb[0].mxu0
        %v8169 = vadd.f32 0.0, %v8168
        %v8170 = vpop.f32.mrb[0].mxu0
        %8171 = vdwg.mxu0
        %8172 = vmatprep.subr.mxu0 0.0
        %8173 = vmatpush1.msra.mxu0 %v8094
        %8174 = vmatprep.subr.mxu0 0.0
        %8175 = vmatpush1.msra.mxu0 %v8095
        %8176 = vmatprep.subr.mxu0 0.0
        %8177 = vmatpush1.msra.mxu0 %v8096
        %8178 = vmatprep.subr.mxu0 0.0
        %8179 = vmatpush1.msra.mxu0 %v8097
        %8180 = vmatprep.subr.mxu0 0.0
        %8181 = vmatpush1.msra.mxu0 0.0
        %8182 = vmatprep.subr.mxu0 0.0
        %8183 = vmatpush1.msra.mxu0 0.0
        %8184 = vmatprep.subr.mxu0 0.0
        %8185 = vmatpush1.msra.mxu0 0.0
        %8186 = vmatprep.subr.mxu0 0.0
        %8187 = vmatpush1.msra.mxu0 0.0
        %8188 = vmatprep.subr.mxu0 0.0
        %8189 = vmatpush1.msra.mxu0 0.0
        %8190 = vmatprep.subr.mxu0 0.0
        %8191 = vmatpush1.msra.mxu0 0.0
        %8192 = vmatprep.subr.mxu0 0.0
        %8193 = vmatpush1.msra.mxu0 0.0
        %8194 = vmatprep.subr.mxu0 0.0
        %8195 = vmatpush1.msra.mxu0 0.0
        %8196 = vmatprep.subr.mxu0 0.0
        %8197 = vmatpush1.msra.mxu0 0.0
        %8198 = vmatprep.subr.mxu0 0.0
        %8199 = vmatpush1.msra.mxu0 0.0
        %8200 = vmatprep.subr.mxu0 0.0
        %8201 = vmatpush1.msra.mxu0 0.0
        %8202 = vmatprep.subr.mxu0 0.0
        %8203 = vmatpush1.msra.mxu0 0.0
        %8204 = vmatprep.subr.mxu0 0.0
        %8205 = vmatpush1.msra.mxu0 0.0
        %8206 = vmatprep.subr.mxu0 0.0
        %8207 = vmatpush1.msra.mxu0 0.0
        %8208 = vmatprep.subr.mxu0 0.0
        %8209 = vmatpush1.msra.mxu0 0.0
        %8210 = vmatprep.subr.mxu0 0.0
        %8211 = vmatpush1.msra.mxu0 0.0
        %8212 = vmatprep.subr.mxu0 0.0
        %8213 = vmatpush1.msra.mxu0 0.0
        %8214 = vmatprep.subr.mxu0 0.0
        %8215 = vmatpush1.msra.mxu0 0.0
        %8216 = vmatprep.subr.mxu0 0.0
        %8217 = vmatpush1.msra.mxu0 0.0
        %8218 = vmatprep.subr.mxu0 0.0
        %8219 = vmatpush1.msra.mxu0 0.0
        %8220 = vmatprep.subr.mxu0 0.0
        %8221 = vmatpush1.msra.mxu0 0.0
        %8222 = vmatprep.subr.mxu0 0.0
        %8223 = vmatpush1.msra.mxu0 0.0
        %8224 = vmatprep.subr.mxu0 0.0
        %8225 = vmatpush1.msra.mxu0 0.0
        %8226 = vmatprep.subr.mxu0 0.0
        %8227 = vmatpush1.msra.mxu0 0.0
        %8228 = vmatprep.subr.mxu0 0.0
        %8229 = vmatpush1.msra.mxu0 0.0
        %8230 = vmatprep.subr.mxu0 0.0
        %8231 = vmatpush1.msra.mxu0 0.0
        %8232 = vmatprep.subr.mxu0 0.0
        %8233 = vmatpush1.msra.mxu0 0.0
        %8234 = vmatprep.subr.mxu0 0.0
        %8235 = vmatpush1.msra.mxu0 0.0
        %8236 = vmatprep.mubr.f32.mxu0 0.0
        %8237 = vmatmul.mubr.f32.gmra.mrb[0].mxu0 %v7858
        %v8238 = vpop.f32.mrb[0].mxu0
        %v8239 = vadd.f32 %v8169, %v8238
        %v8240 = vpop.f32.mrb[0].mxu0
        %8241 = vdwg.mxu0
        %v8242 = vld [vmem:[%s1695] sm:$0x1]
        %v8244 = vlaneseq
        %v8245 = vshrl.u32 %v8244, 7
        %v8246 = vsub.s32 0, %v8245
        %v8247 = vrot.slane %v8242, %v8246
        %v8249 = vadd.f32 %v8239, %v8247
        %v8250 = vld [vmem:[%s1704] sm:$0xff]
        %v8251 = vld [vmem:[%s1704 + $0x8] sm:$0xff]
        %v8252 = vld [vmem:[%s1704 + $0x10] sm:$0xff]
        %v8253 = vld [vmem:[%s1704 + $0x18] sm:$0xff]
        %v8254 = vld [vmem:[%s1709] sm:$0xff]
        %v8255 = vld [vmem:[%s1709 + $0x8] sm:$0xff]
        %v8256 = vld [vmem:[%s1709 + $0x10] sm:$0xff]
        %v8257 = vld [vmem:[%s1709 + $0x18] sm:$0xff]
        %8258 = vmatprep.subr.mxu0 0.0
        %8259 = vmatpush1.msra.mxu0 %v8254
        %8260 = vmatprep.subr.mxu0 0.0
        %8261 = vmatpush1.msra.mxu0 %v8255
        %8262 = vmatprep.subr.mxu0 0.0
        %8263 = vmatpush1.msra.mxu0 %v8256
        %8264 = vmatprep.subr.mxu0 0.0
        %8265 = vmatpush1.msra.mxu0 %v8257
        %8266 = vmatprep.subr.mxu0 0.0
        %8267 = vmatpush1.msra.mxu0 0.0
        %8268 = vmatprep.subr.mxu0 0.0
        %8269 = vmatpush1.msra.mxu0 0.0
        %8270 = vmatprep.subr.mxu0 0.0
        %8271 = vmatpush1.msra.mxu0 0.0
        %8272 = vmatprep.subr.mxu0 0.0
        %8273 = vmatpush1.msra.mxu0 0.0
        %8274 = vmatprep.subr.mxu0 0.0
        %8275 = vmatpush1.msra.mxu0 0.0
        %8276 = vmatprep.subr.mxu0 0.0
        %8277 = vmatpush1.msra.mxu0 0.0
        %8278 = vmatprep.subr.mxu0 0.0
        %8279 = vmatpush1.msra.mxu0 0.0
        %8280 = vmatprep.subr.mxu0 0.0
        %8281 = vmatpush1.msra.mxu0 0.0
        %8282 = vmatprep.subr.mxu0 0.0
        %8283 = vmatpush1.msra.mxu0 0.0
        %8284 = vmatprep.subr.mxu0 0.0
        %8285 = vmatpush1.msra.mxu0 0.0
        %8286 = vmatprep.subr.mxu0 0.0
        %8287 = vmatpush1.msra.mxu0 0.0
        %8288 = vmatprep.subr.mxu0 0.0
        %8289 = vmatpush1.msra.mxu0 0.0
        %8290 = vmatprep.subr.mxu0 0.0
        %8291 = vmatpush1.msra.mxu0 0.0
        %8292 = vmatprep.subr.mxu0 0.0
        %8293 = vmatpush1.msra.mxu0 0.0
        %8294 = vmatprep.subr.mxu0 0.0
        %8295 = vmatpush1.msra.mxu0 0.0
        %8296 = vmatprep.subr.mxu0 0.0
        %8297 = vmatpush1.msra.mxu0 0.0
        %8298 = vmatprep.subr.mxu0 0.0
        %8299 = vmatpush1.msra.mxu0 0.0
        %8300 = vmatprep.subr.mxu0 0.0
        %8301 = vmatpush1.msra.mxu0 0.0
        %8302 = vmatprep.subr.mxu0 0.0
        %8303 = vmatpush1.msra.mxu0 0.0
        %8304 = vmatprep.subr.mxu0 0.0
        %8305 = vmatpush1.msra.mxu0 0.0
        %8306 = vmatprep.subr.mxu0 0.0
        %8307 = vmatpush1.msra.mxu0 0.0
        %8308 = vmatprep.subr.mxu0 0.0
        %8309 = vmatpush1.msra.mxu0 0.0
        %8310 = vmatprep.subr.mxu0 0.0
        %8311 = vmatpush1.msra.mxu0 0.0
        %8312 = vmatprep.subr.mxu0 0.0
        %8313 = vmatpush1.msra.mxu0 0.0
        %8314 = vmatprep.subr.mxu0 0.0
        %8315 = vmatpush1.msra.mxu0 0.0
        %8316 = vmatprep.subr.mxu0 0.0
        %8317 = vmatpush1.msra.mxu0 0.0
        %8318 = vmatprep.subr.mxu0 0.0
        %8319 = vmatpush1.msra.mxu0 0.0
        %8320 = vmatprep.subr.mxu0 0.0
        %8321 = vmatpush1.msra.mxu0 0.0
        %8322 = vmatprep.mubr.f32.mxu0 0.0
        %8323 = vmatmul.mubr.f32.gmra.mrb[0].mxu0 %v7779
        %v8324 = vpop.f32.mrb[0].mxu0
        %v8325 = vadd.f32 0.0, %v8324
        %v8326 = vpop.f32.mrb[0].mxu0
        %8327 = vdwg.mxu0
        %8328 = vmatprep.subr.mxu0 0.0
        %8329 = vmatpush1.msra.mxu0 %v8250
        %8330 = vmatprep.subr.mxu0 0.0
        %8331 = vmatpush1.msra.mxu0 %v8251
        %8332 = vmatprep.subr.mxu0 0.0
        %8333 = vmatpush1.msra.mxu0 %v8252
        %8334 = vmatprep.subr.mxu0 0.0
        %8335 = vmatpush1.msra.mxu0 %v8253
        %8336 = vmatprep.subr.mxu0 0.0
        %8337 = vmatpush1.msra.mxu0 0.0
        %8338 = vmatprep.subr.mxu0 0.0
        %8339 = vmatpush1.msra.mxu0 0.0
        %8340 = vmatprep.subr.mxu0 0.0
        %8341 = vmatpush1.msra.mxu0 0.0
        %8342 = vmatprep.subr.mxu0 0.0
        %8343 = vmatpush1.msra.mxu0 0.0
        %8344 = vmatprep.subr.mxu0 0.0
        %8345 = vmatpush1.msra.mxu0 0.0
        %8346 = vmatprep.subr.mxu0 0.0
        %8347 = vmatpush1.msra.mxu0 0.0
        %8348 = vmatprep.subr.mxu0 0.0
        %8349 = vmatpush1.msra.mxu0 0.0
        %8350 = vmatprep.subr.mxu0 0.0
        %8351 = vmatpush1.msra.mxu0 0.0
        %8352 = vmatprep.subr.mxu0 0.0
        %8353 = vmatpush1.msra.mxu0 0.0
        %8354 = vmatprep.subr.mxu0 0.0
        %8355 = vmatpush1.msra.mxu0 0.0
        %8356 = vmatprep.subr.mxu0 0.0
        %8357 = vmatpush1.msra.mxu0 0.0
        %8358 = vmatprep.subr.mxu0 0.0
        %8359 = vmatpush1.msra.mxu0 0.0
        %8360 = vmatprep.subr.mxu0 0.0
        %8361 = vmatpush1.msra.mxu0 0.0
        %8362 = vmatprep.subr.mxu0 0.0
        %8363 = vmatpush1.msra.mxu0 0.0
        %8364 = vmatprep.subr.mxu0 0.0
        %8365 = vmatpush1.msra.mxu0 0.0
        %8366 = vmatprep.subr.mxu0 0.0
        %8367 = vmatpush1.msra.mxu0 0.0
        %8368 = vmatprep.subr.mxu0 0.0
        %8369 = vmatpush1.msra.mxu0 0.0
        %8370 = vmatprep.subr.mxu0 0.0
        %8371 = vmatpush1.msra.mxu0 0.0
        %8372 = vmatprep.subr.mxu0 0.0
        %8373 = vmatpush1.msra.mxu0 0.0
        %8374 = vmatprep.subr.mxu0 0.0
        %8375 = vmatpush1.msra.mxu0 0.0
        %8376 = vmatprep.subr.mxu0 0.0
        %8377 = vmatpush1.msra.mxu0 0.0
        %8378 = vmatprep.subr.mxu0 0.0
        %8379 = vmatpush1.msra.mxu0 0.0
        %8380 = vmatprep.subr.mxu0 0.0
        %8381 = vmatpush1.msra.mxu0 0.0
        %8382 = vmatprep.subr.mxu0 0.0
        %8383 = vmatpush1.msra.mxu0 0.0
        %8384 = vmatprep.subr.mxu0 0.0
        %8385 = vmatpush1.msra.mxu0 0.0
        %8386 = vmatprep.subr.mxu0 0.0
        %8387 = vmatpush1.msra.mxu0 0.0
        %8388 = vmatprep.subr.mxu0 0.0
        %8389 = vmatpush1.msra.mxu0 0.0
        %8390 = vmatprep.subr.mxu0 0.0
        %8391 = vmatpush1.msra.mxu0 0.0
        %8392 = vmatprep.mubr.f32.mxu0 0.0
        %8393 = vmatmul.mubr.f32.gmra.mrb[0].mxu0 %v7858
        %v8394 = vpop.f32.mrb[0].mxu0
        %v8395 = vadd.f32 %v8325, %v8394
        %v8396 = vpop.f32.mrb[0].mxu0
        %8397 = vdwg.mxu0
        %v8398 = vld [vmem:[%s1854] sm:$0x1]
        %v8400 = vlaneseq
        %v8401 = vshrl.u32 %v8400, 7
        %v8402 = vsub.s32 0, %v8401
        %v8403 = vrot.slane %v8398, %v8402
        %v8405 = vadd.f32 %v8395, %v8403
        %v8406 = vxor.u32 %v7937, 2147483648
        %v8407 = vmul.f32 %v8406, 1.442695
        %v8408 = vpow.pop %v8407
        %v8409 = vadd.f32 %v8408, 1.0
        %v8410 = vrcp.pop %v8409
        %v8411 = vmul.f32 1.0, %v8410
        %v8412 = vxor.u32 %v8093, 2147483648
        %v8413 = vmul.f32 %v8412, 1.442695
        %v8414 = vpow.pop %v8413
        %v8415 = vadd.f32 %v8414, 1.0
        %v8416 = vrcp.pop %v8415
        %v8417 = vmul.f32 1.0, %v8416
        %v8418 = vtanh.pop %v8249
        %v8419 = vxor.u32 %v8405, 2147483648
        %v8420 = vmul.f32 %v8419, 1.442695
        %v8421 = vpow.pop %v8420
        %v8422 = vadd.f32 %v8421, 1.0
        %v8423 = vrcp.pop %v8422
        %v8424 = vmul.f32 1.0, %v8423
        %v8425 = vmul.f32 %v8417, %v7769
        %v8426 = vmul.f32 %v8411, %v8418
        %v8427 = vadd.f32 %v8425, %v8426
        %v8428 = vtanh.pop %v8427
        %v8429 = vmul.f32 %v8424, %v8428
        %8430 = vst.msk [vmem:[#allocation2] sm:$0x7] %vm1887, %v8429
        %8431 = vst.msk [vmem:[#allocation3] sm:$0x7] %vm1887, %v8427
        %v8432 = vld [vmem:[%s465] sm:$0x7]
        %v8433 = vld [vmem:[%s1891] sm:$0x7]
        %v8434 = vld [vmem:[#allocation6] sm:$0xff]
        %v8435 = vld [vmem:[#allocation6 + $0x8] sm:$0xff]
        %v8436 = vld [vmem:[#allocation6 + $0x10] sm:$0xff]
        %v8437 = vld [vmem:[#allocation6 + $0x18] sm:$0xff]
        %v8438 = vld [vmem:[#allocation8] sm:$0xff]
        %v8439 = vld [vmem:[#allocation8 + $0x8] sm:$0xff]
        %v8440 = vld [vmem:[#allocation8 + $0x10] sm:$0xff]
        %v8441 = vld [vmem:[#allocation8 + $0x18] sm:$0xff]
        %v8443 = vsel %vm494, %v8432, 0
        %8445 = vmatprep.subr.mxu0 0.0
        %8446 = vmatpush1.msra.mxu0 %v8438
        %8447 = vmatprep.subr.mxu0 0.0
        %8448 = vmatpush1.msra.mxu0 %v8439
        %8449 = vmatprep.subr.mxu0 0.0
        %8450 = vmatpush1.msra.mxu0 %v8440
        %8451 = vmatprep.subr.mxu0 0.0
        %8452 = vmatpush1.msra.mxu0 %v8441
        %8453 = vmatprep.subr.mxu0 0.0
        %8454 = vmatpush1.msra.mxu0 0.0
        %8455 = vmatprep.subr.mxu0 0.0
        %8456 = vmatpush1.msra.mxu0 0.0
        %8457 = vmatprep.subr.mxu0 0.0
        %8458 = vmatpush1.msra.mxu0 0.0
        %8459 = vmatprep.subr.mxu0 0.0
        %8460 = vmatpush1.msra.mxu0 0.0
        %8461 = vmatprep.subr.mxu0 0.0
        %8462 = vmatpush1.msra.mxu0 0.0
        %8463 = vmatprep.subr.mxu0 0.0
        %8464 = vmatpush1.msra.mxu0 0.0
        %8465 = vmatprep.subr.mxu0 0.0
        %8466 = vmatpush1.msra.mxu0 0.0
        %8467 = vmatprep.subr.mxu0 0.0
        %8468 = vmatpush1.msra.mxu0 0.0
        %8469 = vmatprep.subr.mxu0 0.0
        %8470 = vmatpush1.msra.mxu0 0.0
        %8471 = vmatprep.subr.mxu0 0.0
        %8472 = vmatpush1.msra.mxu0 0.0
        %8473 = vmatprep.subr.mxu0 0.0
        %8474 = vmatpush1.msra.mxu0 0.0
        %8475 = vmatprep.subr.mxu0 0.0
        %8476 = vmatpush1.msra.mxu0 0.0
        %8477 = vmatprep.subr.mxu0 0.0
        %8478 = vmatpush1.msra.mxu0 0.0
        %8479 = vmatprep.subr.mxu0 0.0
        %8480 = vmatpush1.msra.mxu0 0.0
        %8481 = vmatprep.subr.mxu0 0.0
        %8482 = vmatpush1.msra.mxu0 0.0
        %8483 = vmatprep.subr.mxu0 0.0
        %8484 = vmatpush1.msra.mxu0 0.0
        %8485 = vmatprep.subr.mxu0 0.0
        %8486 = vmatpush1.msra.mxu0 0.0
        %8487 = vmatprep.subr.mxu0 0.0
        %8488 = vmatpush1.msra.mxu0 0.0
        %8489 = vmatprep.subr.mxu0 0.0
        %8490 = vmatpush1.msra.mxu0 0.0
        %8491 = vmatprep.subr.mxu0 0.0
        %8492 = vmatpush1.msra.mxu0 0.0
        %8493 = vmatprep.subr.mxu0 0.0
        %8494 = vmatpush1.msra.mxu0 0.0
        %8495 = vmatprep.subr.mxu0 0.0
        %8496 = vmatpush1.msra.mxu0 0.0
        %8497 = vmatprep.subr.mxu0 0.0
        %8498 = vmatpush1.msra.mxu0 0.0
        %8499 = vmatprep.subr.mxu0 0.0
        %8500 = vmatpush1.msra.mxu0 0.0
        %8501 = vmatprep.subr.mxu0 0.0
        %8502 = vmatpush1.msra.mxu0 0.0
        %8503 = vmatprep.subr.mxu0 0.0
        %8504 = vmatpush1.msra.mxu0 0.0
        %8505 = vmatprep.subr.mxu0 0.0
        %8506 = vmatpush1.msra.mxu0 0.0
        %8507 = vmatprep.subr.mxu0 0.0
        %8508 = vmatpush1.msra.mxu0 0.0
        %8509 = vmatprep.mubr.f32.mxu0 0.0
        %8510 = vmatmul.mubr.f32.gmra.mrb[0].mxu0 %v8443
        %v8511 = vpop.f32.mrb[0].mxu0
        %v8512 = vadd.f32 0.0, %v8511
        %v8513 = vpop.f32.mrb[0].mxu0
        %8514 = vdwg.mxu0
        %v8516 = vsel %vm494, %v8429, 0
        %8518 = vmatprep.subr.mxu0 0.0
        %8519 = vmatpush1.msra.mxu0 %v8434
        %8520 = vmatprep.subr.mxu0 0.0
        %8521 = vmatpush1.msra.mxu0 %v8435
        %8522 = vmatprep.subr.mxu0 0.0
        %8523 = vmatpush1.msra.mxu0 %v8436
        %8524 = vmatprep.subr.mxu0 0.0
        %8525 = vmatpush1.msra.mxu0 %v8437
        %8526 = vmatprep.subr.mxu0 0.0
        %8527 = vmatpush1.msra.mxu0 0.0
        %8528 = vmatprep.subr.mxu0 0.0
        %8529 = vmatpush1.msra.mxu0 0.0
        %8530 = vmatprep.subr.mxu0 0.0
        %8531 = vmatpush1.msra.mxu0 0.0
        %8532 = vmatprep.subr.mxu0 0.0
        %8533 = vmatpush1.msra.mxu0 0.0
        %8534 = vmatprep.subr.mxu0 0.0
        %8535 = vmatpush1.msra.mxu0 0.0
        %8536 = vmatprep.subr.mxu0 0.0
        %8537 = vmatpush1.msra.mxu0 0.0
        %8538 = vmatprep.subr.mxu0 0.0
        %8539 = vmatpush1.msra.mxu0 0.0
        %8540 = vmatprep.subr.mxu0 0.0
        %8541 = vmatpush1.msra.mxu0 0.0
        %8542 = vmatprep.subr.mxu0 0.0
        %8543 = vmatpush1.msra.mxu0 0.0
        %8544 = vmatprep.subr.mxu0 0.0
        %8545 = vmatpush1.msra.mxu0 0.0
        %8546 = vmatprep.subr.mxu0 0.0
        %8547 = vmatpush1.msra.mxu0 0.0
        %8548 = vmatprep.subr.mxu0 0.0
        %8549 = vmatpush1.msra.mxu0 0.0
        %8550 = vmatprep.subr.mxu0 0.0
        %8551 = vmatpush1.msra.mxu0 0.0
        %8552 = vmatprep.subr.mxu0 0.0
        %8553 = vmatpush1.msra.mxu0 0.0
        %8554 = vmatprep.subr.mxu0 0.0
        %8555 = vmatpush1.msra.mxu0 0.0
        %8556 = vmatprep.subr.mxu0 0.0
        %8557 = vmatpush1.msra.mxu0 0.0
        %8558 = vmatprep.subr.mxu0 0.0
        %8559 = vmatpush1.msra.mxu0 0.0
        %8560 = vmatprep.subr.mxu0 0.0
        %8561 = vmatpush1.msra.mxu0 0.0
        %8562 = vmatprep.subr.mxu0 0.0
        %8563 = vmatpush1.msra.mxu0 0.0
        %8564 = vmatprep.subr.mxu0 0.0
        %8565 = vmatpush1.msra.mxu0 0.0
        %8566 = vmatprep.subr.mxu0 0.0
        %8567 = vmatpush1.msra.mxu0 0.0
        %8568 = vmatprep.subr.mxu0 0.0
        %8569 = vmatpush1.msra.mxu0 0.0
        %8570 = vmatprep.subr.mxu0 0.0
        %8571 = vmatpush1.msra.mxu0 0.0
        %8572 = vmatprep.subr.mxu0 0.0
        %8573 = vmatpush1.msra.mxu0 0.0
        %8574 = vmatprep.subr.mxu0 0.0
        %8575 = vmatpush1.msra.mxu0 0.0
        %8576 = vmatprep.subr.mxu0 0.0
        %8577 = vmatpush1.msra.mxu0 0.0
        %8578 = vmatprep.subr.mxu0 0.0
        %8579 = vmatpush1.msra.mxu0 0.0
        %8580 = vmatprep.subr.mxu0 0.0
        %8581 = vmatpush1.msra.mxu0 0.0
        %8582 = vmatprep.mubr.f32.mxu0 0.0
        %8583 = vmatmul.mubr.f32.gmra.mrb[0].mxu0 %v8516
        %v8584 = vpop.f32.mrb[0].mxu0
        %v8585 = vadd.f32 %v8512, %v8584
        %v8586 = vpop.f32.mrb[0].mxu0
        %8587 = vdwg.mxu0
        %v8588 = vld [vmem:[%s7] sm:$0x1]
        %v8590 = vlaneseq
        %v8591 = vshrl.u32 %v8590, 7
        %v8592 = vsub.s32 0, %v8591
        %v8593 = vrot.slane %v8588, %v8592
        %v8595 = vadd.f32 %v8585, %v8593
        %v8596 = vld [vmem:[%s1386] sm:$0xff]
        %v8597 = vld [vmem:[%s1386 + $0x8] sm:$0xff]
        %v8598 = vld [vmem:[%s1386 + $0x10] sm:$0xff]
        %v8599 = vld [vmem:[%s1386 + $0x18] sm:$0xff]
        %v8600 = vld [vmem:[%s1391] sm:$0xff]
        %v8601 = vld [vmem:[%s1391 + $0x8] sm:$0xff]
        %v8602 = vld [vmem:[%s1391 + $0x10] sm:$0xff]
        %v8603 = vld [vmem:[%s1391 + $0x18] sm:$0xff]
        %8604 = vmatprep.subr.mxu0 0.0
        %8605 = vmatpush1.msra.mxu0 %v8600
        %8606 = vmatprep.subr.mxu0 0.0
        %8607 = vmatpush1.msra.mxu0 %v8601
        %8608 = vmatprep.subr.mxu0 0.0
        %8609 = vmatpush1.msra.mxu0 %v8602
        %8610 = vmatprep.subr.mxu0 0.0
        %8611 = vmatpush1.msra.mxu0 %v8603
        %8612 = vmatprep.subr.mxu0 0.0
        %8613 = vmatpush1.msra.mxu0 0.0
        %8614 = vmatprep.subr.mxu0 0.0
        %8615 = vmatpush1.msra.mxu0 0.0
        %8616 = vmatprep.subr.mxu0 0.0
        %8617 = vmatpush1.msra.mxu0 0.0
        %8618 = vmatprep.subr.mxu0 0.0
        %8619 = vmatpush1.msra.mxu0 0.0
        %8620 = vmatprep.subr.mxu0 0.0
        %8621 = vmatpush1.msra.mxu0 0.0
        %8622 = vmatprep.subr.mxu0 0.0
        %8623 = vmatpush1.msra.mxu0 0.0
        %8624 = vmatprep.subr.mxu0 0.0
        %8625 = vmatpush1.msra.mxu0 0.0
        %8626 = vmatprep.subr.mxu0 0.0
        %8627 = vmatpush1.msra.mxu0 0.0
        %8628 = vmatprep.subr.mxu0 0.0
        %8629 = vmatpush1.msra.mxu0 0.0
        %8630 = vmatprep.subr.mxu0 0.0
        %8631 = vmatpush1.msra.mxu0 0.0
        %8632 = vmatprep.subr.mxu0 0.0
        %8633 = vmatpush1.msra.mxu0 0.0
        %8634 = vmatprep.subr.mxu0 0.0
        %8635 = vmatpush1.msra.mxu0 0.0
        %8636 = vmatprep.subr.mxu0 0.0
        %8637 = vmatpush1.msra.mxu0 0.0
        %8638 = vmatprep.subr.mxu0 0.0
        %8639 = vmatpush1.msra.mxu0 0.0
        %8640 = vmatprep.subr.mxu0 0.0
        %8641 = vmatpush1.msra.mxu0 0.0
        %8642 = vmatprep.subr.mxu0 0.0
        %8643 = vmatpush1.msra.mxu0 0.0
        %8644 = vmatprep.subr.mxu0 0.0
        %8645 = vmatpush1.msra.mxu0 0.0
        %8646 = vmatprep.subr.mxu0 0.0
        %8647 = vmatpush1.msra.mxu0 0.0
        %8648 = vmatprep.subr.mxu0 0.0
        %8649 = vmatpush1.msra.mxu0 0.0
        %8650 = vmatprep.subr.mxu0 0.0
        %8651 = vmatpush1.msra.mxu0 0.0
        %8652 = vmatprep.subr.mxu0 0.0
        %8653 = vmatpush1.msra.mxu0 0.0
        %8654 = vmatprep.subr.mxu0 0.0
        %8655 = vmatpush1.msra.mxu0 0.0
        %8656 = vmatprep.subr.mxu0 0.0
        %8657 = vmatpush1.msra.mxu0 0.0
        %8658 = vmatprep.subr.mxu0 0.0
        %8659 = vmatpush1.msra.mxu0 0.0
        %8660 = vmatprep.subr.mxu0 0.0
        %8661 = vmatpush1.msra.mxu0 0.0
        %8662 = vmatprep.subr.mxu0 0.0
        %8663 = vmatpush1.msra.mxu0 0.0
        %8664 = vmatprep.subr.mxu0 0.0
        %8665 = vmatpush1.msra.mxu0 0.0
        %8666 = vmatprep.subr.mxu0 0.0
        %8667 = vmatpush1.msra.mxu0 0.0
        %8668 = vmatprep.mubr.f32.mxu0 0.0
        %8669 = vmatmul.mubr.f32.gmra.mrb[0].mxu0 %v8443
        %v8670 = vpop.f32.mrb[0].mxu0
        %v8671 = vadd.f32 0.0, %v8670
        %v8672 = vpop.f32.mrb[0].mxu0
        %8673 = vdwg.mxu0
        %8674 = vmatprep.subr.mxu0 0.0
        %8675 = vmatpush1.msra.mxu0 %v8596
        %8676 = vmatprep.subr.mxu0 0.0
        %8677 = vmatpush1.msra.mxu0 %v8597
        %8678 = vmatprep.subr.mxu0 0.0
        %8679 = vmatpush1.msra.mxu0 %v8598
        %8680 = vmatprep.subr.mxu0 0.0
        %8681 = vmatpush1.msra.mxu0 %v8599
        %8682 = vmatprep.subr.mxu0 0.0
        %8683 = vmatpush1.msra.mxu0 0.0
        %8684 = vmatprep.subr.mxu0 0.0
        %8685 = vmatpush1.msra.mxu0 0.0
        %8686 = vmatprep.subr.mxu0 0.0
        %8687 = vmatpush1.msra.mxu0 0.0
        %8688 = vmatprep.subr.mxu0 0.0
        %8689 = vmatpush1.msra.mxu0 0.0
        %8690 = vmatprep.subr.mxu0 0.0
        %8691 = vmatpush1.msra.mxu0 0.0
        %8692 = vmatprep.subr.mxu0 0.0
        %8693 = vmatpush1.msra.mxu0 0.0
        %8694 = vmatprep.subr.mxu0 0.0
        %8695 = vmatpush1.msra.mxu0 0.0
        %8696 = vmatprep.subr.mxu0 0.0
        %8697 = vmatpush1.msra.mxu0 0.0
        %8698 = vmatprep.subr.mxu0 0.0
        %8699 = vmatpush1.msra.mxu0 0.0
        %8700 = vmatprep.subr.mxu0 0.0
        %8701 = vmatpush1.msra.mxu0 0.0
        %8702 = vmatprep.subr.mxu0 0.0
        %8703 = vmatpush1.msra.mxu0 0.0
        %8704 = vmatprep.subr.mxu0 0.0
        %8705 = vmatpush1.msra.mxu0 0.0
        %8706 = vmatprep.subr.mxu0 0.0
        %8707 = vmatpush1.msra.mxu0 0.0
        %8708 = vmatprep.subr.mxu0 0.0
        %8709 = vmatpush1.msra.mxu0 0.0
        %8710 = vmatprep.subr.mxu0 0.0
        %8711 = vmatpush1.msra.mxu0 0.0
        %8712 = vmatprep.subr.mxu0 0.0
        %8713 = vmatpush1.msra.mxu0 0.0
        %8714 = vmatprep.subr.mxu0 0.0
        %8715 = vmatpush1.msra.mxu0 0.0
        %8716 = vmatprep.subr.mxu0 0.0
        %8717 = vmatpush1.msra.mxu0 0.0
        %8718 = vmatprep.subr.mxu0 0.0
        %8719 = vmatpush1.msra.mxu0 0.0
        %8720 = vmatprep.subr.mxu0 0.0
        %8721 = vmatpush1.msra.mxu0 0.0
        %8722 = vmatprep.subr.mxu0 0.0
        %8723 = vmatpush1.msra.mxu0 0.0
        %8724 = vmatprep.subr.mxu0 0.0
        %8725 = vmatpush1.msra.mxu0 0.0
        %8726 = vmatprep.subr.mxu0 0.0
        %8727 = vmatpush1.msra.mxu0 0.0
        %8728 = vmatprep.subr.mxu0 0.0
        %8729 = vmatpush1.msra.mxu0 0.0
        %8730 = vmatprep.subr.mxu0 0.0
        %8731 = vmatpush1.msra.mxu0 0.0
        %8732 = vmatprep.subr.mxu0 0.0
        %8733 = vmatpush1.msra.mxu0 0.0
        %8734 = vmatprep.subr.mxu0 0.0
        %8735 = vmatpush1.msra.mxu0 0.0
        %8736 = vmatprep.subr.mxu0 0.0
        %8737 = vmatpush1.msra.mxu0 0.0
        %8738 = vmatprep.mubr.f32.mxu0 0.0
        %8739 = vmatmul.mubr.f32.gmra.mrb[0].mxu0 %v8516
        %v8740 = vpop.f32.mrb[0].mxu0
        %v8741 = vadd.f32 %v8671, %v8740
        %v8742 = vpop.f32.mrb[0].mxu0
        %8743 = vdwg.mxu0
        %v8744 = vld [vmem:[%s1536] sm:$0x1]
        %v8746 = vlaneseq
        %v8747 = vshrl.u32 %v8746, 7
        %v8748 = vsub.s32 0, %v8747
        %v8749 = vrot.slane %v8744, %v8748
        %v8751 = vadd.f32 %v8741, %v8749
        %v8752 = vld [vmem:[%s1545] sm:$0xff]
        %v8753 = vld [vmem:[%s1545 + $0x8] sm:$0xff]
        %v8754 = vld [vmem:[%s1545 + $0x10] sm:$0xff]
        %v8755 = vld [vmem:[%s1545 + $0x18] sm:$0xff]
        %v8756 = vld [vmem:[%s1550] sm:$0xff]
        %v8757 = vld [vmem:[%s1550 + $0x8] sm:$0xff]
        %v8758 = vld [vmem:[%s1550 + $0x10] sm:$0xff]
        %v8759 = vld [vmem:[%s1550 + $0x18] sm:$0xff]
        %8760 = vmatprep.subr.mxu0 0.0
        %8761 = vmatpush1.msra.mxu0 %v8756
        %8762 = vmatprep.subr.mxu0 0.0
        %8763 = vmatpush1.msra.mxu0 %v8757
        %8764 = vmatprep.subr.mxu0 0.0
        %8765 = vmatpush1.msra.mxu0 %v8758
        %8766 = vmatprep.subr.mxu0 0.0
        %8767 = vmatpush1.msra.mxu0 %v8759
        %8768 = vmatprep.subr.mxu0 0.0
        %8769 = vmatpush1.msra.mxu0 0.0
        %8770 = vmatprep.subr.mxu0 0.0
        %8771 = vmatpush1.msra.mxu0 0.0
        %8772 = vmatprep.subr.mxu0 0.0
        %8773 = vmatpush1.msra.mxu0 0.0
        %8774 = vmatprep.subr.mxu0 0.0
        %8775 = vmatpush1.msra.mxu0 0.0
        %8776 = vmatprep.subr.mxu0 0.0
        %8777 = vmatpush1.msra.mxu0 0.0
        %8778 = vmatprep.subr.mxu0 0.0
        %8779 = vmatpush1.msra.mxu0 0.0
        %8780 = vmatprep.subr.mxu0 0.0
        %8781 = vmatpush1.msra.mxu0 0.0
        %8782 = vmatprep.subr.mxu0 0.0
        %8783 = vmatpush1.msra.mxu0 0.0
        %8784 = vmatprep.subr.mxu0 0.0
        %8785 = vmatpush1.msra.mxu0 0.0
        %8786 = vmatprep.subr.mxu0 0.0
        %8787 = vmatpush1.msra.mxu0 0.0
        %8788 = vmatprep.subr.mxu0 0.0
        %8789 = vmatpush1.msra.mxu0 0.0
        %8790 = vmatprep.subr.mxu0 0.0
        %8791 = vmatpush1.msra.mxu0 0.0
        %8792 = vmatprep.subr.mxu0 0.0
        %8793 = vmatpush1.msra.mxu0 0.0
        %8794 = vmatprep.subr.mxu0 0.0
        %8795 = vmatpush1.msra.mxu0 0.0
        %8796 = vmatprep.subr.mxu0 0.0
        %8797 = vmatpush1.msra.mxu0 0.0
        %8798 = vmatprep.subr.mxu0 0.0
        %8799 = vmatpush1.msra.mxu0 0.0
        %8800 = vmatprep.subr.mxu0 0.0
        %8801 = vmatpush1.msra.mxu0 0.0
        %8802 = vmatprep.subr.mxu0 0.0
        %8803 = vmatpush1.msra.mxu0 0.0
        %8804 = vmatprep.subr.mxu0 0.0
        %8805 = vmatpush1.msra.mxu0 0.0
        %8806 = vmatprep.subr.mxu0 0.0
        %8807 = vmatpush1.msra.mxu0 0.0
        %8808 = vmatprep.subr.mxu0 0.0
        %8809 = vmatpush1.msra.mxu0 0.0
        %8810 = vmatprep.subr.mxu0 0.0
        %8811 = vmatpush1.msra.mxu0 0.0
        %8812 = vmatprep.subr.mxu0 0.0
        %8813 = vmatpush1.msra.mxu0 0.0
        %8814 = vmatprep.subr.mxu0 0.0
        %8815 = vmatpush1.msra.mxu0 0.0
        %8816 = vmatprep.subr.mxu0 0.0
        %8817 = vmatpush1.msra.mxu0 0.0
        %8818 = vmatprep.subr.mxu0 0.0
        %8819 = vmatpush1.msra.mxu0 0.0
        %8820 = vmatprep.subr.mxu0 0.0
        %8821 = vmatpush1.msra.mxu0 0.0
        %8822 = vmatprep.subr.mxu0 0.0
        %8823 = vmatpush1.msra.mxu0 0.0
        %8824 = vmatprep.mubr.f32.mxu0 0.0
        %8825 = vmatmul.mubr.f32.gmra.mrb[0].mxu0 %v8443
        %v8826 = vpop.f32.mrb[0].mxu0
        %v8827 = vadd.f32 0.0, %v8826
        %v8828 = vpop.f32.mrb[0].mxu0
        %8829 = vdwg.mxu0
        %8830 = vmatprep.subr.mxu0 0.0
        %8831 = vmatpush1.msra.mxu0 %v8752
        %8832 = vmatprep.subr.mxu0 0.0
        %8833 = vmatpush1.msra.mxu0 %v8753
        %8834 = vmatprep.subr.mxu0 0.0
        %8835 = vmatpush1.msra.mxu0 %v8754
        %8836 = vmatprep.subr.mxu0 0.0
        %8837 = vmatpush1.msra.mxu0 %v8755
        %8838 = vmatprep.subr.mxu0 0.0
        %8839 = vmatpush1.msra.mxu0 0.0
        %8840 = vmatprep.subr.mxu0 0.0
        %8841 = vmatpush1.msra.mxu0 0.0
        %8842 = vmatprep.subr.mxu0 0.0
        %8843 = vmatpush1.msra.mxu0 0.0
        %8844 = vmatprep.subr.mxu0 0.0
        %8845 = vmatpush1.msra.mxu0 0.0
        %8846 = vmatprep.subr.mxu0 0.0
        %8847 = vmatpush1.msra.mxu0 0.0
        %8848 = vmatprep.subr.mxu0 0.0
        %8849 = vmatpush1.msra.mxu0 0.0
        %8850 = vmatprep.subr.mxu0 0.0
        %8851 = vmatpush1.msra.mxu0 0.0
        %8852 = vmatprep.subr.mxu0 0.0
        %8853 = vmatpush1.msra.mxu0 0.0
        %8854 = vmatprep.subr.mxu0 0.0
        %8855 = vmatpush1.msra.mxu0 0.0
        %8856 = vmatprep.subr.mxu0 0.0
        %8857 = vmatpush1.msra.mxu0 0.0
        %8858 = vmatprep.subr.mxu0 0.0
        %8859 = vmatpush1.msra.mxu0 0.0
        %8860 = vmatprep.subr.mxu0 0.0
        %8861 = vmatpush1.msra.mxu0 0.0
        %8862 = vmatprep.subr.mxu0 0.0
        %8863 = vmatpush1.msra.mxu0 0.0
        %8864 = vmatprep.subr.mxu0 0.0
        %8865 = vmatpush1.msra.mxu0 0.0
        %8866 = vmatprep.subr.mxu0 0.0
        %8867 = vmatpush1.msra.mxu0 0.0
        %8868 = vmatprep.subr.mxu0 0.0
        %8869 = vmatpush1.msra.mxu0 0.0
        %8870 = vmatprep.subr.mxu0 0.0
        %8871 = vmatpush1.msra.mxu0 0.0
        %8872 = vmatprep.subr.mxu0 0.0
        %8873 = vmatpush1.msra.mxu0 0.0
        %8874 = vmatprep.subr.mxu0 0.0
        %8875 = vmatpush1.msra.mxu0 0.0
        %8876 = vmatprep.subr.mxu0 0.0
        %8877 = vmatpush1.msra.mxu0 0.0
        %8878 = vmatprep.subr.mxu0 0.0
        %8879 = vmatpush1.msra.mxu0 0.0
        %8880 = vmatprep.subr.mxu0 0.0
        %8881 = vmatpush1.msra.mxu0 0.0
        %8882 = vmatprep.subr.mxu0 0.0
        %8883 = vmatpush1.msra.mxu0 0.0
        %8884 = vmatprep.subr.mxu0 0.0
        %8885 = vmatpush1.msra.mxu0 0.0
        %8886 = vmatprep.subr.mxu0 0.0
        %8887 = vmatpush1.msra.mxu0 0.0
        %8888 = vmatprep.subr.mxu0 0.0
        %8889 = vmatpush1.msra.mxu0 0.0
        %8890 = vmatprep.subr.mxu0 0.0
        %8891 = vmatpush1.msra.mxu0 0.0
        %8892 = vmatprep.subr.mxu0 0.0
        %8893 = vmatpush1.msra.mxu0 0.0
        %8894 = vmatprep.mubr.f32.mxu0 0.0
        %8895 = vmatmul.mubr.f32.gmra.mrb[0].mxu0 %v8516
        %v8896 = vpop.f32.mrb[0].mxu0
        %v8897 = vadd.f32 %v8827, %v8896
        %v8898 = vpop.f32.mrb[0].mxu0
        %8899 = vdwg.mxu0
        %v8900 = vld [vmem:[%s1695] sm:$0x1]
        %v8902 = vlaneseq
        %v8903 = vshrl.u32 %v8902, 7
        %v8904 = vsub.s32 0, %v8903
        %v8905 = vrot.slane %v8900, %v8904
        %v8907 = vadd.f32 %v8897, %v8905
        %v8908 = vld [vmem:[%s1704] sm:$0xff]
        %v8909 = vld [vmem:[%s1704 + $0x8] sm:$0xff]
        %v8910 = vld [vmem:[%s1704 + $0x10] sm:$0xff]
        %v8911 = vld [vmem:[%s1704 + $0x18] sm:$0xff]
        %v8912 = vld [vmem:[%s1709] sm:$0xff]
        %v8913 = vld [vmem:[%s1709 + $0x8] sm:$0xff]
        %v8914 = vld [vmem:[%s1709 + $0x10] sm:$0xff]
        %v8915 = vld [vmem:[%s1709 + $0x18] sm:$0xff]
        %8916 = vmatprep.subr.mxu0 0.0
        %8917 = vmatpush1.msra.mxu0 %v8912
        %8918 = vmatprep.subr.mxu0 0.0
        %8919 = vmatpush1.msra.mxu0 %v8913
        %8920 = vmatprep.subr.mxu0 0.0
        %8921 = vmatpush1.msra.mxu0 %v8914
        %8922 = vmatprep.subr.mxu0 0.0
        %8923 = vmatpush1.msra.mxu0 %v8915
        %8924 = vmatprep.subr.mxu0 0.0
        %8925 = vmatpush1.msra.mxu0 0.0
        %8926 = vmatprep.subr.mxu0 0.0
        %8927 = vmatpush1.msra.mxu0 0.0
        %8928 = vmatprep.subr.mxu0 0.0
        %8929 = vmatpush1.msra.mxu0 0.0
        %8930 = vmatprep.subr.mxu0 0.0
        %8931 = vmatpush1.msra.mxu0 0.0
        %8932 = vmatprep.subr.mxu0 0.0
        %8933 = vmatpush1.msra.mxu0 0.0
        %8934 = vmatprep.subr.mxu0 0.0
        %8935 = vmatpush1.msra.mxu0 0.0
        %8936 = vmatprep.subr.mxu0 0.0
        %8937 = vmatpush1.msra.mxu0 0.0
        %8938 = vmatprep.subr.mxu0 0.0
        %8939 = vmatpush1.msra.mxu0 0.0
        %8940 = vmatprep.subr.mxu0 0.0
        %8941 = vmatpush1.msra.mxu0 0.0
        %8942 = vmatprep.subr.mxu0 0.0
        %8943 = vmatpush1.msra.mxu0 0.0
        %8944 = vmatprep.subr.mxu0 0.0
        %8945 = vmatpush1.msra.mxu0 0.0
        %8946 = vmatprep.subr.mxu0 0.0
        %8947 = vmatpush1.msra.mxu0 0.0
        %8948 = vmatprep.subr.mxu0 0.0
        %8949 = vmatpush1.msra.mxu0 0.0
        %8950 = vmatprep.subr.mxu0 0.0
        %8951 = vmatpush1.msra.mxu0 0.0
        %8952 = vmatprep.subr.mxu0 0.0
        %8953 = vmatpush1.msra.mxu0 0.0
        %8954 = vmatprep.subr.mxu0 0.0
        %8955 = vmatpush1.msra.mxu0 0.0
        %8956 = vmatprep.subr.mxu0 0.0
        %8957 = vmatpush1.msra.mxu0 0.0
        %8958 = vmatprep.subr.mxu0 0.0
        %8959 = vmatpush1.msra.mxu0 0.0
        %8960 = vmatprep.subr.mxu0 0.0
        %8961 = vmatpush1.msra.mxu0 0.0
        %8962 = vmatprep.subr.mxu0 0.0
        %8963 = vmatpush1.msra.mxu0 0.0
        %8964 = vmatprep.subr.mxu0 0.0
        %8965 = vmatpush1.msra.mxu0 0.0
        %8966 = vmatprep.subr.mxu0 0.0
        %8967 = vmatpush1.msra.mxu0 0.0
        %8968 = vmatprep.subr.mxu0 0.0
        %8969 = vmatpush1.msra.mxu0 0.0
        %8970 = vmatprep.subr.mxu0 0.0
        %8971 = vmatpush1.msra.mxu0 0.0
        %8972 = vmatprep.subr.mxu0 0.0
        %8973 = vmatpush1.msra.mxu0 0.0
        %8974 = vmatprep.subr.mxu0 0.0
        %8975 = vmatpush1.msra.mxu0 0.0
        %8976 = vmatprep.subr.mxu0 0.0
        %8977 = vmatpush1.msra.mxu0 0.0
        %8978 = vmatprep.subr.mxu0 0.0
        %8979 = vmatpush1.msra.mxu0 0.0
        %8980 = vmatprep.mubr.f32.mxu0 0.0
        %8981 = vmatmul.mubr.f32.gmra.mrb[0].mxu0 %v8443
        %v8982 = vpop.f32.mrb[0].mxu0
        %v8983 = vadd.f32 0.0, %v8982
        %v8984 = vpop.f32.mrb[0].mxu0
        %8985 = vdwg.mxu0
        %8986 = vmatprep.subr.mxu0 0.0
        %8987 = vmatpush1.msra.mxu0 %v8908
        %8988 = vmatprep.subr.mxu0 0.0
        %8989 = vmatpush1.msra.mxu0 %v8909
        %8990 = vmatprep.subr.mxu0 0.0
        %8991 = vmatpush1.msra.mxu0 %v8910
        %8992 = vmatprep.subr.mxu0 0.0
        %8993 = vmatpush1.msra.mxu0 %v8911
        %8994 = vmatprep.subr.mxu0 0.0
        %8995 = vmatpush1.msra.mxu0 0.0
        %8996 = vmatprep.subr.mxu0 0.0
        %8997 = vmatpush1.msra.mxu0 0.0
        %8998 = vmatprep.subr.mxu0 0.0
        %8999 = vmatpush1.msra.mxu0 0.0
        %9000 = vmatprep.subr.mxu0 0.0
        %9001 = vmatpush1.msra.mxu0 0.0
        %9002 = vmatprep.subr.mxu0 0.0
        %9003 = vmatpush1.msra.mxu0 0.0
        %9004 = vmatprep.subr.mxu0 0.0
        %9005 = vmatpush1.msra.mxu0 0.0
        %9006 = vmatprep.subr.mxu0 0.0
        %9007 = vmatpush1.msra.mxu0 0.0
        %9008 = vmatprep.subr.mxu0 0.0
        %9009 = vmatpush1.msra.mxu0 0.0
        %9010 = vmatprep.subr.mxu0 0.0
        %9011 = vmatpush1.msra.mxu0 0.0
        %9012 = vmatprep.subr.mxu0 0.0
        %9013 = vmatpush1.msra.mxu0 0.0
        %9014 = vmatprep.subr.mxu0 0.0
        %9015 = vmatpush1.msra.mxu0 0.0
        %9016 = vmatprep.subr.mxu0 0.0
        %9017 = vmatpush1.msra.mxu0 0.0
        %9018 = vmatprep.subr.mxu0 0.0
        %9019 = vmatpush1.msra.mxu0 0.0
        %9020 = vmatprep.subr.mxu0 0.0
        %9021 = vmatpush1.msra.mxu0 0.0
        %9022 = vmatprep.subr.mxu0 0.0
        %9023 = vmatpush1.msra.mxu0 0.0
        %9024 = vmatprep.subr.mxu0 0.0
        %9025 = vmatpush1.msra.mxu0 0.0
        %9026 = vmatprep.subr.mxu0 0.0
        %9027 = vmatpush1.msra.mxu0 0.0
        %9028 = vmatprep.subr.mxu0 0.0
        %9029 = vmatpush1.msra.mxu0 0.0
        %9030 = vmatprep.subr.mxu0 0.0
        %9031 = vmatpush1.msra.mxu0 0.0
        %9032 = vmatprep.subr.mxu0 0.0
        %9033 = vmatpush1.msra.mxu0 0.0
        %9034 = vmatprep.subr.mxu0 0.0
        %9035 = vmatpush1.msra.mxu0 0.0
        %9036 = vmatprep.subr.mxu0 0.0
        %9037 = vmatpush1.msra.mxu0 0.0
        %9038 = vmatprep.subr.mxu0 0.0
        %9039 = vmatpush1.msra.mxu0 0.0
        %9040 = vmatprep.subr.mxu0 0.0
        %9041 = vmatpush1.msra.mxu0 0.0
        %9042 = vmatprep.subr.mxu0 0.0
        %9043 = vmatpush1.msra.mxu0 0.0
        %9044 = vmatprep.subr.mxu0 0.0
        %9045 = vmatpush1.msra.mxu0 0.0
        %9046 = vmatprep.subr.mxu0 0.0
        %9047 = vmatpush1.msra.mxu0 0.0
        %9048 = vmatprep.subr.mxu0 0.0
        %9049 = vmatpush1.msra.mxu0 0.0
        %9050 = vmatprep.mubr.f32.mxu0 0.0
        %9051 = vmatmul.mubr.f32.gmra.mrb[0].mxu0 %v8516
        %v9052 = vpop.f32.mrb[0].mxu0
        %v9053 = vadd.f32 %v8983, %v9052
        %v9054 = vpop.f32.mrb[0].mxu0
        %9055 = vdwg.mxu0
        %v9056 = vld [vmem:[%s1854] sm:$0x1]
        %v9058 = vlaneseq
        %v9059 = vshrl.u32 %v9058, 7
        %v9060 = vsub.s32 0, %v9059
        %v9061 = vrot.slane %v9056, %v9060
        %v9063 = vadd.f32 %v9053, %v9061
        %v9064 = vxor.u32 %v8595, 2147483648
        %v9065 = vmul.f32 %v9064, 1.442695
        %v9066 = vpow.pop %v9065
        %v9067 = vadd.f32 %v9066, 1.0
        %v9068 = vrcp.pop %v9067
        %v9069 = vmul.f32 1.0, %v9068
        %v9070 = vxor.u32 %v8751, 2147483648
        %v9071 = vmul.f32 %v9070, 1.442695
        %v9072 = vpow.pop %v9071
        %v9073 = vadd.f32 %v9072, 1.0
        %v9074 = vrcp.pop %v9073
        %v9075 = vmul.f32 1.0, %v9074
        %v9076 = vtanh.pop %v8907
        %v9077 = vxor.u32 %v9063, 2147483648
        %v9078 = vmul.f32 %v9077, 1.442695
        %v9079 = vpow.pop %v9078
        %v9080 = vadd.f32 %v9079, 1.0
        %v9081 = vrcp.pop %v9080
        %v9082 = vmul.f32 1.0, %v9081
        %v9083 = vmul.f32 %v9075, %v8433
        %v9084 = vmul.f32 %v9069, %v9076
        %v9085 = vadd.f32 %v9083, %v9084
        %v9086 = vtanh.pop %v9085
        %v9087 = vmul.f32 %v9082, %v9086
        %9088 = vst.msk [vmem:[%s465] sm:$0x7] %vm1887, %v9087
        %9089 = vst.msk [vmem:[%s1891] sm:$0x7] %vm1887, %v9085
        %v9091 = vsel %vm494, %v9087, 0
        %9093 = vmatprep.subr.mxu0 0.0
        %9094 = vmatpush1.msra.mxu0 %v453
        %9095 = vmatprep.subr.mxu0 0.0
        %9096 = vmatpush1.msra.mxu0 %v454
        %9097 = vmatprep.subr.mxu0 0.0
        %9098 = vmatpush1.msra.mxu0 %v455
        %9099 = vmatprep.subr.mxu0 0.0
        %9100 = vmatpush1.msra.mxu0 %v456
        %9101 = vmatprep.subr.mxu0 0.0
        %9102 = vmatpush1.msra.mxu0 0.0
        %9103 = vmatprep.subr.mxu0 0.0
        %9104 = vmatpush1.msra.mxu0 0.0
        %9105 = vmatprep.subr.mxu0 0.0
        %9106 = vmatpush1.msra.mxu0 0.0
        %9107 = vmatprep.subr.mxu0 0.0
        %9108 = vmatpush1.msra.mxu0 0.0
        %9109 = vmatprep.subr.mxu0 0.0
        %9110 = vmatpush1.msra.mxu0 0.0
        %9111 = vmatprep.subr.mxu0 0.0
        %9112 = vmatpush1.msra.mxu0 0.0
        %9113 = vmatprep.subr.mxu0 0.0
        %9114 = vmatpush1.msra.mxu0 0.0
        %9115 = vmatprep.subr.mxu0 0.0
        %9116 = vmatpush1.msra.mxu0 0.0
        %9117 = vmatprep.subr.mxu0 0.0
        %9118 = vmatpush1.msra.mxu0 0.0
        %9119 = vmatprep.subr.mxu0 0.0
        %9120 = vmatpush1.msra.mxu0 0.0
        %9121 = vmatprep.subr.mxu0 0.0
        %9122 = vmatpush1.msra.mxu0 0.0
        %9123 = vmatprep.subr.mxu0 0.0
        %9124 = vmatpush1.msra.mxu0 0.0
        %9125 = vmatprep.subr.mxu0 0.0
        %9126 = vmatpush1.msra.mxu0 0.0
        %9127 = vmatprep.subr.mxu0 0.0
        %9128 = vmatpush1.msra.mxu0 0.0
        %9129 = vmatprep.subr.mxu0 0.0
        %9130 = vmatpush1.msra.mxu0 0.0
        %9131 = vmatprep.subr.mxu0 0.0
        %9132 = vmatpush1.msra.mxu0 0.0
        %9133 = vmatprep.subr.mxu0 0.0
        %9134 = vmatpush1.msra.mxu0 0.0
        %9135 = vmatprep.subr.mxu0 0.0
        %9136 = vmatpush1.msra.mxu0 0.0
        %9137 = vmatprep.subr.mxu0 0.0
        %9138 = vmatpush1.msra.mxu0 0.0
        %9139 = vmatprep.subr.mxu0 0.0
        %9140 = vmatpush1.msra.mxu0 0.0
        %9141 = vmatprep.subr.mxu0 0.0
        %9142 = vmatpush1.msra.mxu0 0.0
        %9143 = vmatprep.subr.mxu0 0.0
        %9144 = vmatpush1.msra.mxu0 0.0
        %9145 = vmatprep.subr.mxu0 0.0
        %9146 = vmatpush1.msra.mxu0 0.0
        %9147 = vmatprep.subr.mxu0 0.0
        %9148 = vmatpush1.msra.mxu0 0.0
        %9149 = vmatprep.subr.mxu0 0.0
        %9150 = vmatpush1.msra.mxu0 0.0
        %9151 = vmatprep.subr.mxu0 0.0
        %9152 = vmatpush1.msra.mxu0 0.0
        %9153 = vmatprep.subr.mxu0 0.0
        %9154 = vmatpush1.msra.mxu0 0.0
        %9155 = vmatprep.subr.mxu0 0.0
        %9156 = vmatpush1.msra.mxu0 0.0
        %9157 = vmatprep.mubr.f32.mxu0 0.0
        %9158 = vmatmul.mubr.f32.gmra.mrb[0].mxu0 %v9091
        %v9159 = vpop.f32.mrb[0].mxu0
        %v9160 = vadd.f32 %v2553, %v9159
        %v9161 = vpop.f32.mrb[0].mxu0
        %9162 = vdwg.mxu0
        %v9163 = vsel %vm2628, %v9160, -inf
        %9164 = vmax.xlane.f32.xlu0 %v9163
        %v9165 = vpop.xlane.xlu0 %9164
        %v9166 = vsub.f32 %v9160, %v9165
        %v9167 = vmul.f32 %v9166, 1.442695
        %v9168 = vpow.pop %v9167
        %v9169 = vsel %vm2628, %v9168, 0.0
        %9170 = vadd.xlane.f32.xlu0 %v9169
        %v9171 = vpop.xlane.xlu0 %9170
        %v9172 = vrcp.pop %v9171
        %v9173 = vmul.f32 %v9168, %v9172
        %9175 = vrot.lane.b32.xlu0 %v9173, 8
        %v9176 = vpop.permute.xlu0 %9175
        %v9178 = vlaneseq
        %v9179 = vshrl.u32 %v9178, 7
        %v9180 = vsub.s32 %v2644, %v9179
        %v9181 = vrot.slane %v7484, %v9180
        %v9182 = vlaneseq
        %v9183 = vshrl.u32 %v9182, 7
        %v9184 = vsub.s32 %v2649, %v9183
        %v9185 = vrot.slane %v7487, %v9184
        %v9186 = vsel %vm2654, %v9185, %v9181
        %v9187 = vlaneseq
        %v9188 = vshrl.u32 %v9187, 7
        %v9189 = vsub.s32 %v2644, %v9188
        %v9190 = vrot.slane %v7490, %v9189
        %v9191 = vlaneseq
        %v9192 = vshrl.u32 %v9191, 7
        %v9193 = vsub.s32 %v2649, %v9192
        %v9194 = vrot.slane %v7493, %v9193
        %v9195 = vsel %vm2654, %v9194, %v9190
        %v9196 = vlaneseq
        %v9197 = vshrl.u32 %v9196, 7
        %v9198 = vsub.s32 %v2644, %v9197
        %v9199 = vrot.slane %v7496, %v9198
        %v9200 = vlaneseq
        %v9201 = vshrl.u32 %v9200, 7
        %v9202 = vsub.s32 %v2649, %v9201
        %v9203 = vrot.slane %v7499, %v9202
        %v9204 = vsel %vm2654, %v9203, %v9199
        %v9205 = vsel %vm752, %v9195, %v9186
        %v9206 = vsel %vm754, %v9204, %v9205
        %v9208 = vsel %vm2677, %v9160, %v9176
        %v9209 = vsel %vm987, %v9208, %v9206
        %v9210 = vsel %vm494, %v9209, 0.0
        %s9211 = scalar_lea.vmem %s432, 12
        %9212 = vst [vmem:[%s9211] sm:$0x7] %v9210
        %s9213 = smul.u32 4, %s25
        %p9214 = scmp.lt.s32.totalorder %s9213, 7
        %s9215 = scalar_select %p9214, %s9213, 7
        %s9216 = smul.addr %s9215, 4
        %s9217 = scalar_lea.vmem %s10, %s9216
        // Predicated region
        $region77: #{tpu_custom_call.1} parent=59 // pred_check
          %p9218 = pneg %p263
        $region78: #{tpu_custom_call.1} parent=59 // pred_check_branch
          %9220 = sbr.rel (%p9218) target = $region80
        $region79: #{tpu_custom_call.1} parent=59 // pred_region
          %s9221 = smul.u32 4, %s25
        $region80: #{tpu_custom_call.1} parent=59 // pred_fallthru
          _
      $region60: #{tpu_custom_call.1} parent=5 // pred_fallthru
        _
      %p9222 = scmp.le.s32.totalorder 2, %s20
      // Predicated region
      $region81: #{tpu_custom_call.1} parent=5 // pred_check
        %p9223 = pneg %p9222
      $region82: #{tpu_custom_call.1} parent=5 // pred_check_branch
        %9225 = sbr.rel (%p9223) target = $region84
      $region83: #{tpu_custom_call.1} parent=5 // pred_region
        %s9226 = ssub.s32 %s20, 2
        // Predicated region
        $region85: #{tpu_custom_call.1} parent=83 // pred_check
          %p9227 = pneg %p269
        $region86: #{tpu_custom_call.1} parent=83 // pred_check_branch
          %9229 = sbr.rel (%p9227) target = $region88
        $region87: #{tpu_custom_call.1} parent=83 // pred_region
          %s9230 = smul.u32 4, %s26
          %p9231 = scmp.lt.s32.totalorder %s9230, 7
          %s9232 = scalar_select %p9231, %s9230, 7
          %s9233 = smul.addr %s9232, 4
          %s9234 = scalar_lea.vmem %s10, %s9233
        $region88: #{tpu_custom_call.1} parent=83 // pred_fallthru
          _
      $region84: #{tpu_custom_call.1} parent=5 // pred_fallthru
        _
    $region6: #{tpu_custom_call.1} parent=1 // loop_footer
      %s24 = sadd.s32 1, %s20
    $region7: #{tpu_custom_call.1} parent=1 // loop_footer_branch
      %19 = sbr.rel target = $region3
    $region8: #{tpu_custom_call.1} parent=1 // loop_exit
      _
    %9235 = vsyncpa [#allocation5], 1
    %s9236 = scalar_lea.sflag [#allocation5], 1
    %9237 = vsyncpa %s9236, 1
    %9238 = vsyncpa [#allocation7], 1

</llo_original>
